<compile_context>
chip_gen: v6e
topology: v6e:2x2x1
jax: 0.10.0
libtpu: 0.0.40
codegen_flags: <defaults>
</compile_context>

<pallas_src>
import numpy as np

import jax
import jax.numpy as jnp
from jax.experimental import pallas as pl
from jax.experimental.pallas import tpu as pltpu


# Padded ("lane friendly") channel / feature widths.
C1P = 32    # conv1 out channels 10 -> 32
C2P = 32    # conv2 out channels 20 -> 32
F1P = 64    # fc1 out features 50 -> 64


# ----------------------------- Pallas kernel -------------------------------

def _net_kernel(xq_ref, w1_ref, b1_ref, w2_ref, b2_ref,
                wfc1_ref, bfc1_ref, wfc2_ref, bfc2_ref, out_ref):
    """Whole Net forward for one image (one grid step)."""
    f32 = jnp.float32

    # ---- conv1: 5 Toeplitz matmuls per output-row phase m (ho = 4u + m) ----
    # xq_ref[0, p, r, w*3+c] = x[4r+p, w, c]; output columns are laid out as
    # (q, wo2, co_pad32) with wo = 2*wo2 + q, so both pooling directions become
    # elementwise max of whole blocks.
    acc = [None, None, None, None]                       # each (6, 768)
    for kh in range(5):
        wk = w1_ref[kh]                                  # (84, 768)
        for m in range(4):
            r = m + kh                                   # input row = 4u + r
            lhs = xq_ref[0, r % 4, r // 4: r // 4 + 6, :]          # (6, 84)
            t = jnp.dot(lhs.astype(wk.dtype), wk, preferred_element_type=f32)
            acc[m] = t if acc[m] is None else acc[m] + t

    # ---- maxpool(2,2) + bias + ReLU (bias & ReLU commute with max) ---------
    half1 = 12 * C1P                                     # 384
    m_even = jnp.maximum(acc[0], acc[1])                 # pooled rows t = 2u
    m_odd = jnp.maximum(acc[2], acc[3])                  # pooled rows t = 2u+1
    p_even = jnp.maximum(
        jnp.maximum(m_even[:, :half1], m_even[:, half1:]) + b1_ref[...], 0.0)
    p_odd = jnp.maximum(
        jnp.maximum(m_odd[:, :half1], m_odd[:, half1:]) + b1_ref[...], 0.0)
    # p_even/p_odd: (6, 384), columns = s*32 + channel, rows = pooled row 2u / 2u+1

    # ---- conv2: same Toeplitz trick, outputs split by output-row parity ----
    e2 = None                                            # rows ho = 2i   (4, 256)
    o2 = None                                            # rows ho = 2i+1 (4, 256)
    for kh in range(5):
        wk = w2_ref[kh]                                  # (384, 256)
        a = kh // 2
        if kh % 2 == 0:
            lhs_e = p_even[a:a + 4, :]
            lhs_o = p_odd[a:a + 4, :]
        else:
            lhs_e = p_odd[a:a + 4, :]
            lhs_o = p_even[a + 1:a + 5, :]
        te = jnp.dot(lhs_e.astype(wk.dtype), wk, preferred_element_type=f32)
        to = jnp.dot(lhs_o.astype(wk.dtype), wk, preferred_element_type=f32)
        e2 = te if e2 is None else e2 + te
        o2 = to if o2 is None else o2 + to

    # ---- maxpool(2,2) + bias (NO ReLU after conv2 in the reference module) -
    half2 = 4 * C2P                                      # 128
    m2 = jnp.maximum(e2, o2)
    feat = jnp.maximum(m2[:, :half2], m2[:, half2:]) + b2_ref[...]   # (4, 128)
    # feat[h, w*32 + c] == features[c, h, w]  (c < 20; padded channels are 0)
    # TODO(synk): Dropout2d / Dropout are eval-mode identities here.

    # ---- classifier: Linear(320,50) -> ReLU -> Linear(50,10) -> LogSoftmax -
    h = None
    for r in range(4):                                   # contract the 4 rows
        wk = wfc1_ref[r]                                 # (128, 64)
        t = jnp.dot(feat[r:r + 1, :].astype(wk.dtype), wk,
                    preferred_element_type=f32)
        h = t if h is None else h + t
    h = jnp.maximum(h + bfc1_ref[...], 0.0)              # (1, 64)
    logits = jnp.dot(h.astype(wfc2_ref.dtype), wfc2_ref[...],
                     preferred_element_type=f32) + bfc2_ref[...]     # (1, 10)
    mx = jnp.max(logits, axis=-1, keepdims=True)
    lse = mx + jnp.log(jnp.sum(jnp.exp(logits - mx), axis=-1, keepdims=True))
    out_ref[0, :, :] = (logits - lse).astype(out_ref.dtype)


# ------------------------ one-time parameter prep --------------------------

def prepare_params(params, dtype=jnp.float32):
    """Fold conv kernels / FC weights into banded, channel-padded matmul
    operands.  Done once (hoisted out of the forward hot path)."""
    w1 = np.asarray(params["conv1_w"], np.float32)       # (10, 3, 5, 5)
    b1 = np.asarray(params["conv1_b"], np.float32)
    w2 = np.asarray(params["conv2_w"], np.float32)       # (20, 10, 5, 5)
    b2 = np.asarray(params["conv2_b"], np.float32)
    f1w = np.asarray(params["fc1_w"], np.float32)        # (50, 320)
    f1b = np.asarray(params["fc1_b"], np.float32)
    f2w = np.asarray(params["fc2_w"], np.float32)        # (10, 50)
    f2b = np.asarray(params["fc2_b"], np.float32)

    # conv1 Toeplitz: W1t[kh, w*3+ci, q*384 + wo2*32 + co] = w1[co, ci, kh, w-2*wo2-q]
    w1t = np.zeros((5, 28 * 3, 2 * 12 * C1P), np.float32)
    for kh in range(5):
        for kw in range(5):
            for q in range(2):
                for wo2 in range(12):
                    w = 2 * wo2 + q + kw
                    col = q * 12 * C1P + wo2 * C1P
                    w1t[kh, w * 3:w * 3 + 3, col:col + 10] = w1[:, :, kh, kw].T
    b1r = np.zeros((1, 12 * C1P), np.float32)
    for wo2 in range(12):
        b1r[0, wo2 * C1P: wo2 * C1P + 10] = b1

    # conv2 Toeplitz: W2t[kh, s*32+ci, q*128 + wo2*32 + co] = w2[co, ci, kh, s-2*wo2-q]
    w2t = np.zeros((5, 12 * C1P, 2 * 4 * C2P), np.float32)
    for kh in range(5):
        for kw in range(5):
            for q in range(2):
                for wo2 in range(4):
                    s = 2 * wo2 + q + kw
                    col = q * 4 * C2P + wo2 * C2P
                    w2t[kh, s * C1P: s * C1P + 10, col: col + 20] = w2[:, :, kh, kw].T
    b2r = np.zeros((1, 4 * C2P), np.float32)
    for wo2 in range(4):
        b2r[0, wo2 * C2P: wo2 * C2P + 20] = b2

    # fc1 rearranged to match the kernel's (h, w*32+c) feature layout
    # (this also performs PyTorch's NCHW .view(B, -1) ordering, c*16 + h*4 + w).
    wfc1 = np.zeros((4, 4 * C2P, F1P), np.float32)
    for h in range(4):
        for w in range(4):
            cols = np.arange(20) * 16 + h * 4 + w
            wfc1[h, w * C2P: w * C2P + 20, :50] = f1w[:, cols].T
    bfc1 = np.zeros((1, F1P), np.float32)
    bfc1[0, :50] = f1b

    wfc2 = np.zeros((F1P, 10), np.float32)
    wfc2[:50, :] = f2w.T
    bfc2 = f2b.reshape(1, 10)

    return {
        "w1t": jnp.asarray(w1t, dtype), "b1r": jnp.asarray(b1r),
        "w2t": jnp.asarray(w2t, dtype), "b2r": jnp.asarray(b2r),
        "wfc1": jnp.asarray(wfc1, dtype), "bfc1": jnp.asarray(bfc1),
        "wfc2": jnp.asarray(wfc2, dtype), "bfc2": jnp.asarray(bfc2),
    }


# ------------------------------- forward -----------------------------------

@jax.jit
def net_forward(prep, x_nchw):
    """x_nchw: (B, 3, 28, 28) float32 (PyTorch layout) -> (B, 10) log-probs."""
    B = x_nchw.shape[0]
    x = jnp.transpose(x_nchw.astype(jnp.float32), (0, 2, 3, 1))      # NHWC
    # Split rows by (row mod 4) so the kernel only needs unit-stride row slices:
    # xq[b, p, r, w*3+c] = x[b, 4r+p, w, c]
    xq = x.reshape(B, 7, 4, 28 * 3).transpose(0, 2, 1, 3)            # (B, 4, 7, 84)
    xq = xq.astype(prep["w1t"].dtype)

    out = pl.pallas_call(
        _net_kernel,
        grid=(B,),
        in_specs=[
            pl.BlockSpec((1, 4, 7, 84), lambda b: (b, 0, 0, 0)),
            pl.BlockSpec((5, 84, 2 * 12 * C1P), lambda b: (0, 0, 0)),
            pl.BlockSpec((1, 12 * C1P), lambda b: (0, 0)),
            pl.BlockSpec((5, 12 * C1P, 2 * 4 * C2P), lambda b: (0, 0, 0)),
            pl.BlockSpec((1, 4 * C2P), lambda b: (0, 0)),
            pl.BlockSpec((4, 4 * C2P, F1P), lambda b: (0, 0, 0)),
            pl.BlockSpec((1, F1P), lambda b: (0, 0)),
            pl.BlockSpec((F1P, 10), lambda b: (0, 0)),
            pl.BlockSpec((1, 10), lambda b: (0, 0)),
        ],
        out_specs=pl.BlockSpec((1, 1, 10), lambda b: (b, 0, 0)),
        out_shape=jax.ShapeDtypeStruct((B, 1, 10), jnp.float32),
        compiler_params=pltpu.CompilerParams(
            dimension_semantics=("parallel",)),
    )(xq, prep["w1t"], prep["b1r"], prep["w2t"], prep["b2r"],
      prep["wfc1"], prep["bfc1"], prep["wfc2"], prep["bfc2"])
    return out[:, 0, :]


# --------------------------- init & pure-JAX reference ----------------------

def init_params(key):
    ks = jax.random.split(key, 8)

    def uni(k, shape, fan_in):
        bound = 1.0 / jnp.sqrt(fan_in)
        return jax.random.uniform(k, shape, jnp.float32, -bound, bound)

    return {
        "conv1_w": uni(ks[0], (10, 3, 5, 5), 3 * 5 * 5),
        "conv1_b": uni(ks[1], (10,), 3 * 5 * 5),
        "conv2_w": uni(ks[2], (20, 10, 5, 5), 10 * 5 * 5),
        "conv2_b": uni(ks[3], (20,), 10 * 5 * 5),
        "fc1_w": uni(ks[4], (50, 320), 320),
        "fc1_b": uni(ks[5], (50,), 320),
        "fc2_w": uni(ks[6], (10, 50), 50),
        "fc2_b": uni(ks[7], (10,), 50),
    }


def _reference_forward(params, x):
    hp = jax.lax.Precision.HIGHEST
    h = jax.lax.conv_general_dilated(
        x, params["conv1_w"], window_strides=(1, 1), padding="VALID",
        dimension_numbers=("NCHW", "OIHW", "NCHW"), precision=hp)
    h = h + params["conv1_b"][None, :, None, None]
    h = jax.lax.reduce_window(h, -jnp.inf, jax.lax.max,
                              (1, 1, 2, 2), (1, 1, 2, 2), "VALID")
    h = jnp.maximum(h, 0.0)
    h = jax.lax.conv_general_dilated(
        h, params["conv2_w"], window_strides=(1, 1), padding="VALID",
        dimension_numbers=("NCHW", "OIHW", "NCHW"), precision=hp)
    h = h + params["conv2_b"][None, :, None, None]
    h = jax.lax.reduce_window(h, -jnp.inf, jax.lax.max,
                              (1, 1, 2, 2), (1, 1, 2, 2), "VALID")
    feat = h.reshape(x.shape[0], -1)
    z = jnp.maximum(jnp.dot(feat, params["fc1_w"].T, precision=hp)
                    + params["fc1_b"], 0.0)
    logits = jnp.dot(z, params["fc2_w"].T, precision=hp) + params["fc2_b"]
    return jax.nn.log_softmax(logits, axis=-1)


if __name__ == "__main__":
    key = jax.random.PRNGKey(0)
    pkey, xkey = jax.random.split(key)

    params = init_params(pkey)
    prep = prepare_params(params)            # hoisted, one-time weight prep
    # Linear(320, 50) implies 3x28x28 inputs (PyTorch NCHW).
    x = jax.random.normal(xkey, (2, 3, 28, 28), dtype=jnp.float32)

    out = net_forward(prep, x)
    out = jax.block_until_ready(out)

    assert out.shape == (2, 10)
    # log-softmax rows must (approximately) sum to 1 in probability space
    assert jnp.allclose(jnp.sum(jnp.exp(out), axis=-1), 1.0, atol=1e-4)
    # compare against a pure-JAX reference (tolerance covers MXU f32-via-bf16
    # pass rounding at default matmul precision)
    ref = _reference_forward(params, x)
    assert jnp.allclose(out, ref, atol=3e-2, rtol=0.0), \
        float(jnp.max(jnp.abs(out - ref)))
    print("KERNEL_OK")
</pallas_src>

<mosaic_0001>
module attributes {stable_mosaic.version = 11 : i64} {
  func.func @_net_kernel(%arg0: i32, %arg1: memref<1x4x7x84xf32, #tpu.memory_space<vmem>>, %arg2: memref<5x84x768xf32, #tpu.memory_space<vmem>>, %arg3: memref<1x384xf32, #tpu.memory_space<vmem>>, %arg4: memref<5x384x256xf32, #tpu.memory_space<vmem>>, %arg5: memref<1x128xf32, #tpu.memory_space<vmem>>, %arg6: memref<4x128x64xf32, #tpu.memory_space<vmem>>, %arg7: memref<1x64xf32, #tpu.memory_space<vmem>>, %arg8: memref<64x10xf32, #tpu.memory_space<vmem>>, %arg9: memref<1x10xf32, #tpu.memory_space<vmem>>, %arg10: memref<1x1x10xf32, #tpu.memory_space<vmem>>) attributes {dimension_semantics = [#tpu.dimension_semantics<parallel>], iteration_bounds = array<i64: 2>, scalar_prefetch = 0 : i64, scratch_operands = 0 : i64, tpu.core_type = #tpu.core_type<tc>, window_params = [{transform_indices = @transform_0, window_bounds = array<i64: 1, 4, 7, 84>}, {pipeline_mode = #tpu.pipeline_mode<synchronous>, transform_indices = @transform_1, window_bounds = array<i64: 5, 84, 768>}, {pipeline_mode = #tpu.pipeline_mode<synchronous>, transform_indices = @transform_2, window_bounds = array<i64: 1, 384>}, {pipeline_mode = #tpu.pipeline_mode<synchronous>, transform_indices = @transform_3, window_bounds = array<i64: 5, 384, 256>}, {pipeline_mode = #tpu.pipeline_mode<synchronous>, transform_indices = @transform_4, window_bounds = array<i64: 1, 128>}, {pipeline_mode = #tpu.pipeline_mode<synchronous>, transform_indices = @transform_5, window_bounds = array<i64: 4, 128, 64>}, {pipeline_mode = #tpu.pipeline_mode<synchronous>, transform_indices = @transform_6, window_bounds = array<i64: 1, 64>}, {pipeline_mode = #tpu.pipeline_mode<synchronous>, transform_indices = @transform_7, window_bounds = array<i64: 64, 10>}, {pipeline_mode = #tpu.pipeline_mode<synchronous>, transform_indices = @transform_8, window_bounds = array<i64: 1, 10>}, {transform_indices = @transform_9, window_bounds = array<i64: 1, 1, 10>}]} {
    %c0 = arith.constant 0 : index
    %c0_0 = arith.constant 0 : index
    %c0_1 = arith.constant 0 : index
    %0 = vector.load %arg2[%c0, %c0_0, %c0_1] : memref<5x84x768xf32, #tpu.memory_space<vmem>>, vector<1x84x768xf32>
    %1 = vector.shape_cast %0 : vector<1x84x768xf32> to vector<84x768xf32>
    %c0_2 = arith.constant 0 : index
    %c0_3 = arith.constant 0 : index
    %c0_4 = arith.constant 0 : index
    %c0_5 = arith.constant 0 : index
    %2 = vector.load %arg1[%c0_2, %c0_3, %c0_4, %c0_5] : memref<1x4x7x84xf32, #tpu.memory_space<vmem>>, vector<1x1x6x84xf32>
    %3 = vector.shape_cast %2 : vector<1x1x6x84xf32> to vector<6x84xf32>
    %cst = arith.constant dense<0.000000e+00> : vector<6x768xf32>
    %4 = tpu.matmul %3, %1, %cst {dimension_numbers = #tpu.dot_dimension_numbers<[1], [0], [0], [1], [0, 0, 1, 1], [], []>} : vector<6x84xf32>, vector<84x768xf32>, vector<6x768xf32> -> vector<6x768xf32>
    %c0_6 = arith.constant 0 : index
    %c1 = arith.constant 1 : index
    %c0_7 = arith.constant 0 : index
    %c0_8 = arith.constant 0 : index
    %5 = vector.load %arg1[%c0_6, %c1, %c0_7, %c0_8] : memref<1x4x7x84xf32, #tpu.memory_space<vmem>>, vector<1x1x6x84xf32>
    %6 = vector.shape_cast %5 : vector<1x1x6x84xf32> to vector<6x84xf32>
    %cst_9 = arith.constant dense<0.000000e+00> : vector<6x768xf32>
    %7 = tpu.matmul %6, %1, %cst_9 {dimension_numbers = #tpu.dot_dimension_numbers<[1], [0], [0], [1], [0, 0, 1, 1], [], []>} : vector<6x84xf32>, vector<84x768xf32>, vector<6x768xf32> -> vector<6x768xf32>
    %c0_10 = arith.constant 0 : index
    %c2 = arith.constant 2 : index
    %c0_11 = arith.constant 0 : index
    %c0_12 = arith.constant 0 : index
    %8 = vector.load %arg1[%c0_10, %c2, %c0_11, %c0_12] : memref<1x4x7x84xf32, #tpu.memory_space<vmem>>, vector<1x1x6x84xf32>
    %9 = vector.shape_cast %8 : vector<1x1x6x84xf32> to vector<6x84xf32>
    %cst_13 = arith.constant dense<0.000000e+00> : vector<6x768xf32>
    %10 = tpu.matmul %9, %1, %cst_13 {dimension_numbers = #tpu.dot_dimension_numbers<[1], [0], [0], [1], [0, 0, 1, 1], [], []>} : vector<6x84xf32>, vector<84x768xf32>, vector<6x768xf32> -> vector<6x768xf32>
    %c0_14 = arith.constant 0 : index
    %c3 = arith.constant 3 : index
    %c0_15 = arith.constant 0 : index
    %c0_16 = arith.constant 0 : index
    %11 = vector.load %arg1[%c0_14, %c3, %c0_15, %c0_16] : memref<1x4x7x84xf32, #tpu.memory_space<vmem>>, vector<1x1x6x84xf32>
    %12 = vector.shape_cast %11 : vector<1x1x6x84xf32> to vector<6x84xf32>
    %cst_17 = arith.constant dense<0.000000e+00> : vector<6x768xf32>
    %13 = tpu.matmul %12, %1, %cst_17 {dimension_numbers = #tpu.dot_dimension_numbers<[1], [0], [0], [1], [0, 0, 1, 1], [], []>} : vector<6x84xf32>, vector<84x768xf32>, vector<6x768xf32> -> vector<6x768xf32>
    %c1_18 = arith.constant 1 : index
    %c0_19 = arith.constant 0 : index
    %c0_20 = arith.constant 0 : index
    %14 = vector.load %arg2[%c1_18, %c0_19, %c0_20] : memref<5x84x768xf32, #tpu.memory_space<vmem>>, vector<1x84x768xf32>
    %15 = vector.shape_cast %14 : vector<1x84x768xf32> to vector<84x768xf32>
    %c0_21 = arith.constant 0 : index
    %c1_22 = arith.constant 1 : index
    %c0_23 = arith.constant 0 : index
    %c0_24 = arith.constant 0 : index
    %16 = vector.load %arg1[%c0_21, %c1_22, %c0_23, %c0_24] : memref<1x4x7x84xf32, #tpu.memory_space<vmem>>, vector<1x1x6x84xf32>
    %17 = vector.shape_cast %16 : vector<1x1x6x84xf32> to vector<6x84xf32>
    %cst_25 = arith.constant dense<0.000000e+00> : vector<6x768xf32>
    %18 = tpu.matmul %17, %15, %cst_25 {dimension_numbers = #tpu.dot_dimension_numbers<[1], [0], [0], [1], [0, 0, 1, 1], [], []>} : vector<6x84xf32>, vector<84x768xf32>, vector<6x768xf32> -> vector<6x768xf32>
    %19 = arith.addf %4, %18 : vector<6x768xf32>
    %c0_26 = arith.constant 0 : index
    %c2_27 = arith.constant 2 : index
    %c0_28 = arith.constant 0 : index
    %c0_29 = arith.constant 0 : index
    %20 = vector.load %arg1[%c0_26, %c2_27, %c0_28, %c0_29] : memref<1x4x7x84xf32, #tpu.memory_space<vmem>>, vector<1x1x6x84xf32>
    %21 = vector.shape_cast %20 : vector<1x1x6x84xf32> to vector<6x84xf32>
    %cst_30 = arith.constant dense<0.000000e+00> : vector<6x768xf32>
    %22 = tpu.matmul %21, %15, %cst_30 {dimension_numbers = #tpu.dot_dimension_numbers<[1], [0], [0], [1], [0, 0, 1, 1], [], []>} : vector<6x84xf32>, vector<84x768xf32>, vector<6x768xf32> -> vector<6x768xf32>
    %23 = arith.addf %7, %22 : vector<6x768xf32>
    %c0_31 = arith.constant 0 : index
    %c3_32 = arith.constant 3 : index
    %c0_33 = arith.constant 0 : index
    %c0_34 = arith.constant 0 : index
    %24 = vector.load %arg1[%c0_31, %c3_32, %c0_33, %c0_34] : memref<1x4x7x84xf32, #tpu.memory_space<vmem>>, vector<1x1x6x84xf32>
    %25 = vector.shape_cast %24 : vector<1x1x6x84xf32> to vector<6x84xf32>
    %cst_35 = arith.constant dense<0.000000e+00> : vector<6x768xf32>
    %26 = tpu.matmul %25, %15, %cst_35 {dimension_numbers = #tpu.dot_dimension_numbers<[1], [0], [0], [1], [0, 0, 1, 1], [], []>} : vector<6x84xf32>, vector<84x768xf32>, vector<6x768xf32> -> vector<6x768xf32>
    %27 = arith.addf %10, %26 : vector<6x768xf32>
    %c0_36 = arith.constant 0 : index
    %c0_37 = arith.constant 0 : index
    %c1_38 = arith.constant 1 : index
    %c0_39 = arith.constant 0 : index
    %28 = vector.load %arg1[%c0_36, %c0_37, %c1_38, %c0_39] : memref<1x4x7x84xf32, #tpu.memory_space<vmem>>, vector<1x1x6x84xf32>
    %29 = vector.shape_cast %28 : vector<1x1x6x84xf32> to vector<6x84xf32>
    %cst_40 = arith.constant dense<0.000000e+00> : vector<6x768xf32>
    %30 = tpu.matmul %29, %15, %cst_40 {dimension_numbers = #tpu.dot_dimension_numbers<[1], [0], [0], [1], [0, 0, 1, 1], [], []>} : vector<6x84xf32>, vector<84x768xf32>, vector<6x768xf32> -> vector<6x768xf32>
    %31 = arith.addf %13, %30 : vector<6x768xf32>
    %c2_41 = arith.constant 2 : index
    %c0_42 = arith.constant 0 : index
    %c0_43 = arith.constant 0 : index
    %32 = vector.load %arg2[%c2_41, %c0_42, %c0_43] : memref<5x84x768xf32, #tpu.memory_space<vmem>>, vector<1x84x768xf32>
    %33 = vector.shape_cast %32 : vector<1x84x768xf32> to vector<84x768xf32>
    %c0_44 = arith.constant 0 : index
    %c2_45 = arith.constant 2 : index
    %c0_46 = arith.constant 0 : index
    %c0_47 = arith.constant 0 : index
    %34 = vector.load %arg1[%c0_44, %c2_45, %c0_46, %c0_47] : memref<1x4x7x84xf32, #tpu.memory_space<vmem>>, vector<1x1x6x84xf32>
    %35 = vector.shape_cast %34 : vector<1x1x6x84xf32> to vector<6x84xf32>
    %cst_48 = arith.constant dense<0.000000e+00> : vector<6x768xf32>
    %36 = tpu.matmul %35, %33, %cst_48 {dimension_numbers = #tpu.dot_dimension_numbers<[1], [0], [0], [1], [0, 0, 1, 1], [], []>} : vector<6x84xf32>, vector<84x768xf32>, vector<6x768xf32> -> vector<6x768xf32>
    %37 = arith.addf %19, %36 : vector<6x768xf32>
    %c0_49 = arith.constant 0 : index
    %c3_50 = arith.constant 3 : index
    %c0_51 = arith.constant 0 : index
    %c0_52 = arith.constant 0 : index
    %38 = vector.load %arg1[%c0_49, %c3_50, %c0_51, %c0_52] : memref<1x4x7x84xf32, #tpu.memory_space<vmem>>, vector<1x1x6x84xf32>
    %39 = vector.shape_cast %38 : vector<1x1x6x84xf32> to vector<6x84xf32>
    %cst_53 = arith.constant dense<0.000000e+00> : vector<6x768xf32>
    %40 = tpu.matmul %39, %33, %cst_53 {dimension_numbers = #tpu.dot_dimension_numbers<[1], [0], [0], [1], [0, 0, 1, 1], [], []>} : vector<6x84xf32>, vector<84x768xf32>, vector<6x768xf32> -> vector<6x768xf32>
    %41 = arith.addf %23, %40 : vector<6x768xf32>
    %c0_54 = arith.constant 0 : index
    %c0_55 = arith.constant 0 : index
    %c1_56 = arith.constant 1 : index
    %c0_57 = arith.constant 0 : index
    %42 = vector.load %arg1[%c0_54, %c0_55, %c1_56, %c0_57] : memref<1x4x7x84xf32, #tpu.memory_space<vmem>>, vector<1x1x6x84xf32>
    %43 = vector.shape_cast %42 : vector<1x1x6x84xf32> to vector<6x84xf32>
    %cst_58 = arith.constant dense<0.000000e+00> : vector<6x768xf32>
    %44 = tpu.matmul %43, %33, %cst_58 {dimension_numbers = #tpu.dot_dimension_numbers<[1], [0], [0], [1], [0, 0, 1, 1], [], []>} : vector<6x84xf32>, vector<84x768xf32>, vector<6x768xf32> -> vector<6x768xf32>
    %45 = arith.addf %27, %44 : vector<6x768xf32>
    %c0_59 = arith.constant 0 : index
    %c1_60 = arith.constant 1 : index
    %c1_61 = arith.constant 1 : index
    %c0_62 = arith.constant 0 : index
    %46 = vector.load %arg1[%c0_59, %c1_60, %c1_61, %c0_62] : memref<1x4x7x84xf32, #tpu.memory_space<vmem>>, vector<1x1x6x84xf32>
    %47 = vector.shape_cast %46 : vector<1x1x6x84xf32> to vector<6x84xf32>
    %cst_63 = arith.constant dense<0.000000e+00> : vector<6x768xf32>
    %48 = tpu.matmul %47, %33, %cst_63 {dimension_numbers = #tpu.dot_dimension_numbers<[1], [0], [0], [1], [0, 0, 1, 1], [], []>} : vector<6x84xf32>, vector<84x768xf32>, vector<6x768xf32> -> vector<6x768xf32>
    %49 = arith.addf %31, %48 : vector<6x768xf32>
    %c3_64 = arith.constant 3 : index
    %c0_65 = arith.constant 0 : index
    %c0_66 = arith.constant 0 : index
    %50 = vector.load %arg2[%c3_64, %c0_65, %c0_66] : memref<5x84x768xf32, #tpu.memory_space<vmem>>, vector<1x84x768xf32>
    %51 = vector.shape_cast %50 : vector<1x84x768xf32> to vector<84x768xf32>
    %c0_67 = arith.constant 0 : index
    %c3_68 = arith.constant 3 : index
    %c0_69 = arith.constant 0 : index
    %c0_70 = arith.constant 0 : index
    %52 = vector.load %arg1[%c0_67, %c3_68, %c0_69, %c0_70] : memref<1x4x7x84xf32, #tpu.memory_space<vmem>>, vector<1x1x6x84xf32>
    %53 = vector.shape_cast %52 : vector<1x1x6x84xf32> to vector<6x84xf32>
    %cst_71 = arith.constant dense<0.000000e+00> : vector<6x768xf32>
    %54 = tpu.matmul %53, %51, %cst_71 {dimension_numbers = #tpu.dot_dimension_numbers<[1], [0], [0], [1], [0, 0, 1, 1], [], []>} : vector<6x84xf32>, vector<84x768xf32>, vector<6x768xf32> -> vector<6x768xf32>
    %55 = arith.addf %37, %54 : vector<6x768xf32>
    %c0_72 = arith.constant 0 : index
    %c0_73 = arith.constant 0 : index
    %c1_74 = arith.constant 1 : index
    %c0_75 = arith.constant 0 : index
    %56 = vector.load %arg1[%c0_72, %c0_73, %c1_74, %c0_75] : memref<1x4x7x84xf32, #tpu.memory_space<vmem>>, vector<1x1x6x84xf32>
    %57 = vector.shape_cast %56 : vector<1x1x6x84xf32> to vector<6x84xf32>
    %cst_76 = arith.constant dense<0.000000e+00> : vector<6x768xf32>
    %58 = tpu.matmul %57, %51, %cst_76 {dimension_numbers = #tpu.dot_dimension_numbers<[1], [0], [0], [1], [0, 0, 1, 1], [], []>} : vector<6x84xf32>, vector<84x768xf32>, vector<6x768xf32> -> vector<6x768xf32>
    %59 = arith.addf %41, %58 : vector<6x768xf32>
    %c0_77 = arith.constant 0 : index
    %c1_78 = arith.constant 1 : index
    %c1_79 = arith.constant 1 : index
    %c0_80 = arith.constant 0 : index
    %60 = vector.load %arg1[%c0_77, %c1_78, %c1_79, %c0_80] : memref<1x4x7x84xf32, #tpu.memory_space<vmem>>, vector<1x1x6x84xf32>
    %61 = vector.shape_cast %60 : vector<1x1x6x84xf32> to vector<6x84xf32>
    %cst_81 = arith.constant dense<0.000000e+00> : vector<6x768xf32>
    %62 = tpu.matmul %61, %51, %cst_81 {dimension_numbers = #tpu.dot_dimension_numbers<[1], [0], [0], [1], [0, 0, 1, 1], [], []>} : vector<6x84xf32>, vector<84x768xf32>, vector<6x768xf32> -> vector<6x768xf32>
    %63 = arith.addf %45, %62 : vector<6x768xf32>
    %c0_82 = arith.constant 0 : index
    %c2_83 = arith.constant 2 : index
    %c1_84 = arith.constant 1 : index
    %c0_85 = arith.constant 0 : index
    %64 = vector.load %arg1[%c0_82, %c2_83, %c1_84, %c0_85] : memref<1x4x7x84xf32, #tpu.memory_space<vmem>>, vector<1x1x6x84xf32>
    %65 = vector.shape_cast %64 : vector<1x1x6x84xf32> to vector<6x84xf32>
    %cst_86 = arith.constant dense<0.000000e+00> : vector<6x768xf32>
    %66 = tpu.matmul %65, %51, %cst_86 {dimension_numbers = #tpu.dot_dimension_numbers<[1], [0], [0], [1], [0, 0, 1, 1], [], []>} : vector<6x84xf32>, vector<84x768xf32>, vector<6x768xf32> -> vector<6x768xf32>
    %67 = arith.addf %49, %66 : vector<6x768xf32>
    %c4 = arith.constant 4 : index
    %c0_87 = arith.constant 0 : index
    %c0_88 = arith.constant 0 : index
    %68 = vector.load %arg2[%c4, %c0_87, %c0_88] : memref<5x84x768xf32, #tpu.memory_space<vmem>>, vector<1x84x768xf32>
    %69 = vector.shape_cast %68 : vector<1x84x768xf32> to vector<84x768xf32>
    %c0_89 = arith.constant 0 : index
    %c0_90 = arith.constant 0 : index
    %c1_91 = arith.constant 1 : index
    %c0_92 = arith.constant 0 : index
    %70 = vector.load %arg1[%c0_89, %c0_90, %c1_91, %c0_92] : memref<1x4x7x84xf32, #tpu.memory_space<vmem>>, vector<1x1x6x84xf32>
    %71 = vector.shape_cast %70 : vector<1x1x6x84xf32> to vector<6x84xf32>
    %cst_93 = arith.constant dense<0.000000e+00> : vector<6x768xf32>
    %72 = tpu.matmul %71, %69, %cst_93 {dimension_numbers = #tpu.dot_dimension_numbers<[1], [0], [0], [1], [0, 0, 1, 1], [], []>} : vector<6x84xf32>, vector<84x768xf32>, vector<6x768xf32> -> vector<6x768xf32>
    %73 = arith.addf %55, %72 : vector<6x768xf32>
    %c0_94 = arith.constant 0 : index
    %c1_95 = arith.constant 1 : index
    %c1_96 = arith.constant 1 : index
    %c0_97 = arith.constant 0 : index
    %74 = vector.load %arg1[%c0_94, %c1_95, %c1_96, %c0_97] : memref<1x4x7x84xf32, #tpu.memory_space<vmem>>, vector<1x1x6x84xf32>
    %75 = vector.shape_cast %74 : vector<1x1x6x84xf32> to vector<6x84xf32>
    %cst_98 = arith.constant dense<0.000000e+00> : vector<6x768xf32>
    %76 = tpu.matmul %75, %69, %cst_98 {dimension_numbers = #tpu.dot_dimension_numbers<[1], [0], [0], [1], [0, 0, 1, 1], [], []>} : vector<6x84xf32>, vector<84x768xf32>, vector<6x768xf32> -> vector<6x768xf32>
    %77 = arith.addf %59, %76 : vector<6x768xf32>
    %c0_99 = arith.constant 0 : index
    %c2_100 = arith.constant 2 : index
    %c1_101 = arith.constant 1 : index
    %c0_102 = arith.constant 0 : index
    %78 = vector.load %arg1[%c0_99, %c2_100, %c1_101, %c0_102] : memref<1x4x7x84xf32, #tpu.memory_space<vmem>>, vector<1x1x6x84xf32>
    %79 = vector.shape_cast %78 : vector<1x1x6x84xf32> to vector<6x84xf32>
    %cst_103 = arith.constant dense<0.000000e+00> : vector<6x768xf32>
    %80 = tpu.matmul %79, %69, %cst_103 {dimension_numbers = #tpu.dot_dimension_numbers<[1], [0], [0], [1], [0, 0, 1, 1], [], []>} : vector<6x84xf32>, vector<84x768xf32>, vector<6x768xf32> -> vector<6x768xf32>
    %81 = arith.addf %63, %80 : vector<6x768xf32>
    %c0_104 = arith.constant 0 : index
    %c3_105 = arith.constant 3 : index
    %c1_106 = arith.constant 1 : index
    %c0_107 = arith.constant 0 : index
    %82 = vector.load %arg1[%c0_104, %c3_105, %c1_106, %c0_107] : memref<1x4x7x84xf32, #tpu.memory_space<vmem>>, vector<1x1x6x84xf32>
    %83 = vector.shape_cast %82 : vector<1x1x6x84xf32> to vector<6x84xf32>
    %cst_108 = arith.constant dense<0.000000e+00> : vector<6x768xf32>
    %84 = tpu.matmul %83, %69, %cst_108 {dimension_numbers = #tpu.dot_dimension_numbers<[1], [0], [0], [1], [0, 0, 1, 1], [], []>} : vector<6x84xf32>, vector<84x768xf32>, vector<6x768xf32> -> vector<6x768xf32>
    %85 = arith.addf %67, %84 : vector<6x768xf32>
    %86 = arith.maximumf %73, %77 : vector<6x768xf32>
    %87 = arith.maximumf %81, %85 : vector<6x768xf32>
    %88 = vector.extract_strided_slice %86 {offsets = [0, 0], sizes = [6, 384], strides = [1, 1]} : vector<6x768xf32> to vector<6x384xf32>
    %89 = vector.extract_strided_slice %86 {offsets = [0, 384], sizes = [6, 384], strides = [1, 1]} : vector<6x768xf32> to vector<6x384xf32>
    %90 = arith.maximumf %88, %89 : vector<6x384xf32>
    %c0_109 = arith.constant 0 : index
    %c0_110 = arith.constant 0 : index
    %91 = vector.load %arg3[%c0_109, %c0_110] : memref<1x384xf32, #tpu.memory_space<vmem>>, vector<1x384xf32>
    %92 = vector.broadcast %91 : vector<1x384xf32> to vector<6x384xf32>
    %93 = arith.addf %90, %92 : vector<6x384xf32>
    %cst_111 = arith.constant 0.000000e+00 : f32
    %94 = vector.broadcast %cst_111 : f32 to vector<6x384xf32>
    %95 = arith.maximumf %93, %94 : vector<6x384xf32>
    %96 = vector.extract_strided_slice %87 {offsets = [0, 0], sizes = [6, 384], strides = [1, 1]} : vector<6x768xf32> to vector<6x384xf32>
    %97 = vector.extract_strided_slice %87 {offsets = [0, 384], sizes = [6, 384], strides = [1, 1]} : vector<6x768xf32> to vector<6x384xf32>
    %98 = arith.maximumf %96, %97 : vector<6x384xf32>
    %c0_112 = arith.constant 0 : index
    %c0_113 = arith.constant 0 : index
    %99 = vector.load %arg3[%c0_112, %c0_113] : memref<1x384xf32, #tpu.memory_space<vmem>>, vector<1x384xf32>
    %100 = vector.broadcast %99 : vector<1x384xf32> to vector<6x384xf32>
    %101 = arith.addf %98, %100 : vector<6x384xf32>
    %cst_114 = arith.constant 0.000000e+00 : f32
    %102 = vector.broadcast %cst_114 : f32 to vector<6x384xf32>
    %103 = arith.maximumf %101, %102 : vector<6x384xf32>
    %c0_115 = arith.constant 0 : index
    %c0_116 = arith.constant 0 : index
    %c0_117 = arith.constant 0 : index
    %104 = vector.load %arg4[%c0_115, %c0_116, %c0_117] : memref<5x384x256xf32, #tpu.memory_space<vmem>>, vector<1x384x256xf32>
    %105 = vector.shape_cast %104 : vector<1x384x256xf32> to vector<384x256xf32>
    %106 = vector.extract_strided_slice %95 {offsets = [0, 0], sizes = [4, 384], strides = [1, 1]} : vector<6x384xf32> to vector<4x384xf32>
    %107 = vector.extract_strided_slice %103 {offsets = [0, 0], sizes = [4, 384], strides = [1, 1]} : vector<6x384xf32> to vector<4x384xf32>
    %cst_118 = arith.constant dense<0.000000e+00> : vector<4x256xf32>
    %108 = tpu.matmul %106, %105, %cst_118 {dimension_numbers = #tpu.dot_dimension_numbers<[1], [0], [0], [1], [0, 0, 1, 1], [], []>} : vector<4x384xf32>, vector<384x256xf32>, vector<4x256xf32> -> vector<4x256xf32>
    %cst_119 = arith.constant dense<0.000000e+00> : vector<4x256xf32>
    %109 = tpu.matmul %107, %105, %cst_119 {dimension_numbers = #tpu.dot_dimension_numbers<[1], [0], [0], [1], [0, 0, 1, 1], [], []>} : vector<4x384xf32>, vector<384x256xf32>, vector<4x256xf32> -> vector<4x256xf32>
    %c1_120 = arith.constant 1 : index
    %c0_121 = arith.constant 0 : index
    %c0_122 = arith.constant 0 : index
    %110 = vector.load %arg4[%c1_120, %c0_121, %c0_122] : memref<5x384x256xf32, #tpu.memory_space<vmem>>, vector<1x384x256xf32>
    %111 = vector.shape_cast %110 : vector<1x384x256xf32> to vector<384x256xf32>
    %112 = vector.extract_strided_slice %103 {offsets = [0, 0], sizes = [4, 384], strides = [1, 1]} : vector<6x384xf32> to vector<4x384xf32>
    %113 = vector.extract_strided_slice %95 {offsets = [1, 0], sizes = [4, 384], strides = [1, 1]} : vector<6x384xf32> to vector<4x384xf32>
    %cst_123 = arith.constant dense<0.000000e+00> : vector<4x256xf32>
    %114 = tpu.matmul %112, %111, %cst_123 {dimension_numbers = #tpu.dot_dimension_numbers<[1], [0], [0], [1], [0, 0, 1, 1], [], []>} : vector<4x384xf32>, vector<384x256xf32>, vector<4x256xf32> -> vector<4x256xf32>
    %cst_124 = arith.constant dense<0.000000e+00> : vector<4x256xf32>
    %115 = tpu.matmul %113, %111, %cst_124 {dimension_numbers = #tpu.dot_dimension_numbers<[1], [0], [0], [1], [0, 0, 1, 1], [], []>} : vector<4x384xf32>, vector<384x256xf32>, vector<4x256xf32> -> vector<4x256xf32>
    %116 = arith.addf %108, %114 : vector<4x256xf32>
    %117 = arith.addf %109, %115 : vector<4x256xf32>
    %c2_125 = arith.constant 2 : index
    %c0_126 = arith.constant 0 : index
    %c0_127 = arith.constant 0 : index
    %118 = vector.load %arg4[%c2_125, %c0_126, %c0_127] : memref<5x384x256xf32, #tpu.memory_space<vmem>>, vector<1x384x256xf32>
    %119 = vector.shape_cast %118 : vector<1x384x256xf32> to vector<384x256xf32>
    %120 = vector.extract_strided_slice %95 {offsets = [1, 0], sizes = [4, 384], strides = [1, 1]} : vector<6x384xf32> to vector<4x384xf32>
    %121 = vector.extract_strided_slice %103 {offsets = [1, 0], sizes = [4, 384], strides = [1, 1]} : vector<6x384xf32> to vector<4x384xf32>
    %cst_128 = arith.constant dense<0.000000e+00> : vector<4x256xf32>
    %122 = tpu.matmul %120, %119, %cst_128 {dimension_numbers = #tpu.dot_dimension_numbers<[1], [0], [0], [1], [0, 0, 1, 1], [], []>} : vector<4x384xf32>, vector<384x256xf32>, vector<4x256xf32> -> vector<4x256xf32>
    %cst_129 = arith.constant dense<0.000000e+00> : vector<4x256xf32>
    %123 = tpu.matmul %121, %119, %cst_129 {dimension_numbers = #tpu.dot_dimension_numbers<[1], [0], [0], [1], [0, 0, 1, 1], [], []>} : vector<4x384xf32>, vector<384x256xf32>, vector<4x256xf32> -> vector<4x256xf32>
    %124 = arith.addf %116, %122 : vector<4x256xf32>
    %125 = arith.addf %117, %123 : vector<4x256xf32>
    %c3_130 = arith.constant 3 : index
    %c0_131 = arith.constant 0 : index
    %c0_132 = arith.constant 0 : index
    %126 = vector.load %arg4[%c3_130, %c0_131, %c0_132] : memref<5x384x256xf32, #tpu.memory_space<vmem>>, vector<1x384x256xf32>
    %127 = vector.shape_cast %126 : vector<1x384x256xf32> to vector<384x256xf32>
    %128 = vector.extract_strided_slice %103 {offsets = [1, 0], sizes = [4, 384], strides = [1, 1]} : vector<6x384xf32> to vector<4x384xf32>
    %129 = vector.extract_strided_slice %95 {offsets = [2, 0], sizes = [4, 384], strides = [1, 1]} : vector<6x384xf32> to vector<4x384xf32>
    %cst_133 = arith.constant dense<0.000000e+00> : vector<4x256xf32>
    %130 = tpu.matmul %128, %127, %cst_133 {dimension_numbers = #tpu.dot_dimension_numbers<[1], [0], [0], [1], [0, 0, 1, 1], [], []>} : vector<4x384xf32>, vector<384x256xf32>, vector<4x256xf32> -> vector<4x256xf32>
    %cst_134 = arith.constant dense<0.000000e+00> : vector<4x256xf32>
    %131 = tpu.matmul %129, %127, %cst_134 {dimension_numbers = #tpu.dot_dimension_numbers<[1], [0], [0], [1], [0, 0, 1, 1], [], []>} : vector<4x384xf32>, vector<384x256xf32>, vector<4x256xf32> -> vector<4x256xf32>
    %132 = arith.addf %124, %130 : vector<4x256xf32>
    %133 = arith.addf %125, %131 : vector<4x256xf32>
    %c4_135 = arith.constant 4 : index
    %c0_136 = arith.constant 0 : index
    %c0_137 = arith.constant 0 : index
    %134 = vector.load %arg4[%c4_135, %c0_136, %c0_137] : memref<5x384x256xf32, #tpu.memory_space<vmem>>, vector<1x384x256xf32>
    %135 = vector.shape_cast %134 : vector<1x384x256xf32> to vector<384x256xf32>
    %136 = vector.extract_strided_slice %95 {offsets = [2, 0], sizes = [4, 384], strides = [1, 1]} : vector<6x384xf32> to vector<4x384xf32>
    %137 = vector.extract_strided_slice %103 {offsets = [2, 0], sizes = [4, 384], strides = [1, 1]} : vector<6x384xf32> to vector<4x384xf32>
    %cst_138 = arith.constant dense<0.000000e+00> : vector<4x256xf32>
    %138 = tpu.matmul %136, %135, %cst_138 {dimension_numbers = #tpu.dot_dimension_numbers<[1], [0], [0], [1], [0, 0, 1, 1], [], []>} : vector<4x384xf32>, vector<384x256xf32>, vector<4x256xf32> -> vector<4x256xf32>
    %cst_139 = arith.constant dense<0.000000e+00> : vector<4x256xf32>
    %139 = tpu.matmul %137, %135, %cst_139 {dimension_numbers = #tpu.dot_dimension_numbers<[1], [0], [0], [1], [0, 0, 1, 1], [], []>} : vector<4x384xf32>, vector<384x256xf32>, vector<4x256xf32> -> vector<4x256xf32>
    %140 = arith.addf %132, %138 : vector<4x256xf32>
    %141 = arith.addf %133, %139 : vector<4x256xf32>
    %142 = arith.maximumf %140, %141 : vector<4x256xf32>
    %143 = vector.extract_strided_slice %142 {offsets = [0, 0], sizes = [4, 128], strides = [1, 1]} : vector<4x256xf32> to vector<4x128xf32>
    %144 = vector.extract_strided_slice %142 {offsets = [0, 128], sizes = [4, 128], strides = [1, 1]} : vector<4x256xf32> to vector<4x128xf32>
    %145 = arith.maximumf %143, %144 : vector<4x128xf32>
    %c0_140 = arith.constant 0 : index
    %c0_141 = arith.constant 0 : index
    %146 = vector.load %arg5[%c0_140, %c0_141] : memref<1x128xf32, #tpu.memory_space<vmem>>, vector<1x128xf32>
    %147 = vector.broadcast %146 : vector<1x128xf32> to vector<4x128xf32>
    %148 = arith.addf %145, %147 : vector<4x128xf32>
    %c0_142 = arith.constant 0 : index
    %c0_143 = arith.constant 0 : index
    %c0_144 = arith.constant 0 : index
    %149 = vector.load %arg6[%c0_142, %c0_143, %c0_144] : memref<4x128x64xf32, #tpu.memory_space<vmem>>, vector<1x128x64xf32>
    %150 = vector.shape_cast %149 : vector<1x128x64xf32> to vector<128x64xf32>
    %151 = vector.extract_strided_slice %148 {offsets = [0, 0], sizes = [1, 128], strides = [1, 1]} : vector<4x128xf32> to vector<1x128xf32>
    %cst_145 = arith.constant dense<0.000000e+00> : vector<1x64xf32>
    %152 = tpu.matmul %151, %150, %cst_145 {dimension_numbers = #tpu.dot_dimension_numbers<[1], [0], [0], [1], [0, 0, 1, 1], [], []>} : vector<1x128xf32>, vector<128x64xf32>, vector<1x64xf32> -> vector<1x64xf32>
    %c1_146 = arith.constant 1 : index
    %c0_147 = arith.constant 0 : index
    %c0_148 = arith.constant 0 : index
    %153 = vector.load %arg6[%c1_146, %c0_147, %c0_148] : memref<4x128x64xf32, #tpu.memory_space<vmem>>, vector<1x128x64xf32>
    %154 = vector.shape_cast %153 : vector<1x128x64xf32> to vector<128x64xf32>
    %155 = vector.extract_strided_slice %148 {offsets = [1, 0], sizes = [1, 128], strides = [1, 1]} : vector<4x128xf32> to vector<1x128xf32>
    %cst_149 = arith.constant dense<0.000000e+00> : vector<1x64xf32>
    %156 = tpu.matmul %155, %154, %cst_149 {dimension_numbers = #tpu.dot_dimension_numbers<[1], [0], [0], [1], [0, 0, 1, 1], [], []>} : vector<1x128xf32>, vector<128x64xf32>, vector<1x64xf32> -> vector<1x64xf32>
    %157 = arith.addf %152, %156 : vector<1x64xf32>
    %c2_150 = arith.constant 2 : index
    %c0_151 = arith.constant 0 : index
    %c0_152 = arith.constant 0 : index
    %158 = vector.load %arg6[%c2_150, %c0_151, %c0_152] : memref<4x128x64xf32, #tpu.memory_space<vmem>>, vector<1x128x64xf32>
    %159 = vector.shape_cast %158 : vector<1x128x64xf32> to vector<128x64xf32>
    %160 = vector.extract_strided_slice %148 {offsets = [2, 0], sizes = [1, 128], strides = [1, 1]} : vector<4x128xf32> to vector<1x128xf32>
    %cst_153 = arith.constant dense<0.000000e+00> : vector<1x64xf32>
    %161 = tpu.matmul %160, %159, %cst_153 {dimension_numbers = #tpu.dot_dimension_numbers<[1], [0], [0], [1], [0, 0, 1, 1], [], []>} : vector<1x128xf32>, vector<128x64xf32>, vector<1x64xf32> -> vector<1x64xf32>
    %162 = arith.addf %157, %161 : vector<1x64xf32>
    %c3_154 = arith.constant 3 : index
    %c0_155 = arith.constant 0 : index
    %c0_156 = arith.constant 0 : index
    %163 = vector.load %arg6[%c3_154, %c0_155, %c0_156] : memref<4x128x64xf32, #tpu.memory_space<vmem>>, vector<1x128x64xf32>
    %164 = vector.shape_cast %163 : vector<1x128x64xf32> to vector<128x64xf32>
    %165 = vector.extract_strided_slice %148 {offsets = [3, 0], sizes = [1, 128], strides = [1, 1]} : vector<4x128xf32> to vector<1x128xf32>
    %cst_157 = arith.constant dense<0.000000e+00> : vector<1x64xf32>
    %166 = tpu.matmul %165, %164, %cst_157 {dimension_numbers = #tpu.dot_dimension_numbers<[1], [0], [0], [1], [0, 0, 1, 1], [], []>} : vector<1x128xf32>, vector<128x64xf32>, vector<1x64xf32> -> vector<1x64xf32>
    %167 = arith.addf %162, %166 : vector<1x64xf32>
    %c0_158 = arith.constant 0 : index
    %c0_159 = arith.constant 0 : index
    %168 = vector.load %arg7[%c0_158, %c0_159] : memref<1x64xf32, #tpu.memory_space<vmem>>, vector<1x64xf32>
    %169 = arith.addf %167, %168 : vector<1x64xf32>
    %cst_160 = arith.constant 0.000000e+00 : f32
    %170 = vector.broadcast %cst_160 : f32 to vector<1x64xf32>
    %171 = arith.maximumf %169, %170 : vector<1x64xf32>
    %c0_161 = arith.constant 0 : index
    %c0_162 = arith.constant 0 : index
    %172 = vector.load %arg8[%c0_161, %c0_162] : memref<64x10xf32, #tpu.memory_space<vmem>>, vector<64x10xf32>
    %cst_163 = arith.constant dense<0.000000e+00> : vector<1x10xf32>
    %173 = tpu.matmul %171, %172, %cst_163 {dimension_numbers = #tpu.dot_dimension_numbers<[1], [0], [0], [1], [0, 0, 1, 1], [], []>} : vector<1x64xf32>, vector<64x10xf32>, vector<1x10xf32> -> vector<1x10xf32>
    %c0_164 = arith.constant 0 : index
    %c0_165 = arith.constant 0 : index
    %174 = vector.load %arg9[%c0_164, %c0_165] : memref<1x10xf32, #tpu.memory_space<vmem>>, vector<1x10xf32>
    %175 = arith.addf %173, %174 : vector<1x10xf32>
    %cst_166 = arith.constant dense<0xFF800000> : vector<1xf32>
    %176 = vector.multi_reduction <maximumf>, %175, %cst_166 [1] : vector<1x10xf32> to vector<1xf32>
    %177 = vector.shape_cast %176 : vector<1xf32> to vector<1x1xf32>
    %178 = vector.broadcast %177 : vector<1x1xf32> to vector<1x10xf32>
    %179 = arith.subf %175, %178 : vector<1x10xf32>
    %180 = math.exp %179 : vector<1x10xf32>
    %cst_167 = arith.constant dense<0.000000e+00> : vector<1xf32>
    %181 = vector.multi_reduction <add>, %180, %cst_167 [1] : vector<1x10xf32> to vector<1xf32>
    %182 = vector.shape_cast %181 : vector<1xf32> to vector<1x1xf32>
    %183 = math.log %182 : vector<1x1xf32>
    %184 = arith.addf %177, %183 : vector<1x1xf32>
    %185 = vector.broadcast %184 : vector<1x1xf32> to vector<1x10xf32>
    %186 = arith.subf %175, %185 : vector<1x10xf32>
    %c0_168 = arith.constant 0 : index
    %c0_169 = arith.constant 0 : index
    %c0_170 = arith.constant 0 : index
    %187 = vector.load %arg10[%c0_168, %c0_169, %c0_170] : memref<1x1x10xf32, #tpu.memory_space<vmem>>, vector<1x1x10xf32>
    %188 = vector.shape_cast %187 : vector<1x1x10xf32> to vector<1x10xf32>
    %189 = vector.shape_cast %186 : vector<1x10xf32> to vector<1x1x10xf32>
    tpu.vector_store %arg10[%c0_168, %c0_169, %c0_170], %189 {strides = array<i32>} : memref<1x1x10xf32, #tpu.memory_space<vmem>>, vector<1x1x10xf32>,
    return
  }
  func.func @transform_0(%arg0: i32) -> (i32, i32, i32, i32) {
    %c0_i32 = arith.constant 0 : i32
    %c0_i32_0 = arith.constant 0 : i32
    %c0_i32_1 = arith.constant 0 : i32
    %c0_i32_2 = arith.constant 0 : i32
    return %arg0, %c0_i32, %c0_i32_0, %c0_i32_1 : i32, i32, i32, i32
  }
  func.func @transform_1(%arg0: i32) -> (i32, i32, i32) {
    %c0_i32 = arith.constant 0 : i32
    %c0_i32_0 = arith.constant 0 : i32
    %c0_i32_1 = arith.constant 0 : i32
    %c0_i32_2 = arith.constant 0 : i32
    return %c0_i32, %c0_i32_0, %c0_i32_1 : i32, i32, i32
  }
  func.func @transform_2(%arg0: i32) -> (i32, i32) {
    %c0_i32 = arith.constant 0 : i32
    %c0_i32_0 = arith.constant 0 : i32
    %c0_i32_1 = arith.constant 0 : i32
    return %c0_i32, %c0_i32_0 : i32, i32
  }
  func.func @transform_3(%arg0: i32) -> (i32, i32, i32) {
    %c0_i32 = arith.constant 0 : i32
    %c0_i32_0 = arith.constant 0 : i32
    %c0_i32_1 = arith.constant 0 : i32
    %c0_i32_2 = arith.constant 0 : i32
    return %c0_i32, %c0_i32_0, %c0_i32_1 : i32, i32, i32
  }
  func.func @transform_4(%arg0: i32) -> (i32, i32) {
    %c0_i32 = arith.constant 0 : i32
    %c0_i32_0 = arith.constant 0 : i32
    %c0_i32_1 = arith.constant 0 : i32
    return %c0_i32, %c0_i32_0 : i32, i32
  }
  func.func @transform_5(%arg0: i32) -> (i32, i32, i32) {
    %c0_i32 = arith.constant 0 : i32
    %c0_i32_0 = arith.constant 0 : i32
    %c0_i32_1 = arith.constant 0 : i32
    %c0_i32_2 = arith.constant 0 : i32
    return %c0_i32, %c0_i32_0, %c0_i32_1 : i32, i32, i32
  }
  func.func @transform_6(%arg0: i32) -> (i32, i32) {
    %c0_i32 = arith.constant 0 : i32
    %c0_i32_0 = arith.constant 0 : i32
    %c0_i32_1 = arith.constant 0 : i32
    return %c0_i32, %c0_i32_0 : i32, i32
  }
  func.func @transform_7(%arg0: i32) -> (i32, i32) {
    %c0_i32 = arith.constant 0 : i32
    %c0_i32_0 = arith.constant 0 : i32
    %c0_i32_1 = arith.constant 0 : i32
    return %c0_i32, %c0_i32_0 : i32, i32
  }
  func.func @transform_8(%arg0: i32) -> (i32, i32) {
    %c0_i32 = arith.constant 0 : i32
    %c0_i32_0 = arith.constant 0 : i32
    %c0_i32_1 = arith.constant 0 : i32
    return %c0_i32, %c0_i32_0 : i32, i32
  }
  func.func @transform_9(%arg0: i32) -> (i32, i32, i32) {
    %c0_i32 = arith.constant 0 : i32
    %c0_i32_0 = arith.constant 0 : i32
    %c0_i32_1 = arith.constant 0 : i32
    return %arg0, %c0_i32, %c0_i32_0 : i32, i32, i32
  }
}

</mosaic_0001>

<llo_original>
// kernel: net_forward.1
$region0: #{net_forward.1}
  #allocation0 [shape = 'u32[]', space=smem, size = 0x4, offset = 0x4, fixed_abs, tag = 'smem constant byte address 0x4 - core index']
  #allocation1 [shape = 'u32[144,128]{1,0:T(1,128)}', space=vmem, size = 0x12000, scoped, tag = 'internal scratch']
  %s0 = inlined_call_operand.vmem [shape: f32[2,4,7,84], index: 0, kind: input, shape index: {}]
  %s1 = inlined_call_operand.hbm [shape: f32[5,84,768], index: 1, kind: input, shape index: {}]
  %s2 = inlined_call_operand.vmem [shape: f32[1,384], index: 2, kind: input, shape index: {}]
  %s3 = inlined_call_operand.vmem [shape: f32[5,384,256], index: 3, kind: input, shape index: {}]
  %s4 = inlined_call_operand.vmem [shape: f32[1,128], index: 4, kind: input, shape index: {}]
  %s5 = inlined_call_operand.vmem [shape: f32[4,128,64], index: 5, kind: input, shape index: {}]
  %s6 = inlined_call_operand.vmem [shape: f32[1,64], index: 6, kind: input, shape index: {}]
  %s7 = inlined_call_operand.vmem [shape: f32[64,10], index: 7, kind: input, shape index: {}]
  %s8 = inlined_call_operand.vmem [shape: f32[1,10], index: 8, kind: input, shape index: {}]
  %s9 = inlined_call_operand.hbm [shape: f32[2,1,10], index: 9, kind: output, shape index: {}]
  %s10 = sld [smem:[#allocation0]]
  $region73: #{net_forward.1} parent=0
    _
  %s12 = ssub.s32 1, %s10
  %s13 = scalar_select 0, %s12, %s10
  $region1: #{net_forward.1} parent=0
    #allocation2 [shape = 'u8[1351680]{0}', space=vmem, size = 0x14a000, scoped, tag = 'input window, operand 1, single buffered']
    #allocation3 [shape = 's32[2]{0}', space=sflag, size = 0x8, scoped, tag = 'scoped memory for net_forward.1']
    #allocation4 [shape = 's32[2]{0}', space=sflag, size = 0x8, scoped, tag = 'scoped memory for net_forward.1']
    #allocation5 [shape = 'u8[1024]{0}', space=vmem, size = 0x400, scoped, tag = 'output window, operand 0']
    %14 = vsyncpa [#allocation3], 0
    %15 = vsyncpa [#allocation4], 0
    %s16 = scalar_lea.sflag [#allocation4], 1
    %17 = vsyncpa %s16, 0
    loop: start=0, step=1, limit=4
    $region2: #{net_forward.1} parent=1 // loop_pre_header
      _
    $region3: #{net_forward.1} parent=1 // loop_header
      %s19 = sphi 0, %s23
      %p20 = scmp.ge.s32.totalorder %s19, 4
      %s29 = sphi 0, %s31
      %s32 = sphi 0, %s29
      %s33 = sphi 0, %s32
      %s49 = sphi 0, %s33
      %s53 = sphi 0, %s53
      %s55 = sphi 0, %s53
      %s56 = sphi 0, %s55
      %s70 = sphi 0, %s56
      %s74 = sphi 0, %s74
      %s76 = sphi 0, %s74
      %s77 = sphi 0, %s76
      %s91 = sphi 0, %s77
      %s95 = sphi 0, %s95
      %s97 = sphi 0, %s95
      %s98 = sphi 0, %s97
      %s112 = sphi 0, %s98
      %s116 = sphi 0, %s116
      %s118 = sphi 0, %s116
      %s119 = sphi 0, %s118
      %s133 = sphi 0, %s119
      %s137 = sphi 0, %s137
      %s139 = sphi 0, %s137
      %s140 = sphi 0, %s139
      %s154 = sphi 0, %s140
      %s158 = sphi 0, %s158
      %s160 = sphi 0, %s158
      %s161 = sphi 0, %s160
      %s175 = sphi 0, %s161
      %s179 = sphi 0, %s179
      %s181 = sphi 0, %s179
      %s182 = sphi 0, %s181
      %s196 = sphi 0, %s182
      %s200 = sphi 0, %s200
      %s202 = sphi 0, %s200
      %s203 = sphi 0, %s202
      %s217 = sphi 0, %s203
      %s223 = sphi 0, %s225
      %s226 = sphi 0, %s223
      %s227 = sphi 0, %s226
      %s243 = sphi 0, %s227
    $region4: #{net_forward.1} parent=1 // loop_header_branch
      %22 = sbr.rel (%p20) target = $region8
    $region5: #{net_forward.1} parent=1 // loop_body
      %s24 = ssub.s32 %s19, 1
      %s25 = ssub.s32 %s19, 2
      %s26 = sadd.s32 %s19, 1
      %s27 = ssub.s32 %s19, %s26
      %p28 = scmp.eq.s32.totalorder %s27, 0
      %s30 = sadd.s32 %s29, 1
      %s31 = scalar_select %p28, %s29, %s30
      %p34 = pneg %p28
      %p35 = scmp.eq.s32.totalorder %s19, 1
      %p36 = por %p34, %p35
      %p37 = scmp.ne.s32.totalorder %s29, %s32
      %p38 = scmp.eq.s32.totalorder %s19, 0
      %p39 = por %p37, %p38
      %p40 = scmp.ne.s32.totalorder %s29, %s32
      %p41 = scmp.eq.s32.totalorder %s24, 1
      %p42 = por %p40, %p41
      %p43 = scmp.ne.s32.totalorder %s32, %s33
      %p44 = scmp.eq.s32.totalorder %s24, 0
      %p45 = por %p43, %p44
      %p46 = scmp.ne.s32.totalorder %s32, %s33
      %p47 = scmp.eq.s32.totalorder %s25, 1
      %p48 = por %p46, %p47
      %p50 = scmp.ne.s32.totalorder %s33, %s49
      %p51 = scmp.eq.s32.totalorder %s25, 0
      %p52 = por %p50, %p51
      %s54 = sadd.s32 %s53, 1
      %p57 = scmp.eq.s32.totalorder %s19, 1
      %p58 = scmp.ne.s32.totalorder %s53, %s55
      %p59 = scmp.eq.s32.totalorder %s19, 0
      %p60 = por %p58, %p59
      %p61 = scmp.ne.s32.totalorder %s53, %s55
      %p62 = scmp.eq.s32.totalorder %s24, 1
      %p63 = por %p61, %p62
      %p64 = scmp.ne.s32.totalorder %s55, %s56
      %p65 = scmp.eq.s32.totalorder %s24, 0
      %p66 = por %p64, %p65
      %p67 = scmp.ne.s32.totalorder %s55, %s56
      %p68 = scmp.eq.s32.totalorder %s25, 1
      %p69 = por %p67, %p68
      %p71 = scmp.ne.s32.totalorder %s56, %s70
      %p72 = scmp.eq.s32.totalorder %s25, 0
      %p73 = por %p71, %p72
      %s75 = sadd.s32 %s74, 1
      %p78 = scmp.eq.s32.totalorder %s19, 1
      %p79 = scmp.ne.s32.totalorder %s74, %s76
      %p80 = scmp.eq.s32.totalorder %s19, 0
      %p81 = por %p79, %p80
      %p82 = scmp.ne.s32.totalorder %s74, %s76
      %p83 = scmp.eq.s32.totalorder %s24, 1
      %p84 = por %p82, %p83
      %p85 = scmp.ne.s32.totalorder %s76, %s77
      %p86 = scmp.eq.s32.totalorder %s24, 0
      %p87 = por %p85, %p86
      %p88 = scmp.ne.s32.totalorder %s76, %s77
      %p89 = scmp.eq.s32.totalorder %s25, 1
      %p90 = por %p88, %p89
      %p92 = scmp.ne.s32.totalorder %s77, %s91
      %p93 = scmp.eq.s32.totalorder %s25, 0
      %p94 = por %p92, %p93
      %s96 = sadd.s32 %s95, 1
      %p99 = scmp.eq.s32.totalorder %s19, 1
      %p100 = scmp.ne.s32.totalorder %s95, %s97
      %p101 = scmp.eq.s32.totalorder %s19, 0
      %p102 = por %p100, %p101
      %p103 = scmp.ne.s32.totalorder %s95, %s97
      %p104 = scmp.eq.s32.totalorder %s24, 1
      %p105 = por %p103, %p104
      %p106 = scmp.ne.s32.totalorder %s97, %s98
      %p107 = scmp.eq.s32.totalorder %s24, 0
      %p108 = por %p106, %p107
      %p109 = scmp.ne.s32.totalorder %s97, %s98
      %p110 = scmp.eq.s32.totalorder %s25, 1
      %p111 = por %p109, %p110
      %p113 = scmp.ne.s32.totalorder %s98, %s112
      %p114 = scmp.eq.s32.totalorder %s25, 0
      %p115 = por %p113, %p114
      %s117 = sadd.s32 %s116, 1
      %p120 = scmp.eq.s32.totalorder %s19, 1
      %p121 = scmp.ne.s32.totalorder %s116, %s118
      %p122 = scmp.eq.s32.totalorder %s19, 0
      %p123 = por %p121, %p122
      %p124 = scmp.ne.s32.totalorder %s116, %s118
      %p125 = scmp.eq.s32.totalorder %s24, 1
      %p126 = por %p124, %p125
      %p127 = scmp.ne.s32.totalorder %s118, %s119
      %p128 = scmp.eq.s32.totalorder %s24, 0
      %p129 = por %p127, %p128
      %p130 = scmp.ne.s32.totalorder %s118, %s119
      %p131 = scmp.eq.s32.totalorder %s25, 1
      %p132 = por %p130, %p131
      %p134 = scmp.ne.s32.totalorder %s119, %s133
      %p135 = scmp.eq.s32.totalorder %s25, 0
      %p136 = por %p134, %p135
      %s138 = sadd.s32 %s137, 1
      %p141 = scmp.eq.s32.totalorder %s19, 1
      %p142 = scmp.ne.s32.totalorder %s137, %s139
      %p143 = scmp.eq.s32.totalorder %s19, 0
      %p144 = por %p142, %p143
      %p145 = scmp.ne.s32.totalorder %s137, %s139
      %p146 = scmp.eq.s32.totalorder %s24, 1
      %p147 = por %p145, %p146
      %p148 = scmp.ne.s32.totalorder %s139, %s140
      %p149 = scmp.eq.s32.totalorder %s24, 0
      %p150 = por %p148, %p149
      %p151 = scmp.ne.s32.totalorder %s139, %s140
      %p152 = scmp.eq.s32.totalorder %s25, 1
      %p153 = por %p151, %p152
      %p155 = scmp.ne.s32.totalorder %s140, %s154
      %p156 = scmp.eq.s32.totalorder %s25, 0
      %p157 = por %p155, %p156
      %s159 = sadd.s32 %s158, 1
      %p162 = scmp.eq.s32.totalorder %s19, 1
      %p163 = scmp.ne.s32.totalorder %s158, %s160
      %p164 = scmp.eq.s32.totalorder %s19, 0
      %p165 = por %p163, %p164
      %p166 = scmp.ne.s32.totalorder %s158, %s160
      %p167 = scmp.eq.s32.totalorder %s24, 1
      %p168 = por %p166, %p167
      %p169 = scmp.ne.s32.totalorder %s160, %s161
      %p170 = scmp.eq.s32.totalorder %s24, 0
      %p171 = por %p169, %p170
      %p172 = scmp.ne.s32.totalorder %s160, %s161
      %p173 = scmp.eq.s32.totalorder %s25, 1
      %p174 = por %p172, %p173
      %p176 = scmp.ne.s32.totalorder %s161, %s175
      %p177 = scmp.eq.s32.totalorder %s25, 0
      %p178 = por %p176, %p177
      %s180 = sadd.s32 %s179, 1
      %p183 = scmp.eq.s32.totalorder %s19, 1
      %p184 = scmp.ne.s32.totalorder %s179, %s181
      %p185 = scmp.eq.s32.totalorder %s19, 0
      %p186 = por %p184, %p185
      %p187 = scmp.ne.s32.totalorder %s179, %s181
      %p188 = scmp.eq.s32.totalorder %s24, 1
      %p189 = por %p187, %p188
      %p190 = scmp.ne.s32.totalorder %s181, %s182
      %p191 = scmp.eq.s32.totalorder %s24, 0
      %p192 = por %p190, %p191
      %p193 = scmp.ne.s32.totalorder %s181, %s182
      %p194 = scmp.eq.s32.totalorder %s25, 1
      %p195 = por %p193, %p194
      %p197 = scmp.ne.s32.totalorder %s182, %s196
      %p198 = scmp.eq.s32.totalorder %s25, 0
      %p199 = por %p197, %p198
      %s201 = sadd.s32 %s200, 1
      %p204 = scmp.eq.s32.totalorder %s19, 1
      %p205 = scmp.ne.s32.totalorder %s200, %s202
      %p206 = scmp.eq.s32.totalorder %s19, 0
      %p207 = por %p205, %p206
      %p208 = scmp.ne.s32.totalorder %s200, %s202
      %p209 = scmp.eq.s32.totalorder %s24, 1
      %p210 = por %p208, %p209
      %p211 = scmp.ne.s32.totalorder %s202, %s203
      %p212 = scmp.eq.s32.totalorder %s24, 0
      %p213 = por %p211, %p212
      %p214 = scmp.ne.s32.totalorder %s202, %s203
      %p215 = scmp.eq.s32.totalorder %s25, 1
      %p216 = por %p214, %p215
      %p218 = scmp.ne.s32.totalorder %s203, %s217
      %p219 = scmp.eq.s32.totalorder %s25, 0
      %p220 = por %p218, %p219
      %s221 = ssub.s32 %s19, %s26
      %p222 = scmp.eq.s32.totalorder %s221, 0
      %s224 = sadd.s32 %s223, 1
      %s225 = scalar_select %p222, %s223, %s224
      %p228 = pneg %p222
      %p229 = scmp.eq.s32.totalorder %s19, 1
      %p230 = por %p228, %p229
      %p231 = scmp.ne.s32.totalorder %s223, %s226
      %p232 = scmp.eq.s32.totalorder %s19, 0
      %p233 = por %p231, %p232
      %p234 = scmp.ne.s32.totalorder %s223, %s226
      %p235 = scmp.eq.s32.totalorder %s24, 1
      %p236 = por %p234, %p235
      %p237 = scmp.ne.s32.totalorder %s226, %s227
      %p238 = scmp.eq.s32.totalorder %s24, 0
      %p239 = por %p237, %p238
      %p240 = scmp.ne.s32.totalorder %s226, %s227
      %p241 = scmp.eq.s32.totalorder %s25, 1
      %p242 = por %p240, %p241
      %p244 = scmp.ne.s32.totalorder %s227, %s243
      %p245 = scmp.eq.s32.totalorder %s25, 0
      %p246 = por %p244, %p245
      %p247 = scmp.le.s32.totalorder 1, %s19
      %p248 = scmp.lt.s32.totalorder %s19, 3
      %p249 = pnand %p247, %p248
      %p250 = pneg %p249
      // Predicated region
      $region9: #{net_forward.1} parent=5 // pred_check
        _
      $region10: #{net_forward.1} parent=5 // pred_check_branch
        %252 = sbr.rel (%p249) target = $region12
      $region11: #{net_forward.1} parent=5 // pred_region
        %s253 = ssub.s32 %s19, 1
        // Predicated region
        $region13: #{net_forward.1} parent=11 // pred_check
          %p254 = pneg %p66
        $region14: #{net_forward.1} parent=11 // pred_check_branch
          %256 = sbr.rel (%p254) target = $region16
        $region15: #{net_forward.1} parent=11 // pred_region
          %s258 = ssub.s32 42240, 42240
          %259 = vsyncadd [#allocation3], %s258
          %s260 = sshll.u32 [#allocation2], 4
          %s261 = int_to_ptr.vmem [resolvable:$true] %s260
          %266 = dma.hbm_to_vmem [thread:$0]  %s1, 42240, %s261, [#allocation3], 768, 768, 48
        $region16: #{net_forward.1} parent=11 // pred_fallthru
          _
        // Predicated region
        $region17: #{net_forward.1} parent=11 // pred_check
          %p267 = pneg %p87
        $region18: #{net_forward.1} parent=11 // pred_check_branch
          %269 = sbr.rel (%p267) target = $region20
        $region19: #{net_forward.1} parent=11 // pred_region
          _
        $region20: #{net_forward.1} parent=11 // pred_fallthru
          _
        // Predicated region
        $region21: #{net_forward.1} parent=11 // pred_check
          %p270 = pneg %p108
        $region22: #{net_forward.1} parent=11 // pred_check_branch
          %272 = sbr.rel (%p270) target = $region24
        $region23: #{net_forward.1} parent=11 // pred_region
          _
        $region24: #{net_forward.1} parent=11 // pred_fallthru
          _
        // Predicated region
        $region25: #{net_forward.1} parent=11 // pred_check
          %p273 = pneg %p129
        $region26: #{net_forward.1} parent=11 // pred_check_branch
          %275 = sbr.rel (%p273) target = $region28
        $region27: #{net_forward.1} parent=11 // pred_region
          _
        $region28: #{net_forward.1} parent=11 // pred_fallthru
          _
        // Predicated region
        $region29: #{net_forward.1} parent=11 // pred_check
          %p276 = pneg %p150
        $region30: #{net_forward.1} parent=11 // pred_check_branch
          %278 = sbr.rel (%p276) target = $region32
        $region31: #{net_forward.1} parent=11 // pred_region
          _
        $region32: #{net_forward.1} parent=11 // pred_fallthru
          _
        // Predicated region
        $region33: #{net_forward.1} parent=11 // pred_check
          %p279 = pneg %p171
        $region34: #{net_forward.1} parent=11 // pred_check_branch
          %281 = sbr.rel (%p279) target = $region36
        $region35: #{net_forward.1} parent=11 // pred_region
          _
        $region36: #{net_forward.1} parent=11 // pred_fallthru
          _
        // Predicated region
        $region37: #{net_forward.1} parent=11 // pred_check
          %p282 = pneg %p192
        $region38: #{net_forward.1} parent=11 // pred_check_branch
          %284 = sbr.rel (%p282) target = $region40
        $region39: #{net_forward.1} parent=11 // pred_region
          _
        $region40: #{net_forward.1} parent=11 // pred_fallthru
          _
        // Predicated region
        $region41: #{net_forward.1} parent=11 // pred_check
          %p285 = pneg %p213
        $region42: #{net_forward.1} parent=11 // pred_check_branch
          %287 = sbr.rel (%p285) target = $region44
        $region43: #{net_forward.1} parent=11 // pred_region
          _
        $region44: #{net_forward.1} parent=11 // pred_fallthru
          _
      $region12: #{net_forward.1} parent=5 // pred_fallthru
        _
      %p288 = scmp.lt.s32.totalorder %s19, 2
      // Predicated region
      $region45: #{net_forward.1} parent=5 // pred_check
        %p289 = pneg %p288
      $region46: #{net_forward.1} parent=5 // pred_check_branch
        %291 = sbr.rel (%p289) target = $region48
      $region47: #{net_forward.1} parent=5 // pred_region
        // Predicated region
        $region49: #{net_forward.1} parent=47 // pred_check
          %p292 = pneg %p39
        $region50: #{net_forward.1} parent=47 // pred_check_branch
          %294 = sbr.rel (%p292) target = $region52
        $region51: #{net_forward.1} parent=47 // pred_region
          %p295 = scmp.lt.s32.totalorder %s19, 1
          %s296 = scalar_select %p295, %s19, 1
          %s297 = smul.addr %s296, 4
          %s298 = smul.addr %s297, 8
          %s299 = scalar_lea.vmem %s0, %s298
        $region52: #{net_forward.1} parent=47 // pred_fallthru
          _
      $region48: #{net_forward.1} parent=5 // pred_fallthru
        _
      %p300 = scmp.le.s32.totalorder 1, %s19
      %p301 = scmp.lt.s32.totalorder %s19, 3
      %p302 = pnand %p300, %p301
      %p303 = pneg %p302
      // Predicated region
      $region53: #{net_forward.1} parent=5 // pred_check
        _
      $region54: #{net_forward.1} parent=5 // pred_check_branch
        %305 = sbr.rel (%p302) target = $region56
      $region55: #{net_forward.1} parent=5 // pred_region
        %s306 = ssub.s32 %s19, 1
        // Predicated region
        $region57: #{net_forward.1} parent=55 // pred_check
          %p307 = pneg %p66
        $region58: #{net_forward.1} parent=55 // pred_check_branch
          %309 = sbr.rel (%p307) target = $region60
        $region59: #{net_forward.1} parent=55 // pred_region
          %310 = dma.done [#allocation3], 42240
        $region60: #{net_forward.1} parent=55 // pred_fallthru
          _
        %p311 = scmp.lt.s32.totalorder %s24, 1
        %s312 = scalar_select %p311, %s24, 1
        %s313 = smul.addr %s312, 4
        %s314 = smul.addr %s313, 8
        %s315 = scalar_lea.vmem %s0, %s314
        %p316 = pneg %p45
        %p317 = pneg %p42
        %p318 = pneg %p66
        %p319 = pneg %p63
        %p320 = pneg %p87
        %p321 = pneg %p84
        %p322 = pneg %p108
        %p323 = pneg %p105
        %p324 = pneg %p129
        %p325 = pneg %p126
        %p326 = pneg %p150
        %p327 = pneg %p147
        %p328 = pneg %p171
        %p329 = pneg %p168
        %p330 = pneg %p192
        %p331 = pneg %p189
        %p332 = pneg %p213
        %p333 = pneg %p210
        %p334 = pneg %p239
        %p335 = pneg %p236
        %s336 = sand.u32 %s226, 1
        %s337 = scalar_lea.sflag [#allocation4], %s336
        %s338 = sand.u32 %s226, 1
        %s339 = scalar_lea.vmem [#allocation5], %s338
        %p340 = scmp.lt.s32.totalorder %s24, 1
        %s341 = scalar_select %p340, %s24, 1
        %s342 = smul.addr %s341, 4
        %s343 = smul.addr %s342, 8
        %s344 = scalar_lea.vmem %s0, %s343
        %v345 = vld [vmem:[#allocation2] sm:$0xff]
        %v346 = vld [vmem:[#allocation2 + $0x8] sm:$0xff]
        %v347 = vld [vmem:[#allocation2 + $0x10] sm:$0xff]
        %v348 = vld [vmem:[#allocation2 + $0x18] sm:$0xff]
        %v349 = vld [vmem:[#allocation2 + $0x20] sm:$0xff]
        %v350 = vld [vmem:[#allocation2 + $0x28] sm:$0xff]
        %v351 = vld [vmem:[#allocation2 + $0x30] sm:$0xff]
        %v352 = vld [vmem:[#allocation2 + $0x38] sm:$0xff]
        %v353 = vld [vmem:[#allocation2 + $0x40] sm:$0xff]
        %v354 = vld [vmem:[#allocation2 + $0x48] sm:$0xff]
        %v355 = vld [vmem:[#allocation2 + $0x50] sm:$0xff]
        %v356 = vld [vmem:[#allocation2 + $0x58] sm:$0xff]
        %v357 = vld [vmem:[#allocation2 + $0x60] sm:$0xff]
        %v358 = vld [vmem:[#allocation2 + $0x68] sm:$0xff]
        %v359 = vld [vmem:[#allocation2 + $0x70] sm:$0xff]
        %v360 = vld [vmem:[#allocation2 + $0x78] sm:$0xff]
        %v361 = vld [vmem:[#allocation2 + $0x80] sm:$0xff]
        %v362 = vld [vmem:[#allocation2 + $0x88] sm:$0xff]
        %v363 = vld [vmem:[#allocation2 + $0x90] sm:$0xff]
        %v364 = vld [vmem:[#allocation2 + $0x98] sm:$0xff]
        %v365 = vld [vmem:[#allocation2 + $0xa0] sm:$0xff]
        %v366 = vld [vmem:[#allocation2 + $0xa8] sm:$0xff]
        %v367 = vld [vmem:[#allocation2 + $0xb0] sm:$0xff]
        %v368 = vld [vmem:[#allocation2 + $0xb8] sm:$0xff]
        %v369 = vld [vmem:[#allocation2 + $0xc0] sm:$0xff]
        %v370 = vld [vmem:[#allocation2 + $0xc8] sm:$0xff]
        %v371 = vld [vmem:[#allocation2 + $0xd0] sm:$0xff]
        %v372 = vld [vmem:[#allocation2 + $0xd8] sm:$0xff]
        %v373 = vld [vmem:[#allocation2 + $0xe0] sm:$0xff]
        %v374 = vld [vmem:[#allocation2 + $0xe8] sm:$0xff]
        %v375 = vld [vmem:[#allocation2 + $0xf0] sm:$0xff]
        %v376 = vld [vmem:[#allocation2 + $0xf8] sm:$0xff]
        %v377 = vld [vmem:[#allocation2 + $0x100] sm:$0xff]
        %v378 = vld [vmem:[#allocation2 + $0x108] sm:$0xff]
        %v379 = vld [vmem:[#allocation2 + $0x110] sm:$0xff]
        %v380 = vld [vmem:[#allocation2 + $0x118] sm:$0xff]
        %v381 = vld [vmem:[#allocation2 + $0x120] sm:$0xff]
        %v382 = vld [vmem:[#allocation2 + $0x128] sm:$0xff]
        %v383 = vld [vmem:[#allocation2 + $0x130] sm:$0xff]
        %v384 = vld [vmem:[#allocation2 + $0x138] sm:$0xff]
        %v385 = vld [vmem:[#allocation2 + $0x140] sm:$0xff]
        %v386 = vld [vmem:[#allocation2 + $0x148] sm:$0xff]
        %v387 = vld [vmem:[#allocation2 + $0x150] sm:$0xff]
        %v388 = vld [vmem:[#allocation2 + $0x158] sm:$0xff]
        %v389 = vld [vmem:[#allocation2 + $0x160] sm:$0xff]
        %v390 = vld [vmem:[#allocation2 + $0x168] sm:$0xff]
        %v391 = vld [vmem:[#allocation2 + $0x170] sm:$0xff]
        %v392 = vld [vmem:[#allocation2 + $0x178] sm:$0xff]
        %v393 = vld [vmem:[#allocation2 + $0x180] sm:$0xff]
        %v394 = vld [vmem:[#allocation2 + $0x188] sm:$0xff]
        %v395 = vld [vmem:[#allocation2 + $0x190] sm:$0xff]
        %v396 = vld [vmem:[#allocation2 + $0x198] sm:$0xff]
        %v397 = vld [vmem:[#allocation2 + $0x1a0] sm:$0xff]
        %v398 = vld [vmem:[#allocation2 + $0x1a8] sm:$0xff]
        %v399 = vld [vmem:[#allocation2 + $0x1b0] sm:$0xff]
        %v400 = vld [vmem:[#allocation2 + $0x1b8] sm:$0xff]
        %v401 = vld [vmem:[#allocation2 + $0x1c0] sm:$0xff]
        %v402 = vld [vmem:[#allocation2 + $0x1c8] sm:$0xff]
        %v403 = vld [vmem:[#allocation2 + $0x1d0] sm:$0xff]
        %v404 = vld [vmem:[#allocation2 + $0x1d8] sm:$0xff]
        %v405 = vld [vmem:[#allocation2 + $0x1e0] sm:$0xf]
        %v406 = vld [vmem:[#allocation2 + $0x1e8] sm:$0xf]
        %v407 = vld [vmem:[#allocation2 + $0x1f0] sm:$0xf]
        %v408 = vld [vmem:[#allocation2 + $0x1f8] sm:$0xf]
        %v409 = vld [vmem:[#allocation2 + $0x200] sm:$0xf]
        %v410 = vld [vmem:[#allocation2 + $0x208] sm:$0xf]
        %v411 = vld [vmem:[%s344] sm:$0x3f]
        %s412 = scalar_lea.vmem %s344, 8
        %v413 = vld [vmem:[%s412] sm:$0x3f]
        %s414 = scalar_lea.vmem %s344, 16
        %v415 = vld [vmem:[%s414] sm:$0x3f]
        %s416 = scalar_lea.vmem %s344, 24
        %v417 = vld [vmem:[%s416] sm:$0x3f]
        %s418 = scalar_lea.vmem [#allocation2], 528
        %v419 = vld [vmem:[%s418] sm:$0xff]
        %v420 = vld [vmem:[%s418 + $0x8] sm:$0xff]
        %v421 = vld [vmem:[%s418 + $0x10] sm:$0xff]
        %v422 = vld [vmem:[%s418 + $0x18] sm:$0xff]
        %v423 = vld [vmem:[%s418 + $0x20] sm:$0xff]
        %v424 = vld [vmem:[%s418 + $0x28] sm:$0xff]
        %v425 = vld [vmem:[%s418 + $0x30] sm:$0xff]
        %v426 = vld [vmem:[%s418 + $0x38] sm:$0xff]
        %v427 = vld [vmem:[%s418 + $0x40] sm:$0xff]
        %v428 = vld [vmem:[%s418 + $0x48] sm:$0xff]
        %v429 = vld [vmem:[%s418 + $0x50] sm:$0xff]
        %v430 = vld [vmem:[%s418 + $0x58] sm:$0xff]
        %v431 = vld [vmem:[%s418 + $0x60] sm:$0xff]
        %v432 = vld [vmem:[%s418 + $0x68] sm:$0xff]
        %v433 = vld [vmem:[%s418 + $0x70] sm:$0xff]
        %v434 = vld [vmem:[%s418 + $0x78] sm:$0xff]
        %v435 = vld [vmem:[%s418 + $0x80] sm:$0xff]
        %v436 = vld [vmem:[%s418 + $0x88] sm:$0xff]
        %v437 = vld [vmem:[%s418 + $0x90] sm:$0xff]
        %v438 = vld [vmem:[%s418 + $0x98] sm:$0xff]
        %v439 = vld [vmem:[%s418 + $0xa0] sm:$0xff]
        %v440 = vld [vmem:[%s418 + $0xa8] sm:$0xff]
        %v441 = vld [vmem:[%s418 + $0xb0] sm:$0xff]
        %v442 = vld [vmem:[%s418 + $0xb8] sm:$0xff]
        %v443 = vld [vmem:[%s418 + $0xc0] sm:$0xff]
        %v444 = vld [vmem:[%s418 + $0xc8] sm:$0xff]
        %v445 = vld [vmem:[%s418 + $0xd0] sm:$0xff]
        %v446 = vld [vmem:[%s418 + $0xd8] sm:$0xff]
        %v447 = vld [vmem:[%s418 + $0xe0] sm:$0xff]
        %v448 = vld [vmem:[%s418 + $0xe8] sm:$0xff]
        %v449 = vld [vmem:[%s418 + $0xf0] sm:$0xff]
        %v450 = vld [vmem:[%s418 + $0xf8] sm:$0xff]
        %v451 = vld [vmem:[%s418 + $0x100] sm:$0xff]
        %v452 = vld [vmem:[%s418 + $0x108] sm:$0xff]
        %v453 = vld [vmem:[%s418 + $0x110] sm:$0xff]
        %v454 = vld [vmem:[%s418 + $0x118] sm:$0xff]
        %v455 = vld [vmem:[%s418 + $0x120] sm:$0xff]
        %v456 = vld [vmem:[%s418 + $0x128] sm:$0xff]
        %v457 = vld [vmem:[%s418 + $0x130] sm:$0xff]
        %v458 = vld [vmem:[%s418 + $0x138] sm:$0xff]
        %v459 = vld [vmem:[%s418 + $0x140] sm:$0xff]
        %v460 = vld [vmem:[%s418 + $0x148] sm:$0xff]
        %v461 = vld [vmem:[%s418 + $0x150] sm:$0xff]
        %v462 = vld [vmem:[%s418 + $0x158] sm:$0xff]
        %v463 = vld [vmem:[%s418 + $0x160] sm:$0xff]
        %v464 = vld [vmem:[%s418 + $0x168] sm:$0xff]
        %v465 = vld [vmem:[%s418 + $0x170] sm:$0xff]
        %v466 = vld [vmem:[%s418 + $0x178] sm:$0xff]
        %v467 = vld [vmem:[%s418 + $0x180] sm:$0xff]
        %v468 = vld [vmem:[%s418 + $0x188] sm:$0xff]
        %v469 = vld [vmem:[%s418 + $0x190] sm:$0xff]
        %v470 = vld [vmem:[%s418 + $0x198] sm:$0xff]
        %v471 = vld [vmem:[%s418 + $0x1a0] sm:$0xff]
        %v472 = vld [vmem:[%s418 + $0x1a8] sm:$0xff]
        %v473 = vld [vmem:[%s418 + $0x1b0] sm:$0xff]
        %v474 = vld [vmem:[%s418 + $0x1b8] sm:$0xff]
        %v475 = vld [vmem:[%s418 + $0x1c0] sm:$0xff]
        %v476 = vld [vmem:[%s418 + $0x1c8] sm:$0xff]
        %v477 = vld [vmem:[%s418 + $0x1d0] sm:$0xff]
        %v478 = vld [vmem:[%s418 + $0x1d8] sm:$0xff]
        %v479 = vld [vmem:[%s418 + $0x1e0] sm:$0xf]
        %v480 = vld [vmem:[%s418 + $0x1e8] sm:$0xf]
        %v481 = vld [vmem:[%s418 + $0x1f0] sm:$0xf]
        %v482 = vld [vmem:[%s418 + $0x1f8] sm:$0xf]
        %v483 = vld [vmem:[%s418 + $0x200] sm:$0xf]
        %v484 = vld [vmem:[%s418 + $0x208] sm:$0xf]
        %vm485 = vcmask 687104
        %v487 = vsel %vm485, %v413, 0
        %vm489 = vcmask 1043456
        %v491 = vsel %vm489, %v479, 0
        %v494 = vsel %vm489, %v480, 0
        %v497 = vsel %vm489, %v481, 0
        %v500 = vsel %vm489, %v482, 0
        %v503 = vsel %vm489, %v483, 0
        %v506 = vsel %vm489, %v484, 0
        %508 = vmatprep.subr.mxu0 0.0
        %509 = vmatpush1.msra.mxu0 0.0
        %510 = vmatprep.subr.mxu0 0.0
        %511 = vmatpush1.msra.mxu0 0.0
        %512 = vmatprep.subr.mxu0 0.0
        %513 = vmatpush1.msra.mxu0 0.0
        %514 = vmatprep.subr.mxu0 0.0
        %515 = vmatpush1.msra.mxu0 0.0
        %516 = vmatprep.subr.mxu0 0.0
        %517 = vmatpush1.msra.mxu0 0.0
        %518 = vmatprep.subr.mxu0 %v494
        %519 = vmatpush1.msra.mxu0 %v491
        %520 = vmatprep.subr.mxu0 %v474
        %521 = vmatpush1.msra.mxu0 %v473
        %522 = vmatprep.subr.mxu0 %v468
        %523 = vmatpush1.msra.mxu0 %v467
        %524 = vmatprep.subr.mxu0 %v462
        %525 = vmatpush1.msra.mxu0 %v461
        %526 = vmatprep.subr.mxu0 %v456
        %527 = vmatpush1.msra.mxu0 %v455
        %528 = vmatprep.subr.mxu0 %v450
        %529 = vmatpush1.msra.mxu0 %v449
        %530 = vmatprep.subr.mxu0 %v444
        %531 = vmatpush1.msra.mxu0 %v443
        %532 = vmatprep.subr.mxu0 %v438
        %533 = vmatpush1.msra.mxu0 %v437
        %534 = vmatprep.subr.mxu0 %v432
        %535 = vmatpush1.msra.mxu0 %v431
        %536 = vmatprep.subr.mxu0 %v426
        %537 = vmatpush1.msra.mxu0 %v425
        %538 = vmatprep.subr.mxu0 %v420
        %539 = vmatpush1.msra.mxu0 %v419
        %540 = vmatprep.subr.mxu0 0.0
        %541 = vmatpush2.msra.mxu0 0.0
        %542 = vmatprep.subr.mxu0 0.0
        %543 = vmatpush2.msra.mxu0 0.0
        %544 = vmatprep.subr.mxu0 0.0
        %545 = vmatpush2.msra.mxu0 0.0
        %546 = vmatprep.subr.mxu0 0.0
        %547 = vmatpush2.msra.mxu0 0.0
        %548 = vmatprep.subr.mxu0 0.0
        %549 = vmatpush2.msra.mxu0 0.0
        %550 = vmatprep.subr.mxu0 0.0
        %551 = vmatpush2.msra.mxu0 0.0
        %552 = vmatprep.subr.mxu0 0.0
        %553 = vmatpush2.msra.mxu0 0.0
        %554 = vmatprep.subr.mxu0 0.0
        %555 = vmatpush2.msra.mxu0 0.0
        %556 = vmatprep.subr.mxu0 0.0
        %557 = vmatpush2.msra.mxu0 0.0
        %558 = vmatprep.subr.mxu0 0.0
        %559 = vmatpush2.msra.mxu0 0.0
        %560 = vmatprep.subr.mxu0 0.0
        %561 = vmatpush2.msra.mxu0 0.0
        %562 = vmatprep.subr.mxu0 0.0
        %563 = vmatpush2.msra.mxu0 0.0
        %564 = vmatprep.subr.mxu0 0.0
        %565 = vmatpush2.msra.mxu0 0.0
        %566 = vmatprep.subr.mxu0 0.0
        %567 = vmatpush2.msra.mxu0 0.0
        %568 = vmatprep.subr.mxu0 0.0
        %569 = vmatpush2.msra.mxu0 0.0
        %570 = vmatprep.subr.mxu0 0.0
        %571 = vmatpush2.msra.mxu0 0.0
        %572 = vmatprep.mubr.f32.mxu0 0.0
        %573 = vmatmul.mubr.f32.gmra.mxu0 %v487
        %v574 = vpop.f32.mrf.mxu0
        %v575 = vadd.f32 0.0, %v574
        %v576 = vpop.f32.mrf.mxu0
        %v577 = vadd.f32 0.0, %v576
        %578 = vdwg.mxu0
        %579 = vmatprep.subr.mxu0 0.0
        %580 = vmatpush1.msra.mxu0 0.0
        %581 = vmatprep.subr.mxu0 0.0
        %582 = vmatpush1.msra.mxu0 0.0
        %583 = vmatprep.subr.mxu0 0.0
        %584 = vmatpush1.msra.mxu0 0.0
        %585 = vmatprep.subr.mxu0 0.0
        %586 = vmatpush1.msra.mxu0 0.0
        %587 = vmatprep.subr.mxu0 0.0
        %588 = vmatpush1.msra.mxu0 0.0
        %589 = vmatprep.subr.mxu0 %v500
        %590 = vmatpush1.msra.mxu0 %v497
        %591 = vmatprep.subr.mxu0 %v476
        %592 = vmatpush1.msra.mxu0 %v475
        %593 = vmatprep.subr.mxu0 %v470
        %594 = vmatpush1.msra.mxu0 %v469
        %595 = vmatprep.subr.mxu0 %v464
        %596 = vmatpush1.msra.mxu0 %v463
        %597 = vmatprep.subr.mxu0 %v458
        %598 = vmatpush1.msra.mxu0 %v457
        %599 = vmatprep.subr.mxu0 %v452
        %600 = vmatpush1.msra.mxu0 %v451
        %601 = vmatprep.subr.mxu0 %v446
        %602 = vmatpush1.msra.mxu0 %v445
        %603 = vmatprep.subr.mxu0 %v440
        %604 = vmatpush1.msra.mxu0 %v439
        %605 = vmatprep.subr.mxu0 %v434
        %606 = vmatpush1.msra.mxu0 %v433
        %607 = vmatprep.subr.mxu0 %v428
        %608 = vmatpush1.msra.mxu0 %v427
        %609 = vmatprep.subr.mxu0 %v422
        %610 = vmatpush1.msra.mxu0 %v421
        %611 = vmatprep.subr.mxu0 0.0
        %612 = vmatpush2.msra.mxu0 0.0
        %613 = vmatprep.subr.mxu0 0.0
        %614 = vmatpush2.msra.mxu0 0.0
        %615 = vmatprep.subr.mxu0 0.0
        %616 = vmatpush2.msra.mxu0 0.0
        %617 = vmatprep.subr.mxu0 0.0
        %618 = vmatpush2.msra.mxu0 0.0
        %619 = vmatprep.subr.mxu0 0.0
        %620 = vmatpush2.msra.mxu0 0.0
        %621 = vmatprep.subr.mxu0 0.0
        %622 = vmatpush2.msra.mxu0 0.0
        %623 = vmatprep.subr.mxu0 0.0
        %624 = vmatpush2.msra.mxu0 0.0
        %625 = vmatprep.subr.mxu0 0.0
        %626 = vmatpush2.msra.mxu0 0.0
        %627 = vmatprep.subr.mxu0 0.0
        %628 = vmatpush2.msra.mxu0 0.0
        %629 = vmatprep.subr.mxu0 0.0
        %630 = vmatpush2.msra.mxu0 0.0
        %631 = vmatprep.subr.mxu0 0.0
        %632 = vmatpush2.msra.mxu0 0.0
        %633 = vmatprep.subr.mxu0 0.0
        %634 = vmatpush2.msra.mxu0 0.0
        %635 = vmatprep.subr.mxu0 0.0
        %636 = vmatpush2.msra.mxu0 0.0
        %637 = vmatprep.subr.mxu0 0.0
        %638 = vmatpush2.msra.mxu0 0.0
        %639 = vmatprep.subr.mxu0 0.0
        %640 = vmatpush2.msra.mxu0 0.0
        %641 = vmatprep.subr.mxu0 0.0
        %642 = vmatpush2.msra.mxu0 0.0
        %643 = vmatprep.mubr.f32.mxu0 0.0
        %644 = vmatmul.mubr.f32.gmra.mxu0 %v487
        %v645 = vpop.f32.mrf.mxu0
        %v646 = vadd.f32 0.0, %v645
        %v647 = vpop.f32.mrf.mxu0
        %v648 = vadd.f32 0.0, %v647
        %649 = vdwg.mxu0
        %650 = vmatprep.subr.mxu0 0.0
        %651 = vmatpush1.msra.mxu0 0.0
        %652 = vmatprep.subr.mxu0 0.0
        %653 = vmatpush1.msra.mxu0 0.0
        %654 = vmatprep.subr.mxu0 0.0
        %655 = vmatpush1.msra.mxu0 0.0
        %656 = vmatprep.subr.mxu0 0.0
        %657 = vmatpush1.msra.mxu0 0.0
        %658 = vmatprep.subr.mxu0 0.0
        %659 = vmatpush1.msra.mxu0 0.0
        %660 = vmatprep.subr.mxu0 %v506
        %661 = vmatpush1.msra.mxu0 %v503
        %662 = vmatprep.subr.mxu0 %v478
        %663 = vmatpush1.msra.mxu0 %v477
        %664 = vmatprep.subr.mxu0 %v472
        %665 = vmatpush1.msra.mxu0 %v471
        %666 = vmatprep.subr.mxu0 %v466
        %667 = vmatpush1.msra.mxu0 %v465
        %668 = vmatprep.subr.mxu0 %v460
        %669 = vmatpush1.msra.mxu0 %v459
        %670 = vmatprep.subr.mxu0 %v454
        %671 = vmatpush1.msra.mxu0 %v453
        %672 = vmatprep.subr.mxu0 %v448
        %673 = vmatpush1.msra.mxu0 %v447
        %674 = vmatprep.subr.mxu0 %v442
        %675 = vmatpush1.msra.mxu0 %v441
        %676 = vmatprep.subr.mxu0 %v436
        %677 = vmatpush1.msra.mxu0 %v435
        %678 = vmatprep.subr.mxu0 %v430
        %679 = vmatpush1.msra.mxu0 %v429
        %680 = vmatprep.subr.mxu0 %v424
        %681 = vmatpush1.msra.mxu0 %v423
        %682 = vmatprep.subr.mxu0 0.0
        %683 = vmatpush2.msra.mxu0 0.0
        %684 = vmatprep.subr.mxu0 0.0
        %685 = vmatpush2.msra.mxu0 0.0
        %686 = vmatprep.subr.mxu0 0.0
        %687 = vmatpush2.msra.mxu0 0.0
        %688 = vmatprep.subr.mxu0 0.0
        %689 = vmatpush2.msra.mxu0 0.0
        %690 = vmatprep.subr.mxu0 0.0
        %691 = vmatpush2.msra.mxu0 0.0
        %692 = vmatprep.subr.mxu0 0.0
        %693 = vmatpush2.msra.mxu0 0.0
        %694 = vmatprep.subr.mxu0 0.0
        %695 = vmatpush2.msra.mxu0 0.0
        %696 = vmatprep.subr.mxu0 0.0
        %697 = vmatpush2.msra.mxu0 0.0
        %698 = vmatprep.subr.mxu0 0.0
        %699 = vmatpush2.msra.mxu0 0.0
        %700 = vmatprep.subr.mxu0 0.0
        %701 = vmatpush2.msra.mxu0 0.0
        %702 = vmatprep.subr.mxu0 0.0
        %703 = vmatpush2.msra.mxu0 0.0
        %704 = vmatprep.subr.mxu0 0.0
        %705 = vmatpush2.msra.mxu0 0.0
        %706 = vmatprep.subr.mxu0 0.0
        %707 = vmatpush2.msra.mxu0 0.0
        %708 = vmatprep.subr.mxu0 0.0
        %709 = vmatpush2.msra.mxu0 0.0
        %710 = vmatprep.subr.mxu0 0.0
        %711 = vmatpush2.msra.mxu0 0.0
        %712 = vmatprep.subr.mxu0 0.0
        %713 = vmatpush2.msra.mxu0 0.0
        %714 = vmatprep.mubr.f32.mxu0 0.0
        %715 = vmatmul.mubr.f32.gmra.mxu0 %v487
        %v716 = vpop.f32.mrf.mxu0
        %v717 = vadd.f32 0.0, %v716
        %v718 = vpop.f32.mrf.mxu0
        %v719 = vadd.f32 0.0, %v718
        %720 = vdwg.mxu0
        %v722 = vsel %vm485, %v411, 0
        %v725 = vsel %vm489, %v405, 0
        %v728 = vsel %vm489, %v406, 0
        %v731 = vsel %vm489, %v407, 0
        %v734 = vsel %vm489, %v408, 0
        %v737 = vsel %vm489, %v409, 0
        %v740 = vsel %vm489, %v410, 0
        %742 = vmatprep.subr.mxu0 0.0
        %743 = vmatpush1.msra.mxu0 0.0
        %744 = vmatprep.subr.mxu0 0.0
        %745 = vmatpush1.msra.mxu0 0.0
        %746 = vmatprep.subr.mxu0 0.0
        %747 = vmatpush1.msra.mxu0 0.0
        %748 = vmatprep.subr.mxu0 0.0
        %749 = vmatpush1.msra.mxu0 0.0
        %750 = vmatprep.subr.mxu0 0.0
        %751 = vmatpush1.msra.mxu0 0.0
        %752 = vmatprep.subr.mxu0 %v728
        %753 = vmatpush1.msra.mxu0 %v725
        %754 = vmatprep.subr.mxu0 %v400
        %755 = vmatpush1.msra.mxu0 %v399
        %756 = vmatprep.subr.mxu0 %v394
        %757 = vmatpush1.msra.mxu0 %v393
        %758 = vmatprep.subr.mxu0 %v388
        %759 = vmatpush1.msra.mxu0 %v387
        %760 = vmatprep.subr.mxu0 %v382
        %761 = vmatpush1.msra.mxu0 %v381
        %762 = vmatprep.subr.mxu0 %v376
        %763 = vmatpush1.msra.mxu0 %v375
        %764 = vmatprep.subr.mxu0 %v370
        %765 = vmatpush1.msra.mxu0 %v369
        %766 = vmatprep.subr.mxu0 %v364
        %767 = vmatpush1.msra.mxu0 %v363
        %768 = vmatprep.subr.mxu0 %v358
        %769 = vmatpush1.msra.mxu0 %v357
        %770 = vmatprep.subr.mxu0 %v352
        %771 = vmatpush1.msra.mxu0 %v351
        %772 = vmatprep.subr.mxu0 %v346
        %773 = vmatpush1.msra.mxu0 %v345
        %774 = vmatprep.subr.mxu0 0.0
        %775 = vmatpush2.msra.mxu0 0.0
        %776 = vmatprep.subr.mxu0 0.0
        %777 = vmatpush2.msra.mxu0 0.0
        %778 = vmatprep.subr.mxu0 0.0
        %779 = vmatpush2.msra.mxu0 0.0
        %780 = vmatprep.subr.mxu0 0.0
        %781 = vmatpush2.msra.mxu0 0.0
        %782 = vmatprep.subr.mxu0 0.0
        %783 = vmatpush2.msra.mxu0 0.0
        %784 = vmatprep.subr.mxu0 0.0
        %785 = vmatpush2.msra.mxu0 0.0
        %786 = vmatprep.subr.mxu0 0.0
        %787 = vmatpush2.msra.mxu0 0.0
        %788 = vmatprep.subr.mxu0 0.0
        %789 = vmatpush2.msra.mxu0 0.0
        %790 = vmatprep.subr.mxu0 0.0
        %791 = vmatpush2.msra.mxu0 0.0
        %792 = vmatprep.subr.mxu0 0.0
        %793 = vmatpush2.msra.mxu0 0.0
        %794 = vmatprep.subr.mxu0 0.0
        %795 = vmatpush2.msra.mxu0 0.0
        %796 = vmatprep.subr.mxu0 0.0
        %797 = vmatpush2.msra.mxu0 0.0
        %798 = vmatprep.subr.mxu0 0.0
        %799 = vmatpush2.msra.mxu0 0.0
        %800 = vmatprep.subr.mxu0 0.0
        %801 = vmatpush2.msra.mxu0 0.0
        %802 = vmatprep.subr.mxu0 0.0
        %803 = vmatpush2.msra.mxu0 0.0
        %804 = vmatprep.subr.mxu0 0.0
        %805 = vmatpush2.msra.mxu0 0.0
        %806 = vmatprep.mubr.f32.mxu0 0.0
        %807 = vmatmul.mubr.f32.gmra.mxu0 %v722
        %v808 = vpop.f32.mrf.mxu0
        %v809 = vadd.f32 %v575, %v808
        %v810 = vpop.f32.mrf.mxu0
        %v811 = vadd.f32 %v577, %v810
        %812 = vdwg.mxu0
        %813 = vmatprep.subr.mxu0 0.0
        %814 = vmatpush1.msra.mxu0 0.0
        %815 = vmatprep.subr.mxu0 0.0
        %816 = vmatpush1.msra.mxu0 0.0
        %817 = vmatprep.subr.mxu0 0.0
        %818 = vmatpush1.msra.mxu0 0.0
        %819 = vmatprep.subr.mxu0 0.0
        %820 = vmatpush1.msra.mxu0 0.0
        %821 = vmatprep.subr.mxu0 0.0
        %822 = vmatpush1.msra.mxu0 0.0
        %823 = vmatprep.subr.mxu0 %v734
        %824 = vmatpush1.msra.mxu0 %v731
        %825 = vmatprep.subr.mxu0 %v402
        %826 = vmatpush1.msra.mxu0 %v401
        %827 = vmatprep.subr.mxu0 %v396
        %828 = vmatpush1.msra.mxu0 %v395
        %829 = vmatprep.subr.mxu0 %v390
        %830 = vmatpush1.msra.mxu0 %v389
        %831 = vmatprep.subr.mxu0 %v384
        %832 = vmatpush1.msra.mxu0 %v383
        %833 = vmatprep.subr.mxu0 %v378
        %834 = vmatpush1.msra.mxu0 %v377
        %835 = vmatprep.subr.mxu0 %v372
        %836 = vmatpush1.msra.mxu0 %v371
        %837 = vmatprep.subr.mxu0 %v366
        %838 = vmatpush1.msra.mxu0 %v365
        %839 = vmatprep.subr.mxu0 %v360
        %840 = vmatpush1.msra.mxu0 %v359
        %841 = vmatprep.subr.mxu0 %v354
        %842 = vmatpush1.msra.mxu0 %v353
        %843 = vmatprep.subr.mxu0 %v348
        %844 = vmatpush1.msra.mxu0 %v347
        %845 = vmatprep.subr.mxu0 0.0
        %846 = vmatpush2.msra.mxu0 0.0
        %847 = vmatprep.subr.mxu0 0.0
        %848 = vmatpush2.msra.mxu0 0.0
        %849 = vmatprep.subr.mxu0 0.0
        %850 = vmatpush2.msra.mxu0 0.0
        %851 = vmatprep.subr.mxu0 0.0
        %852 = vmatpush2.msra.mxu0 0.0
        %853 = vmatprep.subr.mxu0 0.0
        %854 = vmatpush2.msra.mxu0 0.0
        %855 = vmatprep.subr.mxu0 0.0
        %856 = vmatpush2.msra.mxu0 0.0
        %857 = vmatprep.subr.mxu0 0.0
        %858 = vmatpush2.msra.mxu0 0.0
        %859 = vmatprep.subr.mxu0 0.0
        %860 = vmatpush2.msra.mxu0 0.0
        %861 = vmatprep.subr.mxu0 0.0
        %862 = vmatpush2.msra.mxu0 0.0
        %863 = vmatprep.subr.mxu0 0.0
        %864 = vmatpush2.msra.mxu0 0.0
        %865 = vmatprep.subr.mxu0 0.0
        %866 = vmatpush2.msra.mxu0 0.0
        %867 = vmatprep.subr.mxu0 0.0
        %868 = vmatpush2.msra.mxu0 0.0
        %869 = vmatprep.subr.mxu0 0.0
        %870 = vmatpush2.msra.mxu0 0.0
        %871 = vmatprep.subr.mxu0 0.0
        %872 = vmatpush2.msra.mxu0 0.0
        %873 = vmatprep.subr.mxu0 0.0
        %874 = vmatpush2.msra.mxu0 0.0
        %875 = vmatprep.subr.mxu0 0.0
        %876 = vmatpush2.msra.mxu0 0.0
        %877 = vmatprep.mubr.f32.mxu0 0.0
        %878 = vmatmul.mubr.f32.gmra.mxu0 %v722
        %v879 = vpop.f32.mrf.mxu0
        %v880 = vadd.f32 %v646, %v879
        %v881 = vpop.f32.mrf.mxu0
        %v882 = vadd.f32 %v648, %v881
        %883 = vdwg.mxu0
        %884 = vmatprep.subr.mxu0 0.0
        %885 = vmatpush1.msra.mxu0 0.0
        %886 = vmatprep.subr.mxu0 0.0
        %887 = vmatpush1.msra.mxu0 0.0
        %888 = vmatprep.subr.mxu0 0.0
        %889 = vmatpush1.msra.mxu0 0.0
        %890 = vmatprep.subr.mxu0 0.0
        %891 = vmatpush1.msra.mxu0 0.0
        %892 = vmatprep.subr.mxu0 0.0
        %893 = vmatpush1.msra.mxu0 0.0
        %894 = vmatprep.subr.mxu0 %v740
        %895 = vmatpush1.msra.mxu0 %v737
        %896 = vmatprep.subr.mxu0 %v404
        %897 = vmatpush1.msra.mxu0 %v403
        %898 = vmatprep.subr.mxu0 %v398
        %899 = vmatpush1.msra.mxu0 %v397
        %900 = vmatprep.subr.mxu0 %v392
        %901 = vmatpush1.msra.mxu0 %v391
        %902 = vmatprep.subr.mxu0 %v386
        %903 = vmatpush1.msra.mxu0 %v385
        %904 = vmatprep.subr.mxu0 %v380
        %905 = vmatpush1.msra.mxu0 %v379
        %906 = vmatprep.subr.mxu0 %v374
        %907 = vmatpush1.msra.mxu0 %v373
        %908 = vmatprep.subr.mxu0 %v368
        %909 = vmatpush1.msra.mxu0 %v367
        %910 = vmatprep.subr.mxu0 %v362
        %911 = vmatpush1.msra.mxu0 %v361
        %912 = vmatprep.subr.mxu0 %v356
        %913 = vmatpush1.msra.mxu0 %v355
        %914 = vmatprep.subr.mxu0 %v350
        %915 = vmatpush1.msra.mxu0 %v349
        %916 = vmatprep.subr.mxu0 0.0
        %917 = vmatpush2.msra.mxu0 0.0
        %918 = vmatprep.subr.mxu0 0.0
        %919 = vmatpush2.msra.mxu0 0.0
        %920 = vmatprep.subr.mxu0 0.0
        %921 = vmatpush2.msra.mxu0 0.0
        %922 = vmatprep.subr.mxu0 0.0
        %923 = vmatpush2.msra.mxu0 0.0
        %924 = vmatprep.subr.mxu0 0.0
        %925 = vmatpush2.msra.mxu0 0.0
        %926 = vmatprep.subr.mxu0 0.0
        %927 = vmatpush2.msra.mxu0 0.0
        %928 = vmatprep.subr.mxu0 0.0
        %929 = vmatpush2.msra.mxu0 0.0
        %930 = vmatprep.subr.mxu0 0.0
        %931 = vmatpush2.msra.mxu0 0.0
        %932 = vmatprep.subr.mxu0 0.0
        %933 = vmatpush2.msra.mxu0 0.0
        %934 = vmatprep.subr.mxu0 0.0
        %935 = vmatpush2.msra.mxu0 0.0
        %936 = vmatprep.subr.mxu0 0.0
        %937 = vmatpush2.msra.mxu0 0.0
        %938 = vmatprep.subr.mxu0 0.0
        %939 = vmatpush2.msra.mxu0 0.0
        %940 = vmatprep.subr.mxu0 0.0
        %941 = vmatpush2.msra.mxu0 0.0
        %942 = vmatprep.subr.mxu0 0.0
        %943 = vmatpush2.msra.mxu0 0.0
        %944 = vmatprep.subr.mxu0 0.0
        %945 = vmatpush2.msra.mxu0 0.0
        %946 = vmatprep.subr.mxu0 0.0
        %947 = vmatpush2.msra.mxu0 0.0
        %948 = vmatprep.mubr.f32.mxu0 0.0
        %949 = vmatmul.mubr.f32.gmra.mxu0 %v722
        %v950 = vpop.f32.mrf.mxu0
        %v951 = vadd.f32 %v717, %v950
        %v952 = vpop.f32.mrf.mxu0
        %v953 = vadd.f32 %v719, %v952
        %954 = vdwg.mxu0
        %v956 = vsel %vm485, %v415, 0
        %958 = vmatprep.subr.mxu0 0.0
        %959 = vmatpush1.msra.mxu0 0.0
        %960 = vmatprep.subr.mxu0 0.0
        %961 = vmatpush1.msra.mxu0 0.0
        %962 = vmatprep.subr.mxu0 0.0
        %963 = vmatpush1.msra.mxu0 0.0
        %964 = vmatprep.subr.mxu0 0.0
        %965 = vmatpush1.msra.mxu0 0.0
        %966 = vmatprep.subr.mxu0 0.0
        %967 = vmatpush1.msra.mxu0 0.0
        %968 = vmatprep.subr.mxu0 %v494
        %969 = vmatpush1.msra.mxu0 %v491
        %970 = vmatprep.subr.mxu0 %v474
        %971 = vmatpush1.msra.mxu0 %v473
        %972 = vmatprep.subr.mxu0 %v468
        %973 = vmatpush1.msra.mxu0 %v467
        %974 = vmatprep.subr.mxu0 %v462
        %975 = vmatpush1.msra.mxu0 %v461
        %976 = vmatprep.subr.mxu0 %v456
        %977 = vmatpush1.msra.mxu0 %v455
        %978 = vmatprep.subr.mxu0 %v450
        %979 = vmatpush1.msra.mxu0 %v449
        %980 = vmatprep.subr.mxu0 %v444
        %981 = vmatpush1.msra.mxu0 %v443
        %982 = vmatprep.subr.mxu0 %v438
        %983 = vmatpush1.msra.mxu0 %v437
        %984 = vmatprep.subr.mxu0 %v432
        %985 = vmatpush1.msra.mxu0 %v431
        %986 = vmatprep.subr.mxu0 %v426
        %987 = vmatpush1.msra.mxu0 %v425
        %988 = vmatprep.subr.mxu0 %v420
        %989 = vmatpush1.msra.mxu0 %v419
        %990 = vmatprep.subr.mxu0 0.0
        %991 = vmatpush2.msra.mxu0 0.0
        %992 = vmatprep.subr.mxu0 0.0
        %993 = vmatpush2.msra.mxu0 0.0
        %994 = vmatprep.subr.mxu0 0.0
        %995 = vmatpush2.msra.mxu0 0.0
        %996 = vmatprep.subr.mxu0 0.0
        %997 = vmatpush2.msra.mxu0 0.0
        %998 = vmatprep.subr.mxu0 0.0
        %999 = vmatpush2.msra.mxu0 0.0
        %1000 = vmatprep.subr.mxu0 0.0
        %1001 = vmatpush2.msra.mxu0 0.0
        %1002 = vmatprep.subr.mxu0 0.0
        %1003 = vmatpush2.msra.mxu0 0.0
        %1004 = vmatprep.subr.mxu0 0.0
        %1005 = vmatpush2.msra.mxu0 0.0
        %1006 = vmatprep.subr.mxu0 0.0
        %1007 = vmatpush2.msra.mxu0 0.0
        %1008 = vmatprep.subr.mxu0 0.0
        %1009 = vmatpush2.msra.mxu0 0.0
        %1010 = vmatprep.subr.mxu0 0.0
        %1011 = vmatpush2.msra.mxu0 0.0
        %1012 = vmatprep.subr.mxu0 0.0
        %1013 = vmatpush2.msra.mxu0 0.0
        %1014 = vmatprep.subr.mxu0 0.0
        %1015 = vmatpush2.msra.mxu0 0.0
        %1016 = vmatprep.subr.mxu0 0.0
        %1017 = vmatpush2.msra.mxu0 0.0
        %1018 = vmatprep.subr.mxu0 0.0
        %1019 = vmatpush2.msra.mxu0 0.0
        %1020 = vmatprep.subr.mxu0 0.0
        %1021 = vmatpush2.msra.mxu0 0.0
        %1022 = vmatprep.mubr.f32.mxu0 0.0
        %1023 = vmatmul.mubr.f32.gmra.mxu0 %v956
        %v1024 = vpop.f32.mrf.mxu0
        %v1025 = vadd.f32 0.0, %v1024
        %v1026 = vpop.f32.mrf.mxu0
        %v1027 = vadd.f32 0.0, %v1026
        %1028 = vdwg.mxu0
        %1029 = vmatprep.subr.mxu0 0.0
        %1030 = vmatpush1.msra.mxu0 0.0
        %1031 = vmatprep.subr.mxu0 0.0
        %1032 = vmatpush1.msra.mxu0 0.0
        %1033 = vmatprep.subr.mxu0 0.0
        %1034 = vmatpush1.msra.mxu0 0.0
        %1035 = vmatprep.subr.mxu0 0.0
        %1036 = vmatpush1.msra.mxu0 0.0
        %1037 = vmatprep.subr.mxu0 0.0
        %1038 = vmatpush1.msra.mxu0 0.0
        %1039 = vmatprep.subr.mxu0 %v500
        %1040 = vmatpush1.msra.mxu0 %v497
        %1041 = vmatprep.subr.mxu0 %v476
        %1042 = vmatpush1.msra.mxu0 %v475
        %1043 = vmatprep.subr.mxu0 %v470
        %1044 = vmatpush1.msra.mxu0 %v469
        %1045 = vmatprep.subr.mxu0 %v464
        %1046 = vmatpush1.msra.mxu0 %v463
        %1047 = vmatprep.subr.mxu0 %v458
        %1048 = vmatpush1.msra.mxu0 %v457
        %1049 = vmatprep.subr.mxu0 %v452
        %1050 = vmatpush1.msra.mxu0 %v451
        %1051 = vmatprep.subr.mxu0 %v446
        %1052 = vmatpush1.msra.mxu0 %v445
        %1053 = vmatprep.subr.mxu0 %v440
        %1054 = vmatpush1.msra.mxu0 %v439
        %1055 = vmatprep.subr.mxu0 %v434
        %1056 = vmatpush1.msra.mxu0 %v433
        %1057 = vmatprep.subr.mxu0 %v428
        %1058 = vmatpush1.msra.mxu0 %v427
        %1059 = vmatprep.subr.mxu0 %v422
        %1060 = vmatpush1.msra.mxu0 %v421
        %1061 = vmatprep.subr.mxu0 0.0
        %1062 = vmatpush2.msra.mxu0 0.0
        %1063 = vmatprep.subr.mxu0 0.0
        %1064 = vmatpush2.msra.mxu0 0.0
        %1065 = vmatprep.subr.mxu0 0.0
        %1066 = vmatpush2.msra.mxu0 0.0
        %1067 = vmatprep.subr.mxu0 0.0
        %1068 = vmatpush2.msra.mxu0 0.0
        %1069 = vmatprep.subr.mxu0 0.0
        %1070 = vmatpush2.msra.mxu0 0.0
        %1071 = vmatprep.subr.mxu0 0.0
        %1072 = vmatpush2.msra.mxu0 0.0
        %1073 = vmatprep.subr.mxu0 0.0
        %1074 = vmatpush2.msra.mxu0 0.0
        %1075 = vmatprep.subr.mxu0 0.0
        %1076 = vmatpush2.msra.mxu0 0.0
        %1077 = vmatprep.subr.mxu0 0.0
        %1078 = vmatpush2.msra.mxu0 0.0
        %1079 = vmatprep.subr.mxu0 0.0
        %1080 = vmatpush2.msra.mxu0 0.0
        %1081 = vmatprep.subr.mxu0 0.0
        %1082 = vmatpush2.msra.mxu0 0.0
        %1083 = vmatprep.subr.mxu0 0.0
        %1084 = vmatpush2.msra.mxu0 0.0
        %1085 = vmatprep.subr.mxu0 0.0
        %1086 = vmatpush2.msra.mxu0 0.0
        %1087 = vmatprep.subr.mxu0 0.0
        %1088 = vmatpush2.msra.mxu0 0.0
        %1089 = vmatprep.subr.mxu0 0.0
        %1090 = vmatpush2.msra.mxu0 0.0
        %1091 = vmatprep.subr.mxu0 0.0
        %1092 = vmatpush2.msra.mxu0 0.0
        %1093 = vmatprep.mubr.f32.mxu0 0.0
        %1094 = vmatmul.mubr.f32.gmra.mxu0 %v956
        %v1095 = vpop.f32.mrf.mxu0
        %v1096 = vadd.f32 0.0, %v1095
        %v1097 = vpop.f32.mrf.mxu0
        %v1098 = vadd.f32 0.0, %v1097
        %1099 = vdwg.mxu0
        %1100 = vmatprep.subr.mxu0 0.0
        %1101 = vmatpush1.msra.mxu0 0.0
        %1102 = vmatprep.subr.mxu0 0.0
        %1103 = vmatpush1.msra.mxu0 0.0
        %1104 = vmatprep.subr.mxu0 0.0
        %1105 = vmatpush1.msra.mxu0 0.0
        %1106 = vmatprep.subr.mxu0 0.0
        %1107 = vmatpush1.msra.mxu0 0.0
        %1108 = vmatprep.subr.mxu0 0.0
        %1109 = vmatpush1.msra.mxu0 0.0
        %1110 = vmatprep.subr.mxu0 %v506
        %1111 = vmatpush1.msra.mxu0 %v503
        %1112 = vmatprep.subr.mxu0 %v478
        %1113 = vmatpush1.msra.mxu0 %v477
        %1114 = vmatprep.subr.mxu0 %v472
        %1115 = vmatpush1.msra.mxu0 %v471
        %1116 = vmatprep.subr.mxu0 %v466
        %1117 = vmatpush1.msra.mxu0 %v465
        %1118 = vmatprep.subr.mxu0 %v460
        %1119 = vmatpush1.msra.mxu0 %v459
        %1120 = vmatprep.subr.mxu0 %v454
        %1121 = vmatpush1.msra.mxu0 %v453
        %1122 = vmatprep.subr.mxu0 %v448
        %1123 = vmatpush1.msra.mxu0 %v447
        %1124 = vmatprep.subr.mxu0 %v442
        %1125 = vmatpush1.msra.mxu0 %v441
        %1126 = vmatprep.subr.mxu0 %v436
        %1127 = vmatpush1.msra.mxu0 %v435
        %1128 = vmatprep.subr.mxu0 %v430
        %1129 = vmatpush1.msra.mxu0 %v429
        %1130 = vmatprep.subr.mxu0 %v424
        %1131 = vmatpush1.msra.mxu0 %v423
        %1132 = vmatprep.subr.mxu0 0.0
        %1133 = vmatpush2.msra.mxu0 0.0
        %1134 = vmatprep.subr.mxu0 0.0
        %1135 = vmatpush2.msra.mxu0 0.0
        %1136 = vmatprep.subr.mxu0 0.0
        %1137 = vmatpush2.msra.mxu0 0.0
        %1138 = vmatprep.subr.mxu0 0.0
        %1139 = vmatpush2.msra.mxu0 0.0
        %1140 = vmatprep.subr.mxu0 0.0
        %1141 = vmatpush2.msra.mxu0 0.0
        %1142 = vmatprep.subr.mxu0 0.0
        %1143 = vmatpush2.msra.mxu0 0.0
        %1144 = vmatprep.subr.mxu0 0.0
        %1145 = vmatpush2.msra.mxu0 0.0
        %1146 = vmatprep.subr.mxu0 0.0
        %1147 = vmatpush2.msra.mxu0 0.0
        %1148 = vmatprep.subr.mxu0 0.0
        %1149 = vmatpush2.msra.mxu0 0.0
        %1150 = vmatprep.subr.mxu0 0.0
        %1151 = vmatpush2.msra.mxu0 0.0
        %1152 = vmatprep.subr.mxu0 0.0
        %1153 = vmatpush2.msra.mxu0 0.0
        %1154 = vmatprep.subr.mxu0 0.0
        %1155 = vmatpush2.msra.mxu0 0.0
        %1156 = vmatprep.subr.mxu0 0.0
        %1157 = vmatpush2.msra.mxu0 0.0
        %1158 = vmatprep.subr.mxu0 0.0
        %1159 = vmatpush2.msra.mxu0 0.0
        %1160 = vmatprep.subr.mxu0 0.0
        %1161 = vmatpush2.msra.mxu0 0.0
        %1162 = vmatprep.subr.mxu0 0.0
        %1163 = vmatpush2.msra.mxu0 0.0
        %1164 = vmatprep.mubr.f32.mxu0 0.0
        %1165 = vmatmul.mubr.f32.gmra.mxu0 %v956
        %v1166 = vpop.f32.mrf.mxu0
        %v1167 = vadd.f32 0.0, %v1166
        %v1168 = vpop.f32.mrf.mxu0
        %v1169 = vadd.f32 0.0, %v1168
        %1170 = vdwg.mxu0
        %1171 = vmatprep.subr.mxu0 0.0
        %1172 = vmatpush1.msra.mxu0 0.0
        %1173 = vmatprep.subr.mxu0 0.0
        %1174 = vmatpush1.msra.mxu0 0.0
        %1175 = vmatprep.subr.mxu0 0.0
        %1176 = vmatpush1.msra.mxu0 0.0
        %1177 = vmatprep.subr.mxu0 0.0
        %1178 = vmatpush1.msra.mxu0 0.0
        %1179 = vmatprep.subr.mxu0 0.0
        %1180 = vmatpush1.msra.mxu0 0.0
        %1181 = vmatprep.subr.mxu0 %v728
        %1182 = vmatpush1.msra.mxu0 %v725
        %1183 = vmatprep.subr.mxu0 %v400
        %1184 = vmatpush1.msra.mxu0 %v399
        %1185 = vmatprep.subr.mxu0 %v394
        %1186 = vmatpush1.msra.mxu0 %v393
        %1187 = vmatprep.subr.mxu0 %v388
        %1188 = vmatpush1.msra.mxu0 %v387
        %1189 = vmatprep.subr.mxu0 %v382
        %1190 = vmatpush1.msra.mxu0 %v381
        %1191 = vmatprep.subr.mxu0 %v376
        %1192 = vmatpush1.msra.mxu0 %v375
        %1193 = vmatprep.subr.mxu0 %v370
        %1194 = vmatpush1.msra.mxu0 %v369
        %1195 = vmatprep.subr.mxu0 %v364
        %1196 = vmatpush1.msra.mxu0 %v363
        %1197 = vmatprep.subr.mxu0 %v358
        %1198 = vmatpush1.msra.mxu0 %v357
        %1199 = vmatprep.subr.mxu0 %v352
        %1200 = vmatpush1.msra.mxu0 %v351
        %1201 = vmatprep.subr.mxu0 %v346
        %1202 = vmatpush1.msra.mxu0 %v345
        %1203 = vmatprep.subr.mxu0 0.0
        %1204 = vmatpush2.msra.mxu0 0.0
        %1205 = vmatprep.subr.mxu0 0.0
        %1206 = vmatpush2.msra.mxu0 0.0
        %1207 = vmatprep.subr.mxu0 0.0
        %1208 = vmatpush2.msra.mxu0 0.0
        %1209 = vmatprep.subr.mxu0 0.0
        %1210 = vmatpush2.msra.mxu0 0.0
        %1211 = vmatprep.subr.mxu0 0.0
        %1212 = vmatpush2.msra.mxu0 0.0
        %1213 = vmatprep.subr.mxu0 0.0
        %1214 = vmatpush2.msra.mxu0 0.0
        %1215 = vmatprep.subr.mxu0 0.0
        %1216 = vmatpush2.msra.mxu0 0.0
        %1217 = vmatprep.subr.mxu0 0.0
        %1218 = vmatpush2.msra.mxu0 0.0
        %1219 = vmatprep.subr.mxu0 0.0
        %1220 = vmatpush2.msra.mxu0 0.0
        %1221 = vmatprep.subr.mxu0 0.0
        %1222 = vmatpush2.msra.mxu0 0.0
        %1223 = vmatprep.subr.mxu0 0.0
        %1224 = vmatpush2.msra.mxu0 0.0
        %1225 = vmatprep.subr.mxu0 0.0
        %1226 = vmatpush2.msra.mxu0 0.0
        %1227 = vmatprep.subr.mxu0 0.0
        %1228 = vmatpush2.msra.mxu0 0.0
        %1229 = vmatprep.subr.mxu0 0.0
        %1230 = vmatpush2.msra.mxu0 0.0
        %1231 = vmatprep.subr.mxu0 0.0
        %1232 = vmatpush2.msra.mxu0 0.0
        %1233 = vmatprep.subr.mxu0 0.0
        %1234 = vmatpush2.msra.mxu0 0.0
        %1235 = vmatprep.mubr.f32.mxu0 0.0
        %1236 = vmatmul.mubr.f32.gmra.mxu0 %v487
        %v1237 = vpop.f32.mrf.mxu0
        %v1238 = vadd.f32 %v1025, %v1237
        %v1239 = vpop.f32.mrf.mxu0
        %v1240 = vadd.f32 %v1027, %v1239
        %1241 = vdwg.mxu0
        %1242 = vmatprep.subr.mxu0 0.0
        %1243 = vmatpush1.msra.mxu0 0.0
        %1244 = vmatprep.subr.mxu0 0.0
        %1245 = vmatpush1.msra.mxu0 0.0
        %1246 = vmatprep.subr.mxu0 0.0
        %1247 = vmatpush1.msra.mxu0 0.0
        %1248 = vmatprep.subr.mxu0 0.0
        %1249 = vmatpush1.msra.mxu0 0.0
        %1250 = vmatprep.subr.mxu0 0.0
        %1251 = vmatpush1.msra.mxu0 0.0
        %1252 = vmatprep.subr.mxu0 %v734
        %1253 = vmatpush1.msra.mxu0 %v731
        %1254 = vmatprep.subr.mxu0 %v402
        %1255 = vmatpush1.msra.mxu0 %v401
        %1256 = vmatprep.subr.mxu0 %v396
        %1257 = vmatpush1.msra.mxu0 %v395
        %1258 = vmatprep.subr.mxu0 %v390
        %1259 = vmatpush1.msra.mxu0 %v389
        %1260 = vmatprep.subr.mxu0 %v384
        %1261 = vmatpush1.msra.mxu0 %v383
        %1262 = vmatprep.subr.mxu0 %v378
        %1263 = vmatpush1.msra.mxu0 %v377
        %1264 = vmatprep.subr.mxu0 %v372
        %1265 = vmatpush1.msra.mxu0 %v371
        %1266 = vmatprep.subr.mxu0 %v366
        %1267 = vmatpush1.msra.mxu0 %v365
        %1268 = vmatprep.subr.mxu0 %v360
        %1269 = vmatpush1.msra.mxu0 %v359
        %1270 = vmatprep.subr.mxu0 %v354
        %1271 = vmatpush1.msra.mxu0 %v353
        %1272 = vmatprep.subr.mxu0 %v348
        %1273 = vmatpush1.msra.mxu0 %v347
        %1274 = vmatprep.subr.mxu0 0.0
        %1275 = vmatpush2.msra.mxu0 0.0
        %1276 = vmatprep.subr.mxu0 0.0
        %1277 = vmatpush2.msra.mxu0 0.0
        %1278 = vmatprep.subr.mxu0 0.0
        %1279 = vmatpush2.msra.mxu0 0.0
        %1280 = vmatprep.subr.mxu0 0.0
        %1281 = vmatpush2.msra.mxu0 0.0
        %1282 = vmatprep.subr.mxu0 0.0
        %1283 = vmatpush2.msra.mxu0 0.0
        %1284 = vmatprep.subr.mxu0 0.0
        %1285 = vmatpush2.msra.mxu0 0.0
        %1286 = vmatprep.subr.mxu0 0.0
        %1287 = vmatpush2.msra.mxu0 0.0
        %1288 = vmatprep.subr.mxu0 0.0
        %1289 = vmatpush2.msra.mxu0 0.0
        %1290 = vmatprep.subr.mxu0 0.0
        %1291 = vmatpush2.msra.mxu0 0.0
        %1292 = vmatprep.subr.mxu0 0.0
        %1293 = vmatpush2.msra.mxu0 0.0
        %1294 = vmatprep.subr.mxu0 0.0
        %1295 = vmatpush2.msra.mxu0 0.0
        %1296 = vmatprep.subr.mxu0 0.0
        %1297 = vmatpush2.msra.mxu0 0.0
        %1298 = vmatprep.subr.mxu0 0.0
        %1299 = vmatpush2.msra.mxu0 0.0
        %1300 = vmatprep.subr.mxu0 0.0
        %1301 = vmatpush2.msra.mxu0 0.0
        %1302 = vmatprep.subr.mxu0 0.0
        %1303 = vmatpush2.msra.mxu0 0.0
        %1304 = vmatprep.subr.mxu0 0.0
        %1305 = vmatpush2.msra.mxu0 0.0
        %1306 = vmatprep.mubr.f32.mxu0 0.0
        %1307 = vmatmul.mubr.f32.gmra.mxu0 %v487
        %v1308 = vpop.f32.mrf.mxu0
        %v1309 = vadd.f32 %v1096, %v1308
        %v1310 = vpop.f32.mrf.mxu0
        %v1311 = vadd.f32 %v1098, %v1310
        %1312 = vdwg.mxu0
        %1313 = vmatprep.subr.mxu0 0.0
        %1314 = vmatpush1.msra.mxu0 0.0
        %1315 = vmatprep.subr.mxu0 0.0
        %1316 = vmatpush1.msra.mxu0 0.0
        %1317 = vmatprep.subr.mxu0 0.0
        %1318 = vmatpush1.msra.mxu0 0.0
        %1319 = vmatprep.subr.mxu0 0.0
        %1320 = vmatpush1.msra.mxu0 0.0
        %1321 = vmatprep.subr.mxu0 0.0
        %1322 = vmatpush1.msra.mxu0 0.0
        %1323 = vmatprep.subr.mxu0 %v740
        %1324 = vmatpush1.msra.mxu0 %v737
        %1325 = vmatprep.subr.mxu0 %v404
        %1326 = vmatpush1.msra.mxu0 %v403
        %1327 = vmatprep.subr.mxu0 %v398
        %1328 = vmatpush1.msra.mxu0 %v397
        %1329 = vmatprep.subr.mxu0 %v392
        %1330 = vmatpush1.msra.mxu0 %v391
        %1331 = vmatprep.subr.mxu0 %v386
        %1332 = vmatpush1.msra.mxu0 %v385
        %1333 = vmatprep.subr.mxu0 %v380
        %1334 = vmatpush1.msra.mxu0 %v379
        %1335 = vmatprep.subr.mxu0 %v374
        %1336 = vmatpush1.msra.mxu0 %v373
        %1337 = vmatprep.subr.mxu0 %v368
        %1338 = vmatpush1.msra.mxu0 %v367
        %1339 = vmatprep.subr.mxu0 %v362
        %1340 = vmatpush1.msra.mxu0 %v361
        %1341 = vmatprep.subr.mxu0 %v356
        %1342 = vmatpush1.msra.mxu0 %v355
        %1343 = vmatprep.subr.mxu0 %v350
        %1344 = vmatpush1.msra.mxu0 %v349
        %1345 = vmatprep.subr.mxu0 0.0
        %1346 = vmatpush2.msra.mxu0 0.0
        %1347 = vmatprep.subr.mxu0 0.0
        %1348 = vmatpush2.msra.mxu0 0.0
        %1349 = vmatprep.subr.mxu0 0.0
        %1350 = vmatpush2.msra.mxu0 0.0
        %1351 = vmatprep.subr.mxu0 0.0
        %1352 = vmatpush2.msra.mxu0 0.0
        %1353 = vmatprep.subr.mxu0 0.0
        %1354 = vmatpush2.msra.mxu0 0.0
        %1355 = vmatprep.subr.mxu0 0.0
        %1356 = vmatpush2.msra.mxu0 0.0
        %1357 = vmatprep.subr.mxu0 0.0
        %1358 = vmatpush2.msra.mxu0 0.0
        %1359 = vmatprep.subr.mxu0 0.0
        %1360 = vmatpush2.msra.mxu0 0.0
        %1361 = vmatprep.subr.mxu0 0.0
        %1362 = vmatpush2.msra.mxu0 0.0
        %1363 = vmatprep.subr.mxu0 0.0
        %1364 = vmatpush2.msra.mxu0 0.0
        %1365 = vmatprep.subr.mxu0 0.0
        %1366 = vmatpush2.msra.mxu0 0.0
        %1367 = vmatprep.subr.mxu0 0.0
        %1368 = vmatpush2.msra.mxu0 0.0
        %1369 = vmatprep.subr.mxu0 0.0
        %1370 = vmatpush2.msra.mxu0 0.0
        %1371 = vmatprep.subr.mxu0 0.0
        %1372 = vmatpush2.msra.mxu0 0.0
        %1373 = vmatprep.subr.mxu0 0.0
        %1374 = vmatpush2.msra.mxu0 0.0
        %1375 = vmatprep.subr.mxu0 0.0
        %1376 = vmatpush2.msra.mxu0 0.0
        %1377 = vmatprep.mubr.f32.mxu0 0.0
        %1378 = vmatmul.mubr.f32.gmra.mxu0 %v487
        %v1379 = vpop.f32.mrf.mxu0
        %v1380 = vadd.f32 %v1167, %v1379
        %v1381 = vpop.f32.mrf.mxu0
        %v1382 = vadd.f32 %v1169, %v1381
        %1383 = vdwg.mxu0
        %v1385 = vsel %vm485, %v417, 0
        %1387 = vmatprep.subr.mxu0 0.0
        %1388 = vmatpush1.msra.mxu0 0.0
        %1389 = vmatprep.subr.mxu0 0.0
        %1390 = vmatpush1.msra.mxu0 0.0
        %1391 = vmatprep.subr.mxu0 0.0
        %1392 = vmatpush1.msra.mxu0 0.0
        %1393 = vmatprep.subr.mxu0 0.0
        %1394 = vmatpush1.msra.mxu0 0.0
        %1395 = vmatprep.subr.mxu0 0.0
        %1396 = vmatpush1.msra.mxu0 0.0
        %1397 = vmatprep.subr.mxu0 %v494
        %1398 = vmatpush1.msra.mxu0 %v491
        %1399 = vmatprep.subr.mxu0 %v474
        %1400 = vmatpush1.msra.mxu0 %v473
        %1401 = vmatprep.subr.mxu0 %v468
        %1402 = vmatpush1.msra.mxu0 %v467
        %1403 = vmatprep.subr.mxu0 %v462
        %1404 = vmatpush1.msra.mxu0 %v461
        %1405 = vmatprep.subr.mxu0 %v456
        %1406 = vmatpush1.msra.mxu0 %v455
        %1407 = vmatprep.subr.mxu0 %v450
        %1408 = vmatpush1.msra.mxu0 %v449
        %1409 = vmatprep.subr.mxu0 %v444
        %1410 = vmatpush1.msra.mxu0 %v443
        %1411 = vmatprep.subr.mxu0 %v438
        %1412 = vmatpush1.msra.mxu0 %v437
        %1413 = vmatprep.subr.mxu0 %v432
        %1414 = vmatpush1.msra.mxu0 %v431
        %1415 = vmatprep.subr.mxu0 %v426
        %1416 = vmatpush1.msra.mxu0 %v425
        %1417 = vmatprep.subr.mxu0 %v420
        %1418 = vmatpush1.msra.mxu0 %v419
        %1419 = vmatprep.subr.mxu0 0.0
        %1420 = vmatpush2.msra.mxu0 0.0
        %1421 = vmatprep.subr.mxu0 0.0
        %1422 = vmatpush2.msra.mxu0 0.0
        %1423 = vmatprep.subr.mxu0 0.0
        %1424 = vmatpush2.msra.mxu0 0.0
        %1425 = vmatprep.subr.mxu0 0.0
        %1426 = vmatpush2.msra.mxu0 0.0
        %1427 = vmatprep.subr.mxu0 0.0
        %1428 = vmatpush2.msra.mxu0 0.0
        %1429 = vmatprep.subr.mxu0 0.0
        %1430 = vmatpush2.msra.mxu0 0.0
        %1431 = vmatprep.subr.mxu0 0.0
        %1432 = vmatpush2.msra.mxu0 0.0
        %1433 = vmatprep.subr.mxu0 0.0
        %1434 = vmatpush2.msra.mxu0 0.0
        %1435 = vmatprep.subr.mxu0 0.0
        %1436 = vmatpush2.msra.mxu0 0.0
        %1437 = vmatprep.subr.mxu0 0.0
        %1438 = vmatpush2.msra.mxu0 0.0
        %1439 = vmatprep.subr.mxu0 0.0
        %1440 = vmatpush2.msra.mxu0 0.0
        %1441 = vmatprep.subr.mxu0 0.0
        %1442 = vmatpush2.msra.mxu0 0.0
        %1443 = vmatprep.subr.mxu0 0.0
        %1444 = vmatpush2.msra.mxu0 0.0
        %1445 = vmatprep.subr.mxu0 0.0
        %1446 = vmatpush2.msra.mxu0 0.0
        %1447 = vmatprep.subr.mxu0 0.0
        %1448 = vmatpush2.msra.mxu0 0.0
        %1449 = vmatprep.subr.mxu0 0.0
        %1450 = vmatpush2.msra.mxu0 0.0
        %1451 = vmatprep.mubr.f32.mxu0 0.0
        %1452 = vmatmul.mubr.f32.gmra.mxu0 %v1385
        %v1453 = vpop.f32.mrf.mxu0
        %v1454 = vadd.f32 0.0, %v1453
        %v1455 = vpop.f32.mrf.mxu0
        %v1456 = vadd.f32 0.0, %v1455
        %1457 = vdwg.mxu0
        %1458 = vmatprep.subr.mxu0 0.0
        %1459 = vmatpush1.msra.mxu0 0.0
        %1460 = vmatprep.subr.mxu0 0.0
        %1461 = vmatpush1.msra.mxu0 0.0
        %1462 = vmatprep.subr.mxu0 0.0
        %1463 = vmatpush1.msra.mxu0 0.0
        %1464 = vmatprep.subr.mxu0 0.0
        %1465 = vmatpush1.msra.mxu0 0.0
        %1466 = vmatprep.subr.mxu0 0.0
        %1467 = vmatpush1.msra.mxu0 0.0
        %1468 = vmatprep.subr.mxu0 %v500
        %1469 = vmatpush1.msra.mxu0 %v497
        %1470 = vmatprep.subr.mxu0 %v476
        %1471 = vmatpush1.msra.mxu0 %v475
        %1472 = vmatprep.subr.mxu0 %v470
        %1473 = vmatpush1.msra.mxu0 %v469
        %1474 = vmatprep.subr.mxu0 %v464
        %1475 = vmatpush1.msra.mxu0 %v463
        %1476 = vmatprep.subr.mxu0 %v458
        %1477 = vmatpush1.msra.mxu0 %v457
        %1478 = vmatprep.subr.mxu0 %v452
        %1479 = vmatpush1.msra.mxu0 %v451
        %1480 = vmatprep.subr.mxu0 %v446
        %1481 = vmatpush1.msra.mxu0 %v445
        %1482 = vmatprep.subr.mxu0 %v440
        %1483 = vmatpush1.msra.mxu0 %v439
        %1484 = vmatprep.subr.mxu0 %v434
        %1485 = vmatpush1.msra.mxu0 %v433
        %1486 = vmatprep.subr.mxu0 %v428
        %1487 = vmatpush1.msra.mxu0 %v427
        %1488 = vmatprep.subr.mxu0 %v422
        %1489 = vmatpush1.msra.mxu0 %v421
        %1490 = vmatprep.subr.mxu0 0.0
        %1491 = vmatpush2.msra.mxu0 0.0
        %1492 = vmatprep.subr.mxu0 0.0
        %1493 = vmatpush2.msra.mxu0 0.0
        %1494 = vmatprep.subr.mxu0 0.0
        %1495 = vmatpush2.msra.mxu0 0.0
        %1496 = vmatprep.subr.mxu0 0.0
        %1497 = vmatpush2.msra.mxu0 0.0
        %1498 = vmatprep.subr.mxu0 0.0
        %1499 = vmatpush2.msra.mxu0 0.0
        %1500 = vmatprep.subr.mxu0 0.0
        %1501 = vmatpush2.msra.mxu0 0.0
        %1502 = vmatprep.subr.mxu0 0.0
        %1503 = vmatpush2.msra.mxu0 0.0
        %1504 = vmatprep.subr.mxu0 0.0
        %1505 = vmatpush2.msra.mxu0 0.0
        %1506 = vmatprep.subr.mxu0 0.0
        %1507 = vmatpush2.msra.mxu0 0.0
        %1508 = vmatprep.subr.mxu0 0.0
        %1509 = vmatpush2.msra.mxu0 0.0
        %1510 = vmatprep.subr.mxu0 0.0
        %1511 = vmatpush2.msra.mxu0 0.0
        %1512 = vmatprep.subr.mxu0 0.0
        %1513 = vmatpush2.msra.mxu0 0.0
        %1514 = vmatprep.subr.mxu0 0.0
        %1515 = vmatpush2.msra.mxu0 0.0
        %1516 = vmatprep.subr.mxu0 0.0
        %1517 = vmatpush2.msra.mxu0 0.0
        %1518 = vmatprep.subr.mxu0 0.0
        %1519 = vmatpush2.msra.mxu0 0.0
        %1520 = vmatprep.subr.mxu0 0.0
        %1521 = vmatpush2.msra.mxu0 0.0
        %1522 = vmatprep.mubr.f32.mxu0 0.0
        %1523 = vmatmul.mubr.f32.gmra.mxu0 %v1385
        %v1524 = vpop.f32.mrf.mxu0
        %v1525 = vadd.f32 0.0, %v1524
        %v1526 = vpop.f32.mrf.mxu0
        %v1527 = vadd.f32 0.0, %v1526
        %1528 = vdwg.mxu0
        %1529 = vmatprep.subr.mxu0 0.0
        %1530 = vmatpush1.msra.mxu0 0.0
        %1531 = vmatprep.subr.mxu0 0.0
        %1532 = vmatpush1.msra.mxu0 0.0
        %1533 = vmatprep.subr.mxu0 0.0
        %1534 = vmatpush1.msra.mxu0 0.0
        %1535 = vmatprep.subr.mxu0 0.0
        %1536 = vmatpush1.msra.mxu0 0.0
        %1537 = vmatprep.subr.mxu0 0.0
        %1538 = vmatpush1.msra.mxu0 0.0
        %1539 = vmatprep.subr.mxu0 %v506
        %1540 = vmatpush1.msra.mxu0 %v503
        %1541 = vmatprep.subr.mxu0 %v478
        %1542 = vmatpush1.msra.mxu0 %v477
        %1543 = vmatprep.subr.mxu0 %v472
        %1544 = vmatpush1.msra.mxu0 %v471
        %1545 = vmatprep.subr.mxu0 %v466
        %1546 = vmatpush1.msra.mxu0 %v465
        %1547 = vmatprep.subr.mxu0 %v460
        %1548 = vmatpush1.msra.mxu0 %v459
        %1549 = vmatprep.subr.mxu0 %v454
        %1550 = vmatpush1.msra.mxu0 %v453
        %1551 = vmatprep.subr.mxu0 %v448
        %1552 = vmatpush1.msra.mxu0 %v447
        %1553 = vmatprep.subr.mxu0 %v442
        %1554 = vmatpush1.msra.mxu0 %v441
        %1555 = vmatprep.subr.mxu0 %v436
        %1556 = vmatpush1.msra.mxu0 %v435
        %1557 = vmatprep.subr.mxu0 %v430
        %1558 = vmatpush1.msra.mxu0 %v429
        %1559 = vmatprep.subr.mxu0 %v424
        %1560 = vmatpush1.msra.mxu0 %v423
        %1561 = vmatprep.subr.mxu0 0.0
        %1562 = vmatpush2.msra.mxu0 0.0
        %1563 = vmatprep.subr.mxu0 0.0
        %1564 = vmatpush2.msra.mxu0 0.0
        %1565 = vmatprep.subr.mxu0 0.0
        %1566 = vmatpush2.msra.mxu0 0.0
        %1567 = vmatprep.subr.mxu0 0.0
        %1568 = vmatpush2.msra.mxu0 0.0
        %1569 = vmatprep.subr.mxu0 0.0
        %1570 = vmatpush2.msra.mxu0 0.0
        %1571 = vmatprep.subr.mxu0 0.0
        %1572 = vmatpush2.msra.mxu0 0.0
        %1573 = vmatprep.subr.mxu0 0.0
        %1574 = vmatpush2.msra.mxu0 0.0
        %1575 = vmatprep.subr.mxu0 0.0
        %1576 = vmatpush2.msra.mxu0 0.0
        %1577 = vmatprep.subr.mxu0 0.0
        %1578 = vmatpush2.msra.mxu0 0.0
        %1579 = vmatprep.subr.mxu0 0.0
        %1580 = vmatpush2.msra.mxu0 0.0
        %1581 = vmatprep.subr.mxu0 0.0
        %1582 = vmatpush2.msra.mxu0 0.0
        %1583 = vmatprep.subr.mxu0 0.0
        %1584 = vmatpush2.msra.mxu0 0.0
        %1585 = vmatprep.subr.mxu0 0.0
        %1586 = vmatpush2.msra.mxu0 0.0
        %1587 = vmatprep.subr.mxu0 0.0
        %1588 = vmatpush2.msra.mxu0 0.0
        %1589 = vmatprep.subr.mxu0 0.0
        %1590 = vmatpush2.msra.mxu0 0.0
        %1591 = vmatprep.subr.mxu0 0.0
        %1592 = vmatpush2.msra.mxu0 0.0
        %1593 = vmatprep.mubr.f32.mxu0 0.0
        %1594 = vmatmul.mubr.f32.gmra.mxu0 %v1385
        %v1595 = vpop.f32.mrf.mxu0
        %v1596 = vadd.f32 0.0, %v1595
        %v1597 = vpop.f32.mrf.mxu0
        %v1598 = vadd.f32 0.0, %v1597
        %1599 = vdwg.mxu0
        %1600 = vmatprep.subr.mxu0 0.0
        %1601 = vmatpush1.msra.mxu0 0.0
        %1602 = vmatprep.subr.mxu0 0.0
        %1603 = vmatpush1.msra.mxu0 0.0
        %1604 = vmatprep.subr.mxu0 0.0
        %1605 = vmatpush1.msra.mxu0 0.0
        %1606 = vmatprep.subr.mxu0 0.0
        %1607 = vmatpush1.msra.mxu0 0.0
        %1608 = vmatprep.subr.mxu0 0.0
        %1609 = vmatpush1.msra.mxu0 0.0
        %1610 = vmatprep.subr.mxu0 %v728
        %1611 = vmatpush1.msra.mxu0 %v725
        %1612 = vmatprep.subr.mxu0 %v400
        %1613 = vmatpush1.msra.mxu0 %v399
        %1614 = vmatprep.subr.mxu0 %v394
        %1615 = vmatpush1.msra.mxu0 %v393
        %1616 = vmatprep.subr.mxu0 %v388
        %1617 = vmatpush1.msra.mxu0 %v387
        %1618 = vmatprep.subr.mxu0 %v382
        %1619 = vmatpush1.msra.mxu0 %v381
        %1620 = vmatprep.subr.mxu0 %v376
        %1621 = vmatpush1.msra.mxu0 %v375
        %1622 = vmatprep.subr.mxu0 %v370
        %1623 = vmatpush1.msra.mxu0 %v369
        %1624 = vmatprep.subr.mxu0 %v364
        %1625 = vmatpush1.msra.mxu0 %v363
        %1626 = vmatprep.subr.mxu0 %v358
        %1627 = vmatpush1.msra.mxu0 %v357
        %1628 = vmatprep.subr.mxu0 %v352
        %1629 = vmatpush1.msra.mxu0 %v351
        %1630 = vmatprep.subr.mxu0 %v346
        %1631 = vmatpush1.msra.mxu0 %v345
        %1632 = vmatprep.subr.mxu0 0.0
        %1633 = vmatpush2.msra.mxu0 0.0
        %1634 = vmatprep.subr.mxu0 0.0
        %1635 = vmatpush2.msra.mxu0 0.0
        %1636 = vmatprep.subr.mxu0 0.0
        %1637 = vmatpush2.msra.mxu0 0.0
        %1638 = vmatprep.subr.mxu0 0.0
        %1639 = vmatpush2.msra.mxu0 0.0
        %1640 = vmatprep.subr.mxu0 0.0
        %1641 = vmatpush2.msra.mxu0 0.0
        %1642 = vmatprep.subr.mxu0 0.0
        %1643 = vmatpush2.msra.mxu0 0.0
        %1644 = vmatprep.subr.mxu0 0.0
        %1645 = vmatpush2.msra.mxu0 0.0
        %1646 = vmatprep.subr.mxu0 0.0
        %1647 = vmatpush2.msra.mxu0 0.0
        %1648 = vmatprep.subr.mxu0 0.0
        %1649 = vmatpush2.msra.mxu0 0.0
        %1650 = vmatprep.subr.mxu0 0.0
        %1651 = vmatpush2.msra.mxu0 0.0
        %1652 = vmatprep.subr.mxu0 0.0
        %1653 = vmatpush2.msra.mxu0 0.0
        %1654 = vmatprep.subr.mxu0 0.0
        %1655 = vmatpush2.msra.mxu0 0.0
        %1656 = vmatprep.subr.mxu0 0.0
        %1657 = vmatpush2.msra.mxu0 0.0
        %1658 = vmatprep.subr.mxu0 0.0
        %1659 = vmatpush2.msra.mxu0 0.0
        %1660 = vmatprep.subr.mxu0 0.0
        %1661 = vmatpush2.msra.mxu0 0.0
        %1662 = vmatprep.subr.mxu0 0.0
        %1663 = vmatpush2.msra.mxu0 0.0
        %1664 = vmatprep.mubr.f32.mxu0 0.0
        %1665 = vmatmul.mubr.f32.gmra.mxu0 %v956
        %v1666 = vpop.f32.mrf.mxu0
        %v1667 = vadd.f32 %v1454, %v1666
        %v1668 = vpop.f32.mrf.mxu0
        %v1669 = vadd.f32 %v1456, %v1668
        %1670 = vdwg.mxu0
        %1671 = vmatprep.subr.mxu0 0.0
        %1672 = vmatpush1.msra.mxu0 0.0
        %1673 = vmatprep.subr.mxu0 0.0
        %1674 = vmatpush1.msra.mxu0 0.0
        %1675 = vmatprep.subr.mxu0 0.0
        %1676 = vmatpush1.msra.mxu0 0.0
        %1677 = vmatprep.subr.mxu0 0.0
        %1678 = vmatpush1.msra.mxu0 0.0
        %1679 = vmatprep.subr.mxu0 0.0
        %1680 = vmatpush1.msra.mxu0 0.0
        %1681 = vmatprep.subr.mxu0 %v734
        %1682 = vmatpush1.msra.mxu0 %v731
        %1683 = vmatprep.subr.mxu0 %v402
        %1684 = vmatpush1.msra.mxu0 %v401
        %1685 = vmatprep.subr.mxu0 %v396
        %1686 = vmatpush1.msra.mxu0 %v395
        %1687 = vmatprep.subr.mxu0 %v390
        %1688 = vmatpush1.msra.mxu0 %v389
        %1689 = vmatprep.subr.mxu0 %v384
        %1690 = vmatpush1.msra.mxu0 %v383
        %1691 = vmatprep.subr.mxu0 %v378
        %1692 = vmatpush1.msra.mxu0 %v377
        %1693 = vmatprep.subr.mxu0 %v372
        %1694 = vmatpush1.msra.mxu0 %v371
        %1695 = vmatprep.subr.mxu0 %v366
        %1696 = vmatpush1.msra.mxu0 %v365
        %1697 = vmatprep.subr.mxu0 %v360
        %1698 = vmatpush1.msra.mxu0 %v359
        %1699 = vmatprep.subr.mxu0 %v354
        %1700 = vmatpush1.msra.mxu0 %v353
        %1701 = vmatprep.subr.mxu0 %v348
        %1702 = vmatpush1.msra.mxu0 %v347
        %1703 = vmatprep.subr.mxu0 0.0
        %1704 = vmatpush2.msra.mxu0 0.0
        %1705 = vmatprep.subr.mxu0 0.0
        %1706 = vmatpush2.msra.mxu0 0.0
        %1707 = vmatprep.subr.mxu0 0.0
        %1708 = vmatpush2.msra.mxu0 0.0
        %1709 = vmatprep.subr.mxu0 0.0
        %1710 = vmatpush2.msra.mxu0 0.0
        %1711 = vmatprep.subr.mxu0 0.0
        %1712 = vmatpush2.msra.mxu0 0.0
        %1713 = vmatprep.subr.mxu0 0.0
        %1714 = vmatpush2.msra.mxu0 0.0
        %1715 = vmatprep.subr.mxu0 0.0
        %1716 = vmatpush2.msra.mxu0 0.0
        %1717 = vmatprep.subr.mxu0 0.0
        %1718 = vmatpush2.msra.mxu0 0.0
        %1719 = vmatprep.subr.mxu0 0.0
        %1720 = vmatpush2.msra.mxu0 0.0
        %1721 = vmatprep.subr.mxu0 0.0
        %1722 = vmatpush2.msra.mxu0 0.0
        %1723 = vmatprep.subr.mxu0 0.0
        %1724 = vmatpush2.msra.mxu0 0.0
        %1725 = vmatprep.subr.mxu0 0.0
        %1726 = vmatpush2.msra.mxu0 0.0
        %1727 = vmatprep.subr.mxu0 0.0
        %1728 = vmatpush2.msra.mxu0 0.0
        %1729 = vmatprep.subr.mxu0 0.0
        %1730 = vmatpush2.msra.mxu0 0.0
        %1731 = vmatprep.subr.mxu0 0.0
        %1732 = vmatpush2.msra.mxu0 0.0
        %1733 = vmatprep.subr.mxu0 0.0
        %1734 = vmatpush2.msra.mxu0 0.0
        %1735 = vmatprep.mubr.f32.mxu0 0.0
        %1736 = vmatmul.mubr.f32.gmra.mxu0 %v956
        %v1737 = vpop.f32.mrf.mxu0
        %v1738 = vadd.f32 %v1525, %v1737
        %v1739 = vpop.f32.mrf.mxu0
        %v1740 = vadd.f32 %v1527, %v1739
        %1741 = vdwg.mxu0
        %1742 = vmatprep.subr.mxu0 0.0
        %1743 = vmatpush1.msra.mxu0 0.0
        %1744 = vmatprep.subr.mxu0 0.0
        %1745 = vmatpush1.msra.mxu0 0.0
        %1746 = vmatprep.subr.mxu0 0.0
        %1747 = vmatpush1.msra.mxu0 0.0
        %1748 = vmatprep.subr.mxu0 0.0
        %1749 = vmatpush1.msra.mxu0 0.0
        %1750 = vmatprep.subr.mxu0 0.0
        %1751 = vmatpush1.msra.mxu0 0.0
        %1752 = vmatprep.subr.mxu0 %v740
        %1753 = vmatpush1.msra.mxu0 %v737
        %1754 = vmatprep.subr.mxu0 %v404
        %1755 = vmatpush1.msra.mxu0 %v403
        %1756 = vmatprep.subr.mxu0 %v398
        %1757 = vmatpush1.msra.mxu0 %v397
        %1758 = vmatprep.subr.mxu0 %v392
        %1759 = vmatpush1.msra.mxu0 %v391
        %1760 = vmatprep.subr.mxu0 %v386
        %1761 = vmatpush1.msra.mxu0 %v385
        %1762 = vmatprep.subr.mxu0 %v380
        %1763 = vmatpush1.msra.mxu0 %v379
        %1764 = vmatprep.subr.mxu0 %v374
        %1765 = vmatpush1.msra.mxu0 %v373
        %1766 = vmatprep.subr.mxu0 %v368
        %1767 = vmatpush1.msra.mxu0 %v367
        %1768 = vmatprep.subr.mxu0 %v362
        %1769 = vmatpush1.msra.mxu0 %v361
        %1770 = vmatprep.subr.mxu0 %v356
        %1771 = vmatpush1.msra.mxu0 %v355
        %1772 = vmatprep.subr.mxu0 %v350
        %1773 = vmatpush1.msra.mxu0 %v349
        %1774 = vmatprep.subr.mxu0 0.0
        %1775 = vmatpush2.msra.mxu0 0.0
        %1776 = vmatprep.subr.mxu0 0.0
        %1777 = vmatpush2.msra.mxu0 0.0
        %1778 = vmatprep.subr.mxu0 0.0
        %1779 = vmatpush2.msra.mxu0 0.0
        %1780 = vmatprep.subr.mxu0 0.0
        %1781 = vmatpush2.msra.mxu0 0.0
        %1782 = vmatprep.subr.mxu0 0.0
        %1783 = vmatpush2.msra.mxu0 0.0
        %1784 = vmatprep.subr.mxu0 0.0
        %1785 = vmatpush2.msra.mxu0 0.0
        %1786 = vmatprep.subr.mxu0 0.0
        %1787 = vmatpush2.msra.mxu0 0.0
        %1788 = vmatprep.subr.mxu0 0.0
        %1789 = vmatpush2.msra.mxu0 0.0
        %1790 = vmatprep.subr.mxu0 0.0
        %1791 = vmatpush2.msra.mxu0 0.0
        %1792 = vmatprep.subr.mxu0 0.0
        %1793 = vmatpush2.msra.mxu0 0.0
        %1794 = vmatprep.subr.mxu0 0.0
        %1795 = vmatpush2.msra.mxu0 0.0
        %1796 = vmatprep.subr.mxu0 0.0
        %1797 = vmatpush2.msra.mxu0 0.0
        %1798 = vmatprep.subr.mxu0 0.0
        %1799 = vmatpush2.msra.mxu0 0.0
        %1800 = vmatprep.subr.mxu0 0.0
        %1801 = vmatpush2.msra.mxu0 0.0
        %1802 = vmatprep.subr.mxu0 0.0
        %1803 = vmatpush2.msra.mxu0 0.0
        %1804 = vmatprep.subr.mxu0 0.0
        %1805 = vmatpush2.msra.mxu0 0.0
        %1806 = vmatprep.mubr.f32.mxu0 0.0
        %1807 = vmatmul.mubr.f32.gmra.mxu0 %v956
        %v1808 = vpop.f32.mrf.mxu0
        %v1809 = vadd.f32 %v1596, %v1808
        %v1810 = vpop.f32.mrf.mxu0
        %v1811 = vadd.f32 %v1598, %v1810
        %1812 = vdwg.mxu0
        %v1813 = vld [vmem:[%s344 + $0x1] sm:$0x3f]
        %v1815 = vsel %vm485, %v1813, 0
        %1817 = vmatprep.subr.mxu0 0.0
        %1818 = vmatpush1.msra.mxu0 0.0
        %1819 = vmatprep.subr.mxu0 0.0
        %1820 = vmatpush1.msra.mxu0 0.0
        %1821 = vmatprep.subr.mxu0 0.0
        %1822 = vmatpush1.msra.mxu0 0.0
        %1823 = vmatprep.subr.mxu0 0.0
        %1824 = vmatpush1.msra.mxu0 0.0
        %1825 = vmatprep.subr.mxu0 0.0
        %1826 = vmatpush1.msra.mxu0 0.0
        %1827 = vmatprep.subr.mxu0 %v494
        %1828 = vmatpush1.msra.mxu0 %v491
        %1829 = vmatprep.subr.mxu0 %v474
        %1830 = vmatpush1.msra.mxu0 %v473
        %1831 = vmatprep.subr.mxu0 %v468
        %1832 = vmatpush1.msra.mxu0 %v467
        %1833 = vmatprep.subr.mxu0 %v462
        %1834 = vmatpush1.msra.mxu0 %v461
        %1835 = vmatprep.subr.mxu0 %v456
        %1836 = vmatpush1.msra.mxu0 %v455
        %1837 = vmatprep.subr.mxu0 %v450
        %1838 = vmatpush1.msra.mxu0 %v449
        %1839 = vmatprep.subr.mxu0 %v444
        %1840 = vmatpush1.msra.mxu0 %v443
        %1841 = vmatprep.subr.mxu0 %v438
        %1842 = vmatpush1.msra.mxu0 %v437
        %1843 = vmatprep.subr.mxu0 %v432
        %1844 = vmatpush1.msra.mxu0 %v431
        %1845 = vmatprep.subr.mxu0 %v426
        %1846 = vmatpush1.msra.mxu0 %v425
        %1847 = vmatprep.subr.mxu0 %v420
        %1848 = vmatpush1.msra.mxu0 %v419
        %1849 = vmatprep.subr.mxu0 0.0
        %1850 = vmatpush2.msra.mxu0 0.0
        %1851 = vmatprep.subr.mxu0 0.0
        %1852 = vmatpush2.msra.mxu0 0.0
        %1853 = vmatprep.subr.mxu0 0.0
        %1854 = vmatpush2.msra.mxu0 0.0
        %1855 = vmatprep.subr.mxu0 0.0
        %1856 = vmatpush2.msra.mxu0 0.0
        %1857 = vmatprep.subr.mxu0 0.0
        %1858 = vmatpush2.msra.mxu0 0.0
        %1859 = vmatprep.subr.mxu0 0.0
        %1860 = vmatpush2.msra.mxu0 0.0
        %1861 = vmatprep.subr.mxu0 0.0
        %1862 = vmatpush2.msra.mxu0 0.0
        %1863 = vmatprep.subr.mxu0 0.0
        %1864 = vmatpush2.msra.mxu0 0.0
        %1865 = vmatprep.subr.mxu0 0.0
        %1866 = vmatpush2.msra.mxu0 0.0
        %1867 = vmatprep.subr.mxu0 0.0
        %1868 = vmatpush2.msra.mxu0 0.0
        %1869 = vmatprep.subr.mxu0 0.0
        %1870 = vmatpush2.msra.mxu0 0.0
        %1871 = vmatprep.subr.mxu0 0.0
        %1872 = vmatpush2.msra.mxu0 0.0
        %1873 = vmatprep.subr.mxu0 0.0
        %1874 = vmatpush2.msra.mxu0 0.0
        %1875 = vmatprep.subr.mxu0 0.0
        %1876 = vmatpush2.msra.mxu0 0.0
        %1877 = vmatprep.subr.mxu0 0.0
        %1878 = vmatpush2.msra.mxu0 0.0
        %1879 = vmatprep.subr.mxu0 0.0
        %1880 = vmatpush2.msra.mxu0 0.0
        %1881 = vmatprep.mubr.f32.mxu0 0.0
        %1882 = vmatmul.mubr.f32.gmra.mxu0 %v1815
        %v1883 = vpop.f32.mrf.mxu0
        %v1884 = vadd.f32 0.0, %v1883
        %v1885 = vpop.f32.mrf.mxu0
        %v1886 = vadd.f32 0.0, %v1885
        %1887 = vdwg.mxu0
        %1888 = vmatprep.subr.mxu0 0.0
        %1889 = vmatpush1.msra.mxu0 0.0
        %1890 = vmatprep.subr.mxu0 0.0
        %1891 = vmatpush1.msra.mxu0 0.0
        %1892 = vmatprep.subr.mxu0 0.0
        %1893 = vmatpush1.msra.mxu0 0.0
        %1894 = vmatprep.subr.mxu0 0.0
        %1895 = vmatpush1.msra.mxu0 0.0
        %1896 = vmatprep.subr.mxu0 0.0
        %1897 = vmatpush1.msra.mxu0 0.0
        %1898 = vmatprep.subr.mxu0 %v500
        %1899 = vmatpush1.msra.mxu0 %v497
        %1900 = vmatprep.subr.mxu0 %v476
        %1901 = vmatpush1.msra.mxu0 %v475
        %1902 = vmatprep.subr.mxu0 %v470
        %1903 = vmatpush1.msra.mxu0 %v469
        %1904 = vmatprep.subr.mxu0 %v464
        %1905 = vmatpush1.msra.mxu0 %v463
        %1906 = vmatprep.subr.mxu0 %v458
        %1907 = vmatpush1.msra.mxu0 %v457
        %1908 = vmatprep.subr.mxu0 %v452
        %1909 = vmatpush1.msra.mxu0 %v451
        %1910 = vmatprep.subr.mxu0 %v446
        %1911 = vmatpush1.msra.mxu0 %v445
        %1912 = vmatprep.subr.mxu0 %v440
        %1913 = vmatpush1.msra.mxu0 %v439
        %1914 = vmatprep.subr.mxu0 %v434
        %1915 = vmatpush1.msra.mxu0 %v433
        %1916 = vmatprep.subr.mxu0 %v428
        %1917 = vmatpush1.msra.mxu0 %v427
        %1918 = vmatprep.subr.mxu0 %v422
        %1919 = vmatpush1.msra.mxu0 %v421
        %1920 = vmatprep.subr.mxu0 0.0
        %1921 = vmatpush2.msra.mxu0 0.0
        %1922 = vmatprep.subr.mxu0 0.0
        %1923 = vmatpush2.msra.mxu0 0.0
        %1924 = vmatprep.subr.mxu0 0.0
        %1925 = vmatpush2.msra.mxu0 0.0
        %1926 = vmatprep.subr.mxu0 0.0
        %1927 = vmatpush2.msra.mxu0 0.0
        %1928 = vmatprep.subr.mxu0 0.0
        %1929 = vmatpush2.msra.mxu0 0.0
        %1930 = vmatprep.subr.mxu0 0.0
        %1931 = vmatpush2.msra.mxu0 0.0
        %1932 = vmatprep.subr.mxu0 0.0
        %1933 = vmatpush2.msra.mxu0 0.0
        %1934 = vmatprep.subr.mxu0 0.0
        %1935 = vmatpush2.msra.mxu0 0.0
        %1936 = vmatprep.subr.mxu0 0.0
        %1937 = vmatpush2.msra.mxu0 0.0
        %1938 = vmatprep.subr.mxu0 0.0
        %1939 = vmatpush2.msra.mxu0 0.0
        %1940 = vmatprep.subr.mxu0 0.0
        %1941 = vmatpush2.msra.mxu0 0.0
        %1942 = vmatprep.subr.mxu0 0.0
        %1943 = vmatpush2.msra.mxu0 0.0
        %1944 = vmatprep.subr.mxu0 0.0
        %1945 = vmatpush2.msra.mxu0 0.0
        %1946 = vmatprep.subr.mxu0 0.0
        %1947 = vmatpush2.msra.mxu0 0.0
        %1948 = vmatprep.subr.mxu0 0.0
        %1949 = vmatpush2.msra.mxu0 0.0
        %1950 = vmatprep.subr.mxu0 0.0
        %1951 = vmatpush2.msra.mxu0 0.0
        %1952 = vmatprep.mubr.f32.mxu0 0.0
        %1953 = vmatmul.mubr.f32.gmra.mxu0 %v1815
        %v1954 = vpop.f32.mrf.mxu0
        %v1955 = vadd.f32 0.0, %v1954
        %v1956 = vpop.f32.mrf.mxu0
        %v1957 = vadd.f32 0.0, %v1956
        %1958 = vdwg.mxu0
        %1959 = vmatprep.subr.mxu0 0.0
        %1960 = vmatpush1.msra.mxu0 0.0
        %1961 = vmatprep.subr.mxu0 0.0
        %1962 = vmatpush1.msra.mxu0 0.0
        %1963 = vmatprep.subr.mxu0 0.0
        %1964 = vmatpush1.msra.mxu0 0.0
        %1965 = vmatprep.subr.mxu0 0.0
        %1966 = vmatpush1.msra.mxu0 0.0
        %1967 = vmatprep.subr.mxu0 0.0
        %1968 = vmatpush1.msra.mxu0 0.0
        %1969 = vmatprep.subr.mxu0 %v506
        %1970 = vmatpush1.msra.mxu0 %v503
        %1971 = vmatprep.subr.mxu0 %v478
        %1972 = vmatpush1.msra.mxu0 %v477
        %1973 = vmatprep.subr.mxu0 %v472
        %1974 = vmatpush1.msra.mxu0 %v471
        %1975 = vmatprep.subr.mxu0 %v466
        %1976 = vmatpush1.msra.mxu0 %v465
        %1977 = vmatprep.subr.mxu0 %v460
        %1978 = vmatpush1.msra.mxu0 %v459
        %1979 = vmatprep.subr.mxu0 %v454
        %1980 = vmatpush1.msra.mxu0 %v453
        %1981 = vmatprep.subr.mxu0 %v448
        %1982 = vmatpush1.msra.mxu0 %v447
        %1983 = vmatprep.subr.mxu0 %v442
        %1984 = vmatpush1.msra.mxu0 %v441
        %1985 = vmatprep.subr.mxu0 %v436
        %1986 = vmatpush1.msra.mxu0 %v435
        %1987 = vmatprep.subr.mxu0 %v430
        %1988 = vmatpush1.msra.mxu0 %v429
        %1989 = vmatprep.subr.mxu0 %v424
        %1990 = vmatpush1.msra.mxu0 %v423
        %1991 = vmatprep.subr.mxu0 0.0
        %1992 = vmatpush2.msra.mxu0 0.0
        %1993 = vmatprep.subr.mxu0 0.0
        %1994 = vmatpush2.msra.mxu0 0.0
        %1995 = vmatprep.subr.mxu0 0.0
        %1996 = vmatpush2.msra.mxu0 0.0
        %1997 = vmatprep.subr.mxu0 0.0
        %1998 = vmatpush2.msra.mxu0 0.0
        %1999 = vmatprep.subr.mxu0 0.0
        %2000 = vmatpush2.msra.mxu0 0.0
        %2001 = vmatprep.subr.mxu0 0.0
        %2002 = vmatpush2.msra.mxu0 0.0
        %2003 = vmatprep.subr.mxu0 0.0
        %2004 = vmatpush2.msra.mxu0 0.0
        %2005 = vmatprep.subr.mxu0 0.0
        %2006 = vmatpush2.msra.mxu0 0.0
        %2007 = vmatprep.subr.mxu0 0.0
        %2008 = vmatpush2.msra.mxu0 0.0
        %2009 = vmatprep.subr.mxu0 0.0
        %2010 = vmatpush2.msra.mxu0 0.0
        %2011 = vmatprep.subr.mxu0 0.0
        %2012 = vmatpush2.msra.mxu0 0.0
        %2013 = vmatprep.subr.mxu0 0.0
        %2014 = vmatpush2.msra.mxu0 0.0
        %2015 = vmatprep.subr.mxu0 0.0
        %2016 = vmatpush2.msra.mxu0 0.0
        %2017 = vmatprep.subr.mxu0 0.0
        %2018 = vmatpush2.msra.mxu0 0.0
        %2019 = vmatprep.subr.mxu0 0.0
        %2020 = vmatpush2.msra.mxu0 0.0
        %2021 = vmatprep.subr.mxu0 0.0
        %2022 = vmatpush2.msra.mxu0 0.0
        %2023 = vmatprep.mubr.f32.mxu0 0.0
        %2024 = vmatmul.mubr.f32.gmra.mxu0 %v1815
        %v2025 = vpop.f32.mrf.mxu0
        %v2026 = vadd.f32 0.0, %v2025
        %v2027 = vpop.f32.mrf.mxu0
        %v2028 = vadd.f32 0.0, %v2027
        %2029 = vdwg.mxu0
        %2030 = vmatprep.subr.mxu0 0.0
        %2031 = vmatpush1.msra.mxu0 0.0
        %2032 = vmatprep.subr.mxu0 0.0
        %2033 = vmatpush1.msra.mxu0 0.0
        %2034 = vmatprep.subr.mxu0 0.0
        %2035 = vmatpush1.msra.mxu0 0.0
        %2036 = vmatprep.subr.mxu0 0.0
        %2037 = vmatpush1.msra.mxu0 0.0
        %2038 = vmatprep.subr.mxu0 0.0
        %2039 = vmatpush1.msra.mxu0 0.0
        %2040 = vmatprep.subr.mxu0 %v728
        %2041 = vmatpush1.msra.mxu0 %v725
        %2042 = vmatprep.subr.mxu0 %v400
        %2043 = vmatpush1.msra.mxu0 %v399
        %2044 = vmatprep.subr.mxu0 %v394
        %2045 = vmatpush1.msra.mxu0 %v393
        %2046 = vmatprep.subr.mxu0 %v388
        %2047 = vmatpush1.msra.mxu0 %v387
        %2048 = vmatprep.subr.mxu0 %v382
        %2049 = vmatpush1.msra.mxu0 %v381
        %2050 = vmatprep.subr.mxu0 %v376
        %2051 = vmatpush1.msra.mxu0 %v375
        %2052 = vmatprep.subr.mxu0 %v370
        %2053 = vmatpush1.msra.mxu0 %v369
        %2054 = vmatprep.subr.mxu0 %v364
        %2055 = vmatpush1.msra.mxu0 %v363
        %2056 = vmatprep.subr.mxu0 %v358
        %2057 = vmatpush1.msra.mxu0 %v357
        %2058 = vmatprep.subr.mxu0 %v352
        %2059 = vmatpush1.msra.mxu0 %v351
        %2060 = vmatprep.subr.mxu0 %v346
        %2061 = vmatpush1.msra.mxu0 %v345
        %2062 = vmatprep.subr.mxu0 0.0
        %2063 = vmatpush2.msra.mxu0 0.0
        %2064 = vmatprep.subr.mxu0 0.0
        %2065 = vmatpush2.msra.mxu0 0.0
        %2066 = vmatprep.subr.mxu0 0.0
        %2067 = vmatpush2.msra.mxu0 0.0
        %2068 = vmatprep.subr.mxu0 0.0
        %2069 = vmatpush2.msra.mxu0 0.0
        %2070 = vmatprep.subr.mxu0 0.0
        %2071 = vmatpush2.msra.mxu0 0.0
        %2072 = vmatprep.subr.mxu0 0.0
        %2073 = vmatpush2.msra.mxu0 0.0
        %2074 = vmatprep.subr.mxu0 0.0
        %2075 = vmatpush2.msra.mxu0 0.0
        %2076 = vmatprep.subr.mxu0 0.0
        %2077 = vmatpush2.msra.mxu0 0.0
        %2078 = vmatprep.subr.mxu0 0.0
        %2079 = vmatpush2.msra.mxu0 0.0
        %2080 = vmatprep.subr.mxu0 0.0
        %2081 = vmatpush2.msra.mxu0 0.0
        %2082 = vmatprep.subr.mxu0 0.0
        %2083 = vmatpush2.msra.mxu0 0.0
        %2084 = vmatprep.subr.mxu0 0.0
        %2085 = vmatpush2.msra.mxu0 0.0
        %2086 = vmatprep.subr.mxu0 0.0
        %2087 = vmatpush2.msra.mxu0 0.0
        %2088 = vmatprep.subr.mxu0 0.0
        %2089 = vmatpush2.msra.mxu0 0.0
        %2090 = vmatprep.subr.mxu0 0.0
        %2091 = vmatpush2.msra.mxu0 0.0
        %2092 = vmatprep.subr.mxu0 0.0
        %2093 = vmatpush2.msra.mxu0 0.0
        %2094 = vmatprep.mubr.f32.mxu0 0.0
        %2095 = vmatmul.mubr.f32.gmra.mxu0 %v1385
        %v2096 = vpop.f32.mrf.mxu0
        %v2097 = vadd.f32 %v1884, %v2096
        %v2098 = vpop.f32.mrf.mxu0
        %v2099 = vadd.f32 %v1886, %v2098
        %2100 = vdwg.mxu0
        %2101 = vmatprep.subr.mxu0 0.0
        %2102 = vmatpush1.msra.mxu0 0.0
        %2103 = vmatprep.subr.mxu0 0.0
        %2104 = vmatpush1.msra.mxu0 0.0
        %2105 = vmatprep.subr.mxu0 0.0
        %2106 = vmatpush1.msra.mxu0 0.0
        %2107 = vmatprep.subr.mxu0 0.0
        %2108 = vmatpush1.msra.mxu0 0.0
        %2109 = vmatprep.subr.mxu0 0.0
        %2110 = vmatpush1.msra.mxu0 0.0
        %2111 = vmatprep.subr.mxu0 %v734
        %2112 = vmatpush1.msra.mxu0 %v731
        %2113 = vmatprep.subr.mxu0 %v402
        %2114 = vmatpush1.msra.mxu0 %v401
        %2115 = vmatprep.subr.mxu0 %v396
        %2116 = vmatpush1.msra.mxu0 %v395
        %2117 = vmatprep.subr.mxu0 %v390
        %2118 = vmatpush1.msra.mxu0 %v389
        %2119 = vmatprep.subr.mxu0 %v384
        %2120 = vmatpush1.msra.mxu0 %v383
        %2121 = vmatprep.subr.mxu0 %v378
        %2122 = vmatpush1.msra.mxu0 %v377
        %2123 = vmatprep.subr.mxu0 %v372
        %2124 = vmatpush1.msra.mxu0 %v371
        %2125 = vmatprep.subr.mxu0 %v366
        %2126 = vmatpush1.msra.mxu0 %v365
        %2127 = vmatprep.subr.mxu0 %v360
        %2128 = vmatpush1.msra.mxu0 %v359
        %2129 = vmatprep.subr.mxu0 %v354
        %2130 = vmatpush1.msra.mxu0 %v353
        %2131 = vmatprep.subr.mxu0 %v348
        %2132 = vmatpush1.msra.mxu0 %v347
        %2133 = vmatprep.subr.mxu0 0.0
        %2134 = vmatpush2.msra.mxu0 0.0
        %2135 = vmatprep.subr.mxu0 0.0
        %2136 = vmatpush2.msra.mxu0 0.0
        %2137 = vmatprep.subr.mxu0 0.0
        %2138 = vmatpush2.msra.mxu0 0.0
        %2139 = vmatprep.subr.mxu0 0.0
        %2140 = vmatpush2.msra.mxu0 0.0
        %2141 = vmatprep.subr.mxu0 0.0
        %2142 = vmatpush2.msra.mxu0 0.0
        %2143 = vmatprep.subr.mxu0 0.0
        %2144 = vmatpush2.msra.mxu0 0.0
        %2145 = vmatprep.subr.mxu0 0.0
        %2146 = vmatpush2.msra.mxu0 0.0
        %2147 = vmatprep.subr.mxu0 0.0
        %2148 = vmatpush2.msra.mxu0 0.0
        %2149 = vmatprep.subr.mxu0 0.0
        %2150 = vmatpush2.msra.mxu0 0.0
        %2151 = vmatprep.subr.mxu0 0.0
        %2152 = vmatpush2.msra.mxu0 0.0
        %2153 = vmatprep.subr.mxu0 0.0
        %2154 = vmatpush2.msra.mxu0 0.0
        %2155 = vmatprep.subr.mxu0 0.0
        %2156 = vmatpush2.msra.mxu0 0.0
        %2157 = vmatprep.subr.mxu0 0.0
        %2158 = vmatpush2.msra.mxu0 0.0
        %2159 = vmatprep.subr.mxu0 0.0
        %2160 = vmatpush2.msra.mxu0 0.0
        %2161 = vmatprep.subr.mxu0 0.0
        %2162 = vmatpush2.msra.mxu0 0.0
        %2163 = vmatprep.subr.mxu0 0.0
        %2164 = vmatpush2.msra.mxu0 0.0
        %2165 = vmatprep.mubr.f32.mxu0 0.0
        %2166 = vmatmul.mubr.f32.gmra.mxu0 %v1385
        %v2167 = vpop.f32.mrf.mxu0
        %v2168 = vadd.f32 %v1955, %v2167
        %v2169 = vpop.f32.mrf.mxu0
        %v2170 = vadd.f32 %v1957, %v2169
        %2171 = vdwg.mxu0
        %2172 = vmatprep.subr.mxu0 0.0
        %2173 = vmatpush1.msra.mxu0 0.0
        %2174 = vmatprep.subr.mxu0 0.0
        %2175 = vmatpush1.msra.mxu0 0.0
        %2176 = vmatprep.subr.mxu0 0.0
        %2177 = vmatpush1.msra.mxu0 0.0
        %2178 = vmatprep.subr.mxu0 0.0
        %2179 = vmatpush1.msra.mxu0 0.0
        %2180 = vmatprep.subr.mxu0 0.0
        %2181 = vmatpush1.msra.mxu0 0.0
        %2182 = vmatprep.subr.mxu0 %v740
        %2183 = vmatpush1.msra.mxu0 %v737
        %2184 = vmatprep.subr.mxu0 %v404
        %2185 = vmatpush1.msra.mxu0 %v403
        %2186 = vmatprep.subr.mxu0 %v398
        %2187 = vmatpush1.msra.mxu0 %v397
        %2188 = vmatprep.subr.mxu0 %v392
        %2189 = vmatpush1.msra.mxu0 %v391
        %2190 = vmatprep.subr.mxu0 %v386
        %2191 = vmatpush1.msra.mxu0 %v385
        %2192 = vmatprep.subr.mxu0 %v380
        %2193 = vmatpush1.msra.mxu0 %v379
        %2194 = vmatprep.subr.mxu0 %v374
        %2195 = vmatpush1.msra.mxu0 %v373
        %2196 = vmatprep.subr.mxu0 %v368
        %2197 = vmatpush1.msra.mxu0 %v367
        %2198 = vmatprep.subr.mxu0 %v362
        %2199 = vmatpush1.msra.mxu0 %v361
        %2200 = vmatprep.subr.mxu0 %v356
        %2201 = vmatpush1.msra.mxu0 %v355
        %2202 = vmatprep.subr.mxu0 %v350
        %2203 = vmatpush1.msra.mxu0 %v349
        %2204 = vmatprep.subr.mxu0 0.0
        %2205 = vmatpush2.msra.mxu0 0.0
        %2206 = vmatprep.subr.mxu0 0.0
        %2207 = vmatpush2.msra.mxu0 0.0
        %2208 = vmatprep.subr.mxu0 0.0
        %2209 = vmatpush2.msra.mxu0 0.0
        %2210 = vmatprep.subr.mxu0 0.0
        %2211 = vmatpush2.msra.mxu0 0.0
        %2212 = vmatprep.subr.mxu0 0.0
        %2213 = vmatpush2.msra.mxu0 0.0
        %2214 = vmatprep.subr.mxu0 0.0
        %2215 = vmatpush2.msra.mxu0 0.0
        %2216 = vmatprep.subr.mxu0 0.0
        %2217 = vmatpush2.msra.mxu0 0.0
        %2218 = vmatprep.subr.mxu0 0.0
        %2219 = vmatpush2.msra.mxu0 0.0
        %2220 = vmatprep.subr.mxu0 0.0
        %2221 = vmatpush2.msra.mxu0 0.0
        %2222 = vmatprep.subr.mxu0 0.0
        %2223 = vmatpush2.msra.mxu0 0.0
        %2224 = vmatprep.subr.mxu0 0.0
        %2225 = vmatpush2.msra.mxu0 0.0
        %2226 = vmatprep.subr.mxu0 0.0
        %2227 = vmatpush2.msra.mxu0 0.0
        %2228 = vmatprep.subr.mxu0 0.0
        %2229 = vmatpush2.msra.mxu0 0.0
        %2230 = vmatprep.subr.mxu0 0.0
        %2231 = vmatpush2.msra.mxu0 0.0
        %2232 = vmatprep.subr.mxu0 0.0
        %2233 = vmatpush2.msra.mxu0 0.0
        %2234 = vmatprep.subr.mxu0 0.0
        %2235 = vmatpush2.msra.mxu0 0.0
        %2236 = vmatprep.mubr.f32.mxu0 0.0
        %2237 = vmatmul.mubr.f32.gmra.mxu0 %v1385
        %v2238 = vpop.f32.mrf.mxu0
        %v2239 = vadd.f32 %v2026, %v2238
        %v2240 = vpop.f32.mrf.mxu0
        %v2241 = vadd.f32 %v2028, %v2240
        %2242 = vdwg.mxu0
        %s2243 = scalar_lea.vmem [#allocation2], 1056
        %v2244 = vld [vmem:[%s2243] sm:$0xff]
        %v2245 = vld [vmem:[%s2243 + $0x8] sm:$0xff]
        %v2246 = vld [vmem:[%s2243 + $0x10] sm:$0xff]
        %v2247 = vld [vmem:[%s2243 + $0x18] sm:$0xff]
        %v2248 = vld [vmem:[%s2243 + $0x20] sm:$0xff]
        %v2249 = vld [vmem:[%s2243 + $0x28] sm:$0xff]
        %v2250 = vld [vmem:[%s2243 + $0x30] sm:$0xff]
        %v2251 = vld [vmem:[%s2243 + $0x38] sm:$0xff]
        %v2252 = vld [vmem:[%s2243 + $0x40] sm:$0xff]
        %v2253 = vld [vmem:[%s2243 + $0x48] sm:$0xff]
        %v2254 = vld [vmem:[%s2243 + $0x50] sm:$0xff]
        %v2255 = vld [vmem:[%s2243 + $0x58] sm:$0xff]
        %v2256 = vld [vmem:[%s2243 + $0x60] sm:$0xff]
        %v2257 = vld [vmem:[%s2243 + $0x68] sm:$0xff]
        %v2258 = vld [vmem:[%s2243 + $0x70] sm:$0xff]
        %v2259 = vld [vmem:[%s2243 + $0x78] sm:$0xff]
        %v2260 = vld [vmem:[%s2243 + $0x80] sm:$0xff]
        %v2261 = vld [vmem:[%s2243 + $0x88] sm:$0xff]
        %v2262 = vld [vmem:[%s2243 + $0x90] sm:$0xff]
        %v2263 = vld [vmem:[%s2243 + $0x98] sm:$0xff]
        %v2264 = vld [vmem:[%s2243 + $0xa0] sm:$0xff]
        %v2265 = vld [vmem:[%s2243 + $0xa8] sm:$0xff]
        %v2266 = vld [vmem:[%s2243 + $0xb0] sm:$0xff]
        %v2267 = vld [vmem:[%s2243 + $0xb8] sm:$0xff]
        %v2268 = vld [vmem:[%s2243 + $0xc0] sm:$0xff]
        %v2269 = vld [vmem:[%s2243 + $0xc8] sm:$0xff]
        %v2270 = vld [vmem:[%s2243 + $0xd0] sm:$0xff]
        %v2271 = vld [vmem:[%s2243 + $0xd8] sm:$0xff]
        %v2272 = vld [vmem:[%s2243 + $0xe0] sm:$0xff]
        %v2273 = vld [vmem:[%s2243 + $0xe8] sm:$0xff]
        %v2274 = vld [vmem:[%s2243 + $0xf0] sm:$0xff]
        %v2275 = vld [vmem:[%s2243 + $0xf8] sm:$0xff]
        %v2276 = vld [vmem:[%s2243 + $0x100] sm:$0xff]
        %v2277 = vld [vmem:[%s2243 + $0x108] sm:$0xff]
        %v2278 = vld [vmem:[%s2243 + $0x110] sm:$0xff]
        %v2279 = vld [vmem:[%s2243 + $0x118] sm:$0xff]
        %v2280 = vld [vmem:[%s2243 + $0x120] sm:$0xff]
        %v2281 = vld [vmem:[%s2243 + $0x128] sm:$0xff]
        %v2282 = vld [vmem:[%s2243 + $0x130] sm:$0xff]
        %v2283 = vld [vmem:[%s2243 + $0x138] sm:$0xff]
        %v2284 = vld [vmem:[%s2243 + $0x140] sm:$0xff]
        %v2285 = vld [vmem:[%s2243 + $0x148] sm:$0xff]
        %v2286 = vld [vmem:[%s2243 + $0x150] sm:$0xff]
        %v2287 = vld [vmem:[%s2243 + $0x158] sm:$0xff]
        %v2288 = vld [vmem:[%s2243 + $0x160] sm:$0xff]
        %v2289 = vld [vmem:[%s2243 + $0x168] sm:$0xff]
        %v2290 = vld [vmem:[%s2243 + $0x170] sm:$0xff]
        %v2291 = vld [vmem:[%s2243 + $0x178] sm:$0xff]
        %v2292 = vld [vmem:[%s2243 + $0x180] sm:$0xff]
        %v2293 = vld [vmem:[%s2243 + $0x188] sm:$0xff]
        %v2294 = vld [vmem:[%s2243 + $0x190] sm:$0xff]
        %v2295 = vld [vmem:[%s2243 + $0x198] sm:$0xff]
        %v2296 = vld [vmem:[%s2243 + $0x1a0] sm:$0xff]
        %v2297 = vld [vmem:[%s2243 + $0x1a8] sm:$0xff]
        %v2298 = vld [vmem:[%s2243 + $0x1b0] sm:$0xff]
        %v2299 = vld [vmem:[%s2243 + $0x1b8] sm:$0xff]
        %v2300 = vld [vmem:[%s2243 + $0x1c0] sm:$0xff]
        %v2301 = vld [vmem:[%s2243 + $0x1c8] sm:$0xff]
        %v2302 = vld [vmem:[%s2243 + $0x1d0] sm:$0xff]
        %v2303 = vld [vmem:[%s2243 + $0x1d8] sm:$0xff]
        %v2304 = vld [vmem:[%s2243 + $0x1e0] sm:$0xf]
        %v2305 = vld [vmem:[%s2243 + $0x1e8] sm:$0xf]
        %v2306 = vld [vmem:[%s2243 + $0x1f0] sm:$0xf]
        %v2307 = vld [vmem:[%s2243 + $0x1f8] sm:$0xf]
        %v2308 = vld [vmem:[%s2243 + $0x200] sm:$0xf]
        %v2309 = vld [vmem:[%s2243 + $0x208] sm:$0xf]
        %v2311 = vsel %vm489, %v2304, 0
        %v2314 = vsel %vm489, %v2305, 0
        %v2317 = vsel %vm489, %v2306, 0
        %v2320 = vsel %vm489, %v2307, 0
        %v2323 = vsel %vm489, %v2308, 0
        %v2326 = vsel %vm489, %v2309, 0
        %2328 = vmatprep.subr.mxu0 0.0
        %2329 = vmatpush1.msra.mxu0 0.0
        %2330 = vmatprep.subr.mxu0 0.0
        %2331 = vmatpush1.msra.mxu0 0.0
        %2332 = vmatprep.subr.mxu0 0.0
        %2333 = vmatpush1.msra.mxu0 0.0
        %2334 = vmatprep.subr.mxu0 0.0
        %2335 = vmatpush1.msra.mxu0 0.0
        %2336 = vmatprep.subr.mxu0 0.0
        %2337 = vmatpush1.msra.mxu0 0.0
        %2338 = vmatprep.subr.mxu0 %v2314
        %2339 = vmatpush1.msra.mxu0 %v2311
        %2340 = vmatprep.subr.mxu0 %v2299
        %2341 = vmatpush1.msra.mxu0 %v2298
        %2342 = vmatprep.subr.mxu0 %v2293
        %2343 = vmatpush1.msra.mxu0 %v2292
        %2344 = vmatprep.subr.mxu0 %v2287
        %2345 = vmatpush1.msra.mxu0 %v2286
        %2346 = vmatprep.subr.mxu0 %v2281
        %2347 = vmatpush1.msra.mxu0 %v2280
        %2348 = vmatprep.subr.mxu0 %v2275
        %2349 = vmatpush1.msra.mxu0 %v2274
        %2350 = vmatprep.subr.mxu0 %v2269
        %2351 = vmatpush1.msra.mxu0 %v2268
        %2352 = vmatprep.subr.mxu0 %v2263
        %2353 = vmatpush1.msra.mxu0 %v2262
        %2354 = vmatprep.subr.mxu0 %v2257
        %2355 = vmatpush1.msra.mxu0 %v2256
        %2356 = vmatprep.subr.mxu0 %v2251
        %2357 = vmatpush1.msra.mxu0 %v2250
        %2358 = vmatprep.subr.mxu0 %v2245
        %2359 = vmatpush1.msra.mxu0 %v2244
        %2360 = vmatprep.subr.mxu0 0.0
        %2361 = vmatpush2.msra.mxu0 0.0
        %2362 = vmatprep.subr.mxu0 0.0
        %2363 = vmatpush2.msra.mxu0 0.0
        %2364 = vmatprep.subr.mxu0 0.0
        %2365 = vmatpush2.msra.mxu0 0.0
        %2366 = vmatprep.subr.mxu0 0.0
        %2367 = vmatpush2.msra.mxu0 0.0
        %2368 = vmatprep.subr.mxu0 0.0
        %2369 = vmatpush2.msra.mxu0 0.0
        %2370 = vmatprep.subr.mxu0 0.0
        %2371 = vmatpush2.msra.mxu0 0.0
        %2372 = vmatprep.subr.mxu0 0.0
        %2373 = vmatpush2.msra.mxu0 0.0
        %2374 = vmatprep.subr.mxu0 0.0
        %2375 = vmatpush2.msra.mxu0 0.0
        %2376 = vmatprep.subr.mxu0 0.0
        %2377 = vmatpush2.msra.mxu0 0.0
        %2378 = vmatprep.subr.mxu0 0.0
        %2379 = vmatpush2.msra.mxu0 0.0
        %2380 = vmatprep.subr.mxu0 0.0
        %2381 = vmatpush2.msra.mxu0 0.0
        %2382 = vmatprep.subr.mxu0 0.0
        %2383 = vmatpush2.msra.mxu0 0.0
        %2384 = vmatprep.subr.mxu0 0.0
        %2385 = vmatpush2.msra.mxu0 0.0
        %2386 = vmatprep.subr.mxu0 0.0
        %2387 = vmatpush2.msra.mxu0 0.0
        %2388 = vmatprep.subr.mxu0 0.0
        %2389 = vmatpush2.msra.mxu0 0.0
        %2390 = vmatprep.subr.mxu0 0.0
        %2391 = vmatpush2.msra.mxu0 0.0
        %2392 = vmatprep.mubr.f32.mxu0 0.0
        %2393 = vmatmul.mubr.f32.gmra.mxu0 %v956
        %v2394 = vpop.f32.mrf.mxu0
        %v2395 = vadd.f32 0.0, %v2394
        %v2396 = vpop.f32.mrf.mxu0
        %v2397 = vadd.f32 0.0, %v2396
        %2398 = vdwg.mxu0
        %2399 = vmatprep.subr.mxu0 0.0
        %2400 = vmatpush1.msra.mxu0 0.0
        %2401 = vmatprep.subr.mxu0 0.0
        %2402 = vmatpush1.msra.mxu0 0.0
        %2403 = vmatprep.subr.mxu0 0.0
        %2404 = vmatpush1.msra.mxu0 0.0
        %2405 = vmatprep.subr.mxu0 0.0
        %2406 = vmatpush1.msra.mxu0 0.0
        %2407 = vmatprep.subr.mxu0 0.0
        %2408 = vmatpush1.msra.mxu0 0.0
        %2409 = vmatprep.subr.mxu0 %v2320
        %2410 = vmatpush1.msra.mxu0 %v2317
        %2411 = vmatprep.subr.mxu0 %v2301
        %2412 = vmatpush1.msra.mxu0 %v2300
        %2413 = vmatprep.subr.mxu0 %v2295
        %2414 = vmatpush1.msra.mxu0 %v2294
        %2415 = vmatprep.subr.mxu0 %v2289
        %2416 = vmatpush1.msra.mxu0 %v2288
        %2417 = vmatprep.subr.mxu0 %v2283
        %2418 = vmatpush1.msra.mxu0 %v2282
        %2419 = vmatprep.subr.mxu0 %v2277
        %2420 = vmatpush1.msra.mxu0 %v2276
        %2421 = vmatprep.subr.mxu0 %v2271
        %2422 = vmatpush1.msra.mxu0 %v2270
        %2423 = vmatprep.subr.mxu0 %v2265
        %2424 = vmatpush1.msra.mxu0 %v2264
        %2425 = vmatprep.subr.mxu0 %v2259
        %2426 = vmatpush1.msra.mxu0 %v2258
        %2427 = vmatprep.subr.mxu0 %v2253
        %2428 = vmatpush1.msra.mxu0 %v2252
        %2429 = vmatprep.subr.mxu0 %v2247
        %2430 = vmatpush1.msra.mxu0 %v2246
        %2431 = vmatprep.subr.mxu0 0.0
        %2432 = vmatpush2.msra.mxu0 0.0
        %2433 = vmatprep.subr.mxu0 0.0
        %2434 = vmatpush2.msra.mxu0 0.0
        %2435 = vmatprep.subr.mxu0 0.0
        %2436 = vmatpush2.msra.mxu0 0.0
        %2437 = vmatprep.subr.mxu0 0.0
        %2438 = vmatpush2.msra.mxu0 0.0
        %2439 = vmatprep.subr.mxu0 0.0
        %2440 = vmatpush2.msra.mxu0 0.0
        %2441 = vmatprep.subr.mxu0 0.0
        %2442 = vmatpush2.msra.mxu0 0.0
        %2443 = vmatprep.subr.mxu0 0.0
        %2444 = vmatpush2.msra.mxu0 0.0
        %2445 = vmatprep.subr.mxu0 0.0
        %2446 = vmatpush2.msra.mxu0 0.0
        %2447 = vmatprep.subr.mxu0 0.0
        %2448 = vmatpush2.msra.mxu0 0.0
        %2449 = vmatprep.subr.mxu0 0.0
        %2450 = vmatpush2.msra.mxu0 0.0
        %2451 = vmatprep.subr.mxu0 0.0
        %2452 = vmatpush2.msra.mxu0 0.0
        %2453 = vmatprep.subr.mxu0 0.0
        %2454 = vmatpush2.msra.mxu0 0.0
        %2455 = vmatprep.subr.mxu0 0.0
        %2456 = vmatpush2.msra.mxu0 0.0
        %2457 = vmatprep.subr.mxu0 0.0
        %2458 = vmatpush2.msra.mxu0 0.0
        %2459 = vmatprep.subr.mxu0 0.0
        %2460 = vmatpush2.msra.mxu0 0.0
        %2461 = vmatprep.subr.mxu0 0.0
        %2462 = vmatpush2.msra.mxu0 0.0
        %2463 = vmatprep.mubr.f32.mxu0 0.0
        %2464 = vmatmul.mubr.f32.gmra.mxu0 %v956
        %v2465 = vpop.f32.mrf.mxu0
        %v2466 = vadd.f32 0.0, %v2465
        %v2467 = vpop.f32.mrf.mxu0
        %v2468 = vadd.f32 0.0, %v2467
        %2469 = vdwg.mxu0
        %2470 = vmatprep.subr.mxu0 0.0
        %2471 = vmatpush1.msra.mxu0 0.0
        %2472 = vmatprep.subr.mxu0 0.0
        %2473 = vmatpush1.msra.mxu0 0.0
        %2474 = vmatprep.subr.mxu0 0.0
        %2475 = vmatpush1.msra.mxu0 0.0
        %2476 = vmatprep.subr.mxu0 0.0
        %2477 = vmatpush1.msra.mxu0 0.0
        %2478 = vmatprep.subr.mxu0 0.0
        %2479 = vmatpush1.msra.mxu0 0.0
        %2480 = vmatprep.subr.mxu0 %v2326
        %2481 = vmatpush1.msra.mxu0 %v2323
        %2482 = vmatprep.subr.mxu0 %v2303
        %2483 = vmatpush1.msra.mxu0 %v2302
        %2484 = vmatprep.subr.mxu0 %v2297
        %2485 = vmatpush1.msra.mxu0 %v2296
        %2486 = vmatprep.subr.mxu0 %v2291
        %2487 = vmatpush1.msra.mxu0 %v2290
        %2488 = vmatprep.subr.mxu0 %v2285
        %2489 = vmatpush1.msra.mxu0 %v2284
        %2490 = vmatprep.subr.mxu0 %v2279
        %2491 = vmatpush1.msra.mxu0 %v2278
        %2492 = vmatprep.subr.mxu0 %v2273
        %2493 = vmatpush1.msra.mxu0 %v2272
        %2494 = vmatprep.subr.mxu0 %v2267
        %2495 = vmatpush1.msra.mxu0 %v2266
        %2496 = vmatprep.subr.mxu0 %v2261
        %2497 = vmatpush1.msra.mxu0 %v2260
        %2498 = vmatprep.subr.mxu0 %v2255
        %2499 = vmatpush1.msra.mxu0 %v2254
        %2500 = vmatprep.subr.mxu0 %v2249
        %2501 = vmatpush1.msra.mxu0 %v2248
        %2502 = vmatprep.subr.mxu0 0.0
        %2503 = vmatpush2.msra.mxu0 0.0
        %2504 = vmatprep.subr.mxu0 0.0
        %2505 = vmatpush2.msra.mxu0 0.0
        %2506 = vmatprep.subr.mxu0 0.0
        %2507 = vmatpush2.msra.mxu0 0.0
        %2508 = vmatprep.subr.mxu0 0.0
        %2509 = vmatpush2.msra.mxu0 0.0
        %2510 = vmatprep.subr.mxu0 0.0
        %2511 = vmatpush2.msra.mxu0 0.0
        %2512 = vmatprep.subr.mxu0 0.0
        %2513 = vmatpush2.msra.mxu0 0.0
        %2514 = vmatprep.subr.mxu0 0.0
        %2515 = vmatpush2.msra.mxu0 0.0
        %2516 = vmatprep.subr.mxu0 0.0
        %2517 = vmatpush2.msra.mxu0 0.0
        %2518 = vmatprep.subr.mxu0 0.0
        %2519 = vmatpush2.msra.mxu0 0.0
        %2520 = vmatprep.subr.mxu0 0.0
        %2521 = vmatpush2.msra.mxu0 0.0
        %2522 = vmatprep.subr.mxu0 0.0
        %2523 = vmatpush2.msra.mxu0 0.0
        %2524 = vmatprep.subr.mxu0 0.0
        %2525 = vmatpush2.msra.mxu0 0.0
        %2526 = vmatprep.subr.mxu0 0.0
        %2527 = vmatpush2.msra.mxu0 0.0
        %2528 = vmatprep.subr.mxu0 0.0
        %2529 = vmatpush2.msra.mxu0 0.0
        %2530 = vmatprep.subr.mxu0 0.0
        %2531 = vmatpush2.msra.mxu0 0.0
        %2532 = vmatprep.subr.mxu0 0.0
        %2533 = vmatpush2.msra.mxu0 0.0
        %2534 = vmatprep.mubr.f32.mxu0 0.0
        %2535 = vmatmul.mubr.f32.gmra.mxu0 %v956
        %v2536 = vpop.f32.mrf.mxu0
        %v2537 = vadd.f32 0.0, %v2536
        %v2538 = vpop.f32.mrf.mxu0
        %v2539 = vadd.f32 0.0, %v2538
        %2540 = vdwg.mxu0
        %v2541 = vadd.f32 %v809, %v2395
        %v2542 = vadd.f32 %v811, %v2397
        %v2543 = vadd.f32 %v880, %v2466
        %v2544 = vadd.f32 %v882, %v2468
        %v2545 = vadd.f32 %v951, %v2537
        %v2546 = vadd.f32 %v953, %v2539
        %2547 = vmatprep.subr.mxu0 0.0
        %2548 = vmatpush1.msra.mxu0 0.0
        %2549 = vmatprep.subr.mxu0 0.0
        %2550 = vmatpush1.msra.mxu0 0.0
        %2551 = vmatprep.subr.mxu0 0.0
        %2552 = vmatpush1.msra.mxu0 0.0
        %2553 = vmatprep.subr.mxu0 0.0
        %2554 = vmatpush1.msra.mxu0 0.0
        %2555 = vmatprep.subr.mxu0 0.0
        %2556 = vmatpush1.msra.mxu0 0.0
        %2557 = vmatprep.subr.mxu0 %v2314
        %2558 = vmatpush1.msra.mxu0 %v2311
        %2559 = vmatprep.subr.mxu0 %v2299
        %2560 = vmatpush1.msra.mxu0 %v2298
        %2561 = vmatprep.subr.mxu0 %v2293
        %2562 = vmatpush1.msra.mxu0 %v2292
        %2563 = vmatprep.subr.mxu0 %v2287
        %2564 = vmatpush1.msra.mxu0 %v2286
        %2565 = vmatprep.subr.mxu0 %v2281
        %2566 = vmatpush1.msra.mxu0 %v2280
        %2567 = vmatprep.subr.mxu0 %v2275
        %2568 = vmatpush1.msra.mxu0 %v2274
        %2569 = vmatprep.subr.mxu0 %v2269
        %2570 = vmatpush1.msra.mxu0 %v2268
        %2571 = vmatprep.subr.mxu0 %v2263
        %2572 = vmatpush1.msra.mxu0 %v2262
        %2573 = vmatprep.subr.mxu0 %v2257
        %2574 = vmatpush1.msra.mxu0 %v2256
        %2575 = vmatprep.subr.mxu0 %v2251
        %2576 = vmatpush1.msra.mxu0 %v2250
        %2577 = vmatprep.subr.mxu0 %v2245
        %2578 = vmatpush1.msra.mxu0 %v2244
        %2579 = vmatprep.subr.mxu0 0.0
        %2580 = vmatpush2.msra.mxu0 0.0
        %2581 = vmatprep.subr.mxu0 0.0
        %2582 = vmatpush2.msra.mxu0 0.0
        %2583 = vmatprep.subr.mxu0 0.0
        %2584 = vmatpush2.msra.mxu0 0.0
        %2585 = vmatprep.subr.mxu0 0.0
        %2586 = vmatpush2.msra.mxu0 0.0
        %2587 = vmatprep.subr.mxu0 0.0
        %2588 = vmatpush2.msra.mxu0 0.0
        %2589 = vmatprep.subr.mxu0 0.0
        %2590 = vmatpush2.msra.mxu0 0.0
        %2591 = vmatprep.subr.mxu0 0.0
        %2592 = vmatpush2.msra.mxu0 0.0
        %2593 = vmatprep.subr.mxu0 0.0
        %2594 = vmatpush2.msra.mxu0 0.0
        %2595 = vmatprep.subr.mxu0 0.0
        %2596 = vmatpush2.msra.mxu0 0.0
        %2597 = vmatprep.subr.mxu0 0.0
        %2598 = vmatpush2.msra.mxu0 0.0
        %2599 = vmatprep.subr.mxu0 0.0
        %2600 = vmatpush2.msra.mxu0 0.0
        %2601 = vmatprep.subr.mxu0 0.0
        %2602 = vmatpush2.msra.mxu0 0.0
        %2603 = vmatprep.subr.mxu0 0.0
        %2604 = vmatpush2.msra.mxu0 0.0
        %2605 = vmatprep.subr.mxu0 0.0
        %2606 = vmatpush2.msra.mxu0 0.0
        %2607 = vmatprep.subr.mxu0 0.0
        %2608 = vmatpush2.msra.mxu0 0.0
        %2609 = vmatprep.subr.mxu0 0.0
        %2610 = vmatpush2.msra.mxu0 0.0
        %2611 = vmatprep.mubr.f32.mxu0 0.0
        %2612 = vmatmul.mubr.f32.gmra.mxu0 %v1385
        %v2613 = vpop.f32.mrf.mxu0
        %v2614 = vadd.f32 0.0, %v2613
        %v2615 = vpop.f32.mrf.mxu0
        %v2616 = vadd.f32 0.0, %v2615
        %2617 = vdwg.mxu0
        %2618 = vmatprep.subr.mxu0 0.0
        %2619 = vmatpush1.msra.mxu0 0.0
        %2620 = vmatprep.subr.mxu0 0.0
        %2621 = vmatpush1.msra.mxu0 0.0
        %2622 = vmatprep.subr.mxu0 0.0
        %2623 = vmatpush1.msra.mxu0 0.0
        %2624 = vmatprep.subr.mxu0 0.0
        %2625 = vmatpush1.msra.mxu0 0.0
        %2626 = vmatprep.subr.mxu0 0.0
        %2627 = vmatpush1.msra.mxu0 0.0
        %2628 = vmatprep.subr.mxu0 %v2320
        %2629 = vmatpush1.msra.mxu0 %v2317
        %2630 = vmatprep.subr.mxu0 %v2301
        %2631 = vmatpush1.msra.mxu0 %v2300
        %2632 = vmatprep.subr.mxu0 %v2295
        %2633 = vmatpush1.msra.mxu0 %v2294
        %2634 = vmatprep.subr.mxu0 %v2289
        %2635 = vmatpush1.msra.mxu0 %v2288
        %2636 = vmatprep.subr.mxu0 %v2283
        %2637 = vmatpush1.msra.mxu0 %v2282
        %2638 = vmatprep.subr.mxu0 %v2277
        %2639 = vmatpush1.msra.mxu0 %v2276
        %2640 = vmatprep.subr.mxu0 %v2271
        %2641 = vmatpush1.msra.mxu0 %v2270
        %2642 = vmatprep.subr.mxu0 %v2265
        %2643 = vmatpush1.msra.mxu0 %v2264
        %2644 = vmatprep.subr.mxu0 %v2259
        %2645 = vmatpush1.msra.mxu0 %v2258
        %2646 = vmatprep.subr.mxu0 %v2253
        %2647 = vmatpush1.msra.mxu0 %v2252
        %2648 = vmatprep.subr.mxu0 %v2247
        %2649 = vmatpush1.msra.mxu0 %v2246
        %2650 = vmatprep.subr.mxu0 0.0
        %2651 = vmatpush2.msra.mxu0 0.0
        %2652 = vmatprep.subr.mxu0 0.0
        %2653 = vmatpush2.msra.mxu0 0.0
        %2654 = vmatprep.subr.mxu0 0.0
        %2655 = vmatpush2.msra.mxu0 0.0
        %2656 = vmatprep.subr.mxu0 0.0
        %2657 = vmatpush2.msra.mxu0 0.0
        %2658 = vmatprep.subr.mxu0 0.0
        %2659 = vmatpush2.msra.mxu0 0.0
        %2660 = vmatprep.subr.mxu0 0.0
        %2661 = vmatpush2.msra.mxu0 0.0
        %2662 = vmatprep.subr.mxu0 0.0
        %2663 = vmatpush2.msra.mxu0 0.0
        %2664 = vmatprep.subr.mxu0 0.0
        %2665 = vmatpush2.msra.mxu0 0.0
        %2666 = vmatprep.subr.mxu0 0.0
        %2667 = vmatpush2.msra.mxu0 0.0
        %2668 = vmatprep.subr.mxu0 0.0
        %2669 = vmatpush2.msra.mxu0 0.0
        %2670 = vmatprep.subr.mxu0 0.0
        %2671 = vmatpush2.msra.mxu0 0.0
        %2672 = vmatprep.subr.mxu0 0.0
        %2673 = vmatpush2.msra.mxu0 0.0
        %2674 = vmatprep.subr.mxu0 0.0
        %2675 = vmatpush2.msra.mxu0 0.0
        %2676 = vmatprep.subr.mxu0 0.0
        %2677 = vmatpush2.msra.mxu0 0.0
        %2678 = vmatprep.subr.mxu0 0.0
        %2679 = vmatpush2.msra.mxu0 0.0
        %2680 = vmatprep.subr.mxu0 0.0
        %2681 = vmatpush2.msra.mxu0 0.0
        %2682 = vmatprep.mubr.f32.mxu0 0.0
        %2683 = vmatmul.mubr.f32.gmra.mxu0 %v1385
        %v2684 = vpop.f32.mrf.mxu0
        %v2685 = vadd.f32 0.0, %v2684
        %v2686 = vpop.f32.mrf.mxu0
        %v2687 = vadd.f32 0.0, %v2686
        %2688 = vdwg.mxu0
        %2689 = vmatprep.subr.mxu0 0.0
        %2690 = vmatpush1.msra.mxu0 0.0
        %2691 = vmatprep.subr.mxu0 0.0
        %2692 = vmatpush1.msra.mxu0 0.0
        %2693 = vmatprep.subr.mxu0 0.0
        %2694 = vmatpush1.msra.mxu0 0.0
        %2695 = vmatprep.subr.mxu0 0.0
        %2696 = vmatpush1.msra.mxu0 0.0
        %2697 = vmatprep.subr.mxu0 0.0
        %2698 = vmatpush1.msra.mxu0 0.0
        %2699 = vmatprep.subr.mxu0 %v2326
        %2700 = vmatpush1.msra.mxu0 %v2323
        %2701 = vmatprep.subr.mxu0 %v2303
        %2702 = vmatpush1.msra.mxu0 %v2302
        %2703 = vmatprep.subr.mxu0 %v2297
        %2704 = vmatpush1.msra.mxu0 %v2296
        %2705 = vmatprep.subr.mxu0 %v2291
        %2706 = vmatpush1.msra.mxu0 %v2290
        %2707 = vmatprep.subr.mxu0 %v2285
        %2708 = vmatpush1.msra.mxu0 %v2284
        %2709 = vmatprep.subr.mxu0 %v2279
        %2710 = vmatpush1.msra.mxu0 %v2278
        %2711 = vmatprep.subr.mxu0 %v2273
        %2712 = vmatpush1.msra.mxu0 %v2272
        %2713 = vmatprep.subr.mxu0 %v2267
        %2714 = vmatpush1.msra.mxu0 %v2266
        %2715 = vmatprep.subr.mxu0 %v2261
        %2716 = vmatpush1.msra.mxu0 %v2260
        %2717 = vmatprep.subr.mxu0 %v2255
        %2718 = vmatpush1.msra.mxu0 %v2254
        %2719 = vmatprep.subr.mxu0 %v2249
        %2720 = vmatpush1.msra.mxu0 %v2248
        %2721 = vmatprep.subr.mxu0 0.0
        %2722 = vmatpush2.msra.mxu0 0.0
        %2723 = vmatprep.subr.mxu0 0.0
        %2724 = vmatpush2.msra.mxu0 0.0
        %2725 = vmatprep.subr.mxu0 0.0
        %2726 = vmatpush2.msra.mxu0 0.0
        %2727 = vmatprep.subr.mxu0 0.0
        %2728 = vmatpush2.msra.mxu0 0.0
        %2729 = vmatprep.subr.mxu0 0.0
        %2730 = vmatpush2.msra.mxu0 0.0
        %2731 = vmatprep.subr.mxu0 0.0
        %2732 = vmatpush2.msra.mxu0 0.0
        %2733 = vmatprep.subr.mxu0 0.0
        %2734 = vmatpush2.msra.mxu0 0.0
        %2735 = vmatprep.subr.mxu0 0.0
        %2736 = vmatpush2.msra.mxu0 0.0
        %2737 = vmatprep.subr.mxu0 0.0
        %2738 = vmatpush2.msra.mxu0 0.0
        %2739 = vmatprep.subr.mxu0 0.0
        %2740 = vmatpush2.msra.mxu0 0.0
        %2741 = vmatprep.subr.mxu0 0.0
        %2742 = vmatpush2.msra.mxu0 0.0
        %2743 = vmatprep.subr.mxu0 0.0
        %2744 = vmatpush2.msra.mxu0 0.0
        %2745 = vmatprep.subr.mxu0 0.0
        %2746 = vmatpush2.msra.mxu0 0.0
        %2747 = vmatprep.subr.mxu0 0.0
        %2748 = vmatpush2.msra.mxu0 0.0
        %2749 = vmatprep.subr.mxu0 0.0
        %2750 = vmatpush2.msra.mxu0 0.0
        %2751 = vmatprep.subr.mxu0 0.0
        %2752 = vmatpush2.msra.mxu0 0.0
        %2753 = vmatprep.mubr.f32.mxu0 0.0
        %2754 = vmatmul.mubr.f32.gmra.mxu0 %v1385
        %v2755 = vpop.f32.mrf.mxu0
        %v2756 = vadd.f32 0.0, %v2755
        %v2757 = vpop.f32.mrf.mxu0
        %v2758 = vadd.f32 0.0, %v2757
        %2759 = vdwg.mxu0
        %v2760 = vadd.f32 %v1238, %v2614
        %v2761 = vadd.f32 %v1240, %v2616
        %v2762 = vadd.f32 %v1309, %v2685
        %v2763 = vadd.f32 %v1311, %v2687
        %v2764 = vadd.f32 %v1380, %v2756
        %v2765 = vadd.f32 %v1382, %v2758
        %2766 = vmatprep.subr.mxu0 0.0
        %2767 = vmatpush1.msra.mxu0 0.0
        %2768 = vmatprep.subr.mxu0 0.0
        %2769 = vmatpush1.msra.mxu0 0.0
        %2770 = vmatprep.subr.mxu0 0.0
        %2771 = vmatpush1.msra.mxu0 0.0
        %2772 = vmatprep.subr.mxu0 0.0
        %2773 = vmatpush1.msra.mxu0 0.0
        %2774 = vmatprep.subr.mxu0 0.0
        %2775 = vmatpush1.msra.mxu0 0.0
        %2776 = vmatprep.subr.mxu0 %v2314
        %2777 = vmatpush1.msra.mxu0 %v2311
        %2778 = vmatprep.subr.mxu0 %v2299
        %2779 = vmatpush1.msra.mxu0 %v2298
        %2780 = vmatprep.subr.mxu0 %v2293
        %2781 = vmatpush1.msra.mxu0 %v2292
        %2782 = vmatprep.subr.mxu0 %v2287
        %2783 = vmatpush1.msra.mxu0 %v2286
        %2784 = vmatprep.subr.mxu0 %v2281
        %2785 = vmatpush1.msra.mxu0 %v2280
        %2786 = vmatprep.subr.mxu0 %v2275
        %2787 = vmatpush1.msra.mxu0 %v2274
        %2788 = vmatprep.subr.mxu0 %v2269
        %2789 = vmatpush1.msra.mxu0 %v2268
        %2790 = vmatprep.subr.mxu0 %v2263
        %2791 = vmatpush1.msra.mxu0 %v2262
        %2792 = vmatprep.subr.mxu0 %v2257
        %2793 = vmatpush1.msra.mxu0 %v2256
        %2794 = vmatprep.subr.mxu0 %v2251
        %2795 = vmatpush1.msra.mxu0 %v2250
        %2796 = vmatprep.subr.mxu0 %v2245
        %2797 = vmatpush1.msra.mxu0 %v2244
        %2798 = vmatprep.subr.mxu0 0.0
        %2799 = vmatpush2.msra.mxu0 0.0
        %2800 = vmatprep.subr.mxu0 0.0
        %2801 = vmatpush2.msra.mxu0 0.0
        %2802 = vmatprep.subr.mxu0 0.0
        %2803 = vmatpush2.msra.mxu0 0.0
        %2804 = vmatprep.subr.mxu0 0.0
        %2805 = vmatpush2.msra.mxu0 0.0
        %2806 = vmatprep.subr.mxu0 0.0
        %2807 = vmatpush2.msra.mxu0 0.0
        %2808 = vmatprep.subr.mxu0 0.0
        %2809 = vmatpush2.msra.mxu0 0.0
        %2810 = vmatprep.subr.mxu0 0.0
        %2811 = vmatpush2.msra.mxu0 0.0
        %2812 = vmatprep.subr.mxu0 0.0
        %2813 = vmatpush2.msra.mxu0 0.0
        %2814 = vmatprep.subr.mxu0 0.0
        %2815 = vmatpush2.msra.mxu0 0.0
        %2816 = vmatprep.subr.mxu0 0.0
        %2817 = vmatpush2.msra.mxu0 0.0
        %2818 = vmatprep.subr.mxu0 0.0
        %2819 = vmatpush2.msra.mxu0 0.0
        %2820 = vmatprep.subr.mxu0 0.0
        %2821 = vmatpush2.msra.mxu0 0.0
        %2822 = vmatprep.subr.mxu0 0.0
        %2823 = vmatpush2.msra.mxu0 0.0
        %2824 = vmatprep.subr.mxu0 0.0
        %2825 = vmatpush2.msra.mxu0 0.0
        %2826 = vmatprep.subr.mxu0 0.0
        %2827 = vmatpush2.msra.mxu0 0.0
        %2828 = vmatprep.subr.mxu0 0.0
        %2829 = vmatpush2.msra.mxu0 0.0
        %2830 = vmatprep.mubr.f32.mxu0 0.0
        %2831 = vmatmul.mubr.f32.gmra.mxu0 %v1815
        %v2832 = vpop.f32.mrf.mxu0
        %v2833 = vadd.f32 0.0, %v2832
        %v2834 = vpop.f32.mrf.mxu0
        %v2835 = vadd.f32 0.0, %v2834
        %2836 = vdwg.mxu0
        %2837 = vmatprep.subr.mxu0 0.0
        %2838 = vmatpush1.msra.mxu0 0.0
        %2839 = vmatprep.subr.mxu0 0.0
        %2840 = vmatpush1.msra.mxu0 0.0
        %2841 = vmatprep.subr.mxu0 0.0
        %2842 = vmatpush1.msra.mxu0 0.0
        %2843 = vmatprep.subr.mxu0 0.0
        %2844 = vmatpush1.msra.mxu0 0.0
        %2845 = vmatprep.subr.mxu0 0.0
        %2846 = vmatpush1.msra.mxu0 0.0
        %2847 = vmatprep.subr.mxu0 %v2320
        %2848 = vmatpush1.msra.mxu0 %v2317
        %2849 = vmatprep.subr.mxu0 %v2301
        %2850 = vmatpush1.msra.mxu0 %v2300
        %2851 = vmatprep.subr.mxu0 %v2295
        %2852 = vmatpush1.msra.mxu0 %v2294
        %2853 = vmatprep.subr.mxu0 %v2289
        %2854 = vmatpush1.msra.mxu0 %v2288
        %2855 = vmatprep.subr.mxu0 %v2283
        %2856 = vmatpush1.msra.mxu0 %v2282
        %2857 = vmatprep.subr.mxu0 %v2277
        %2858 = vmatpush1.msra.mxu0 %v2276
        %2859 = vmatprep.subr.mxu0 %v2271
        %2860 = vmatpush1.msra.mxu0 %v2270
        %2861 = vmatprep.subr.mxu0 %v2265
        %2862 = vmatpush1.msra.mxu0 %v2264
        %2863 = vmatprep.subr.mxu0 %v2259
        %2864 = vmatpush1.msra.mxu0 %v2258
        %2865 = vmatprep.subr.mxu0 %v2253
        %2866 = vmatpush1.msra.mxu0 %v2252
        %2867 = vmatprep.subr.mxu0 %v2247
        %2868 = vmatpush1.msra.mxu0 %v2246
        %2869 = vmatprep.subr.mxu0 0.0
        %2870 = vmatpush2.msra.mxu0 0.0
        %2871 = vmatprep.subr.mxu0 0.0
        %2872 = vmatpush2.msra.mxu0 0.0
        %2873 = vmatprep.subr.mxu0 0.0
        %2874 = vmatpush2.msra.mxu0 0.0
        %2875 = vmatprep.subr.mxu0 0.0
        %2876 = vmatpush2.msra.mxu0 0.0
        %2877 = vmatprep.subr.mxu0 0.0
        %2878 = vmatpush2.msra.mxu0 0.0
        %2879 = vmatprep.subr.mxu0 0.0
        %2880 = vmatpush2.msra.mxu0 0.0
        %2881 = vmatprep.subr.mxu0 0.0
        %2882 = vmatpush2.msra.mxu0 0.0
        %2883 = vmatprep.subr.mxu0 0.0
        %2884 = vmatpush2.msra.mxu0 0.0
        %2885 = vmatprep.subr.mxu0 0.0
        %2886 = vmatpush2.msra.mxu0 0.0
        %2887 = vmatprep.subr.mxu0 0.0
        %2888 = vmatpush2.msra.mxu0 0.0
        %2889 = vmatprep.subr.mxu0 0.0
        %2890 = vmatpush2.msra.mxu0 0.0
        %2891 = vmatprep.subr.mxu0 0.0
        %2892 = vmatpush2.msra.mxu0 0.0
        %2893 = vmatprep.subr.mxu0 0.0
        %2894 = vmatpush2.msra.mxu0 0.0
        %2895 = vmatprep.subr.mxu0 0.0
        %2896 = vmatpush2.msra.mxu0 0.0
        %2897 = vmatprep.subr.mxu0 0.0
        %2898 = vmatpush2.msra.mxu0 0.0
        %2899 = vmatprep.subr.mxu0 0.0
        %2900 = vmatpush2.msra.mxu0 0.0
        %2901 = vmatprep.mubr.f32.mxu0 0.0
        %2902 = vmatmul.mubr.f32.gmra.mxu0 %v1815
        %v2903 = vpop.f32.mrf.mxu0
        %v2904 = vadd.f32 0.0, %v2903
        %v2905 = vpop.f32.mrf.mxu0
        %v2906 = vadd.f32 0.0, %v2905
        %2907 = vdwg.mxu0
        %2908 = vmatprep.subr.mxu0 0.0
        %2909 = vmatpush1.msra.mxu0 0.0
        %2910 = vmatprep.subr.mxu0 0.0
        %2911 = vmatpush1.msra.mxu0 0.0
        %2912 = vmatprep.subr.mxu0 0.0
        %2913 = vmatpush1.msra.mxu0 0.0
        %2914 = vmatprep.subr.mxu0 0.0
        %2915 = vmatpush1.msra.mxu0 0.0
        %2916 = vmatprep.subr.mxu0 0.0
        %2917 = vmatpush1.msra.mxu0 0.0
        %2918 = vmatprep.subr.mxu0 %v2326
        %2919 = vmatpush1.msra.mxu0 %v2323
        %2920 = vmatprep.subr.mxu0 %v2303
        %2921 = vmatpush1.msra.mxu0 %v2302
        %2922 = vmatprep.subr.mxu0 %v2297
        %2923 = vmatpush1.msra.mxu0 %v2296
        %2924 = vmatprep.subr.mxu0 %v2291
        %2925 = vmatpush1.msra.mxu0 %v2290
        %2926 = vmatprep.subr.mxu0 %v2285
        %2927 = vmatpush1.msra.mxu0 %v2284
        %2928 = vmatprep.subr.mxu0 %v2279
        %2929 = vmatpush1.msra.mxu0 %v2278
        %2930 = vmatprep.subr.mxu0 %v2273
        %2931 = vmatpush1.msra.mxu0 %v2272
        %2932 = vmatprep.subr.mxu0 %v2267
        %2933 = vmatpush1.msra.mxu0 %v2266
        %2934 = vmatprep.subr.mxu0 %v2261
        %2935 = vmatpush1.msra.mxu0 %v2260
        %2936 = vmatprep.subr.mxu0 %v2255
        %2937 = vmatpush1.msra.mxu0 %v2254
        %2938 = vmatprep.subr.mxu0 %v2249
        %2939 = vmatpush1.msra.mxu0 %v2248
        %2940 = vmatprep.subr.mxu0 0.0
        %2941 = vmatpush2.msra.mxu0 0.0
        %2942 = vmatprep.subr.mxu0 0.0
        %2943 = vmatpush2.msra.mxu0 0.0
        %2944 = vmatprep.subr.mxu0 0.0
        %2945 = vmatpush2.msra.mxu0 0.0
        %2946 = vmatprep.subr.mxu0 0.0
        %2947 = vmatpush2.msra.mxu0 0.0
        %2948 = vmatprep.subr.mxu0 0.0
        %2949 = vmatpush2.msra.mxu0 0.0
        %2950 = vmatprep.subr.mxu0 0.0
        %2951 = vmatpush2.msra.mxu0 0.0
        %2952 = vmatprep.subr.mxu0 0.0
        %2953 = vmatpush2.msra.mxu0 0.0
        %2954 = vmatprep.subr.mxu0 0.0
        %2955 = vmatpush2.msra.mxu0 0.0
        %2956 = vmatprep.subr.mxu0 0.0
        %2957 = vmatpush2.msra.mxu0 0.0
        %2958 = vmatprep.subr.mxu0 0.0
        %2959 = vmatpush2.msra.mxu0 0.0
        %2960 = vmatprep.subr.mxu0 0.0
        %2961 = vmatpush2.msra.mxu0 0.0
        %2962 = vmatprep.subr.mxu0 0.0
        %2963 = vmatpush2.msra.mxu0 0.0
        %2964 = vmatprep.subr.mxu0 0.0
        %2965 = vmatpush2.msra.mxu0 0.0
        %2966 = vmatprep.subr.mxu0 0.0
        %2967 = vmatpush2.msra.mxu0 0.0
        %2968 = vmatprep.subr.mxu0 0.0
        %2969 = vmatpush2.msra.mxu0 0.0
        %2970 = vmatprep.subr.mxu0 0.0
        %2971 = vmatpush2.msra.mxu0 0.0
        %2972 = vmatprep.mubr.f32.mxu0 0.0
        %2973 = vmatmul.mubr.f32.gmra.mxu0 %v1815
        %v2974 = vpop.f32.mrf.mxu0
        %v2975 = vadd.f32 0.0, %v2974
        %v2976 = vpop.f32.mrf.mxu0
        %v2977 = vadd.f32 0.0, %v2976
        %2978 = vdwg.mxu0
        %v2979 = vadd.f32 %v1667, %v2833
        %v2980 = vadd.f32 %v1669, %v2835
        %v2981 = vadd.f32 %v1738, %v2904
        %v2982 = vadd.f32 %v1740, %v2906
        %v2983 = vadd.f32 %v1809, %v2975
        %v2984 = vadd.f32 %v1811, %v2977
        %v2985 = vld [vmem:[%s412 + $0x1] sm:$0x3f]
        %v2987 = vsel %vm485, %v2985, 0
        %2989 = vmatprep.subr.mxu0 0.0
        %2990 = vmatpush1.msra.mxu0 0.0
        %2991 = vmatprep.subr.mxu0 0.0
        %2992 = vmatpush1.msra.mxu0 0.0
        %2993 = vmatprep.subr.mxu0 0.0
        %2994 = vmatpush1.msra.mxu0 0.0
        %2995 = vmatprep.subr.mxu0 0.0
        %2996 = vmatpush1.msra.mxu0 0.0
        %2997 = vmatprep.subr.mxu0 0.0
        %2998 = vmatpush1.msra.mxu0 0.0
        %2999 = vmatprep.subr.mxu0 %v2314
        %3000 = vmatpush1.msra.mxu0 %v2311
        %3001 = vmatprep.subr.mxu0 %v2299
        %3002 = vmatpush1.msra.mxu0 %v2298
        %3003 = vmatprep.subr.mxu0 %v2293
        %3004 = vmatpush1.msra.mxu0 %v2292
        %3005 = vmatprep.subr.mxu0 %v2287
        %3006 = vmatpush1.msra.mxu0 %v2286
        %3007 = vmatprep.subr.mxu0 %v2281
        %3008 = vmatpush1.msra.mxu0 %v2280
        %3009 = vmatprep.subr.mxu0 %v2275
        %3010 = vmatpush1.msra.mxu0 %v2274
        %3011 = vmatprep.subr.mxu0 %v2269
        %3012 = vmatpush1.msra.mxu0 %v2268
        %3013 = vmatprep.subr.mxu0 %v2263
        %3014 = vmatpush1.msra.mxu0 %v2262
        %3015 = vmatprep.subr.mxu0 %v2257
        %3016 = vmatpush1.msra.mxu0 %v2256
        %3017 = vmatprep.subr.mxu0 %v2251
        %3018 = vmatpush1.msra.mxu0 %v2250
        %3019 = vmatprep.subr.mxu0 %v2245
        %3020 = vmatpush1.msra.mxu0 %v2244
        %3021 = vmatprep.subr.mxu0 0.0
        %3022 = vmatpush2.msra.mxu0 0.0
        %3023 = vmatprep.subr.mxu0 0.0
        %3024 = vmatpush2.msra.mxu0 0.0
        %3025 = vmatprep.subr.mxu0 0.0
        %3026 = vmatpush2.msra.mxu0 0.0
        %3027 = vmatprep.subr.mxu0 0.0
        %3028 = vmatpush2.msra.mxu0 0.0
        %3029 = vmatprep.subr.mxu0 0.0
        %3030 = vmatpush2.msra.mxu0 0.0
        %3031 = vmatprep.subr.mxu0 0.0
        %3032 = vmatpush2.msra.mxu0 0.0
        %3033 = vmatprep.subr.mxu0 0.0
        %3034 = vmatpush2.msra.mxu0 0.0
        %3035 = vmatprep.subr.mxu0 0.0
        %3036 = vmatpush2.msra.mxu0 0.0
        %3037 = vmatprep.subr.mxu0 0.0
        %3038 = vmatpush2.msra.mxu0 0.0
        %3039 = vmatprep.subr.mxu0 0.0
        %3040 = vmatpush2.msra.mxu0 0.0
        %3041 = vmatprep.subr.mxu0 0.0
        %3042 = vmatpush2.msra.mxu0 0.0
        %3043 = vmatprep.subr.mxu0 0.0
        %3044 = vmatpush2.msra.mxu0 0.0
        %3045 = vmatprep.subr.mxu0 0.0
        %3046 = vmatpush2.msra.mxu0 0.0
        %3047 = vmatprep.subr.mxu0 0.0
        %3048 = vmatpush2.msra.mxu0 0.0
        %3049 = vmatprep.subr.mxu0 0.0
        %3050 = vmatpush2.msra.mxu0 0.0
        %3051 = vmatprep.subr.mxu0 0.0
        %3052 = vmatpush2.msra.mxu0 0.0
        %3053 = vmatprep.mubr.f32.mxu0 0.0
        %3054 = vmatmul.mubr.f32.gmra.mxu0 %v2987
        %v3055 = vpop.f32.mrf.mxu0
        %v3056 = vadd.f32 0.0, %v3055
        %v3057 = vpop.f32.mrf.mxu0
        %v3058 = vadd.f32 0.0, %v3057
        %3059 = vdwg.mxu0
        %3060 = vmatprep.subr.mxu0 0.0
        %3061 = vmatpush1.msra.mxu0 0.0
        %3062 = vmatprep.subr.mxu0 0.0
        %3063 = vmatpush1.msra.mxu0 0.0
        %3064 = vmatprep.subr.mxu0 0.0
        %3065 = vmatpush1.msra.mxu0 0.0
        %3066 = vmatprep.subr.mxu0 0.0
        %3067 = vmatpush1.msra.mxu0 0.0
        %3068 = vmatprep.subr.mxu0 0.0
        %3069 = vmatpush1.msra.mxu0 0.0
        %3070 = vmatprep.subr.mxu0 %v2320
        %3071 = vmatpush1.msra.mxu0 %v2317
        %3072 = vmatprep.subr.mxu0 %v2301
        %3073 = vmatpush1.msra.mxu0 %v2300
        %3074 = vmatprep.subr.mxu0 %v2295
        %3075 = vmatpush1.msra.mxu0 %v2294
        %3076 = vmatprep.subr.mxu0 %v2289
        %3077 = vmatpush1.msra.mxu0 %v2288
        %3078 = vmatprep.subr.mxu0 %v2283
        %3079 = vmatpush1.msra.mxu0 %v2282
        %3080 = vmatprep.subr.mxu0 %v2277
        %3081 = vmatpush1.msra.mxu0 %v2276
        %3082 = vmatprep.subr.mxu0 %v2271
        %3083 = vmatpush1.msra.mxu0 %v2270
        %3084 = vmatprep.subr.mxu0 %v2265
        %3085 = vmatpush1.msra.mxu0 %v2264
        %3086 = vmatprep.subr.mxu0 %v2259
        %3087 = vmatpush1.msra.mxu0 %v2258
        %3088 = vmatprep.subr.mxu0 %v2253
        %3089 = vmatpush1.msra.mxu0 %v2252
        %3090 = vmatprep.subr.mxu0 %v2247
        %3091 = vmatpush1.msra.mxu0 %v2246
        %3092 = vmatprep.subr.mxu0 0.0
        %3093 = vmatpush2.msra.mxu0 0.0
        %3094 = vmatprep.subr.mxu0 0.0
        %3095 = vmatpush2.msra.mxu0 0.0
        %3096 = vmatprep.subr.mxu0 0.0
        %3097 = vmatpush2.msra.mxu0 0.0
        %3098 = vmatprep.subr.mxu0 0.0
        %3099 = vmatpush2.msra.mxu0 0.0
        %3100 = vmatprep.subr.mxu0 0.0
        %3101 = vmatpush2.msra.mxu0 0.0
        %3102 = vmatprep.subr.mxu0 0.0
        %3103 = vmatpush2.msra.mxu0 0.0
        %3104 = vmatprep.subr.mxu0 0.0
        %3105 = vmatpush2.msra.mxu0 0.0
        %3106 = vmatprep.subr.mxu0 0.0
        %3107 = vmatpush2.msra.mxu0 0.0
        %3108 = vmatprep.subr.mxu0 0.0
        %3109 = vmatpush2.msra.mxu0 0.0
        %3110 = vmatprep.subr.mxu0 0.0
        %3111 = vmatpush2.msra.mxu0 0.0
        %3112 = vmatprep.subr.mxu0 0.0
        %3113 = vmatpush2.msra.mxu0 0.0
        %3114 = vmatprep.subr.mxu0 0.0
        %3115 = vmatpush2.msra.mxu0 0.0
        %3116 = vmatprep.subr.mxu0 0.0
        %3117 = vmatpush2.msra.mxu0 0.0
        %3118 = vmatprep.subr.mxu0 0.0
        %3119 = vmatpush2.msra.mxu0 0.0
        %3120 = vmatprep.subr.mxu0 0.0
        %3121 = vmatpush2.msra.mxu0 0.0
        %3122 = vmatprep.subr.mxu0 0.0
        %3123 = vmatpush2.msra.mxu0 0.0
        %3124 = vmatprep.mubr.f32.mxu0 0.0
        %3125 = vmatmul.mubr.f32.gmra.mxu0 %v2987
        %v3126 = vpop.f32.mrf.mxu0
        %v3127 = vadd.f32 0.0, %v3126
        %v3128 = vpop.f32.mrf.mxu0
        %v3129 = vadd.f32 0.0, %v3128
        %3130 = vdwg.mxu0
        %3131 = vmatprep.subr.mxu0 0.0
        %3132 = vmatpush1.msra.mxu0 0.0
        %3133 = vmatprep.subr.mxu0 0.0
        %3134 = vmatpush1.msra.mxu0 0.0
        %3135 = vmatprep.subr.mxu0 0.0
        %3136 = vmatpush1.msra.mxu0 0.0
        %3137 = vmatprep.subr.mxu0 0.0
        %3138 = vmatpush1.msra.mxu0 0.0
        %3139 = vmatprep.subr.mxu0 0.0
        %3140 = vmatpush1.msra.mxu0 0.0
        %3141 = vmatprep.subr.mxu0 %v2326
        %3142 = vmatpush1.msra.mxu0 %v2323
        %3143 = vmatprep.subr.mxu0 %v2303
        %3144 = vmatpush1.msra.mxu0 %v2302
        %3145 = vmatprep.subr.mxu0 %v2297
        %3146 = vmatpush1.msra.mxu0 %v2296
        %3147 = vmatprep.subr.mxu0 %v2291
        %3148 = vmatpush1.msra.mxu0 %v2290
        %3149 = vmatprep.subr.mxu0 %v2285
        %3150 = vmatpush1.msra.mxu0 %v2284
        %3151 = vmatprep.subr.mxu0 %v2279
        %3152 = vmatpush1.msra.mxu0 %v2278
        %3153 = vmatprep.subr.mxu0 %v2273
        %3154 = vmatpush1.msra.mxu0 %v2272
        %3155 = vmatprep.subr.mxu0 %v2267
        %3156 = vmatpush1.msra.mxu0 %v2266
        %3157 = vmatprep.subr.mxu0 %v2261
        %3158 = vmatpush1.msra.mxu0 %v2260
        %3159 = vmatprep.subr.mxu0 %v2255
        %3160 = vmatpush1.msra.mxu0 %v2254
        %3161 = vmatprep.subr.mxu0 %v2249
        %3162 = vmatpush1.msra.mxu0 %v2248
        %3163 = vmatprep.subr.mxu0 0.0
        %3164 = vmatpush2.msra.mxu0 0.0
        %3165 = vmatprep.subr.mxu0 0.0
        %3166 = vmatpush2.msra.mxu0 0.0
        %3167 = vmatprep.subr.mxu0 0.0
        %3168 = vmatpush2.msra.mxu0 0.0
        %3169 = vmatprep.subr.mxu0 0.0
        %3170 = vmatpush2.msra.mxu0 0.0
        %3171 = vmatprep.subr.mxu0 0.0
        %3172 = vmatpush2.msra.mxu0 0.0
        %3173 = vmatprep.subr.mxu0 0.0
        %3174 = vmatpush2.msra.mxu0 0.0
        %3175 = vmatprep.subr.mxu0 0.0
        %3176 = vmatpush2.msra.mxu0 0.0
        %3177 = vmatprep.subr.mxu0 0.0
        %3178 = vmatpush2.msra.mxu0 0.0
        %3179 = vmatprep.subr.mxu0 0.0
        %3180 = vmatpush2.msra.mxu0 0.0
        %3181 = vmatprep.subr.mxu0 0.0
        %3182 = vmatpush2.msra.mxu0 0.0
        %3183 = vmatprep.subr.mxu0 0.0
        %3184 = vmatpush2.msra.mxu0 0.0
        %3185 = vmatprep.subr.mxu0 0.0
        %3186 = vmatpush2.msra.mxu0 0.0
        %3187 = vmatprep.subr.mxu0 0.0
        %3188 = vmatpush2.msra.mxu0 0.0
        %3189 = vmatprep.subr.mxu0 0.0
        %3190 = vmatpush2.msra.mxu0 0.0
        %3191 = vmatprep.subr.mxu0 0.0
        %3192 = vmatpush2.msra.mxu0 0.0
        %3193 = vmatprep.subr.mxu0 0.0
        %3194 = vmatpush2.msra.mxu0 0.0
        %3195 = vmatprep.mubr.f32.mxu0 0.0
        %3196 = vmatmul.mubr.f32.gmra.mxu0 %v2987
        %v3197 = vpop.f32.mrf.mxu0
        %v3198 = vadd.f32 0.0, %v3197
        %v3199 = vpop.f32.mrf.mxu0
        %v3200 = vadd.f32 0.0, %v3199
        %3201 = vdwg.mxu0
        %v3202 = vadd.f32 %v2097, %v3056
        %v3203 = vadd.f32 %v2099, %v3058
        %v3204 = vadd.f32 %v2168, %v3127
        %v3205 = vadd.f32 %v2170, %v3129
        %v3206 = vadd.f32 %v2239, %v3198
        %v3207 = vadd.f32 %v2241, %v3200
        %s3208 = scalar_lea.vmem [#allocation2], 1584
        %v3209 = vld [vmem:[%s3208] sm:$0xff]
        %v3210 = vld [vmem:[%s3208 + $0x8] sm:$0xff]
        %v3211 = vld [vmem:[%s3208 + $0x10] sm:$0xff]
        %v3212 = vld [vmem:[%s3208 + $0x18] sm:$0xff]
        %v3213 = vld [vmem:[%s3208 + $0x20] sm:$0xff]
        %v3214 = vld [vmem:[%s3208 + $0x28] sm:$0xff]
        %v3215 = vld [vmem:[%s3208 + $0x30] sm:$0xff]
        %v3216 = vld [vmem:[%s3208 + $0x38] sm:$0xff]
        %v3217 = vld [vmem:[%s3208 + $0x40] sm:$0xff]
        %v3218 = vld [vmem:[%s3208 + $0x48] sm:$0xff]
        %v3219 = vld [vmem:[%s3208 + $0x50] sm:$0xff]
        %v3220 = vld [vmem:[%s3208 + $0x58] sm:$0xff]
        %v3221 = vld [vmem:[%s3208 + $0x60] sm:$0xff]
        %v3222 = vld [vmem:[%s3208 + $0x68] sm:$0xff]
        %v3223 = vld [vmem:[%s3208 + $0x70] sm:$0xff]
        %v3224 = vld [vmem:[%s3208 + $0x78] sm:$0xff]
        %v3225 = vld [vmem:[%s3208 + $0x80] sm:$0xff]
        %v3226 = vld [vmem:[%s3208 + $0x88] sm:$0xff]
        %v3227 = vld [vmem:[%s3208 + $0x90] sm:$0xff]
        %v3228 = vld [vmem:[%s3208 + $0x98] sm:$0xff]
        %v3229 = vld [vmem:[%s3208 + $0xa0] sm:$0xff]
        %v3230 = vld [vmem:[%s3208 + $0xa8] sm:$0xff]
        %v3231 = vld [vmem:[%s3208 + $0xb0] sm:$0xff]
        %v3232 = vld [vmem:[%s3208 + $0xb8] sm:$0xff]
        %v3233 = vld [vmem:[%s3208 + $0xc0] sm:$0xff]
        %v3234 = vld [vmem:[%s3208 + $0xc8] sm:$0xff]
        %v3235 = vld [vmem:[%s3208 + $0xd0] sm:$0xff]
        %v3236 = vld [vmem:[%s3208 + $0xd8] sm:$0xff]
        %v3237 = vld [vmem:[%s3208 + $0xe0] sm:$0xff]
        %v3238 = vld [vmem:[%s3208 + $0xe8] sm:$0xff]
        %v3239 = vld [vmem:[%s3208 + $0xf0] sm:$0xff]
        %v3240 = vld [vmem:[%s3208 + $0xf8] sm:$0xff]
        %v3241 = vld [vmem:[%s3208 + $0x100] sm:$0xff]
        %v3242 = vld [vmem:[%s3208 + $0x108] sm:$0xff]
        %v3243 = vld [vmem:[%s3208 + $0x110] sm:$0xff]
        %v3244 = vld [vmem:[%s3208 + $0x118] sm:$0xff]
        %v3245 = vld [vmem:[%s3208 + $0x120] sm:$0xff]
        %v3246 = vld [vmem:[%s3208 + $0x128] sm:$0xff]
        %v3247 = vld [vmem:[%s3208 + $0x130] sm:$0xff]
        %v3248 = vld [vmem:[%s3208 + $0x138] sm:$0xff]
        %v3249 = vld [vmem:[%s3208 + $0x140] sm:$0xff]
        %v3250 = vld [vmem:[%s3208 + $0x148] sm:$0xff]
        %v3251 = vld [vmem:[%s3208 + $0x150] sm:$0xff]
        %v3252 = vld [vmem:[%s3208 + $0x158] sm:$0xff]
        %v3253 = vld [vmem:[%s3208 + $0x160] sm:$0xff]
        %v3254 = vld [vmem:[%s3208 + $0x168] sm:$0xff]
        %v3255 = vld [vmem:[%s3208 + $0x170] sm:$0xff]
        %v3256 = vld [vmem:[%s3208 + $0x178] sm:$0xff]
        %v3257 = vld [vmem:[%s3208 + $0x180] sm:$0xff]
        %v3258 = vld [vmem:[%s3208 + $0x188] sm:$0xff]
        %v3259 = vld [vmem:[%s3208 + $0x190] sm:$0xff]
        %v3260 = vld [vmem:[%s3208 + $0x198] sm:$0xff]
        %v3261 = vld [vmem:[%s3208 + $0x1a0] sm:$0xff]
        %v3262 = vld [vmem:[%s3208 + $0x1a8] sm:$0xff]
        %v3263 = vld [vmem:[%s3208 + $0x1b0] sm:$0xff]
        %v3264 = vld [vmem:[%s3208 + $0x1b8] sm:$0xff]
        %v3265 = vld [vmem:[%s3208 + $0x1c0] sm:$0xff]
        %v3266 = vld [vmem:[%s3208 + $0x1c8] sm:$0xff]
        %v3267 = vld [vmem:[%s3208 + $0x1d0] sm:$0xff]
        %v3268 = vld [vmem:[%s3208 + $0x1d8] sm:$0xff]
        %v3269 = vld [vmem:[%s3208 + $0x1e0] sm:$0xf]
        %v3270 = vld [vmem:[%s3208 + $0x1e8] sm:$0xf]
        %v3271 = vld [vmem:[%s3208 + $0x1f0] sm:$0xf]
        %v3272 = vld [vmem:[%s3208 + $0x1f8] sm:$0xf]
        %v3273 = vld [vmem:[%s3208 + $0x200] sm:$0xf]
        %v3274 = vld [vmem:[%s3208 + $0x208] sm:$0xf]
        %v3276 = vsel %vm489, %v3269, 0
        %v3279 = vsel %vm489, %v3270, 0
        %v3282 = vsel %vm489, %v3271, 0
        %v3285 = vsel %vm489, %v3272, 0
        %v3288 = vsel %vm489, %v3273, 0
        %v3291 = vsel %vm489, %v3274, 0
        %3293 = vmatprep.subr.mxu0 0.0
        %3294 = vmatpush1.msra.mxu0 0.0
        %3295 = vmatprep.subr.mxu0 0.0
        %3296 = vmatpush1.msra.mxu0 0.0
        %3297 = vmatprep.subr.mxu0 0.0
        %3298 = vmatpush1.msra.mxu0 0.0
        %3299 = vmatprep.subr.mxu0 0.0
        %3300 = vmatpush1.msra.mxu0 0.0
        %3301 = vmatprep.subr.mxu0 0.0
        %3302 = vmatpush1.msra.mxu0 0.0
        %3303 = vmatprep.subr.mxu0 %v3279
        %3304 = vmatpush1.msra.mxu0 %v3276
        %3305 = vmatprep.subr.mxu0 %v3264
        %3306 = vmatpush1.msra.mxu0 %v3263
        %3307 = vmatprep.subr.mxu0 %v3258
        %3308 = vmatpush1.msra.mxu0 %v3257
        %3309 = vmatprep.subr.mxu0 %v3252
        %3310 = vmatpush1.msra.mxu0 %v3251
        %3311 = vmatprep.subr.mxu0 %v3246
        %3312 = vmatpush1.msra.mxu0 %v3245
        %3313 = vmatprep.subr.mxu0 %v3240
        %3314 = vmatpush1.msra.mxu0 %v3239
        %3315 = vmatprep.subr.mxu0 %v3234
        %3316 = vmatpush1.msra.mxu0 %v3233
        %3317 = vmatprep.subr.mxu0 %v3228
        %3318 = vmatpush1.msra.mxu0 %v3227
        %3319 = vmatprep.subr.mxu0 %v3222
        %3320 = vmatpush1.msra.mxu0 %v3221
        %3321 = vmatprep.subr.mxu0 %v3216
        %3322 = vmatpush1.msra.mxu0 %v3215
        %3323 = vmatprep.subr.mxu0 %v3210
        %3324 = vmatpush1.msra.mxu0 %v3209
        %3325 = vmatprep.subr.mxu0 0.0
        %3326 = vmatpush2.msra.mxu0 0.0
        %3327 = vmatprep.subr.mxu0 0.0
        %3328 = vmatpush2.msra.mxu0 0.0
        %3329 = vmatprep.subr.mxu0 0.0
        %3330 = vmatpush2.msra.mxu0 0.0
        %3331 = vmatprep.subr.mxu0 0.0
        %3332 = vmatpush2.msra.mxu0 0.0
        %3333 = vmatprep.subr.mxu0 0.0
        %3334 = vmatpush2.msra.mxu0 0.0
        %3335 = vmatprep.subr.mxu0 0.0
        %3336 = vmatpush2.msra.mxu0 0.0
        %3337 = vmatprep.subr.mxu0 0.0
        %3338 = vmatpush2.msra.mxu0 0.0
        %3339 = vmatprep.subr.mxu0 0.0
        %3340 = vmatpush2.msra.mxu0 0.0
        %3341 = vmatprep.subr.mxu0 0.0
        %3342 = vmatpush2.msra.mxu0 0.0
        %3343 = vmatprep.subr.mxu0 0.0
        %3344 = vmatpush2.msra.mxu0 0.0
        %3345 = vmatprep.subr.mxu0 0.0
        %3346 = vmatpush2.msra.mxu0 0.0
        %3347 = vmatprep.subr.mxu0 0.0
        %3348 = vmatpush2.msra.mxu0 0.0
        %3349 = vmatprep.subr.mxu0 0.0
        %3350 = vmatpush2.msra.mxu0 0.0
        %3351 = vmatprep.subr.mxu0 0.0
        %3352 = vmatpush2.msra.mxu0 0.0
        %3353 = vmatprep.subr.mxu0 0.0
        %3354 = vmatpush2.msra.mxu0 0.0
        %3355 = vmatprep.subr.mxu0 0.0
        %3356 = vmatpush2.msra.mxu0 0.0
        %3357 = vmatprep.mubr.f32.mxu0 0.0
        %3358 = vmatmul.mubr.f32.gmra.mxu0 %v1385
        %v3359 = vpop.f32.mrf.mxu0
        %v3360 = vadd.f32 0.0, %v3359
        %v3361 = vpop.f32.mrf.mxu0
        %v3362 = vadd.f32 0.0, %v3361
        %3363 = vdwg.mxu0
        %3364 = vmatprep.subr.mxu0 0.0
        %3365 = vmatpush1.msra.mxu0 0.0
        %3366 = vmatprep.subr.mxu0 0.0
        %3367 = vmatpush1.msra.mxu0 0.0
        %3368 = vmatprep.subr.mxu0 0.0
        %3369 = vmatpush1.msra.mxu0 0.0
        %3370 = vmatprep.subr.mxu0 0.0
        %3371 = vmatpush1.msra.mxu0 0.0
        %3372 = vmatprep.subr.mxu0 0.0
        %3373 = vmatpush1.msra.mxu0 0.0
        %3374 = vmatprep.subr.mxu0 %v3285
        %3375 = vmatpush1.msra.mxu0 %v3282
        %3376 = vmatprep.subr.mxu0 %v3266
        %3377 = vmatpush1.msra.mxu0 %v3265
        %3378 = vmatprep.subr.mxu0 %v3260
        %3379 = vmatpush1.msra.mxu0 %v3259
        %3380 = vmatprep.subr.mxu0 %v3254
        %3381 = vmatpush1.msra.mxu0 %v3253
        %3382 = vmatprep.subr.mxu0 %v3248
        %3383 = vmatpush1.msra.mxu0 %v3247
        %3384 = vmatprep.subr.mxu0 %v3242
        %3385 = vmatpush1.msra.mxu0 %v3241
        %3386 = vmatprep.subr.mxu0 %v3236
        %3387 = vmatpush1.msra.mxu0 %v3235
        %3388 = vmatprep.subr.mxu0 %v3230
        %3389 = vmatpush1.msra.mxu0 %v3229
        %3390 = vmatprep.subr.mxu0 %v3224
        %3391 = vmatpush1.msra.mxu0 %v3223
        %3392 = vmatprep.subr.mxu0 %v3218
        %3393 = vmatpush1.msra.mxu0 %v3217
        %3394 = vmatprep.subr.mxu0 %v3212
        %3395 = vmatpush1.msra.mxu0 %v3211
        %3396 = vmatprep.subr.mxu0 0.0
        %3397 = vmatpush2.msra.mxu0 0.0
        %3398 = vmatprep.subr.mxu0 0.0
        %3399 = vmatpush2.msra.mxu0 0.0
        %3400 = vmatprep.subr.mxu0 0.0
        %3401 = vmatpush2.msra.mxu0 0.0
        %3402 = vmatprep.subr.mxu0 0.0
        %3403 = vmatpush2.msra.mxu0 0.0
        %3404 = vmatprep.subr.mxu0 0.0
        %3405 = vmatpush2.msra.mxu0 0.0
        %3406 = vmatprep.subr.mxu0 0.0
        %3407 = vmatpush2.msra.mxu0 0.0
        %3408 = vmatprep.subr.mxu0 0.0
        %3409 = vmatpush2.msra.mxu0 0.0
        %3410 = vmatprep.subr.mxu0 0.0
        %3411 = vmatpush2.msra.mxu0 0.0
        %3412 = vmatprep.subr.mxu0 0.0
        %3413 = vmatpush2.msra.mxu0 0.0
        %3414 = vmatprep.subr.mxu0 0.0
        %3415 = vmatpush2.msra.mxu0 0.0
        %3416 = vmatprep.subr.mxu0 0.0
        %3417 = vmatpush2.msra.mxu0 0.0
        %3418 = vmatprep.subr.mxu0 0.0
        %3419 = vmatpush2.msra.mxu0 0.0
        %3420 = vmatprep.subr.mxu0 0.0
        %3421 = vmatpush2.msra.mxu0 0.0
        %3422 = vmatprep.subr.mxu0 0.0
        %3423 = vmatpush2.msra.mxu0 0.0
        %3424 = vmatprep.subr.mxu0 0.0
        %3425 = vmatpush2.msra.mxu0 0.0
        %3426 = vmatprep.subr.mxu0 0.0
        %3427 = vmatpush2.msra.mxu0 0.0
        %3428 = vmatprep.mubr.f32.mxu0 0.0
        %3429 = vmatmul.mubr.f32.gmra.mxu0 %v1385
        %v3430 = vpop.f32.mrf.mxu0
        %v3431 = vadd.f32 0.0, %v3430
        %v3432 = vpop.f32.mrf.mxu0
        %v3433 = vadd.f32 0.0, %v3432
        %3434 = vdwg.mxu0
        %3435 = vmatprep.subr.mxu0 0.0
        %3436 = vmatpush1.msra.mxu0 0.0
        %3437 = vmatprep.subr.mxu0 0.0
        %3438 = vmatpush1.msra.mxu0 0.0
        %3439 = vmatprep.subr.mxu0 0.0
        %3440 = vmatpush1.msra.mxu0 0.0
        %3441 = vmatprep.subr.mxu0 0.0
        %3442 = vmatpush1.msra.mxu0 0.0
        %3443 = vmatprep.subr.mxu0 0.0
        %3444 = vmatpush1.msra.mxu0 0.0
        %3445 = vmatprep.subr.mxu0 %v3291
        %3446 = vmatpush1.msra.mxu0 %v3288
        %3447 = vmatprep.subr.mxu0 %v3268
        %3448 = vmatpush1.msra.mxu0 %v3267
        %3449 = vmatprep.subr.mxu0 %v3262
        %3450 = vmatpush1.msra.mxu0 %v3261
        %3451 = vmatprep.subr.mxu0 %v3256
        %3452 = vmatpush1.msra.mxu0 %v3255
        %3453 = vmatprep.subr.mxu0 %v3250
        %3454 = vmatpush1.msra.mxu0 %v3249
        %3455 = vmatprep.subr.mxu0 %v3244
        %3456 = vmatpush1.msra.mxu0 %v3243
        %3457 = vmatprep.subr.mxu0 %v3238
        %3458 = vmatpush1.msra.mxu0 %v3237
        %3459 = vmatprep.subr.mxu0 %v3232
        %3460 = vmatpush1.msra.mxu0 %v3231
        %3461 = vmatprep.subr.mxu0 %v3226
        %3462 = vmatpush1.msra.mxu0 %v3225
        %3463 = vmatprep.subr.mxu0 %v3220
        %3464 = vmatpush1.msra.mxu0 %v3219
        %3465 = vmatprep.subr.mxu0 %v3214
        %3466 = vmatpush1.msra.mxu0 %v3213
        %3467 = vmatprep.subr.mxu0 0.0
        %3468 = vmatpush2.msra.mxu0 0.0
        %3469 = vmatprep.subr.mxu0 0.0
        %3470 = vmatpush2.msra.mxu0 0.0
        %3471 = vmatprep.subr.mxu0 0.0
        %3472 = vmatpush2.msra.mxu0 0.0
        %3473 = vmatprep.subr.mxu0 0.0
        %3474 = vmatpush2.msra.mxu0 0.0
        %3475 = vmatprep.subr.mxu0 0.0
        %3476 = vmatpush2.msra.mxu0 0.0
        %3477 = vmatprep.subr.mxu0 0.0
        %3478 = vmatpush2.msra.mxu0 0.0
        %3479 = vmatprep.subr.mxu0 0.0
        %3480 = vmatpush2.msra.mxu0 0.0
        %3481 = vmatprep.subr.mxu0 0.0
        %3482 = vmatpush2.msra.mxu0 0.0
        %3483 = vmatprep.subr.mxu0 0.0
        %3484 = vmatpush2.msra.mxu0 0.0
        %3485 = vmatprep.subr.mxu0 0.0
        %3486 = vmatpush2.msra.mxu0 0.0
        %3487 = vmatprep.subr.mxu0 0.0
        %3488 = vmatpush2.msra.mxu0 0.0
        %3489 = vmatprep.subr.mxu0 0.0
        %3490 = vmatpush2.msra.mxu0 0.0
        %3491 = vmatprep.subr.mxu0 0.0
        %3492 = vmatpush2.msra.mxu0 0.0
        %3493 = vmatprep.subr.mxu0 0.0
        %3494 = vmatpush2.msra.mxu0 0.0
        %3495 = vmatprep.subr.mxu0 0.0
        %3496 = vmatpush2.msra.mxu0 0.0
        %3497 = vmatprep.subr.mxu0 0.0
        %3498 = vmatpush2.msra.mxu0 0.0
        %3499 = vmatprep.mubr.f32.mxu0 0.0
        %3500 = vmatmul.mubr.f32.gmra.mxu0 %v1385
        %v3501 = vpop.f32.mrf.mxu0
        %v3502 = vadd.f32 0.0, %v3501
        %v3503 = vpop.f32.mrf.mxu0
        %v3504 = vadd.f32 0.0, %v3503
        %3505 = vdwg.mxu0
        %v3506 = vadd.f32 %v2541, %v3360
        %v3507 = vadd.f32 %v2542, %v3362
        %v3508 = vadd.f32 %v2543, %v3431
        %v3509 = vadd.f32 %v2544, %v3433
        %v3510 = vadd.f32 %v2545, %v3502
        %v3511 = vadd.f32 %v2546, %v3504
        %3512 = vmatprep.subr.mxu0 0.0
        %3513 = vmatpush1.msra.mxu0 0.0
        %3514 = vmatprep.subr.mxu0 0.0
        %3515 = vmatpush1.msra.mxu0 0.0
        %3516 = vmatprep.subr.mxu0 0.0
        %3517 = vmatpush1.msra.mxu0 0.0
        %3518 = vmatprep.subr.mxu0 0.0
        %3519 = vmatpush1.msra.mxu0 0.0
        %3520 = vmatprep.subr.mxu0 0.0
        %3521 = vmatpush1.msra.mxu0 0.0
        %3522 = vmatprep.subr.mxu0 %v3279
        %3523 = vmatpush1.msra.mxu0 %v3276
        %3524 = vmatprep.subr.mxu0 %v3264
        %3525 = vmatpush1.msra.mxu0 %v3263
        %3526 = vmatprep.subr.mxu0 %v3258
        %3527 = vmatpush1.msra.mxu0 %v3257
        %3528 = vmatprep.subr.mxu0 %v3252
        %3529 = vmatpush1.msra.mxu0 %v3251
        %3530 = vmatprep.subr.mxu0 %v3246
        %3531 = vmatpush1.msra.mxu0 %v3245
        %3532 = vmatprep.subr.mxu0 %v3240
        %3533 = vmatpush1.msra.mxu0 %v3239
        %3534 = vmatprep.subr.mxu0 %v3234
        %3535 = vmatpush1.msra.mxu0 %v3233
        %3536 = vmatprep.subr.mxu0 %v3228
        %3537 = vmatpush1.msra.mxu0 %v3227
        %3538 = vmatprep.subr.mxu0 %v3222
        %3539 = vmatpush1.msra.mxu0 %v3221
        %3540 = vmatprep.subr.mxu0 %v3216
        %3541 = vmatpush1.msra.mxu0 %v3215
        %3542 = vmatprep.subr.mxu0 %v3210
        %3543 = vmatpush1.msra.mxu0 %v3209
        %3544 = vmatprep.subr.mxu0 0.0
        %3545 = vmatpush2.msra.mxu0 0.0
        %3546 = vmatprep.subr.mxu0 0.0
        %3547 = vmatpush2.msra.mxu0 0.0
        %3548 = vmatprep.subr.mxu0 0.0
        %3549 = vmatpush2.msra.mxu0 0.0
        %3550 = vmatprep.subr.mxu0 0.0
        %3551 = vmatpush2.msra.mxu0 0.0
        %3552 = vmatprep.subr.mxu0 0.0
        %3553 = vmatpush2.msra.mxu0 0.0
        %3554 = vmatprep.subr.mxu0 0.0
        %3555 = vmatpush2.msra.mxu0 0.0
        %3556 = vmatprep.subr.mxu0 0.0
        %3557 = vmatpush2.msra.mxu0 0.0
        %3558 = vmatprep.subr.mxu0 0.0
        %3559 = vmatpush2.msra.mxu0 0.0
        %3560 = vmatprep.subr.mxu0 0.0
        %3561 = vmatpush2.msra.mxu0 0.0
        %3562 = vmatprep.subr.mxu0 0.0
        %3563 = vmatpush2.msra.mxu0 0.0
        %3564 = vmatprep.subr.mxu0 0.0
        %3565 = vmatpush2.msra.mxu0 0.0
        %3566 = vmatprep.subr.mxu0 0.0
        %3567 = vmatpush2.msra.mxu0 0.0
        %3568 = vmatprep.subr.mxu0 0.0
        %3569 = vmatpush2.msra.mxu0 0.0
        %3570 = vmatprep.subr.mxu0 0.0
        %3571 = vmatpush2.msra.mxu0 0.0
        %3572 = vmatprep.subr.mxu0 0.0
        %3573 = vmatpush2.msra.mxu0 0.0
        %3574 = vmatprep.subr.mxu0 0.0
        %3575 = vmatpush2.msra.mxu0 0.0
        %3576 = vmatprep.mubr.f32.mxu0 0.0
        %3577 = vmatmul.mubr.f32.gmra.mxu0 %v1815
        %v3578 = vpop.f32.mrf.mxu0
        %v3579 = vadd.f32 0.0, %v3578
        %v3580 = vpop.f32.mrf.mxu0
        %v3581 = vadd.f32 0.0, %v3580
        %3582 = vdwg.mxu0
        %3583 = vmatprep.subr.mxu0 0.0
        %3584 = vmatpush1.msra.mxu0 0.0
        %3585 = vmatprep.subr.mxu0 0.0
        %3586 = vmatpush1.msra.mxu0 0.0
        %3587 = vmatprep.subr.mxu0 0.0
        %3588 = vmatpush1.msra.mxu0 0.0
        %3589 = vmatprep.subr.mxu0 0.0
        %3590 = vmatpush1.msra.mxu0 0.0
        %3591 = vmatprep.subr.mxu0 0.0
        %3592 = vmatpush1.msra.mxu0 0.0
        %3593 = vmatprep.subr.mxu0 %v3285
        %3594 = vmatpush1.msra.mxu0 %v3282
        %3595 = vmatprep.subr.mxu0 %v3266
        %3596 = vmatpush1.msra.mxu0 %v3265
        %3597 = vmatprep.subr.mxu0 %v3260
        %3598 = vmatpush1.msra.mxu0 %v3259
        %3599 = vmatprep.subr.mxu0 %v3254
        %3600 = vmatpush1.msra.mxu0 %v3253
        %3601 = vmatprep.subr.mxu0 %v3248
        %3602 = vmatpush1.msra.mxu0 %v3247
        %3603 = vmatprep.subr.mxu0 %v3242
        %3604 = vmatpush1.msra.mxu0 %v3241
        %3605 = vmatprep.subr.mxu0 %v3236
        %3606 = vmatpush1.msra.mxu0 %v3235
        %3607 = vmatprep.subr.mxu0 %v3230
        %3608 = vmatpush1.msra.mxu0 %v3229
        %3609 = vmatprep.subr.mxu0 %v3224
        %3610 = vmatpush1.msra.mxu0 %v3223
        %3611 = vmatprep.subr.mxu0 %v3218
        %3612 = vmatpush1.msra.mxu0 %v3217
        %3613 = vmatprep.subr.mxu0 %v3212
        %3614 = vmatpush1.msra.mxu0 %v3211
        %3615 = vmatprep.subr.mxu0 0.0
        %3616 = vmatpush2.msra.mxu0 0.0
        %3617 = vmatprep.subr.mxu0 0.0
        %3618 = vmatpush2.msra.mxu0 0.0
        %3619 = vmatprep.subr.mxu0 0.0
        %3620 = vmatpush2.msra.mxu0 0.0
        %3621 = vmatprep.subr.mxu0 0.0
        %3622 = vmatpush2.msra.mxu0 0.0
        %3623 = vmatprep.subr.mxu0 0.0
        %3624 = vmatpush2.msra.mxu0 0.0
        %3625 = vmatprep.subr.mxu0 0.0
        %3626 = vmatpush2.msra.mxu0 0.0
        %3627 = vmatprep.subr.mxu0 0.0
        %3628 = vmatpush2.msra.mxu0 0.0
        %3629 = vmatprep.subr.mxu0 0.0
        %3630 = vmatpush2.msra.mxu0 0.0
        %3631 = vmatprep.subr.mxu0 0.0
        %3632 = vmatpush2.msra.mxu0 0.0
        %3633 = vmatprep.subr.mxu0 0.0
        %3634 = vmatpush2.msra.mxu0 0.0
        %3635 = vmatprep.subr.mxu0 0.0
        %3636 = vmatpush2.msra.mxu0 0.0
        %3637 = vmatprep.subr.mxu0 0.0
        %3638 = vmatpush2.msra.mxu0 0.0
        %3639 = vmatprep.subr.mxu0 0.0
        %3640 = vmatpush2.msra.mxu0 0.0
        %3641 = vmatprep.subr.mxu0 0.0
        %3642 = vmatpush2.msra.mxu0 0.0
        %3643 = vmatprep.subr.mxu0 0.0
        %3644 = vmatpush2.msra.mxu0 0.0
        %3645 = vmatprep.subr.mxu0 0.0
        %3646 = vmatpush2.msra.mxu0 0.0
        %3647 = vmatprep.mubr.f32.mxu0 0.0
        %3648 = vmatmul.mubr.f32.gmra.mxu0 %v1815
        %v3649 = vpop.f32.mrf.mxu0
        %v3650 = vadd.f32 0.0, %v3649
        %v3651 = vpop.f32.mrf.mxu0
        %v3652 = vadd.f32 0.0, %v3651
        %3653 = vdwg.mxu0
        %3654 = vmatprep.subr.mxu0 0.0
        %3655 = vmatpush1.msra.mxu0 0.0
        %3656 = vmatprep.subr.mxu0 0.0
        %3657 = vmatpush1.msra.mxu0 0.0
        %3658 = vmatprep.subr.mxu0 0.0
        %3659 = vmatpush1.msra.mxu0 0.0
        %3660 = vmatprep.subr.mxu0 0.0
        %3661 = vmatpush1.msra.mxu0 0.0
        %3662 = vmatprep.subr.mxu0 0.0
        %3663 = vmatpush1.msra.mxu0 0.0
        %3664 = vmatprep.subr.mxu0 %v3291
        %3665 = vmatpush1.msra.mxu0 %v3288
        %3666 = vmatprep.subr.mxu0 %v3268
        %3667 = vmatpush1.msra.mxu0 %v3267
        %3668 = vmatprep.subr.mxu0 %v3262
        %3669 = vmatpush1.msra.mxu0 %v3261
        %3670 = vmatprep.subr.mxu0 %v3256
        %3671 = vmatpush1.msra.mxu0 %v3255
        %3672 = vmatprep.subr.mxu0 %v3250
        %3673 = vmatpush1.msra.mxu0 %v3249
        %3674 = vmatprep.subr.mxu0 %v3244
        %3675 = vmatpush1.msra.mxu0 %v3243
        %3676 = vmatprep.subr.mxu0 %v3238
        %3677 = vmatpush1.msra.mxu0 %v3237
        %3678 = vmatprep.subr.mxu0 %v3232
        %3679 = vmatpush1.msra.mxu0 %v3231
        %3680 = vmatprep.subr.mxu0 %v3226
        %3681 = vmatpush1.msra.mxu0 %v3225
        %3682 = vmatprep.subr.mxu0 %v3220
        %3683 = vmatpush1.msra.mxu0 %v3219
        %3684 = vmatprep.subr.mxu0 %v3214
        %3685 = vmatpush1.msra.mxu0 %v3213
        %3686 = vmatprep.subr.mxu0 0.0
        %3687 = vmatpush2.msra.mxu0 0.0
        %3688 = vmatprep.subr.mxu0 0.0
        %3689 = vmatpush2.msra.mxu0 0.0
        %3690 = vmatprep.subr.mxu0 0.0
        %3691 = vmatpush2.msra.mxu0 0.0
        %3692 = vmatprep.subr.mxu0 0.0
        %3693 = vmatpush2.msra.mxu0 0.0
        %3694 = vmatprep.subr.mxu0 0.0
        %3695 = vmatpush2.msra.mxu0 0.0
        %3696 = vmatprep.subr.mxu0 0.0
        %3697 = vmatpush2.msra.mxu0 0.0
        %3698 = vmatprep.subr.mxu0 0.0
        %3699 = vmatpush2.msra.mxu0 0.0
        %3700 = vmatprep.subr.mxu0 0.0
        %3701 = vmatpush2.msra.mxu0 0.0
        %3702 = vmatprep.subr.mxu0 0.0
        %3703 = vmatpush2.msra.mxu0 0.0
        %3704 = vmatprep.subr.mxu0 0.0
        %3705 = vmatpush2.msra.mxu0 0.0
        %3706 = vmatprep.subr.mxu0 0.0
        %3707 = vmatpush2.msra.mxu0 0.0
        %3708 = vmatprep.subr.mxu0 0.0
        %3709 = vmatpush2.msra.mxu0 0.0
        %3710 = vmatprep.subr.mxu0 0.0
        %3711 = vmatpush2.msra.mxu0 0.0
        %3712 = vmatprep.subr.mxu0 0.0
        %3713 = vmatpush2.msra.mxu0 0.0
        %3714 = vmatprep.subr.mxu0 0.0
        %3715 = vmatpush2.msra.mxu0 0.0
        %3716 = vmatprep.subr.mxu0 0.0
        %3717 = vmatpush2.msra.mxu0 0.0
        %3718 = vmatprep.mubr.f32.mxu0 0.0
        %3719 = vmatmul.mubr.f32.gmra.mxu0 %v1815
        %v3720 = vpop.f32.mrf.mxu0
        %v3721 = vadd.f32 0.0, %v3720
        %v3722 = vpop.f32.mrf.mxu0
        %v3723 = vadd.f32 0.0, %v3722
        %3724 = vdwg.mxu0
        %v3725 = vadd.f32 %v2760, %v3579
        %v3726 = vadd.f32 %v2761, %v3581
        %v3727 = vadd.f32 %v2762, %v3650
        %v3728 = vadd.f32 %v2763, %v3652
        %v3729 = vadd.f32 %v2764, %v3721
        %v3730 = vadd.f32 %v2765, %v3723
        %3731 = vmatprep.subr.mxu0 0.0
        %3732 = vmatpush1.msra.mxu0 0.0
        %3733 = vmatprep.subr.mxu0 0.0
        %3734 = vmatpush1.msra.mxu0 0.0
        %3735 = vmatprep.subr.mxu0 0.0
        %3736 = vmatpush1.msra.mxu0 0.0
        %3737 = vmatprep.subr.mxu0 0.0
        %3738 = vmatpush1.msra.mxu0 0.0
        %3739 = vmatprep.subr.mxu0 0.0
        %3740 = vmatpush1.msra.mxu0 0.0
        %3741 = vmatprep.subr.mxu0 %v3279
        %3742 = vmatpush1.msra.mxu0 %v3276
        %3743 = vmatprep.subr.mxu0 %v3264
        %3744 = vmatpush1.msra.mxu0 %v3263
        %3745 = vmatprep.subr.mxu0 %v3258
        %3746 = vmatpush1.msra.mxu0 %v3257
        %3747 = vmatprep.subr.mxu0 %v3252
        %3748 = vmatpush1.msra.mxu0 %v3251
        %3749 = vmatprep.subr.mxu0 %v3246
        %3750 = vmatpush1.msra.mxu0 %v3245
        %3751 = vmatprep.subr.mxu0 %v3240
        %3752 = vmatpush1.msra.mxu0 %v3239
        %3753 = vmatprep.subr.mxu0 %v3234
        %3754 = vmatpush1.msra.mxu0 %v3233
        %3755 = vmatprep.subr.mxu0 %v3228
        %3756 = vmatpush1.msra.mxu0 %v3227
        %3757 = vmatprep.subr.mxu0 %v3222
        %3758 = vmatpush1.msra.mxu0 %v3221
        %3759 = vmatprep.subr.mxu0 %v3216
        %3760 = vmatpush1.msra.mxu0 %v3215
        %3761 = vmatprep.subr.mxu0 %v3210
        %3762 = vmatpush1.msra.mxu0 %v3209
        %3763 = vmatprep.subr.mxu0 0.0
        %3764 = vmatpush2.msra.mxu0 0.0
        %3765 = vmatprep.subr.mxu0 0.0
        %3766 = vmatpush2.msra.mxu0 0.0
        %3767 = vmatprep.subr.mxu0 0.0
        %3768 = vmatpush2.msra.mxu0 0.0
        %3769 = vmatprep.subr.mxu0 0.0
        %3770 = vmatpush2.msra.mxu0 0.0
        %3771 = vmatprep.subr.mxu0 0.0
        %3772 = vmatpush2.msra.mxu0 0.0
        %3773 = vmatprep.subr.mxu0 0.0
        %3774 = vmatpush2.msra.mxu0 0.0
        %3775 = vmatprep.subr.mxu0 0.0
        %3776 = vmatpush2.msra.mxu0 0.0
        %3777 = vmatprep.subr.mxu0 0.0
        %3778 = vmatpush2.msra.mxu0 0.0
        %3779 = vmatprep.subr.mxu0 0.0
        %3780 = vmatpush2.msra.mxu0 0.0
        %3781 = vmatprep.subr.mxu0 0.0
        %3782 = vmatpush2.msra.mxu0 0.0
        %3783 = vmatprep.subr.mxu0 0.0
        %3784 = vmatpush2.msra.mxu0 0.0
        %3785 = vmatprep.subr.mxu0 0.0
        %3786 = vmatpush2.msra.mxu0 0.0
        %3787 = vmatprep.subr.mxu0 0.0
        %3788 = vmatpush2.msra.mxu0 0.0
        %3789 = vmatprep.subr.mxu0 0.0
        %3790 = vmatpush2.msra.mxu0 0.0
        %3791 = vmatprep.subr.mxu0 0.0
        %3792 = vmatpush2.msra.mxu0 0.0
        %3793 = vmatprep.subr.mxu0 0.0
        %3794 = vmatpush2.msra.mxu0 0.0
        %3795 = vmatprep.mubr.f32.mxu0 0.0
        %3796 = vmatmul.mubr.f32.gmra.mxu0 %v2987
        %v3797 = vpop.f32.mrf.mxu0
        %v3798 = vadd.f32 0.0, %v3797
        %v3799 = vpop.f32.mrf.mxu0
        %v3800 = vadd.f32 0.0, %v3799
        %3801 = vdwg.mxu0
        %3802 = vmatprep.subr.mxu0 0.0
        %3803 = vmatpush1.msra.mxu0 0.0
        %3804 = vmatprep.subr.mxu0 0.0
        %3805 = vmatpush1.msra.mxu0 0.0
        %3806 = vmatprep.subr.mxu0 0.0
        %3807 = vmatpush1.msra.mxu0 0.0
        %3808 = vmatprep.subr.mxu0 0.0
        %3809 = vmatpush1.msra.mxu0 0.0
        %3810 = vmatprep.subr.mxu0 0.0
        %3811 = vmatpush1.msra.mxu0 0.0
        %3812 = vmatprep.subr.mxu0 %v3285
        %3813 = vmatpush1.msra.mxu0 %v3282
        %3814 = vmatprep.subr.mxu0 %v3266
        %3815 = vmatpush1.msra.mxu0 %v3265
        %3816 = vmatprep.subr.mxu0 %v3260
        %3817 = vmatpush1.msra.mxu0 %v3259
        %3818 = vmatprep.subr.mxu0 %v3254
        %3819 = vmatpush1.msra.mxu0 %v3253
        %3820 = vmatprep.subr.mxu0 %v3248
        %3821 = vmatpush1.msra.mxu0 %v3247
        %3822 = vmatprep.subr.mxu0 %v3242
        %3823 = vmatpush1.msra.mxu0 %v3241
        %3824 = vmatprep.subr.mxu0 %v3236
        %3825 = vmatpush1.msra.mxu0 %v3235
        %3826 = vmatprep.subr.mxu0 %v3230
        %3827 = vmatpush1.msra.mxu0 %v3229
        %3828 = vmatprep.subr.mxu0 %v3224
        %3829 = vmatpush1.msra.mxu0 %v3223
        %3830 = vmatprep.subr.mxu0 %v3218
        %3831 = vmatpush1.msra.mxu0 %v3217
        %3832 = vmatprep.subr.mxu0 %v3212
        %3833 = vmatpush1.msra.mxu0 %v3211
        %3834 = vmatprep.subr.mxu0 0.0
        %3835 = vmatpush2.msra.mxu0 0.0
        %3836 = vmatprep.subr.mxu0 0.0
        %3837 = vmatpush2.msra.mxu0 0.0
        %3838 = vmatprep.subr.mxu0 0.0
        %3839 = vmatpush2.msra.mxu0 0.0
        %3840 = vmatprep.subr.mxu0 0.0
        %3841 = vmatpush2.msra.mxu0 0.0
        %3842 = vmatprep.subr.mxu0 0.0
        %3843 = vmatpush2.msra.mxu0 0.0
        %3844 = vmatprep.subr.mxu0 0.0
        %3845 = vmatpush2.msra.mxu0 0.0
        %3846 = vmatprep.subr.mxu0 0.0
        %3847 = vmatpush2.msra.mxu0 0.0
        %3848 = vmatprep.subr.mxu0 0.0
        %3849 = vmatpush2.msra.mxu0 0.0
        %3850 = vmatprep.subr.mxu0 0.0
        %3851 = vmatpush2.msra.mxu0 0.0
        %3852 = vmatprep.subr.mxu0 0.0
        %3853 = vmatpush2.msra.mxu0 0.0
        %3854 = vmatprep.subr.mxu0 0.0
        %3855 = vmatpush2.msra.mxu0 0.0
        %3856 = vmatprep.subr.mxu0 0.0
        %3857 = vmatpush2.msra.mxu0 0.0
        %3858 = vmatprep.subr.mxu0 0.0
        %3859 = vmatpush2.msra.mxu0 0.0
        %3860 = vmatprep.subr.mxu0 0.0
        %3861 = vmatpush2.msra.mxu0 0.0
        %3862 = vmatprep.subr.mxu0 0.0
        %3863 = vmatpush2.msra.mxu0 0.0
        %3864 = vmatprep.subr.mxu0 0.0
        %3865 = vmatpush2.msra.mxu0 0.0
        %3866 = vmatprep.mubr.f32.mxu0 0.0
        %3867 = vmatmul.mubr.f32.gmra.mxu0 %v2987
        %v3868 = vpop.f32.mrf.mxu0
        %v3869 = vadd.f32 0.0, %v3868
        %v3870 = vpop.f32.mrf.mxu0
        %v3871 = vadd.f32 0.0, %v3870
        %3872 = vdwg.mxu0
        %3873 = vmatprep.subr.mxu0 0.0
        %3874 = vmatpush1.msra.mxu0 0.0
        %3875 = vmatprep.subr.mxu0 0.0
        %3876 = vmatpush1.msra.mxu0 0.0
        %3877 = vmatprep.subr.mxu0 0.0
        %3878 = vmatpush1.msra.mxu0 0.0
        %3879 = vmatprep.subr.mxu0 0.0
        %3880 = vmatpush1.msra.mxu0 0.0
        %3881 = vmatprep.subr.mxu0 0.0
        %3882 = vmatpush1.msra.mxu0 0.0
        %3883 = vmatprep.subr.mxu0 %v3291
        %3884 = vmatpush1.msra.mxu0 %v3288
        %3885 = vmatprep.subr.mxu0 %v3268
        %3886 = vmatpush1.msra.mxu0 %v3267
        %3887 = vmatprep.subr.mxu0 %v3262
        %3888 = vmatpush1.msra.mxu0 %v3261
        %3889 = vmatprep.subr.mxu0 %v3256
        %3890 = vmatpush1.msra.mxu0 %v3255
        %3891 = vmatprep.subr.mxu0 %v3250
        %3892 = vmatpush1.msra.mxu0 %v3249
        %3893 = vmatprep.subr.mxu0 %v3244
        %3894 = vmatpush1.msra.mxu0 %v3243
        %3895 = vmatprep.subr.mxu0 %v3238
        %3896 = vmatpush1.msra.mxu0 %v3237
        %3897 = vmatprep.subr.mxu0 %v3232
        %3898 = vmatpush1.msra.mxu0 %v3231
        %3899 = vmatprep.subr.mxu0 %v3226
        %3900 = vmatpush1.msra.mxu0 %v3225
        %3901 = vmatprep.subr.mxu0 %v3220
        %3902 = vmatpush1.msra.mxu0 %v3219
        %3903 = vmatprep.subr.mxu0 %v3214
        %3904 = vmatpush1.msra.mxu0 %v3213
        %3905 = vmatprep.subr.mxu0 0.0
        %3906 = vmatpush2.msra.mxu0 0.0
        %3907 = vmatprep.subr.mxu0 0.0
        %3908 = vmatpush2.msra.mxu0 0.0
        %3909 = vmatprep.subr.mxu0 0.0
        %3910 = vmatpush2.msra.mxu0 0.0
        %3911 = vmatprep.subr.mxu0 0.0
        %3912 = vmatpush2.msra.mxu0 0.0
        %3913 = vmatprep.subr.mxu0 0.0
        %3914 = vmatpush2.msra.mxu0 0.0
        %3915 = vmatprep.subr.mxu0 0.0
        %3916 = vmatpush2.msra.mxu0 0.0
        %3917 = vmatprep.subr.mxu0 0.0
        %3918 = vmatpush2.msra.mxu0 0.0
        %3919 = vmatprep.subr.mxu0 0.0
        %3920 = vmatpush2.msra.mxu0 0.0
        %3921 = vmatprep.subr.mxu0 0.0
        %3922 = vmatpush2.msra.mxu0 0.0
        %3923 = vmatprep.subr.mxu0 0.0
        %3924 = vmatpush2.msra.mxu0 0.0
        %3925 = vmatprep.subr.mxu0 0.0
        %3926 = vmatpush2.msra.mxu0 0.0
        %3927 = vmatprep.subr.mxu0 0.0
        %3928 = vmatpush2.msra.mxu0 0.0
        %3929 = vmatprep.subr.mxu0 0.0
        %3930 = vmatpush2.msra.mxu0 0.0
        %3931 = vmatprep.subr.mxu0 0.0
        %3932 = vmatpush2.msra.mxu0 0.0
        %3933 = vmatprep.subr.mxu0 0.0
        %3934 = vmatpush2.msra.mxu0 0.0
        %3935 = vmatprep.subr.mxu0 0.0
        %3936 = vmatpush2.msra.mxu0 0.0
        %3937 = vmatprep.mubr.f32.mxu0 0.0
        %3938 = vmatmul.mubr.f32.gmra.mxu0 %v2987
        %v3939 = vpop.f32.mrf.mxu0
        %v3940 = vadd.f32 0.0, %v3939
        %v3941 = vpop.f32.mrf.mxu0
        %v3942 = vadd.f32 0.0, %v3941
        %3943 = vdwg.mxu0
        %v3944 = vadd.f32 %v2979, %v3798
        %v3945 = vadd.f32 %v2980, %v3800
        %v3946 = vadd.f32 %v2981, %v3869
        %v3947 = vadd.f32 %v2982, %v3871
        %v3948 = vadd.f32 %v2983, %v3940
        %v3949 = vadd.f32 %v2984, %v3942
        %v3950 = vld [vmem:[%s414 + $0x1] sm:$0x3f]
        %v3952 = vsel %vm485, %v3950, 0
        %3954 = vmatprep.subr.mxu0 0.0
        %3955 = vmatpush1.msra.mxu0 0.0
        %3956 = vmatprep.subr.mxu0 0.0
        %3957 = vmatpush1.msra.mxu0 0.0
        %3958 = vmatprep.subr.mxu0 0.0
        %3959 = vmatpush1.msra.mxu0 0.0
        %3960 = vmatprep.subr.mxu0 0.0
        %3961 = vmatpush1.msra.mxu0 0.0
        %3962 = vmatprep.subr.mxu0 0.0
        %3963 = vmatpush1.msra.mxu0 0.0
        %3964 = vmatprep.subr.mxu0 %v3279
        %3965 = vmatpush1.msra.mxu0 %v3276
        %3966 = vmatprep.subr.mxu0 %v3264
        %3967 = vmatpush1.msra.mxu0 %v3263
        %3968 = vmatprep.subr.mxu0 %v3258
        %3969 = vmatpush1.msra.mxu0 %v3257
        %3970 = vmatprep.subr.mxu0 %v3252
        %3971 = vmatpush1.msra.mxu0 %v3251
        %3972 = vmatprep.subr.mxu0 %v3246
        %3973 = vmatpush1.msra.mxu0 %v3245
        %3974 = vmatprep.subr.mxu0 %v3240
        %3975 = vmatpush1.msra.mxu0 %v3239
        %3976 = vmatprep.subr.mxu0 %v3234
        %3977 = vmatpush1.msra.mxu0 %v3233
        %3978 = vmatprep.subr.mxu0 %v3228
        %3979 = vmatpush1.msra.mxu0 %v3227
        %3980 = vmatprep.subr.mxu0 %v3222
        %3981 = vmatpush1.msra.mxu0 %v3221
        %3982 = vmatprep.subr.mxu0 %v3216
        %3983 = vmatpush1.msra.mxu0 %v3215
        %3984 = vmatprep.subr.mxu0 %v3210
        %3985 = vmatpush1.msra.mxu0 %v3209
        %3986 = vmatprep.subr.mxu0 0.0
        %3987 = vmatpush2.msra.mxu0 0.0
        %3988 = vmatprep.subr.mxu0 0.0
        %3989 = vmatpush2.msra.mxu0 0.0
        %3990 = vmatprep.subr.mxu0 0.0
        %3991 = vmatpush2.msra.mxu0 0.0
        %3992 = vmatprep.subr.mxu0 0.0
        %3993 = vmatpush2.msra.mxu0 0.0
        %3994 = vmatprep.subr.mxu0 0.0
        %3995 = vmatpush2.msra.mxu0 0.0
        %3996 = vmatprep.subr.mxu0 0.0
        %3997 = vmatpush2.msra.mxu0 0.0
        %3998 = vmatprep.subr.mxu0 0.0
        %3999 = vmatpush2.msra.mxu0 0.0
        %4000 = vmatprep.subr.mxu0 0.0
        %4001 = vmatpush2.msra.mxu0 0.0
        %4002 = vmatprep.subr.mxu0 0.0
        %4003 = vmatpush2.msra.mxu0 0.0
        %4004 = vmatprep.subr.mxu0 0.0
        %4005 = vmatpush2.msra.mxu0 0.0
        %4006 = vmatprep.subr.mxu0 0.0
        %4007 = vmatpush2.msra.mxu0 0.0
        %4008 = vmatprep.subr.mxu0 0.0
        %4009 = vmatpush2.msra.mxu0 0.0
        %4010 = vmatprep.subr.mxu0 0.0
        %4011 = vmatpush2.msra.mxu0 0.0
        %4012 = vmatprep.subr.mxu0 0.0
        %4013 = vmatpush2.msra.mxu0 0.0
        %4014 = vmatprep.subr.mxu0 0.0
        %4015 = vmatpush2.msra.mxu0 0.0
        %4016 = vmatprep.subr.mxu0 0.0
        %4017 = vmatpush2.msra.mxu0 0.0
        %4018 = vmatprep.mubr.f32.mxu0 0.0
        %4019 = vmatmul.mubr.f32.gmra.mxu0 %v3952
        %v4020 = vpop.f32.mrf.mxu0
        %v4021 = vadd.f32 0.0, %v4020
        %v4022 = vpop.f32.mrf.mxu0
        %v4023 = vadd.f32 0.0, %v4022
        %4024 = vdwg.mxu0
        %4025 = vmatprep.subr.mxu0 0.0
        %4026 = vmatpush1.msra.mxu0 0.0
        %4027 = vmatprep.subr.mxu0 0.0
        %4028 = vmatpush1.msra.mxu0 0.0
        %4029 = vmatprep.subr.mxu0 0.0
        %4030 = vmatpush1.msra.mxu0 0.0
        %4031 = vmatprep.subr.mxu0 0.0
        %4032 = vmatpush1.msra.mxu0 0.0
        %4033 = vmatprep.subr.mxu0 0.0
        %4034 = vmatpush1.msra.mxu0 0.0
        %4035 = vmatprep.subr.mxu0 %v3285
        %4036 = vmatpush1.msra.mxu0 %v3282
        %4037 = vmatprep.subr.mxu0 %v3266
        %4038 = vmatpush1.msra.mxu0 %v3265
        %4039 = vmatprep.subr.mxu0 %v3260
        %4040 = vmatpush1.msra.mxu0 %v3259
        %4041 = vmatprep.subr.mxu0 %v3254
        %4042 = vmatpush1.msra.mxu0 %v3253
        %4043 = vmatprep.subr.mxu0 %v3248
        %4044 = vmatpush1.msra.mxu0 %v3247
        %4045 = vmatprep.subr.mxu0 %v3242
        %4046 = vmatpush1.msra.mxu0 %v3241
        %4047 = vmatprep.subr.mxu0 %v3236
        %4048 = vmatpush1.msra.mxu0 %v3235
        %4049 = vmatprep.subr.mxu0 %v3230
        %4050 = vmatpush1.msra.mxu0 %v3229
        %4051 = vmatprep.subr.mxu0 %v3224
        %4052 = vmatpush1.msra.mxu0 %v3223
        %4053 = vmatprep.subr.mxu0 %v3218
        %4054 = vmatpush1.msra.mxu0 %v3217
        %4055 = vmatprep.subr.mxu0 %v3212
        %4056 = vmatpush1.msra.mxu0 %v3211
        %4057 = vmatprep.subr.mxu0 0.0
        %4058 = vmatpush2.msra.mxu0 0.0
        %4059 = vmatprep.subr.mxu0 0.0
        %4060 = vmatpush2.msra.mxu0 0.0
        %4061 = vmatprep.subr.mxu0 0.0
        %4062 = vmatpush2.msra.mxu0 0.0
        %4063 = vmatprep.subr.mxu0 0.0
        %4064 = vmatpush2.msra.mxu0 0.0
        %4065 = vmatprep.subr.mxu0 0.0
        %4066 = vmatpush2.msra.mxu0 0.0
        %4067 = vmatprep.subr.mxu0 0.0
        %4068 = vmatpush2.msra.mxu0 0.0
        %4069 = vmatprep.subr.mxu0 0.0
        %4070 = vmatpush2.msra.mxu0 0.0
        %4071 = vmatprep.subr.mxu0 0.0
        %4072 = vmatpush2.msra.mxu0 0.0
        %4073 = vmatprep.subr.mxu0 0.0
        %4074 = vmatpush2.msra.mxu0 0.0
        %4075 = vmatprep.subr.mxu0 0.0
        %4076 = vmatpush2.msra.mxu0 0.0
        %4077 = vmatprep.subr.mxu0 0.0
        %4078 = vmatpush2.msra.mxu0 0.0
        %4079 = vmatprep.subr.mxu0 0.0
        %4080 = vmatpush2.msra.mxu0 0.0
        %4081 = vmatprep.subr.mxu0 0.0
        %4082 = vmatpush2.msra.mxu0 0.0
        %4083 = vmatprep.subr.mxu0 0.0
        %4084 = vmatpush2.msra.mxu0 0.0
        %4085 = vmatprep.subr.mxu0 0.0
        %4086 = vmatpush2.msra.mxu0 0.0
        %4087 = vmatprep.subr.mxu0 0.0
        %4088 = vmatpush2.msra.mxu0 0.0
        %4089 = vmatprep.mubr.f32.mxu0 0.0
        %4090 = vmatmul.mubr.f32.gmra.mxu0 %v3952
        %v4091 = vpop.f32.mrf.mxu0
        %v4092 = vadd.f32 0.0, %v4091
        %v4093 = vpop.f32.mrf.mxu0
        %v4094 = vadd.f32 0.0, %v4093
        %4095 = vdwg.mxu0
        %4096 = vmatprep.subr.mxu0 0.0
        %4097 = vmatpush1.msra.mxu0 0.0
        %4098 = vmatprep.subr.mxu0 0.0
        %4099 = vmatpush1.msra.mxu0 0.0
        %4100 = vmatprep.subr.mxu0 0.0
        %4101 = vmatpush1.msra.mxu0 0.0
        %4102 = vmatprep.subr.mxu0 0.0
        %4103 = vmatpush1.msra.mxu0 0.0
        %4104 = vmatprep.subr.mxu0 0.0
        %4105 = vmatpush1.msra.mxu0 0.0
        %4106 = vmatprep.subr.mxu0 %v3291
        %4107 = vmatpush1.msra.mxu0 %v3288
        %4108 = vmatprep.subr.mxu0 %v3268
        %4109 = vmatpush1.msra.mxu0 %v3267
        %4110 = vmatprep.subr.mxu0 %v3262
        %4111 = vmatpush1.msra.mxu0 %v3261
        %4112 = vmatprep.subr.mxu0 %v3256
        %4113 = vmatpush1.msra.mxu0 %v3255
        %4114 = vmatprep.subr.mxu0 %v3250
        %4115 = vmatpush1.msra.mxu0 %v3249
        %4116 = vmatprep.subr.mxu0 %v3244
        %4117 = vmatpush1.msra.mxu0 %v3243
        %4118 = vmatprep.subr.mxu0 %v3238
        %4119 = vmatpush1.msra.mxu0 %v3237
        %4120 = vmatprep.subr.mxu0 %v3232
        %4121 = vmatpush1.msra.mxu0 %v3231
        %4122 = vmatprep.subr.mxu0 %v3226
        %4123 = vmatpush1.msra.mxu0 %v3225
        %4124 = vmatprep.subr.mxu0 %v3220
        %4125 = vmatpush1.msra.mxu0 %v3219
        %4126 = vmatprep.subr.mxu0 %v3214
        %4127 = vmatpush1.msra.mxu0 %v3213
        %4128 = vmatprep.subr.mxu0 0.0
        %4129 = vmatpush2.msra.mxu0 0.0
        %4130 = vmatprep.subr.mxu0 0.0
        %4131 = vmatpush2.msra.mxu0 0.0
        %4132 = vmatprep.subr.mxu0 0.0
        %4133 = vmatpush2.msra.mxu0 0.0
        %4134 = vmatprep.subr.mxu0 0.0
        %4135 = vmatpush2.msra.mxu0 0.0
        %4136 = vmatprep.subr.mxu0 0.0
        %4137 = vmatpush2.msra.mxu0 0.0
        %4138 = vmatprep.subr.mxu0 0.0
        %4139 = vmatpush2.msra.mxu0 0.0
        %4140 = vmatprep.subr.mxu0 0.0
        %4141 = vmatpush2.msra.mxu0 0.0
        %4142 = vmatprep.subr.mxu0 0.0
        %4143 = vmatpush2.msra.mxu0 0.0
        %4144 = vmatprep.subr.mxu0 0.0
        %4145 = vmatpush2.msra.mxu0 0.0
        %4146 = vmatprep.subr.mxu0 0.0
        %4147 = vmatpush2.msra.mxu0 0.0
        %4148 = vmatprep.subr.mxu0 0.0
        %4149 = vmatpush2.msra.mxu0 0.0
        %4150 = vmatprep.subr.mxu0 0.0
        %4151 = vmatpush2.msra.mxu0 0.0
        %4152 = vmatprep.subr.mxu0 0.0
        %4153 = vmatpush2.msra.mxu0 0.0
        %4154 = vmatprep.subr.mxu0 0.0
        %4155 = vmatpush2.msra.mxu0 0.0
        %4156 = vmatprep.subr.mxu0 0.0
        %4157 = vmatpush2.msra.mxu0 0.0
        %4158 = vmatprep.subr.mxu0 0.0
        %4159 = vmatpush2.msra.mxu0 0.0
        %4160 = vmatprep.mubr.f32.mxu0 0.0
        %4161 = vmatmul.mubr.f32.gmra.mxu0 %v3952
        %v4162 = vpop.f32.mrf.mxu0
        %v4163 = vadd.f32 0.0, %v4162
        %v4164 = vpop.f32.mrf.mxu0
        %v4165 = vadd.f32 0.0, %v4164
        %4166 = vdwg.mxu0
        %v4167 = vadd.f32 %v3202, %v4021
        %v4168 = vadd.f32 %v3203, %v4023
        %v4169 = vadd.f32 %v3204, %v4092
        %v4170 = vadd.f32 %v3205, %v4094
        %v4171 = vadd.f32 %v3206, %v4163
        %v4172 = vadd.f32 %v3207, %v4165
        %s4173 = scalar_lea.vmem [#allocation2], 2112
        %v4174 = vld [vmem:[%s4173] sm:$0xff]
        %v4175 = vld [vmem:[%s4173 + $0x8] sm:$0xff]
        %v4176 = vld [vmem:[%s4173 + $0x10] sm:$0xff]
        %v4177 = vld [vmem:[%s4173 + $0x18] sm:$0xff]
        %v4178 = vld [vmem:[%s4173 + $0x20] sm:$0xff]
        %v4179 = vld [vmem:[%s4173 + $0x28] sm:$0xff]
        %v4180 = vld [vmem:[%s4173 + $0x30] sm:$0xff]
        %v4181 = vld [vmem:[%s4173 + $0x38] sm:$0xff]
        %v4182 = vld [vmem:[%s4173 + $0x40] sm:$0xff]
        %v4183 = vld [vmem:[%s4173 + $0x48] sm:$0xff]
        %v4184 = vld [vmem:[%s4173 + $0x50] sm:$0xff]
        %v4185 = vld [vmem:[%s4173 + $0x58] sm:$0xff]
        %v4186 = vld [vmem:[%s4173 + $0x60] sm:$0xff]
        %v4187 = vld [vmem:[%s4173 + $0x68] sm:$0xff]
        %v4188 = vld [vmem:[%s4173 + $0x70] sm:$0xff]
        %v4189 = vld [vmem:[%s4173 + $0x78] sm:$0xff]
        %v4190 = vld [vmem:[%s4173 + $0x80] sm:$0xff]
        %v4191 = vld [vmem:[%s4173 + $0x88] sm:$0xff]
        %v4192 = vld [vmem:[%s4173 + $0x90] sm:$0xff]
        %v4193 = vld [vmem:[%s4173 + $0x98] sm:$0xff]
        %v4194 = vld [vmem:[%s4173 + $0xa0] sm:$0xff]
        %v4195 = vld [vmem:[%s4173 + $0xa8] sm:$0xff]
        %v4196 = vld [vmem:[%s4173 + $0xb0] sm:$0xff]
        %v4197 = vld [vmem:[%s4173 + $0xb8] sm:$0xff]
        %v4198 = vld [vmem:[%s4173 + $0xc0] sm:$0xff]
        %v4199 = vld [vmem:[%s4173 + $0xc8] sm:$0xff]
        %v4200 = vld [vmem:[%s4173 + $0xd0] sm:$0xff]
        %v4201 = vld [vmem:[%s4173 + $0xd8] sm:$0xff]
        %v4202 = vld [vmem:[%s4173 + $0xe0] sm:$0xff]
        %v4203 = vld [vmem:[%s4173 + $0xe8] sm:$0xff]
        %v4204 = vld [vmem:[%s4173 + $0xf0] sm:$0xff]
        %v4205 = vld [vmem:[%s4173 + $0xf8] sm:$0xff]
        %v4206 = vld [vmem:[%s4173 + $0x100] sm:$0xff]
        %v4207 = vld [vmem:[%s4173 + $0x108] sm:$0xff]
        %v4208 = vld [vmem:[%s4173 + $0x110] sm:$0xff]
        %v4209 = vld [vmem:[%s4173 + $0x118] sm:$0xff]
        %v4210 = vld [vmem:[%s4173 + $0x120] sm:$0xff]
        %v4211 = vld [vmem:[%s4173 + $0x128] sm:$0xff]
        %v4212 = vld [vmem:[%s4173 + $0x130] sm:$0xff]
        %v4213 = vld [vmem:[%s4173 + $0x138] sm:$0xff]
        %v4214 = vld [vmem:[%s4173 + $0x140] sm:$0xff]
        %v4215 = vld [vmem:[%s4173 + $0x148] sm:$0xff]
        %v4216 = vld [vmem:[%s4173 + $0x150] sm:$0xff]
        %v4217 = vld [vmem:[%s4173 + $0x158] sm:$0xff]
        %v4218 = vld [vmem:[%s4173 + $0x160] sm:$0xff]
        %v4219 = vld [vmem:[%s4173 + $0x168] sm:$0xff]
        %v4220 = vld [vmem:[%s4173 + $0x170] sm:$0xff]
        %v4221 = vld [vmem:[%s4173 + $0x178] sm:$0xff]
        %v4222 = vld [vmem:[%s4173 + $0x180] sm:$0xff]
        %v4223 = vld [vmem:[%s4173 + $0x188] sm:$0xff]
        %v4224 = vld [vmem:[%s4173 + $0x190] sm:$0xff]
        %v4225 = vld [vmem:[%s4173 + $0x198] sm:$0xff]
        %v4226 = vld [vmem:[%s4173 + $0x1a0] sm:$0xff]
        %v4227 = vld [vmem:[%s4173 + $0x1a8] sm:$0xff]
        %v4228 = vld [vmem:[%s4173 + $0x1b0] sm:$0xff]
        %v4229 = vld [vmem:[%s4173 + $0x1b8] sm:$0xff]
        %v4230 = vld [vmem:[%s4173 + $0x1c0] sm:$0xff]
        %v4231 = vld [vmem:[%s4173 + $0x1c8] sm:$0xff]
        %v4232 = vld [vmem:[%s4173 + $0x1d0] sm:$0xff]
        %v4233 = vld [vmem:[%s4173 + $0x1d8] sm:$0xff]
        %v4234 = vld [vmem:[%s4173 + $0x1e0] sm:$0xf]
        %v4235 = vld [vmem:[%s4173 + $0x1e8] sm:$0xf]
        %v4236 = vld [vmem:[%s4173 + $0x1f0] sm:$0xf]
        %v4237 = vld [vmem:[%s4173 + $0x1f8] sm:$0xf]
        %v4238 = vld [vmem:[%s4173 + $0x200] sm:$0xf]
        %v4239 = vld [vmem:[%s4173 + $0x208] sm:$0xf]
        %v4241 = vsel %vm489, %v4234, 0
        %v4244 = vsel %vm489, %v4235, 0
        %v4247 = vsel %vm489, %v4236, 0
        %v4250 = vsel %vm489, %v4237, 0
        %v4253 = vsel %vm489, %v4238, 0
        %v4256 = vsel %vm489, %v4239, 0
        %4258 = vmatprep.subr.mxu0 0.0
        %4259 = vmatpush1.msra.mxu0 0.0
        %4260 = vmatprep.subr.mxu0 0.0
        %4261 = vmatpush1.msra.mxu0 0.0
        %4262 = vmatprep.subr.mxu0 0.0
        %4263 = vmatpush1.msra.mxu0 0.0
        %4264 = vmatprep.subr.mxu0 0.0
        %4265 = vmatpush1.msra.mxu0 0.0
        %4266 = vmatprep.subr.mxu0 0.0
        %4267 = vmatpush1.msra.mxu0 0.0
        %4268 = vmatprep.subr.mxu0 %v4244
        %4269 = vmatpush1.msra.mxu0 %v4241
        %4270 = vmatprep.subr.mxu0 %v4229
        %4271 = vmatpush1.msra.mxu0 %v4228
        %4272 = vmatprep.subr.mxu0 %v4223
        %4273 = vmatpush1.msra.mxu0 %v4222
        %4274 = vmatprep.subr.mxu0 %v4217
        %4275 = vmatpush1.msra.mxu0 %v4216
        %4276 = vmatprep.subr.mxu0 %v4211
        %4277 = vmatpush1.msra.mxu0 %v4210
        %4278 = vmatprep.subr.mxu0 %v4205
        %4279 = vmatpush1.msra.mxu0 %v4204
        %4280 = vmatprep.subr.mxu0 %v4199
        %4281 = vmatpush1.msra.mxu0 %v4198
        %4282 = vmatprep.subr.mxu0 %v4193
        %4283 = vmatpush1.msra.mxu0 %v4192
        %4284 = vmatprep.subr.mxu0 %v4187
        %4285 = vmatpush1.msra.mxu0 %v4186
        %4286 = vmatprep.subr.mxu0 %v4181
        %4287 = vmatpush1.msra.mxu0 %v4180
        %4288 = vmatprep.subr.mxu0 %v4175
        %4289 = vmatpush1.msra.mxu0 %v4174
        %4290 = vmatprep.subr.mxu0 0.0
        %4291 = vmatpush2.msra.mxu0 0.0
        %4292 = vmatprep.subr.mxu0 0.0
        %4293 = vmatpush2.msra.mxu0 0.0
        %4294 = vmatprep.subr.mxu0 0.0
        %4295 = vmatpush2.msra.mxu0 0.0
        %4296 = vmatprep.subr.mxu0 0.0
        %4297 = vmatpush2.msra.mxu0 0.0
        %4298 = vmatprep.subr.mxu0 0.0
        %4299 = vmatpush2.msra.mxu0 0.0
        %4300 = vmatprep.subr.mxu0 0.0
        %4301 = vmatpush2.msra.mxu0 0.0
        %4302 = vmatprep.subr.mxu0 0.0
        %4303 = vmatpush2.msra.mxu0 0.0
        %4304 = vmatprep.subr.mxu0 0.0
        %4305 = vmatpush2.msra.mxu0 0.0
        %4306 = vmatprep.subr.mxu0 0.0
        %4307 = vmatpush2.msra.mxu0 0.0
        %4308 = vmatprep.subr.mxu0 0.0
        %4309 = vmatpush2.msra.mxu0 0.0
        %4310 = vmatprep.subr.mxu0 0.0
        %4311 = vmatpush2.msra.mxu0 0.0
        %4312 = vmatprep.subr.mxu0 0.0
        %4313 = vmatpush2.msra.mxu0 0.0
        %4314 = vmatprep.subr.mxu0 0.0
        %4315 = vmatpush2.msra.mxu0 0.0
        %4316 = vmatprep.subr.mxu0 0.0
        %4317 = vmatpush2.msra.mxu0 0.0
        %4318 = vmatprep.subr.mxu0 0.0
        %4319 = vmatpush2.msra.mxu0 0.0
        %4320 = vmatprep.subr.mxu0 0.0
        %4321 = vmatpush2.msra.mxu0 0.0
        %4322 = vmatprep.mubr.f32.mxu0 0.0
        %4323 = vmatmul.mubr.f32.gmra.mxu0 %v1815
        %v4324 = vpop.f32.mrf.mxu0
        %v4325 = vadd.f32 0.0, %v4324
        %v4326 = vpop.f32.mrf.mxu0
        %v4327 = vadd.f32 0.0, %v4326
        %4328 = vdwg.mxu0
        %4329 = vmatprep.subr.mxu0 0.0
        %4330 = vmatpush1.msra.mxu0 0.0
        %4331 = vmatprep.subr.mxu0 0.0
        %4332 = vmatpush1.msra.mxu0 0.0
        %4333 = vmatprep.subr.mxu0 0.0
        %4334 = vmatpush1.msra.mxu0 0.0
        %4335 = vmatprep.subr.mxu0 0.0
        %4336 = vmatpush1.msra.mxu0 0.0
        %4337 = vmatprep.subr.mxu0 0.0
        %4338 = vmatpush1.msra.mxu0 0.0
        %4339 = vmatprep.subr.mxu0 %v4250
        %4340 = vmatpush1.msra.mxu0 %v4247
        %4341 = vmatprep.subr.mxu0 %v4231
        %4342 = vmatpush1.msra.mxu0 %v4230
        %4343 = vmatprep.subr.mxu0 %v4225
        %4344 = vmatpush1.msra.mxu0 %v4224
        %4345 = vmatprep.subr.mxu0 %v4219
        %4346 = vmatpush1.msra.mxu0 %v4218
        %4347 = vmatprep.subr.mxu0 %v4213
        %4348 = vmatpush1.msra.mxu0 %v4212
        %4349 = vmatprep.subr.mxu0 %v4207
        %4350 = vmatpush1.msra.mxu0 %v4206
        %4351 = vmatprep.subr.mxu0 %v4201
        %4352 = vmatpush1.msra.mxu0 %v4200
        %4353 = vmatprep.subr.mxu0 %v4195
        %4354 = vmatpush1.msra.mxu0 %v4194
        %4355 = vmatprep.subr.mxu0 %v4189
        %4356 = vmatpush1.msra.mxu0 %v4188
        %4357 = vmatprep.subr.mxu0 %v4183
        %4358 = vmatpush1.msra.mxu0 %v4182
        %4359 = vmatprep.subr.mxu0 %v4177
        %4360 = vmatpush1.msra.mxu0 %v4176
        %4361 = vmatprep.subr.mxu0 0.0
        %4362 = vmatpush2.msra.mxu0 0.0
        %4363 = vmatprep.subr.mxu0 0.0
        %4364 = vmatpush2.msra.mxu0 0.0
        %4365 = vmatprep.subr.mxu0 0.0
        %4366 = vmatpush2.msra.mxu0 0.0
        %4367 = vmatprep.subr.mxu0 0.0
        %4368 = vmatpush2.msra.mxu0 0.0
        %4369 = vmatprep.subr.mxu0 0.0
        %4370 = vmatpush2.msra.mxu0 0.0
        %4371 = vmatprep.subr.mxu0 0.0
        %4372 = vmatpush2.msra.mxu0 0.0
        %4373 = vmatprep.subr.mxu0 0.0
        %4374 = vmatpush2.msra.mxu0 0.0
        %4375 = vmatprep.subr.mxu0 0.0
        %4376 = vmatpush2.msra.mxu0 0.0
        %4377 = vmatprep.subr.mxu0 0.0
        %4378 = vmatpush2.msra.mxu0 0.0
        %4379 = vmatprep.subr.mxu0 0.0
        %4380 = vmatpush2.msra.mxu0 0.0
        %4381 = vmatprep.subr.mxu0 0.0
        %4382 = vmatpush2.msra.mxu0 0.0
        %4383 = vmatprep.subr.mxu0 0.0
        %4384 = vmatpush2.msra.mxu0 0.0
        %4385 = vmatprep.subr.mxu0 0.0
        %4386 = vmatpush2.msra.mxu0 0.0
        %4387 = vmatprep.subr.mxu0 0.0
        %4388 = vmatpush2.msra.mxu0 0.0
        %4389 = vmatprep.subr.mxu0 0.0
        %4390 = vmatpush2.msra.mxu0 0.0
        %4391 = vmatprep.subr.mxu0 0.0
        %4392 = vmatpush2.msra.mxu0 0.0
        %4393 = vmatprep.mubr.f32.mxu0 0.0
        %4394 = vmatmul.mubr.f32.gmra.mxu0 %v1815
        %v4395 = vpop.f32.mrf.mxu0
        %v4396 = vadd.f32 0.0, %v4395
        %v4397 = vpop.f32.mrf.mxu0
        %v4398 = vadd.f32 0.0, %v4397
        %4399 = vdwg.mxu0
        %4400 = vmatprep.subr.mxu0 0.0
        %4401 = vmatpush1.msra.mxu0 0.0
        %4402 = vmatprep.subr.mxu0 0.0
        %4403 = vmatpush1.msra.mxu0 0.0
        %4404 = vmatprep.subr.mxu0 0.0
        %4405 = vmatpush1.msra.mxu0 0.0
        %4406 = vmatprep.subr.mxu0 0.0
        %4407 = vmatpush1.msra.mxu0 0.0
        %4408 = vmatprep.subr.mxu0 0.0
        %4409 = vmatpush1.msra.mxu0 0.0
        %4410 = vmatprep.subr.mxu0 %v4256
        %4411 = vmatpush1.msra.mxu0 %v4253
        %4412 = vmatprep.subr.mxu0 %v4233
        %4413 = vmatpush1.msra.mxu0 %v4232
        %4414 = vmatprep.subr.mxu0 %v4227
        %4415 = vmatpush1.msra.mxu0 %v4226
        %4416 = vmatprep.subr.mxu0 %v4221
        %4417 = vmatpush1.msra.mxu0 %v4220
        %4418 = vmatprep.subr.mxu0 %v4215
        %4419 = vmatpush1.msra.mxu0 %v4214
        %4420 = vmatprep.subr.mxu0 %v4209
        %4421 = vmatpush1.msra.mxu0 %v4208
        %4422 = vmatprep.subr.mxu0 %v4203
        %4423 = vmatpush1.msra.mxu0 %v4202
        %4424 = vmatprep.subr.mxu0 %v4197
        %4425 = vmatpush1.msra.mxu0 %v4196
        %4426 = vmatprep.subr.mxu0 %v4191
        %4427 = vmatpush1.msra.mxu0 %v4190
        %4428 = vmatprep.subr.mxu0 %v4185
        %4429 = vmatpush1.msra.mxu0 %v4184
        %4430 = vmatprep.subr.mxu0 %v4179
        %4431 = vmatpush1.msra.mxu0 %v4178
        %4432 = vmatprep.subr.mxu0 0.0
        %4433 = vmatpush2.msra.mxu0 0.0
        %4434 = vmatprep.subr.mxu0 0.0
        %4435 = vmatpush2.msra.mxu0 0.0
        %4436 = vmatprep.subr.mxu0 0.0
        %4437 = vmatpush2.msra.mxu0 0.0
        %4438 = vmatprep.subr.mxu0 0.0
        %4439 = vmatpush2.msra.mxu0 0.0
        %4440 = vmatprep.subr.mxu0 0.0
        %4441 = vmatpush2.msra.mxu0 0.0
        %4442 = vmatprep.subr.mxu0 0.0
        %4443 = vmatpush2.msra.mxu0 0.0
        %4444 = vmatprep.subr.mxu0 0.0
        %4445 = vmatpush2.msra.mxu0 0.0
        %4446 = vmatprep.subr.mxu0 0.0
        %4447 = vmatpush2.msra.mxu0 0.0
        %4448 = vmatprep.subr.mxu0 0.0
        %4449 = vmatpush2.msra.mxu0 0.0
        %4450 = vmatprep.subr.mxu0 0.0
        %4451 = vmatpush2.msra.mxu0 0.0
        %4452 = vmatprep.subr.mxu0 0.0
        %4453 = vmatpush2.msra.mxu0 0.0
        %4454 = vmatprep.subr.mxu0 0.0
        %4455 = vmatpush2.msra.mxu0 0.0
        %4456 = vmatprep.subr.mxu0 0.0
        %4457 = vmatpush2.msra.mxu0 0.0
        %4458 = vmatprep.subr.mxu0 0.0
        %4459 = vmatpush2.msra.mxu0 0.0
        %4460 = vmatprep.subr.mxu0 0.0
        %4461 = vmatpush2.msra.mxu0 0.0
        %4462 = vmatprep.subr.mxu0 0.0
        %4463 = vmatpush2.msra.mxu0 0.0
        %4464 = vmatprep.mubr.f32.mxu0 0.0
        %4465 = vmatmul.mubr.f32.gmra.mxu0 %v1815
        %v4466 = vpop.f32.mrf.mxu0
        %v4467 = vadd.f32 0.0, %v4466
        %v4468 = vpop.f32.mrf.mxu0
        %v4469 = vadd.f32 0.0, %v4468
        %4470 = vdwg.mxu0
        %v4471 = vadd.f32 %v3506, %v4325
        %v4472 = vadd.f32 %v3507, %v4327
        %v4473 = vadd.f32 %v3508, %v4396
        %v4474 = vadd.f32 %v3509, %v4398
        %v4475 = vadd.f32 %v3510, %v4467
        %v4476 = vadd.f32 %v3511, %v4469
        %4477 = vmatprep.subr.mxu0 0.0
        %4478 = vmatpush1.msra.mxu0 0.0
        %4479 = vmatprep.subr.mxu0 0.0
        %4480 = vmatpush1.msra.mxu0 0.0
        %4481 = vmatprep.subr.mxu0 0.0
        %4482 = vmatpush1.msra.mxu0 0.0
        %4483 = vmatprep.subr.mxu0 0.0
        %4484 = vmatpush1.msra.mxu0 0.0
        %4485 = vmatprep.subr.mxu0 0.0
        %4486 = vmatpush1.msra.mxu0 0.0
        %4487 = vmatprep.subr.mxu0 %v4244
        %4488 = vmatpush1.msra.mxu0 %v4241
        %4489 = vmatprep.subr.mxu0 %v4229
        %4490 = vmatpush1.msra.mxu0 %v4228
        %4491 = vmatprep.subr.mxu0 %v4223
        %4492 = vmatpush1.msra.mxu0 %v4222
        %4493 = vmatprep.subr.mxu0 %v4217
        %4494 = vmatpush1.msra.mxu0 %v4216
        %4495 = vmatprep.subr.mxu0 %v4211
        %4496 = vmatpush1.msra.mxu0 %v4210
        %4497 = vmatprep.subr.mxu0 %v4205
        %4498 = vmatpush1.msra.mxu0 %v4204
        %4499 = vmatprep.subr.mxu0 %v4199
        %4500 = vmatpush1.msra.mxu0 %v4198
        %4501 = vmatprep.subr.mxu0 %v4193
        %4502 = vmatpush1.msra.mxu0 %v4192
        %4503 = vmatprep.subr.mxu0 %v4187
        %4504 = vmatpush1.msra.mxu0 %v4186
        %4505 = vmatprep.subr.mxu0 %v4181
        %4506 = vmatpush1.msra.mxu0 %v4180
        %4507 = vmatprep.subr.mxu0 %v4175
        %4508 = vmatpush1.msra.mxu0 %v4174
        %4509 = vmatprep.subr.mxu0 0.0
        %4510 = vmatpush2.msra.mxu0 0.0
        %4511 = vmatprep.subr.mxu0 0.0
        %4512 = vmatpush2.msra.mxu0 0.0
        %4513 = vmatprep.subr.mxu0 0.0
        %4514 = vmatpush2.msra.mxu0 0.0
        %4515 = vmatprep.subr.mxu0 0.0
        %4516 = vmatpush2.msra.mxu0 0.0
        %4517 = vmatprep.subr.mxu0 0.0
        %4518 = vmatpush2.msra.mxu0 0.0
        %4519 = vmatprep.subr.mxu0 0.0
        %4520 = vmatpush2.msra.mxu0 0.0
        %4521 = vmatprep.subr.mxu0 0.0
        %4522 = vmatpush2.msra.mxu0 0.0
        %4523 = vmatprep.subr.mxu0 0.0
        %4524 = vmatpush2.msra.mxu0 0.0
        %4525 = vmatprep.subr.mxu0 0.0
        %4526 = vmatpush2.msra.mxu0 0.0
        %4527 = vmatprep.subr.mxu0 0.0
        %4528 = vmatpush2.msra.mxu0 0.0
        %4529 = vmatprep.subr.mxu0 0.0
        %4530 = vmatpush2.msra.mxu0 0.0
        %4531 = vmatprep.subr.mxu0 0.0
        %4532 = vmatpush2.msra.mxu0 0.0
        %4533 = vmatprep.subr.mxu0 0.0
        %4534 = vmatpush2.msra.mxu0 0.0
        %4535 = vmatprep.subr.mxu0 0.0
        %4536 = vmatpush2.msra.mxu0 0.0
        %4537 = vmatprep.subr.mxu0 0.0
        %4538 = vmatpush2.msra.mxu0 0.0
        %4539 = vmatprep.subr.mxu0 0.0
        %4540 = vmatpush2.msra.mxu0 0.0
        %4541 = vmatprep.mubr.f32.mxu0 0.0
        %4542 = vmatmul.mubr.f32.gmra.mxu0 %v2987
        %v4543 = vpop.f32.mrf.mxu0
        %v4544 = vadd.f32 0.0, %v4543
        %v4545 = vpop.f32.mrf.mxu0
        %v4546 = vadd.f32 0.0, %v4545
        %4547 = vdwg.mxu0
        %4548 = vmatprep.subr.mxu0 0.0
        %4549 = vmatpush1.msra.mxu0 0.0
        %4550 = vmatprep.subr.mxu0 0.0
        %4551 = vmatpush1.msra.mxu0 0.0
        %4552 = vmatprep.subr.mxu0 0.0
        %4553 = vmatpush1.msra.mxu0 0.0
        %4554 = vmatprep.subr.mxu0 0.0
        %4555 = vmatpush1.msra.mxu0 0.0
        %4556 = vmatprep.subr.mxu0 0.0
        %4557 = vmatpush1.msra.mxu0 0.0
        %4558 = vmatprep.subr.mxu0 %v4250
        %4559 = vmatpush1.msra.mxu0 %v4247
        %4560 = vmatprep.subr.mxu0 %v4231
        %4561 = vmatpush1.msra.mxu0 %v4230
        %4562 = vmatprep.subr.mxu0 %v4225
        %4563 = vmatpush1.msra.mxu0 %v4224
        %4564 = vmatprep.subr.mxu0 %v4219
        %4565 = vmatpush1.msra.mxu0 %v4218
        %4566 = vmatprep.subr.mxu0 %v4213
        %4567 = vmatpush1.msra.mxu0 %v4212
        %4568 = vmatprep.subr.mxu0 %v4207
        %4569 = vmatpush1.msra.mxu0 %v4206
        %4570 = vmatprep.subr.mxu0 %v4201
        %4571 = vmatpush1.msra.mxu0 %v4200
        %4572 = vmatprep.subr.mxu0 %v4195
        %4573 = vmatpush1.msra.mxu0 %v4194
        %4574 = vmatprep.subr.mxu0 %v4189
        %4575 = vmatpush1.msra.mxu0 %v4188
        %4576 = vmatprep.subr.mxu0 %v4183
        %4577 = vmatpush1.msra.mxu0 %v4182
        %4578 = vmatprep.subr.mxu0 %v4177
        %4579 = vmatpush1.msra.mxu0 %v4176
        %4580 = vmatprep.subr.mxu0 0.0
        %4581 = vmatpush2.msra.mxu0 0.0
        %4582 = vmatprep.subr.mxu0 0.0
        %4583 = vmatpush2.msra.mxu0 0.0
        %4584 = vmatprep.subr.mxu0 0.0
        %4585 = vmatpush2.msra.mxu0 0.0
        %4586 = vmatprep.subr.mxu0 0.0
        %4587 = vmatpush2.msra.mxu0 0.0
        %4588 = vmatprep.subr.mxu0 0.0
        %4589 = vmatpush2.msra.mxu0 0.0
        %4590 = vmatprep.subr.mxu0 0.0
        %4591 = vmatpush2.msra.mxu0 0.0
        %4592 = vmatprep.subr.mxu0 0.0
        %4593 = vmatpush2.msra.mxu0 0.0
        %4594 = vmatprep.subr.mxu0 0.0
        %4595 = vmatpush2.msra.mxu0 0.0
        %4596 = vmatprep.subr.mxu0 0.0
        %4597 = vmatpush2.msra.mxu0 0.0
        %4598 = vmatprep.subr.mxu0 0.0
        %4599 = vmatpush2.msra.mxu0 0.0
        %4600 = vmatprep.subr.mxu0 0.0
        %4601 = vmatpush2.msra.mxu0 0.0
        %4602 = vmatprep.subr.mxu0 0.0
        %4603 = vmatpush2.msra.mxu0 0.0
        %4604 = vmatprep.subr.mxu0 0.0
        %4605 = vmatpush2.msra.mxu0 0.0
        %4606 = vmatprep.subr.mxu0 0.0
        %4607 = vmatpush2.msra.mxu0 0.0
        %4608 = vmatprep.subr.mxu0 0.0
        %4609 = vmatpush2.msra.mxu0 0.0
        %4610 = vmatprep.subr.mxu0 0.0
        %4611 = vmatpush2.msra.mxu0 0.0
        %4612 = vmatprep.mubr.f32.mxu0 0.0
        %4613 = vmatmul.mubr.f32.gmra.mxu0 %v2987
        %v4614 = vpop.f32.mrf.mxu0
        %v4615 = vadd.f32 0.0, %v4614
        %v4616 = vpop.f32.mrf.mxu0
        %v4617 = vadd.f32 0.0, %v4616
        %4618 = vdwg.mxu0
        %4619 = vmatprep.subr.mxu0 0.0
        %4620 = vmatpush1.msra.mxu0 0.0
        %4621 = vmatprep.subr.mxu0 0.0
        %4622 = vmatpush1.msra.mxu0 0.0
        %4623 = vmatprep.subr.mxu0 0.0
        %4624 = vmatpush1.msra.mxu0 0.0
        %4625 = vmatprep.subr.mxu0 0.0
        %4626 = vmatpush1.msra.mxu0 0.0
        %4627 = vmatprep.subr.mxu0 0.0
        %4628 = vmatpush1.msra.mxu0 0.0
        %4629 = vmatprep.subr.mxu0 %v4256
        %4630 = vmatpush1.msra.mxu0 %v4253
        %4631 = vmatprep.subr.mxu0 %v4233
        %4632 = vmatpush1.msra.mxu0 %v4232
        %4633 = vmatprep.subr.mxu0 %v4227
        %4634 = vmatpush1.msra.mxu0 %v4226
        %4635 = vmatprep.subr.mxu0 %v4221
        %4636 = vmatpush1.msra.mxu0 %v4220
        %4637 = vmatprep.subr.mxu0 %v4215
        %4638 = vmatpush1.msra.mxu0 %v4214
        %4639 = vmatprep.subr.mxu0 %v4209
        %4640 = vmatpush1.msra.mxu0 %v4208
        %4641 = vmatprep.subr.mxu0 %v4203
        %4642 = vmatpush1.msra.mxu0 %v4202
        %4643 = vmatprep.subr.mxu0 %v4197
        %4644 = vmatpush1.msra.mxu0 %v4196
        %4645 = vmatprep.subr.mxu0 %v4191
        %4646 = vmatpush1.msra.mxu0 %v4190
        %4647 = vmatprep.subr.mxu0 %v4185
        %4648 = vmatpush1.msra.mxu0 %v4184
        %4649 = vmatprep.subr.mxu0 %v4179
        %4650 = vmatpush1.msra.mxu0 %v4178
        %4651 = vmatprep.subr.mxu0 0.0
        %4652 = vmatpush2.msra.mxu0 0.0
        %4653 = vmatprep.subr.mxu0 0.0
        %4654 = vmatpush2.msra.mxu0 0.0
        %4655 = vmatprep.subr.mxu0 0.0
        %4656 = vmatpush2.msra.mxu0 0.0
        %4657 = vmatprep.subr.mxu0 0.0
        %4658 = vmatpush2.msra.mxu0 0.0
        %4659 = vmatprep.subr.mxu0 0.0
        %4660 = vmatpush2.msra.mxu0 0.0
        %4661 = vmatprep.subr.mxu0 0.0
        %4662 = vmatpush2.msra.mxu0 0.0
        %4663 = vmatprep.subr.mxu0 0.0
        %4664 = vmatpush2.msra.mxu0 0.0
        %4665 = vmatprep.subr.mxu0 0.0
        %4666 = vmatpush2.msra.mxu0 0.0
        %4667 = vmatprep.subr.mxu0 0.0
        %4668 = vmatpush2.msra.mxu0 0.0
        %4669 = vmatprep.subr.mxu0 0.0
        %4670 = vmatpush2.msra.mxu0 0.0
        %4671 = vmatprep.subr.mxu0 0.0
        %4672 = vmatpush2.msra.mxu0 0.0
        %4673 = vmatprep.subr.mxu0 0.0
        %4674 = vmatpush2.msra.mxu0 0.0
        %4675 = vmatprep.subr.mxu0 0.0
        %4676 = vmatpush2.msra.mxu0 0.0
        %4677 = vmatprep.subr.mxu0 0.0
        %4678 = vmatpush2.msra.mxu0 0.0
        %4679 = vmatprep.subr.mxu0 0.0
        %4680 = vmatpush2.msra.mxu0 0.0
        %4681 = vmatprep.subr.mxu0 0.0
        %4682 = vmatpush2.msra.mxu0 0.0
        %4683 = vmatprep.mubr.f32.mxu0 0.0
        %4684 = vmatmul.mubr.f32.gmra.mxu0 %v2987
        %v4685 = vpop.f32.mrf.mxu0
        %v4686 = vadd.f32 0.0, %v4685
        %v4687 = vpop.f32.mrf.mxu0
        %v4688 = vadd.f32 0.0, %v4687
        %4689 = vdwg.mxu0
        %v4690 = vadd.f32 %v3725, %v4544
        %v4691 = vadd.f32 %v3726, %v4546
        %v4692 = vadd.f32 %v3727, %v4615
        %v4693 = vadd.f32 %v3728, %v4617
        %v4694 = vadd.f32 %v3729, %v4686
        %v4695 = vadd.f32 %v3730, %v4688
        %4696 = vmatprep.subr.mxu0 0.0
        %4697 = vmatpush1.msra.mxu0 0.0
        %4698 = vmatprep.subr.mxu0 0.0
        %4699 = vmatpush1.msra.mxu0 0.0
        %4700 = vmatprep.subr.mxu0 0.0
        %4701 = vmatpush1.msra.mxu0 0.0
        %4702 = vmatprep.subr.mxu0 0.0
        %4703 = vmatpush1.msra.mxu0 0.0
        %4704 = vmatprep.subr.mxu0 0.0
        %4705 = vmatpush1.msra.mxu0 0.0
        %4706 = vmatprep.subr.mxu0 %v4244
        %4707 = vmatpush1.msra.mxu0 %v4241
        %4708 = vmatprep.subr.mxu0 %v4229
        %4709 = vmatpush1.msra.mxu0 %v4228
        %4710 = vmatprep.subr.mxu0 %v4223
        %4711 = vmatpush1.msra.mxu0 %v4222
        %4712 = vmatprep.subr.mxu0 %v4217
        %4713 = vmatpush1.msra.mxu0 %v4216
        %4714 = vmatprep.subr.mxu0 %v4211
        %4715 = vmatpush1.msra.mxu0 %v4210
        %4716 = vmatprep.subr.mxu0 %v4205
        %4717 = vmatpush1.msra.mxu0 %v4204
        %4718 = vmatprep.subr.mxu0 %v4199
        %4719 = vmatpush1.msra.mxu0 %v4198
        %4720 = vmatprep.subr.mxu0 %v4193
        %4721 = vmatpush1.msra.mxu0 %v4192
        %4722 = vmatprep.subr.mxu0 %v4187
        %4723 = vmatpush1.msra.mxu0 %v4186
        %4724 = vmatprep.subr.mxu0 %v4181
        %4725 = vmatpush1.msra.mxu0 %v4180
        %4726 = vmatprep.subr.mxu0 %v4175
        %4727 = vmatpush1.msra.mxu0 %v4174
        %4728 = vmatprep.subr.mxu0 0.0
        %4729 = vmatpush2.msra.mxu0 0.0
        %4730 = vmatprep.subr.mxu0 0.0
        %4731 = vmatpush2.msra.mxu0 0.0
        %4732 = vmatprep.subr.mxu0 0.0
        %4733 = vmatpush2.msra.mxu0 0.0
        %4734 = vmatprep.subr.mxu0 0.0
        %4735 = vmatpush2.msra.mxu0 0.0
        %4736 = vmatprep.subr.mxu0 0.0
        %4737 = vmatpush2.msra.mxu0 0.0
        %4738 = vmatprep.subr.mxu0 0.0
        %4739 = vmatpush2.msra.mxu0 0.0
        %4740 = vmatprep.subr.mxu0 0.0
        %4741 = vmatpush2.msra.mxu0 0.0
        %4742 = vmatprep.subr.mxu0 0.0
        %4743 = vmatpush2.msra.mxu0 0.0
        %4744 = vmatprep.subr.mxu0 0.0
        %4745 = vmatpush2.msra.mxu0 0.0
        %4746 = vmatprep.subr.mxu0 0.0
        %4747 = vmatpush2.msra.mxu0 0.0
        %4748 = vmatprep.subr.mxu0 0.0
        %4749 = vmatpush2.msra.mxu0 0.0
        %4750 = vmatprep.subr.mxu0 0.0
        %4751 = vmatpush2.msra.mxu0 0.0
        %4752 = vmatprep.subr.mxu0 0.0
        %4753 = vmatpush2.msra.mxu0 0.0
        %4754 = vmatprep.subr.mxu0 0.0
        %4755 = vmatpush2.msra.mxu0 0.0
        %4756 = vmatprep.subr.mxu0 0.0
        %4757 = vmatpush2.msra.mxu0 0.0
        %4758 = vmatprep.subr.mxu0 0.0
        %4759 = vmatpush2.msra.mxu0 0.0
        %4760 = vmatprep.mubr.f32.mxu0 0.0
        %4761 = vmatmul.mubr.f32.gmra.mxu0 %v3952
        %v4762 = vpop.f32.mrf.mxu0
        %v4763 = vadd.f32 0.0, %v4762
        %v4764 = vpop.f32.mrf.mxu0
        %v4765 = vadd.f32 0.0, %v4764
        %4766 = vdwg.mxu0
        %4767 = vmatprep.subr.mxu0 0.0
        %4768 = vmatpush1.msra.mxu0 0.0
        %4769 = vmatprep.subr.mxu0 0.0
        %4770 = vmatpush1.msra.mxu0 0.0
        %4771 = vmatprep.subr.mxu0 0.0
        %4772 = vmatpush1.msra.mxu0 0.0
        %4773 = vmatprep.subr.mxu0 0.0
        %4774 = vmatpush1.msra.mxu0 0.0
        %4775 = vmatprep.subr.mxu0 0.0
        %4776 = vmatpush1.msra.mxu0 0.0
        %4777 = vmatprep.subr.mxu0 %v4250
        %4778 = vmatpush1.msra.mxu0 %v4247
        %4779 = vmatprep.subr.mxu0 %v4231
        %4780 = vmatpush1.msra.mxu0 %v4230
        %4781 = vmatprep.subr.mxu0 %v4225
        %4782 = vmatpush1.msra.mxu0 %v4224
        %4783 = vmatprep.subr.mxu0 %v4219
        %4784 = vmatpush1.msra.mxu0 %v4218
        %4785 = vmatprep.subr.mxu0 %v4213
        %4786 = vmatpush1.msra.mxu0 %v4212
        %4787 = vmatprep.subr.mxu0 %v4207
        %4788 = vmatpush1.msra.mxu0 %v4206
        %4789 = vmatprep.subr.mxu0 %v4201
        %4790 = vmatpush1.msra.mxu0 %v4200
        %4791 = vmatprep.subr.mxu0 %v4195
        %4792 = vmatpush1.msra.mxu0 %v4194
        %4793 = vmatprep.subr.mxu0 %v4189
        %4794 = vmatpush1.msra.mxu0 %v4188
        %4795 = vmatprep.subr.mxu0 %v4183
        %4796 = vmatpush1.msra.mxu0 %v4182
        %4797 = vmatprep.subr.mxu0 %v4177
        %4798 = vmatpush1.msra.mxu0 %v4176
        %4799 = vmatprep.subr.mxu0 0.0
        %4800 = vmatpush2.msra.mxu0 0.0
        %4801 = vmatprep.subr.mxu0 0.0
        %4802 = vmatpush2.msra.mxu0 0.0
        %4803 = vmatprep.subr.mxu0 0.0
        %4804 = vmatpush2.msra.mxu0 0.0
        %4805 = vmatprep.subr.mxu0 0.0
        %4806 = vmatpush2.msra.mxu0 0.0
        %4807 = vmatprep.subr.mxu0 0.0
        %4808 = vmatpush2.msra.mxu0 0.0
        %4809 = vmatprep.subr.mxu0 0.0
        %4810 = vmatpush2.msra.mxu0 0.0
        %4811 = vmatprep.subr.mxu0 0.0
        %4812 = vmatpush2.msra.mxu0 0.0
        %4813 = vmatprep.subr.mxu0 0.0
        %4814 = vmatpush2.msra.mxu0 0.0
        %4815 = vmatprep.subr.mxu0 0.0
        %4816 = vmatpush2.msra.mxu0 0.0
        %4817 = vmatprep.subr.mxu0 0.0
        %4818 = vmatpush2.msra.mxu0 0.0
        %4819 = vmatprep.subr.mxu0 0.0
        %4820 = vmatpush2.msra.mxu0 0.0
        %4821 = vmatprep.subr.mxu0 0.0
        %4822 = vmatpush2.msra.mxu0 0.0
        %4823 = vmatprep.subr.mxu0 0.0
        %4824 = vmatpush2.msra.mxu0 0.0
        %4825 = vmatprep.subr.mxu0 0.0
        %4826 = vmatpush2.msra.mxu0 0.0
        %4827 = vmatprep.subr.mxu0 0.0
        %4828 = vmatpush2.msra.mxu0 0.0
        %4829 = vmatprep.subr.mxu0 0.0
        %4830 = vmatpush2.msra.mxu0 0.0
        %4831 = vmatprep.mubr.f32.mxu0 0.0
        %4832 = vmatmul.mubr.f32.gmra.mxu0 %v3952
        %v4833 = vpop.f32.mrf.mxu0
        %v4834 = vadd.f32 0.0, %v4833
        %v4835 = vpop.f32.mrf.mxu0
        %v4836 = vadd.f32 0.0, %v4835
        %4837 = vdwg.mxu0
        %4838 = vmatprep.subr.mxu0 0.0
        %4839 = vmatpush1.msra.mxu0 0.0
        %4840 = vmatprep.subr.mxu0 0.0
        %4841 = vmatpush1.msra.mxu0 0.0
        %4842 = vmatprep.subr.mxu0 0.0
        %4843 = vmatpush1.msra.mxu0 0.0
        %4844 = vmatprep.subr.mxu0 0.0
        %4845 = vmatpush1.msra.mxu0 0.0
        %4846 = vmatprep.subr.mxu0 0.0
        %4847 = vmatpush1.msra.mxu0 0.0
        %4848 = vmatprep.subr.mxu0 %v4256
        %4849 = vmatpush1.msra.mxu0 %v4253
        %4850 = vmatprep.subr.mxu0 %v4233
        %4851 = vmatpush1.msra.mxu0 %v4232
        %4852 = vmatprep.subr.mxu0 %v4227
        %4853 = vmatpush1.msra.mxu0 %v4226
        %4854 = vmatprep.subr.mxu0 %v4221
        %4855 = vmatpush1.msra.mxu0 %v4220
        %4856 = vmatprep.subr.mxu0 %v4215
        %4857 = vmatpush1.msra.mxu0 %v4214
        %4858 = vmatprep.subr.mxu0 %v4209
        %4859 = vmatpush1.msra.mxu0 %v4208
        %4860 = vmatprep.subr.mxu0 %v4203
        %4861 = vmatpush1.msra.mxu0 %v4202
        %4862 = vmatprep.subr.mxu0 %v4197
        %4863 = vmatpush1.msra.mxu0 %v4196
        %4864 = vmatprep.subr.mxu0 %v4191
        %4865 = vmatpush1.msra.mxu0 %v4190
        %4866 = vmatprep.subr.mxu0 %v4185
        %4867 = vmatpush1.msra.mxu0 %v4184
        %4868 = vmatprep.subr.mxu0 %v4179
        %4869 = vmatpush1.msra.mxu0 %v4178
        %4870 = vmatprep.subr.mxu0 0.0
        %4871 = vmatpush2.msra.mxu0 0.0
        %4872 = vmatprep.subr.mxu0 0.0
        %4873 = vmatpush2.msra.mxu0 0.0
        %4874 = vmatprep.subr.mxu0 0.0
        %4875 = vmatpush2.msra.mxu0 0.0
        %4876 = vmatprep.subr.mxu0 0.0
        %4877 = vmatpush2.msra.mxu0 0.0
        %4878 = vmatprep.subr.mxu0 0.0
        %4879 = vmatpush2.msra.mxu0 0.0
        %4880 = vmatprep.subr.mxu0 0.0
        %4881 = vmatpush2.msra.mxu0 0.0
        %4882 = vmatprep.subr.mxu0 0.0
        %4883 = vmatpush2.msra.mxu0 0.0
        %4884 = vmatprep.subr.mxu0 0.0
        %4885 = vmatpush2.msra.mxu0 0.0
        %4886 = vmatprep.subr.mxu0 0.0
        %4887 = vmatpush2.msra.mxu0 0.0
        %4888 = vmatprep.subr.mxu0 0.0
        %4889 = vmatpush2.msra.mxu0 0.0
        %4890 = vmatprep.subr.mxu0 0.0
        %4891 = vmatpush2.msra.mxu0 0.0
        %4892 = vmatprep.subr.mxu0 0.0
        %4893 = vmatpush2.msra.mxu0 0.0
        %4894 = vmatprep.subr.mxu0 0.0
        %4895 = vmatpush2.msra.mxu0 0.0
        %4896 = vmatprep.subr.mxu0 0.0
        %4897 = vmatpush2.msra.mxu0 0.0
        %4898 = vmatprep.subr.mxu0 0.0
        %4899 = vmatpush2.msra.mxu0 0.0
        %4900 = vmatprep.subr.mxu0 0.0
        %4901 = vmatpush2.msra.mxu0 0.0
        %4902 = vmatprep.mubr.f32.mxu0 0.0
        %4903 = vmatmul.mubr.f32.gmra.mxu0 %v3952
        %v4904 = vpop.f32.mrf.mxu0
        %v4905 = vadd.f32 0.0, %v4904
        %v4906 = vpop.f32.mrf.mxu0
        %v4907 = vadd.f32 0.0, %v4906
        %4908 = vdwg.mxu0
        %v4909 = vadd.f32 %v3944, %v4763
        %v4910 = vadd.f32 %v3945, %v4765
        %v4911 = vadd.f32 %v3946, %v4834
        %v4912 = vadd.f32 %v3947, %v4836
        %v4913 = vadd.f32 %v3948, %v4905
        %v4914 = vadd.f32 %v3949, %v4907
        %v4915 = vld [vmem:[%s416 + $0x1] sm:$0x3f]
        %v4917 = vsel %vm485, %v4915, 0
        %4919 = vmatprep.subr.mxu0 0.0
        %4920 = vmatpush1.msra.mxu0 0.0
        %4921 = vmatprep.subr.mxu0 0.0
        %4922 = vmatpush1.msra.mxu0 0.0
        %4923 = vmatprep.subr.mxu0 0.0
        %4924 = vmatpush1.msra.mxu0 0.0
        %4925 = vmatprep.subr.mxu0 0.0
        %4926 = vmatpush1.msra.mxu0 0.0
        %4927 = vmatprep.subr.mxu0 0.0
        %4928 = vmatpush1.msra.mxu0 0.0
        %4929 = vmatprep.subr.mxu0 %v4244
        %4930 = vmatpush1.msra.mxu0 %v4241
        %4931 = vmatprep.subr.mxu0 %v4229
        %4932 = vmatpush1.msra.mxu0 %v4228
        %4933 = vmatprep.subr.mxu0 %v4223
        %4934 = vmatpush1.msra.mxu0 %v4222
        %4935 = vmatprep.subr.mxu0 %v4217
        %4936 = vmatpush1.msra.mxu0 %v4216
        %4937 = vmatprep.subr.mxu0 %v4211
        %4938 = vmatpush1.msra.mxu0 %v4210
        %4939 = vmatprep.subr.mxu0 %v4205
        %4940 = vmatpush1.msra.mxu0 %v4204
        %4941 = vmatprep.subr.mxu0 %v4199
        %4942 = vmatpush1.msra.mxu0 %v4198
        %4943 = vmatprep.subr.mxu0 %v4193
        %4944 = vmatpush1.msra.mxu0 %v4192
        %4945 = vmatprep.subr.mxu0 %v4187
        %4946 = vmatpush1.msra.mxu0 %v4186
        %4947 = vmatprep.subr.mxu0 %v4181
        %4948 = vmatpush1.msra.mxu0 %v4180
        %4949 = vmatprep.subr.mxu0 %v4175
        %4950 = vmatpush1.msra.mxu0 %v4174
        %4951 = vmatprep.subr.mxu0 0.0
        %4952 = vmatpush2.msra.mxu0 0.0
        %4953 = vmatprep.subr.mxu0 0.0
        %4954 = vmatpush2.msra.mxu0 0.0
        %4955 = vmatprep.subr.mxu0 0.0
        %4956 = vmatpush2.msra.mxu0 0.0
        %4957 = vmatprep.subr.mxu0 0.0
        %4958 = vmatpush2.msra.mxu0 0.0
        %4959 = vmatprep.subr.mxu0 0.0
        %4960 = vmatpush2.msra.mxu0 0.0
        %4961 = vmatprep.subr.mxu0 0.0
        %4962 = vmatpush2.msra.mxu0 0.0
        %4963 = vmatprep.subr.mxu0 0.0
        %4964 = vmatpush2.msra.mxu0 0.0
        %4965 = vmatprep.subr.mxu0 0.0
        %4966 = vmatpush2.msra.mxu0 0.0
        %4967 = vmatprep.subr.mxu0 0.0
        %4968 = vmatpush2.msra.mxu0 0.0
        %4969 = vmatprep.subr.mxu0 0.0
        %4970 = vmatpush2.msra.mxu0 0.0
        %4971 = vmatprep.subr.mxu0 0.0
        %4972 = vmatpush2.msra.mxu0 0.0
        %4973 = vmatprep.subr.mxu0 0.0
        %4974 = vmatpush2.msra.mxu0 0.0
        %4975 = vmatprep.subr.mxu0 0.0
        %4976 = vmatpush2.msra.mxu0 0.0
        %4977 = vmatprep.subr.mxu0 0.0
        %4978 = vmatpush2.msra.mxu0 0.0
        %4979 = vmatprep.subr.mxu0 0.0
        %4980 = vmatpush2.msra.mxu0 0.0
        %4981 = vmatprep.subr.mxu0 0.0
        %4982 = vmatpush2.msra.mxu0 0.0
        %4983 = vmatprep.mubr.f32.mxu0 0.0
        %4984 = vmatmul.mubr.f32.gmra.mxu0 %v4917
        %v4985 = vpop.f32.mrf.mxu0
        %v4986 = vadd.f32 0.0, %v4985
        %v4987 = vpop.f32.mrf.mxu0
        %v4988 = vadd.f32 0.0, %v4987
        %4989 = vdwg.mxu0
        %4990 = vmatprep.subr.mxu0 0.0
        %4991 = vmatpush1.msra.mxu0 0.0
        %4992 = vmatprep.subr.mxu0 0.0
        %4993 = vmatpush1.msra.mxu0 0.0
        %4994 = vmatprep.subr.mxu0 0.0
        %4995 = vmatpush1.msra.mxu0 0.0
        %4996 = vmatprep.subr.mxu0 0.0
        %4997 = vmatpush1.msra.mxu0 0.0
        %4998 = vmatprep.subr.mxu0 0.0
        %4999 = vmatpush1.msra.mxu0 0.0
        %5000 = vmatprep.subr.mxu0 %v4250
        %5001 = vmatpush1.msra.mxu0 %v4247
        %5002 = vmatprep.subr.mxu0 %v4231
        %5003 = vmatpush1.msra.mxu0 %v4230
        %5004 = vmatprep.subr.mxu0 %v4225
        %5005 = vmatpush1.msra.mxu0 %v4224
        %5006 = vmatprep.subr.mxu0 %v4219
        %5007 = vmatpush1.msra.mxu0 %v4218
        %5008 = vmatprep.subr.mxu0 %v4213
        %5009 = vmatpush1.msra.mxu0 %v4212
        %5010 = vmatprep.subr.mxu0 %v4207
        %5011 = vmatpush1.msra.mxu0 %v4206
        %5012 = vmatprep.subr.mxu0 %v4201
        %5013 = vmatpush1.msra.mxu0 %v4200
        %5014 = vmatprep.subr.mxu0 %v4195
        %5015 = vmatpush1.msra.mxu0 %v4194
        %5016 = vmatprep.subr.mxu0 %v4189
        %5017 = vmatpush1.msra.mxu0 %v4188
        %5018 = vmatprep.subr.mxu0 %v4183
        %5019 = vmatpush1.msra.mxu0 %v4182
        %5020 = vmatprep.subr.mxu0 %v4177
        %5021 = vmatpush1.msra.mxu0 %v4176
        %5022 = vmatprep.subr.mxu0 0.0
        %5023 = vmatpush2.msra.mxu0 0.0
        %5024 = vmatprep.subr.mxu0 0.0
        %5025 = vmatpush2.msra.mxu0 0.0
        %5026 = vmatprep.subr.mxu0 0.0
        %5027 = vmatpush2.msra.mxu0 0.0
        %5028 = vmatprep.subr.mxu0 0.0
        %5029 = vmatpush2.msra.mxu0 0.0
        %5030 = vmatprep.subr.mxu0 0.0
        %5031 = vmatpush2.msra.mxu0 0.0
        %5032 = vmatprep.subr.mxu0 0.0
        %5033 = vmatpush2.msra.mxu0 0.0
        %5034 = vmatprep.subr.mxu0 0.0
        %5035 = vmatpush2.msra.mxu0 0.0
        %5036 = vmatprep.subr.mxu0 0.0
        %5037 = vmatpush2.msra.mxu0 0.0
        %5038 = vmatprep.subr.mxu0 0.0
        %5039 = vmatpush2.msra.mxu0 0.0
        %5040 = vmatprep.subr.mxu0 0.0
        %5041 = vmatpush2.msra.mxu0 0.0
        %5042 = vmatprep.subr.mxu0 0.0
        %5043 = vmatpush2.msra.mxu0 0.0
        %5044 = vmatprep.subr.mxu0 0.0
        %5045 = vmatpush2.msra.mxu0 0.0
        %5046 = vmatprep.subr.mxu0 0.0
        %5047 = vmatpush2.msra.mxu0 0.0
        %5048 = vmatprep.subr.mxu0 0.0
        %5049 = vmatpush2.msra.mxu0 0.0
        %5050 = vmatprep.subr.mxu0 0.0
        %5051 = vmatpush2.msra.mxu0 0.0
        %5052 = vmatprep.subr.mxu0 0.0
        %5053 = vmatpush2.msra.mxu0 0.0
        %5054 = vmatprep.mubr.f32.mxu0 0.0
        %5055 = vmatmul.mubr.f32.gmra.mxu0 %v4917
        %v5056 = vpop.f32.mrf.mxu0
        %v5057 = vadd.f32 0.0, %v5056
        %v5058 = vpop.f32.mrf.mxu0
        %v5059 = vadd.f32 0.0, %v5058
        %5060 = vdwg.mxu0
        %5061 = vmatprep.subr.mxu0 0.0
        %5062 = vmatpush1.msra.mxu0 0.0
        %5063 = vmatprep.subr.mxu0 0.0
        %5064 = vmatpush1.msra.mxu0 0.0
        %5065 = vmatprep.subr.mxu0 0.0
        %5066 = vmatpush1.msra.mxu0 0.0
        %5067 = vmatprep.subr.mxu0 0.0
        %5068 = vmatpush1.msra.mxu0 0.0
        %5069 = vmatprep.subr.mxu0 0.0
        %5070 = vmatpush1.msra.mxu0 0.0
        %5071 = vmatprep.subr.mxu0 %v4256
        %5072 = vmatpush1.msra.mxu0 %v4253
        %5073 = vmatprep.subr.mxu0 %v4233
        %5074 = vmatpush1.msra.mxu0 %v4232
        %5075 = vmatprep.subr.mxu0 %v4227
        %5076 = vmatpush1.msra.mxu0 %v4226
        %5077 = vmatprep.subr.mxu0 %v4221
        %5078 = vmatpush1.msra.mxu0 %v4220
        %5079 = vmatprep.subr.mxu0 %v4215
        %5080 = vmatpush1.msra.mxu0 %v4214
        %5081 = vmatprep.subr.mxu0 %v4209
        %5082 = vmatpush1.msra.mxu0 %v4208
        %5083 = vmatprep.subr.mxu0 %v4203
        %5084 = vmatpush1.msra.mxu0 %v4202
        %5085 = vmatprep.subr.mxu0 %v4197
        %5086 = vmatpush1.msra.mxu0 %v4196
        %5087 = vmatprep.subr.mxu0 %v4191
        %5088 = vmatpush1.msra.mxu0 %v4190
        %5089 = vmatprep.subr.mxu0 %v4185
        %5090 = vmatpush1.msra.mxu0 %v4184
        %5091 = vmatprep.subr.mxu0 %v4179
        %5092 = vmatpush1.msra.mxu0 %v4178
        %5093 = vmatprep.subr.mxu0 0.0
        %5094 = vmatpush2.msra.mxu0 0.0
        %5095 = vmatprep.subr.mxu0 0.0
        %5096 = vmatpush2.msra.mxu0 0.0
        %5097 = vmatprep.subr.mxu0 0.0
        %5098 = vmatpush2.msra.mxu0 0.0
        %5099 = vmatprep.subr.mxu0 0.0
        %5100 = vmatpush2.msra.mxu0 0.0
        %5101 = vmatprep.subr.mxu0 0.0
        %5102 = vmatpush2.msra.mxu0 0.0
        %5103 = vmatprep.subr.mxu0 0.0
        %5104 = vmatpush2.msra.mxu0 0.0
        %5105 = vmatprep.subr.mxu0 0.0
        %5106 = vmatpush2.msra.mxu0 0.0
        %5107 = vmatprep.subr.mxu0 0.0
        %5108 = vmatpush2.msra.mxu0 0.0
        %5109 = vmatprep.subr.mxu0 0.0
        %5110 = vmatpush2.msra.mxu0 0.0
        %5111 = vmatprep.subr.mxu0 0.0
        %5112 = vmatpush2.msra.mxu0 0.0
        %5113 = vmatprep.subr.mxu0 0.0
        %5114 = vmatpush2.msra.mxu0 0.0
        %5115 = vmatprep.subr.mxu0 0.0
        %5116 = vmatpush2.msra.mxu0 0.0
        %5117 = vmatprep.subr.mxu0 0.0
        %5118 = vmatpush2.msra.mxu0 0.0
        %5119 = vmatprep.subr.mxu0 0.0
        %5120 = vmatpush2.msra.mxu0 0.0
        %5121 = vmatprep.subr.mxu0 0.0
        %5122 = vmatpush2.msra.mxu0 0.0
        %5123 = vmatprep.subr.mxu0 0.0
        %5124 = vmatpush2.msra.mxu0 0.0
        %5125 = vmatprep.mubr.f32.mxu0 0.0
        %5126 = vmatmul.mubr.f32.gmra.mxu0 %v4917
        %v5127 = vpop.f32.mrf.mxu0
        %v5128 = vadd.f32 0.0, %v5127
        %v5129 = vpop.f32.mrf.mxu0
        %v5130 = vadd.f32 0.0, %v5129
        %5131 = vdwg.mxu0
        %v5132 = vadd.f32 %v4167, %v4986
        %v5133 = vadd.f32 %v4168, %v4988
        %v5134 = vadd.f32 %v4169, %v5057
        %v5135 = vadd.f32 %v4170, %v5059
        %v5136 = vadd.f32 %v4171, %v5128
        %v5137 = vadd.f32 %v4172, %v5130
        %v5138 = vmax.f32 %v4471, %v4690
        %v5139 = vmax.f32 %v4472, %v4691
        %v5140 = vmax.f32 %v4473, %v4692
        %v5141 = vmax.f32 %v4474, %v4693
        %v5142 = vmax.f32 %v4475, %v4694
        %v5143 = vmax.f32 %v4476, %v4695
        %v5144 = vmax.f32 %v4909, %v5132
        %v5145 = vmax.f32 %v4910, %v5133
        %v5146 = vmax.f32 %v4911, %v5134
        %v5147 = vmax.f32 %v4912, %v5135
        %v5148 = vmax.f32 %v4913, %v5136
        %v5149 = vmax.f32 %v4914, %v5137
        %v5150 = vmax.f32 %v5138, %v5141
        %v5151 = vmax.f32 %v5139, %v5142
        %v5152 = vmax.f32 %v5140, %v5143
        %v5153 = vld [vmem:[%s2] sm:$0x7]
        %v5155 = vlaneseq
        %v5156 = vshrl.u32 %v5155, 7
        %v5157 = vsub.s32 0, %v5156
        %v5158 = vrot.slane %v5153, %v5157
        %v5159 = vlaneseq
        %v5160 = vshrl.u32 %v5159, 7
        %v5161 = vsub.s32 1, %v5160
        %v5162 = vrot.slane %v5153, %v5161
        %v5163 = vlaneseq
        %v5164 = vshrl.u32 %v5163, 7
        %v5165 = vsub.s32 2, %v5164
        %v5166 = vrot.slane %v5153, %v5165
        %v5170 = vadd.f32 %v5150, %v5158
        %v5171 = vadd.f32 %v5151, %v5162
        %v5172 = vadd.f32 %v5152, %v5166
        %v5173 = vmax.f32 %v5170, 0.0
        %v5174 = vmax.f32 %v5171, 0.0
        %v5175 = vmax.f32 %v5172, 0.0
        %v5176 = vmax.f32 %v5144, %v5147
        %v5177 = vmax.f32 %v5145, %v5148
        %v5178 = vmax.f32 %v5146, %v5149
        %v5179 = vadd.f32 %v5176, %v5158
        %v5180 = vadd.f32 %v5177, %v5162
        %v5181 = vadd.f32 %v5178, %v5166
        %v5182 = vmax.f32 %v5179, 0.0
        %v5183 = vmax.f32 %v5180, 0.0
        %v5184 = vmax.f32 %v5181, 0.0
        %v5185 = vld [vmem:[%s3] sm:$0xff]
        %v5186 = vld [vmem:[%s3 + $0x8] sm:$0xff]
        %v5187 = vld [vmem:[%s3 + $0x10] sm:$0xff]
        %v5188 = vld [vmem:[%s3 + $0x18] sm:$0xff]
        %v5189 = vld [vmem:[%s3 + $0x20] sm:$0xff]
        %v5190 = vld [vmem:[%s3 + $0x28] sm:$0xff]
        %v5191 = vld [vmem:[%s3 + $0x30] sm:$0xff]
        %v5192 = vld [vmem:[%s3 + $0x38] sm:$0xff]
        %v5193 = vld [vmem:[%s3 + $0x40] sm:$0xff]
        %v5194 = vld [vmem:[%s3 + $0x48] sm:$0xff]
        %v5195 = vld [vmem:[%s3 + $0x50] sm:$0xff]
        %v5196 = vld [vmem:[%s3 + $0x58] sm:$0xff]
        %v5197 = vld [vmem:[%s3 + $0x60] sm:$0xff]
        %v5198 = vld [vmem:[%s3 + $0x68] sm:$0xff]
        %v5199 = vld [vmem:[%s3 + $0x70] sm:$0xff]
        %v5200 = vld [vmem:[%s3 + $0x78] sm:$0xff]
        %v5201 = vld [vmem:[%s3 + $0x80] sm:$0xff]
        %v5202 = vld [vmem:[%s3 + $0x88] sm:$0xff]
        %v5203 = vld [vmem:[%s3 + $0x90] sm:$0xff]
        %v5204 = vld [vmem:[%s3 + $0x98] sm:$0xff]
        %v5205 = vld [vmem:[%s3 + $0xa0] sm:$0xff]
        %v5206 = vld [vmem:[%s3 + $0xa8] sm:$0xff]
        %v5207 = vld [vmem:[%s3 + $0xb0] sm:$0xff]
        %v5208 = vld [vmem:[%s3 + $0xb8] sm:$0xff]
        %v5209 = vld [vmem:[%s3 + $0xc0] sm:$0xff]
        %v5210 = vld [vmem:[%s3 + $0xc8] sm:$0xff]
        %v5211 = vld [vmem:[%s3 + $0xd0] sm:$0xff]
        %v5212 = vld [vmem:[%s3 + $0xd8] sm:$0xff]
        %v5213 = vld [vmem:[%s3 + $0xe0] sm:$0xff]
        %v5214 = vld [vmem:[%s3 + $0xe8] sm:$0xff]
        %v5215 = vld [vmem:[%s3 + $0xf0] sm:$0xff]
        %v5216 = vld [vmem:[%s3 + $0xf8] sm:$0xff]
        %v5217 = vld [vmem:[%s3 + $0x100] sm:$0xff]
        %v5218 = vld [vmem:[%s3 + $0x108] sm:$0xff]
        %v5219 = vld [vmem:[%s3 + $0x110] sm:$0xff]
        %v5220 = vld [vmem:[%s3 + $0x118] sm:$0xff]
        %v5221 = vld [vmem:[%s3 + $0x120] sm:$0xff]
        %v5222 = vld [vmem:[%s3 + $0x128] sm:$0xff]
        %v5223 = vld [vmem:[%s3 + $0x130] sm:$0xff]
        %v5224 = vld [vmem:[%s3 + $0x138] sm:$0xff]
        %v5225 = vld [vmem:[%s3 + $0x140] sm:$0xff]
        %v5226 = vld [vmem:[%s3 + $0x148] sm:$0xff]
        %v5227 = vld [vmem:[%s3 + $0x150] sm:$0xff]
        %v5228 = vld [vmem:[%s3 + $0x158] sm:$0xff]
        %v5229 = vld [vmem:[%s3 + $0x160] sm:$0xff]
        %v5230 = vld [vmem:[%s3 + $0x168] sm:$0xff]
        %v5231 = vld [vmem:[%s3 + $0x170] sm:$0xff]
        %v5232 = vld [vmem:[%s3 + $0x178] sm:$0xff]
        %v5233 = vld [vmem:[%s3 + $0x180] sm:$0xff]
        %v5234 = vld [vmem:[%s3 + $0x188] sm:$0xff]
        %v5235 = vld [vmem:[%s3 + $0x190] sm:$0xff]
        %v5236 = vld [vmem:[%s3 + $0x198] sm:$0xff]
        %v5237 = vld [vmem:[%s3 + $0x1a0] sm:$0xff]
        %v5238 = vld [vmem:[%s3 + $0x1a8] sm:$0xff]
        %v5239 = vld [vmem:[%s3 + $0x1b0] sm:$0xff]
        %v5240 = vld [vmem:[%s3 + $0x1b8] sm:$0xff]
        %v5241 = vld [vmem:[%s3 + $0x1c0] sm:$0xff]
        %v5242 = vld [vmem:[%s3 + $0x1c8] sm:$0xff]
        %v5243 = vld [vmem:[%s3 + $0x1d0] sm:$0xff]
        %v5244 = vld [vmem:[%s3 + $0x1d8] sm:$0xff]
        %v5245 = vld [vmem:[%s3 + $0x1e0] sm:$0xff]
        %v5246 = vld [vmem:[%s3 + $0x1e8] sm:$0xff]
        %v5247 = vld [vmem:[%s3 + $0x1f0] sm:$0xff]
        %v5248 = vld [vmem:[%s3 + $0x1f8] sm:$0xff]
        %v5249 = vld [vmem:[%s3 + $0x200] sm:$0xff]
        %v5250 = vld [vmem:[%s3 + $0x208] sm:$0xff]
        %v5251 = vld [vmem:[%s3 + $0x210] sm:$0xff]
        %v5252 = vld [vmem:[%s3 + $0x218] sm:$0xff]
        %v5253 = vld [vmem:[%s3 + $0x220] sm:$0xff]
        %v5254 = vld [vmem:[%s3 + $0x228] sm:$0xff]
        %v5255 = vld [vmem:[%s3 + $0x230] sm:$0xff]
        %v5256 = vld [vmem:[%s3 + $0x238] sm:$0xff]
        %v5257 = vld [vmem:[%s3 + $0x240] sm:$0xff]
        %v5258 = vld [vmem:[%s3 + $0x248] sm:$0xff]
        %v5259 = vld [vmem:[%s3 + $0x250] sm:$0xff]
        %v5260 = vld [vmem:[%s3 + $0x258] sm:$0xff]
        %v5261 = vld [vmem:[%s3 + $0x260] sm:$0xff]
        %v5262 = vld [vmem:[%s3 + $0x268] sm:$0xff]
        %v5263 = vld [vmem:[%s3 + $0x270] sm:$0xff]
        %v5264 = vld [vmem:[%s3 + $0x278] sm:$0xff]
        %v5265 = vld [vmem:[%s3 + $0x280] sm:$0xff]
        %v5266 = vld [vmem:[%s3 + $0x288] sm:$0xff]
        %v5267 = vld [vmem:[%s3 + $0x290] sm:$0xff]
        %v5268 = vld [vmem:[%s3 + $0x298] sm:$0xff]
        %v5269 = vld [vmem:[%s3 + $0x2a0] sm:$0xff]
        %v5270 = vld [vmem:[%s3 + $0x2a8] sm:$0xff]
        %v5271 = vld [vmem:[%s3 + $0x2b0] sm:$0xff]
        %v5272 = vld [vmem:[%s3 + $0x2b8] sm:$0xff]
        %v5273 = vld [vmem:[%s3 + $0x2c0] sm:$0xff]
        %v5274 = vld [vmem:[%s3 + $0x2c8] sm:$0xff]
        %v5275 = vld [vmem:[%s3 + $0x2d0] sm:$0xff]
        %v5276 = vld [vmem:[%s3 + $0x2d8] sm:$0xff]
        %v5277 = vld [vmem:[%s3 + $0x2e0] sm:$0xff]
        %v5278 = vld [vmem:[%s3 + $0x2e8] sm:$0xff]
        %v5279 = vld [vmem:[%s3 + $0x2f0] sm:$0xff]
        %v5280 = vld [vmem:[%s3 + $0x2f8] sm:$0xff]
        %s5281 = scalar_lea.vmem %s3, 768
        %v5282 = vld [vmem:[%s5281] sm:$0xff]
        %v5283 = vld [vmem:[%s5281 + $0x8] sm:$0xff]
        %v5284 = vld [vmem:[%s5281 + $0x10] sm:$0xff]
        %v5285 = vld [vmem:[%s5281 + $0x18] sm:$0xff]
        %v5286 = vld [vmem:[%s5281 + $0x20] sm:$0xff]
        %v5287 = vld [vmem:[%s5281 + $0x28] sm:$0xff]
        %v5288 = vld [vmem:[%s5281 + $0x30] sm:$0xff]
        %v5289 = vld [vmem:[%s5281 + $0x38] sm:$0xff]
        %v5290 = vld [vmem:[%s5281 + $0x40] sm:$0xff]
        %v5291 = vld [vmem:[%s5281 + $0x48] sm:$0xff]
        %v5292 = vld [vmem:[%s5281 + $0x50] sm:$0xff]
        %v5293 = vld [vmem:[%s5281 + $0x58] sm:$0xff]
        %v5294 = vld [vmem:[%s5281 + $0x60] sm:$0xff]
        %v5295 = vld [vmem:[%s5281 + $0x68] sm:$0xff]
        %v5296 = vld [vmem:[%s5281 + $0x70] sm:$0xff]
        %v5297 = vld [vmem:[%s5281 + $0x78] sm:$0xff]
        %v5298 = vld [vmem:[%s5281 + $0x80] sm:$0xff]
        %v5299 = vld [vmem:[%s5281 + $0x88] sm:$0xff]
        %v5300 = vld [vmem:[%s5281 + $0x90] sm:$0xff]
        %v5301 = vld [vmem:[%s5281 + $0x98] sm:$0xff]
        %v5302 = vld [vmem:[%s5281 + $0xa0] sm:$0xff]
        %v5303 = vld [vmem:[%s5281 + $0xa8] sm:$0xff]
        %v5304 = vld [vmem:[%s5281 + $0xb0] sm:$0xff]
        %v5305 = vld [vmem:[%s5281 + $0xb8] sm:$0xff]
        %v5306 = vld [vmem:[%s5281 + $0xc0] sm:$0xff]
        %v5307 = vld [vmem:[%s5281 + $0xc8] sm:$0xff]
        %v5308 = vld [vmem:[%s5281 + $0xd0] sm:$0xff]
        %v5309 = vld [vmem:[%s5281 + $0xd8] sm:$0xff]
        %v5310 = vld [vmem:[%s5281 + $0xe0] sm:$0xff]
        %v5311 = vld [vmem:[%s5281 + $0xe8] sm:$0xff]
        %v5312 = vld [vmem:[%s5281 + $0xf0] sm:$0xff]
        %v5313 = vld [vmem:[%s5281 + $0xf8] sm:$0xff]
        %v5314 = vld [vmem:[%s5281 + $0x100] sm:$0xff]
        %v5315 = vld [vmem:[%s5281 + $0x108] sm:$0xff]
        %v5316 = vld [vmem:[%s5281 + $0x110] sm:$0xff]
        %v5317 = vld [vmem:[%s5281 + $0x118] sm:$0xff]
        %v5318 = vld [vmem:[%s5281 + $0x120] sm:$0xff]
        %v5319 = vld [vmem:[%s5281 + $0x128] sm:$0xff]
        %v5320 = vld [vmem:[%s5281 + $0x130] sm:$0xff]
        %v5321 = vld [vmem:[%s5281 + $0x138] sm:$0xff]
        %v5322 = vld [vmem:[%s5281 + $0x140] sm:$0xff]
        %v5323 = vld [vmem:[%s5281 + $0x148] sm:$0xff]
        %v5324 = vld [vmem:[%s5281 + $0x150] sm:$0xff]
        %v5325 = vld [vmem:[%s5281 + $0x158] sm:$0xff]
        %v5326 = vld [vmem:[%s5281 + $0x160] sm:$0xff]
        %v5327 = vld [vmem:[%s5281 + $0x168] sm:$0xff]
        %v5328 = vld [vmem:[%s5281 + $0x170] sm:$0xff]
        %v5329 = vld [vmem:[%s5281 + $0x178] sm:$0xff]
        %v5330 = vld [vmem:[%s5281 + $0x180] sm:$0xff]
        %v5331 = vld [vmem:[%s5281 + $0x188] sm:$0xff]
        %v5332 = vld [vmem:[%s5281 + $0x190] sm:$0xff]
        %v5333 = vld [vmem:[%s5281 + $0x198] sm:$0xff]
        %v5334 = vld [vmem:[%s5281 + $0x1a0] sm:$0xff]
        %v5335 = vld [vmem:[%s5281 + $0x1a8] sm:$0xff]
        %v5336 = vld [vmem:[%s5281 + $0x1b0] sm:$0xff]
        %v5337 = vld [vmem:[%s5281 + $0x1b8] sm:$0xff]
        %v5338 = vld [vmem:[%s5281 + $0x1c0] sm:$0xff]
        %v5339 = vld [vmem:[%s5281 + $0x1c8] sm:$0xff]
        %v5340 = vld [vmem:[%s5281 + $0x1d0] sm:$0xff]
        %v5341 = vld [vmem:[%s5281 + $0x1d8] sm:$0xff]
        %v5342 = vld [vmem:[%s5281 + $0x1e0] sm:$0xff]
        %v5343 = vld [vmem:[%s5281 + $0x1e8] sm:$0xff]
        %v5344 = vld [vmem:[%s5281 + $0x1f0] sm:$0xff]
        %v5345 = vld [vmem:[%s5281 + $0x1f8] sm:$0xff]
        %v5346 = vld [vmem:[%s5281 + $0x200] sm:$0xff]
        %v5347 = vld [vmem:[%s5281 + $0x208] sm:$0xff]
        %v5348 = vld [vmem:[%s5281 + $0x210] sm:$0xff]
        %v5349 = vld [vmem:[%s5281 + $0x218] sm:$0xff]
        %v5350 = vld [vmem:[%s5281 + $0x220] sm:$0xff]
        %v5351 = vld [vmem:[%s5281 + $0x228] sm:$0xff]
        %v5352 = vld [vmem:[%s5281 + $0x230] sm:$0xff]
        %v5353 = vld [vmem:[%s5281 + $0x238] sm:$0xff]
        %v5354 = vld [vmem:[%s5281 + $0x240] sm:$0xff]
        %v5355 = vld [vmem:[%s5281 + $0x248] sm:$0xff]
        %v5356 = vld [vmem:[%s5281 + $0x250] sm:$0xff]
        %v5357 = vld [vmem:[%s5281 + $0x258] sm:$0xff]
        %v5358 = vld [vmem:[%s5281 + $0x260] sm:$0xff]
        %v5359 = vld [vmem:[%s5281 + $0x268] sm:$0xff]
        %v5360 = vld [vmem:[%s5281 + $0x270] sm:$0xff]
        %v5361 = vld [vmem:[%s5281 + $0x278] sm:$0xff]
        %v5362 = vld [vmem:[%s5281 + $0x280] sm:$0xff]
        %v5363 = vld [vmem:[%s5281 + $0x288] sm:$0xff]
        %v5364 = vld [vmem:[%s5281 + $0x290] sm:$0xff]
        %v5365 = vld [vmem:[%s5281 + $0x298] sm:$0xff]
        %v5366 = vld [vmem:[%s5281 + $0x2a0] sm:$0xff]
        %v5367 = vld [vmem:[%s5281 + $0x2a8] sm:$0xff]
        %v5368 = vld [vmem:[%s5281 + $0x2b0] sm:$0xff]
        %v5369 = vld [vmem:[%s5281 + $0x2b8] sm:$0xff]
        %v5370 = vld [vmem:[%s5281 + $0x2c0] sm:$0xff]
        %v5371 = vld [vmem:[%s5281 + $0x2c8] sm:$0xff]
        %v5372 = vld [vmem:[%s5281 + $0x2d0] sm:$0xff]
        %v5373 = vld [vmem:[%s5281 + $0x2d8] sm:$0xff]
        %v5374 = vld [vmem:[%s5281 + $0x2e0] sm:$0xff]
        %v5375 = vld [vmem:[%s5281 + $0x2e8] sm:$0xff]
        %v5376 = vld [vmem:[%s5281 + $0x2f0] sm:$0xff]
        %v5377 = vld [vmem:[%s5281 + $0x2f8] sm:$0xff]
        %5378 = vmatprep.subr.mxu0 %v5313
        %5379 = vmatpush1.msra.mxu0 %v5312
        %5380 = vmatprep.subr.mxu0 %v5311
        %5381 = vmatpush1.msra.mxu0 %v5310
        %5382 = vmatprep.subr.mxu0 %v5309
        %5383 = vmatpush1.msra.mxu0 %v5308
        %5384 = vmatprep.subr.mxu0 %v5307
        %5385 = vmatpush1.msra.mxu0 %v5306
        %5386 = vmatprep.subr.mxu0 %v5305
        %5387 = vmatpush1.msra.mxu0 %v5304
        %5388 = vmatprep.subr.mxu0 %v5303
        %5389 = vmatpush1.msra.mxu0 %v5302
        %5390 = vmatprep.subr.mxu0 %v5301
        %5391 = vmatpush1.msra.mxu0 %v5300
        %5392 = vmatprep.subr.mxu0 %v5299
        %5393 = vmatpush1.msra.mxu0 %v5298
        %5394 = vmatprep.subr.mxu0 %v5297
        %5395 = vmatpush1.msra.mxu0 %v5296
        %5396 = vmatprep.subr.mxu0 %v5295
        %5397 = vmatpush1.msra.mxu0 %v5294
        %5398 = vmatprep.subr.mxu0 %v5293
        %5399 = vmatpush1.msra.mxu0 %v5292
        %5400 = vmatprep.subr.mxu0 %v5291
        %5401 = vmatpush1.msra.mxu0 %v5290
        %5402 = vmatprep.subr.mxu0 %v5289
        %5403 = vmatpush1.msra.mxu0 %v5288
        %5404 = vmatprep.subr.mxu0 %v5287
        %5405 = vmatpush1.msra.mxu0 %v5286
        %5406 = vmatprep.subr.mxu0 %v5285
        %5407 = vmatpush1.msra.mxu0 %v5284
        %5408 = vmatprep.subr.mxu0 %v5283
        %5409 = vmatpush1.msra.mxu0 %v5282
        %5410 = vmatprep.subr.mxu0 %v5345
        %5411 = vmatpush2.msra.mxu0 %v5344
        %5412 = vmatprep.subr.mxu0 %v5343
        %5413 = vmatpush2.msra.mxu0 %v5342
        %5414 = vmatprep.subr.mxu0 %v5341
        %5415 = vmatpush2.msra.mxu0 %v5340
        %5416 = vmatprep.subr.mxu0 %v5339
        %5417 = vmatpush2.msra.mxu0 %v5338
        %5418 = vmatprep.subr.mxu0 %v5337
        %5419 = vmatpush2.msra.mxu0 %v5336
        %5420 = vmatprep.subr.mxu0 %v5335
        %5421 = vmatpush2.msra.mxu0 %v5334
        %5422 = vmatprep.subr.mxu0 %v5333
        %5423 = vmatpush2.msra.mxu0 %v5332
        %5424 = vmatprep.subr.mxu0 %v5331
        %5425 = vmatpush2.msra.mxu0 %v5330
        %5426 = vmatprep.subr.mxu0 %v5329
        %5427 = vmatpush2.msra.mxu0 %v5328
        %5428 = vmatprep.subr.mxu0 %v5327
        %5429 = vmatpush2.msra.mxu0 %v5326
        %5430 = vmatprep.subr.mxu0 %v5325
        %5431 = vmatpush2.msra.mxu0 %v5324
        %5432 = vmatprep.subr.mxu0 %v5323
        %5433 = vmatpush2.msra.mxu0 %v5322
        %5434 = vmatprep.subr.mxu0 %v5321
        %5435 = vmatpush2.msra.mxu0 %v5320
        %5436 = vmatprep.subr.mxu0 %v5319
        %5437 = vmatpush2.msra.mxu0 %v5318
        %5438 = vmatprep.subr.mxu0 %v5317
        %5439 = vmatpush2.msra.mxu0 %v5316
        %5440 = vmatprep.subr.mxu0 %v5315
        %5441 = vmatpush2.msra.mxu0 %v5314
        %5442 = vmatprep.mubr.f32.mxu0 %v5183
        %5443 = vmatmul.mubr.f32.gmra.mxu0 %v5182
        %v5444 = vpop.f32.mrf.mxu0
        %v5445 = vadd.f32 0.0, %v5444
        %v5446 = vpop.f32.mrf.mxu0
        %v5447 = vadd.f32 0.0, %v5446
        %5448 = vdwg.mxu0
        %5449 = vmatprep.subr.mxu0 %v5377
        %5450 = vmatpush1.msra.mxu0 %v5376
        %5451 = vmatprep.subr.mxu0 %v5375
        %5452 = vmatpush1.msra.mxu0 %v5374
        %5453 = vmatprep.subr.mxu0 %v5373
        %5454 = vmatpush1.msra.mxu0 %v5372
        %5455 = vmatprep.subr.mxu0 %v5371
        %5456 = vmatpush1.msra.mxu0 %v5370
        %5457 = vmatprep.subr.mxu0 %v5369
        %5458 = vmatpush1.msra.mxu0 %v5368
        %5459 = vmatprep.subr.mxu0 %v5367
        %5460 = vmatpush1.msra.mxu0 %v5366
        %5461 = vmatprep.subr.mxu0 %v5365
        %5462 = vmatpush1.msra.mxu0 %v5364
        %5463 = vmatprep.subr.mxu0 %v5363
        %5464 = vmatpush1.msra.mxu0 %v5362
        %5465 = vmatprep.subr.mxu0 %v5361
        %5466 = vmatpush1.msra.mxu0 %v5360
        %5467 = vmatprep.subr.mxu0 %v5359
        %5468 = vmatpush1.msra.mxu0 %v5358
        %5469 = vmatprep.subr.mxu0 %v5357
        %5470 = vmatpush1.msra.mxu0 %v5356
        %5471 = vmatprep.subr.mxu0 %v5355
        %5472 = vmatpush1.msra.mxu0 %v5354
        %5473 = vmatprep.subr.mxu0 %v5353
        %5474 = vmatpush1.msra.mxu0 %v5352
        %5475 = vmatprep.subr.mxu0 %v5351
        %5476 = vmatpush1.msra.mxu0 %v5350
        %5477 = vmatprep.subr.mxu0 %v5349
        %5478 = vmatpush1.msra.mxu0 %v5348
        %5479 = vmatprep.subr.mxu0 %v5347
        %5480 = vmatpush1.msra.mxu0 %v5346
        %5481 = vmatprep.subr.mxu0 0.0
        %5482 = vmatpush2.msra.mxu0 0.0
        %5483 = vmatprep.subr.mxu0 0.0
        %5484 = vmatpush2.msra.mxu0 0.0
        %5485 = vmatprep.subr.mxu0 0.0
        %5486 = vmatpush2.msra.mxu0 0.0
        %5487 = vmatprep.subr.mxu0 0.0
        %5488 = vmatpush2.msra.mxu0 0.0
        %5489 = vmatprep.subr.mxu0 0.0
        %5490 = vmatpush2.msra.mxu0 0.0
        %5491 = vmatprep.subr.mxu0 0.0
        %5492 = vmatpush2.msra.mxu0 0.0
        %5493 = vmatprep.subr.mxu0 0.0
        %5494 = vmatpush2.msra.mxu0 0.0
        %5495 = vmatprep.subr.mxu0 0.0
        %5496 = vmatpush2.msra.mxu0 0.0
        %5497 = vmatprep.subr.mxu0 0.0
        %5498 = vmatpush2.msra.mxu0 0.0
        %5499 = vmatprep.subr.mxu0 0.0
        %5500 = vmatpush2.msra.mxu0 0.0
        %5501 = vmatprep.subr.mxu0 0.0
        %5502 = vmatpush2.msra.mxu0 0.0
        %5503 = vmatprep.subr.mxu0 0.0
        %5504 = vmatpush2.msra.mxu0 0.0
        %5505 = vmatprep.subr.mxu0 0.0
        %5506 = vmatpush2.msra.mxu0 0.0
        %5507 = vmatprep.subr.mxu0 0.0
        %5508 = vmatpush2.msra.mxu0 0.0
        %5509 = vmatprep.subr.mxu0 0.0
        %5510 = vmatpush2.msra.mxu0 0.0
        %5511 = vmatprep.subr.mxu0 0.0
        %5512 = vmatpush2.msra.mxu0 0.0
        %5513 = vmatprep.mubr.f32.mxu0 0.0
        %5514 = vmatmul.mubr.f32.gmra.mxu0 %v5184
        %v5515 = vpop.f32.mrf.mxu0
        %v5516 = vadd.f32 %v5445, %v5515
        %v5517 = vpop.f32.mrf.mxu0
        %v5518 = vadd.f32 %v5447, %v5517
        %5519 = vdwg.mxu0
        %v5523 = vrot.slane %v5173, 1
        %v5524 = vrot.slane %v5174, 1
        %v5525 = vrot.slane %v5175, 1
        %5529 = vmatprep.subr.mxu0 %v5313
        %5530 = vmatpush1.msra.mxu0 %v5312
        %5531 = vmatprep.subr.mxu0 %v5311
        %5532 = vmatpush1.msra.mxu0 %v5310
        %5533 = vmatprep.subr.mxu0 %v5309
        %5534 = vmatpush1.msra.mxu0 %v5308
        %5535 = vmatprep.subr.mxu0 %v5307
        %5536 = vmatpush1.msra.mxu0 %v5306
        %5537 = vmatprep.subr.mxu0 %v5305
        %5538 = vmatpush1.msra.mxu0 %v5304
        %5539 = vmatprep.subr.mxu0 %v5303
        %5540 = vmatpush1.msra.mxu0 %v5302
        %5541 = vmatprep.subr.mxu0 %v5301
        %5542 = vmatpush1.msra.mxu0 %v5300
        %5543 = vmatprep.subr.mxu0 %v5299
        %5544 = vmatpush1.msra.mxu0 %v5298
        %5545 = vmatprep.subr.mxu0 %v5297
        %5546 = vmatpush1.msra.mxu0 %v5296
        %5547 = vmatprep.subr.mxu0 %v5295
        %5548 = vmatpush1.msra.mxu0 %v5294
        %5549 = vmatprep.subr.mxu0 %v5293
        %5550 = vmatpush1.msra.mxu0 %v5292
        %5551 = vmatprep.subr.mxu0 %v5291
        %5552 = vmatpush1.msra.mxu0 %v5290
        %5553 = vmatprep.subr.mxu0 %v5289
        %5554 = vmatpush1.msra.mxu0 %v5288
        %5555 = vmatprep.subr.mxu0 %v5287
        %5556 = vmatpush1.msra.mxu0 %v5286
        %5557 = vmatprep.subr.mxu0 %v5285
        %5558 = vmatpush1.msra.mxu0 %v5284
        %5559 = vmatprep.subr.mxu0 %v5283
        %5560 = vmatpush1.msra.mxu0 %v5282
        %5561 = vmatprep.subr.mxu0 %v5345
        %5562 = vmatpush2.msra.mxu0 %v5344
        %5563 = vmatprep.subr.mxu0 %v5343
        %5564 = vmatpush2.msra.mxu0 %v5342
        %5565 = vmatprep.subr.mxu0 %v5341
        %5566 = vmatpush2.msra.mxu0 %v5340
        %5567 = vmatprep.subr.mxu0 %v5339
        %5568 = vmatpush2.msra.mxu0 %v5338
        %5569 = vmatprep.subr.mxu0 %v5337
        %5570 = vmatpush2.msra.mxu0 %v5336
        %5571 = vmatprep.subr.mxu0 %v5335
        %5572 = vmatpush2.msra.mxu0 %v5334
        %5573 = vmatprep.subr.mxu0 %v5333
        %5574 = vmatpush2.msra.mxu0 %v5332
        %5575 = vmatprep.subr.mxu0 %v5331
        %5576 = vmatpush2.msra.mxu0 %v5330
        %5577 = vmatprep.subr.mxu0 %v5329
        %5578 = vmatpush2.msra.mxu0 %v5328
        %5579 = vmatprep.subr.mxu0 %v5327
        %5580 = vmatpush2.msra.mxu0 %v5326
        %5581 = vmatprep.subr.mxu0 %v5325
        %5582 = vmatpush2.msra.mxu0 %v5324
        %5583 = vmatprep.subr.mxu0 %v5323
        %5584 = vmatpush2.msra.mxu0 %v5322
        %5585 = vmatprep.subr.mxu0 %v5321
        %5586 = vmatpush2.msra.mxu0 %v5320
        %5587 = vmatprep.subr.mxu0 %v5319
        %5588 = vmatpush2.msra.mxu0 %v5318
        %5589 = vmatprep.subr.mxu0 %v5317
        %5590 = vmatpush2.msra.mxu0 %v5316
        %5591 = vmatprep.subr.mxu0 %v5315
        %5592 = vmatpush2.msra.mxu0 %v5314
        %5593 = vmatprep.mubr.f32.mxu0 %v5524
        %5594 = vmatmul.mubr.f32.gmra.mxu0 %v5523
        %v5595 = vpop.f32.mrf.mxu0
        %v5596 = vadd.f32 0.0, %v5595
        %v5597 = vpop.f32.mrf.mxu0
        %v5598 = vadd.f32 0.0, %v5597
        %5599 = vdwg.mxu0
        %5600 = vmatprep.subr.mxu0 %v5377
        %5601 = vmatpush1.msra.mxu0 %v5376
        %5602 = vmatprep.subr.mxu0 %v5375
        %5603 = vmatpush1.msra.mxu0 %v5374
        %5604 = vmatprep.subr.mxu0 %v5373
        %5605 = vmatpush1.msra.mxu0 %v5372
        %5606 = vmatprep.subr.mxu0 %v5371
        %5607 = vmatpush1.msra.mxu0 %v5370
        %5608 = vmatprep.subr.mxu0 %v5369
        %5609 = vmatpush1.msra.mxu0 %v5368
        %5610 = vmatprep.subr.mxu0 %v5367
        %5611 = vmatpush1.msra.mxu0 %v5366
        %5612 = vmatprep.subr.mxu0 %v5365
        %5613 = vmatpush1.msra.mxu0 %v5364
        %5614 = vmatprep.subr.mxu0 %v5363
        %5615 = vmatpush1.msra.mxu0 %v5362
        %5616 = vmatprep.subr.mxu0 %v5361
        %5617 = vmatpush1.msra.mxu0 %v5360
        %5618 = vmatprep.subr.mxu0 %v5359
        %5619 = vmatpush1.msra.mxu0 %v5358
        %5620 = vmatprep.subr.mxu0 %v5357
        %5621 = vmatpush1.msra.mxu0 %v5356
        %5622 = vmatprep.subr.mxu0 %v5355
        %5623 = vmatpush1.msra.mxu0 %v5354
        %5624 = vmatprep.subr.mxu0 %v5353
        %5625 = vmatpush1.msra.mxu0 %v5352
        %5626 = vmatprep.subr.mxu0 %v5351
        %5627 = vmatpush1.msra.mxu0 %v5350
        %5628 = vmatprep.subr.mxu0 %v5349
        %5629 = vmatpush1.msra.mxu0 %v5348
        %5630 = vmatprep.subr.mxu0 %v5347
        %5631 = vmatpush1.msra.mxu0 %v5346
        %5632 = vmatprep.subr.mxu0 0.0
        %5633 = vmatpush2.msra.mxu0 0.0
        %5634 = vmatprep.subr.mxu0 0.0
        %5635 = vmatpush2.msra.mxu0 0.0
        %5636 = vmatprep.subr.mxu0 0.0
        %5637 = vmatpush2.msra.mxu0 0.0
        %5638 = vmatprep.subr.mxu0 0.0
        %5639 = vmatpush2.msra.mxu0 0.0
        %5640 = vmatprep.subr.mxu0 0.0
        %5641 = vmatpush2.msra.mxu0 0.0
        %5642 = vmatprep.subr.mxu0 0.0
        %5643 = vmatpush2.msra.mxu0 0.0
        %5644 = vmatprep.subr.mxu0 0.0
        %5645 = vmatpush2.msra.mxu0 0.0
        %5646 = vmatprep.subr.mxu0 0.0
        %5647 = vmatpush2.msra.mxu0 0.0
        %5648 = vmatprep.subr.mxu0 0.0
        %5649 = vmatpush2.msra.mxu0 0.0
        %5650 = vmatprep.subr.mxu0 0.0
        %5651 = vmatpush2.msra.mxu0 0.0
        %5652 = vmatprep.subr.mxu0 0.0
        %5653 = vmatpush2.msra.mxu0 0.0
        %5654 = vmatprep.subr.mxu0 0.0
        %5655 = vmatpush2.msra.mxu0 0.0
        %5656 = vmatprep.subr.mxu0 0.0
        %5657 = vmatpush2.msra.mxu0 0.0
        %5658 = vmatprep.subr.mxu0 0.0
        %5659 = vmatpush2.msra.mxu0 0.0
        %5660 = vmatprep.subr.mxu0 0.0
        %5661 = vmatpush2.msra.mxu0 0.0
        %5662 = vmatprep.subr.mxu0 0.0
        %5663 = vmatpush2.msra.mxu0 0.0
        %5664 = vmatprep.mubr.f32.mxu0 0.0
        %5665 = vmatmul.mubr.f32.gmra.mxu0 %v5525
        %v5666 = vpop.f32.mrf.mxu0
        %v5667 = vadd.f32 %v5596, %v5666
        %v5668 = vpop.f32.mrf.mxu0
        %v5669 = vadd.f32 %v5598, %v5668
        %5670 = vdwg.mxu0
        %5671 = vmatprep.subr.mxu0 %v5216
        %5672 = vmatpush1.msra.mxu0 %v5215
        %5673 = vmatprep.subr.mxu0 %v5214
        %5674 = vmatpush1.msra.mxu0 %v5213
        %5675 = vmatprep.subr.mxu0 %v5212
        %5676 = vmatpush1.msra.mxu0 %v5211
        %5677 = vmatprep.subr.mxu0 %v5210
        %5678 = vmatpush1.msra.mxu0 %v5209
        %5679 = vmatprep.subr.mxu0 %v5208
        %5680 = vmatpush1.msra.mxu0 %v5207
        %5681 = vmatprep.subr.mxu0 %v5206
        %5682 = vmatpush1.msra.mxu0 %v5205
        %5683 = vmatprep.subr.mxu0 %v5204
        %5684 = vmatpush1.msra.mxu0 %v5203
        %5685 = vmatprep.subr.mxu0 %v5202
        %5686 = vmatpush1.msra.mxu0 %v5201
        %5687 = vmatprep.subr.mxu0 %v5200
        %5688 = vmatpush1.msra.mxu0 %v5199
        %5689 = vmatprep.subr.mxu0 %v5198
        %5690 = vmatpush1.msra.mxu0 %v5197
        %5691 = vmatprep.subr.mxu0 %v5196
        %5692 = vmatpush1.msra.mxu0 %v5195
        %5693 = vmatprep.subr.mxu0 %v5194
        %5694 = vmatpush1.msra.mxu0 %v5193
        %5695 = vmatprep.subr.mxu0 %v5192
        %5696 = vmatpush1.msra.mxu0 %v5191
        %5697 = vmatprep.subr.mxu0 %v5190
        %5698 = vmatpush1.msra.mxu0 %v5189
        %5699 = vmatprep.subr.mxu0 %v5188
        %5700 = vmatpush1.msra.mxu0 %v5187
        %5701 = vmatprep.subr.mxu0 %v5186
        %5702 = vmatpush1.msra.mxu0 %v5185
        %5703 = vmatprep.subr.mxu0 %v5248
        %5704 = vmatpush2.msra.mxu0 %v5247
        %5705 = vmatprep.subr.mxu0 %v5246
        %5706 = vmatpush2.msra.mxu0 %v5245
        %5707 = vmatprep.subr.mxu0 %v5244
        %5708 = vmatpush2.msra.mxu0 %v5243
        %5709 = vmatprep.subr.mxu0 %v5242
        %5710 = vmatpush2.msra.mxu0 %v5241
        %5711 = vmatprep.subr.mxu0 %v5240
        %5712 = vmatpush2.msra.mxu0 %v5239
        %5713 = vmatprep.subr.mxu0 %v5238
        %5714 = vmatpush2.msra.mxu0 %v5237
        %5715 = vmatprep.subr.mxu0 %v5236
        %5716 = vmatpush2.msra.mxu0 %v5235
        %5717 = vmatprep.subr.mxu0 %v5234
        %5718 = vmatpush2.msra.mxu0 %v5233
        %5719 = vmatprep.subr.mxu0 %v5232
        %5720 = vmatpush2.msra.mxu0 %v5231
        %5721 = vmatprep.subr.mxu0 %v5230
        %5722 = vmatpush2.msra.mxu0 %v5229
        %5723 = vmatprep.subr.mxu0 %v5228
        %5724 = vmatpush2.msra.mxu0 %v5227
        %5725 = vmatprep.subr.mxu0 %v5226
        %5726 = vmatpush2.msra.mxu0 %v5225
        %5727 = vmatprep.subr.mxu0 %v5224
        %5728 = vmatpush2.msra.mxu0 %v5223
        %5729 = vmatprep.subr.mxu0 %v5222
        %5730 = vmatpush2.msra.mxu0 %v5221
        %5731 = vmatprep.subr.mxu0 %v5220
        %5732 = vmatpush2.msra.mxu0 %v5219
        %5733 = vmatprep.subr.mxu0 %v5218
        %5734 = vmatpush2.msra.mxu0 %v5217
        %5735 = vmatprep.mubr.f32.mxu0 %v5174
        %5736 = vmatmul.mubr.f32.gmra.mxu0 %v5173
        %v5737 = vpop.f32.mrf.mxu0
        %v5738 = vadd.f32 %v5516, %v5737
        %v5739 = vpop.f32.mrf.mxu0
        %v5740 = vadd.f32 %v5518, %v5739
        %5741 = vdwg.mxu0
        %5742 = vmatprep.subr.mxu0 %v5280
        %5743 = vmatpush1.msra.mxu0 %v5279
        %5744 = vmatprep.subr.mxu0 %v5278
        %5745 = vmatpush1.msra.mxu0 %v5277
        %5746 = vmatprep.subr.mxu0 %v5276
        %5747 = vmatpush1.msra.mxu0 %v5275
        %5748 = vmatprep.subr.mxu0 %v5274
        %5749 = vmatpush1.msra.mxu0 %v5273
        %5750 = vmatprep.subr.mxu0 %v5272
        %5751 = vmatpush1.msra.mxu0 %v5271
        %5752 = vmatprep.subr.mxu0 %v5270
        %5753 = vmatpush1.msra.mxu0 %v5269
        %5754 = vmatprep.subr.mxu0 %v5268
        %5755 = vmatpush1.msra.mxu0 %v5267
        %5756 = vmatprep.subr.mxu0 %v5266
        %5757 = vmatpush1.msra.mxu0 %v5265
        %5758 = vmatprep.subr.mxu0 %v5264
        %5759 = vmatpush1.msra.mxu0 %v5263
        %5760 = vmatprep.subr.mxu0 %v5262
        %5761 = vmatpush1.msra.mxu0 %v5261
        %5762 = vmatprep.subr.mxu0 %v5260
        %5763 = vmatpush1.msra.mxu0 %v5259
        %5764 = vmatprep.subr.mxu0 %v5258
        %5765 = vmatpush1.msra.mxu0 %v5257
        %5766 = vmatprep.subr.mxu0 %v5256
        %5767 = vmatpush1.msra.mxu0 %v5255
        %5768 = vmatprep.subr.mxu0 %v5254
        %5769 = vmatpush1.msra.mxu0 %v5253
        %5770 = vmatprep.subr.mxu0 %v5252
        %5771 = vmatpush1.msra.mxu0 %v5251
        %5772 = vmatprep.subr.mxu0 %v5250
        %5773 = vmatpush1.msra.mxu0 %v5249
        %5774 = vmatprep.subr.mxu0 0.0
        %5775 = vmatpush2.msra.mxu0 0.0
        %5776 = vmatprep.subr.mxu0 0.0
        %5777 = vmatpush2.msra.mxu0 0.0
        %5778 = vmatprep.subr.mxu0 0.0
        %5779 = vmatpush2.msra.mxu0 0.0
        %5780 = vmatprep.subr.mxu0 0.0
        %5781 = vmatpush2.msra.mxu0 0.0
        %5782 = vmatprep.subr.mxu0 0.0
        %5783 = vmatpush2.msra.mxu0 0.0
        %5784 = vmatprep.subr.mxu0 0.0
        %5785 = vmatpush2.msra.mxu0 0.0
        %5786 = vmatprep.subr.mxu0 0.0
        %5787 = vmatpush2.msra.mxu0 0.0
        %5788 = vmatprep.subr.mxu0 0.0
        %5789 = vmatpush2.msra.mxu0 0.0
        %5790 = vmatprep.subr.mxu0 0.0
        %5791 = vmatpush2.msra.mxu0 0.0
        %5792 = vmatprep.subr.mxu0 0.0
        %5793 = vmatpush2.msra.mxu0 0.0
        %5794 = vmatprep.subr.mxu0 0.0
        %5795 = vmatpush2.msra.mxu0 0.0
        %5796 = vmatprep.subr.mxu0 0.0
        %5797 = vmatpush2.msra.mxu0 0.0
        %5798 = vmatprep.subr.mxu0 0.0
        %5799 = vmatpush2.msra.mxu0 0.0
        %5800 = vmatprep.subr.mxu0 0.0
        %5801 = vmatpush2.msra.mxu0 0.0
        %5802 = vmatprep.subr.mxu0 0.0
        %5803 = vmatpush2.msra.mxu0 0.0
        %5804 = vmatprep.subr.mxu0 0.0
        %5805 = vmatpush2.msra.mxu0 0.0
        %5806 = vmatprep.mubr.f32.mxu0 0.0
        %5807 = vmatmul.mubr.f32.gmra.mxu0 %v5175
        %v5808 = vpop.f32.mrf.mxu0
        %v5809 = vadd.f32 %v5738, %v5808
        %v5810 = vpop.f32.mrf.mxu0
        %v5811 = vadd.f32 %v5740, %v5810
        %5812 = vdwg.mxu0
        %5813 = vmatprep.subr.mxu0 %v5216
        %5814 = vmatpush1.msra.mxu0 %v5215
        %5815 = vmatprep.subr.mxu0 %v5214
        %5816 = vmatpush1.msra.mxu0 %v5213
        %5817 = vmatprep.subr.mxu0 %v5212
        %5818 = vmatpush1.msra.mxu0 %v5211
        %5819 = vmatprep.subr.mxu0 %v5210
        %5820 = vmatpush1.msra.mxu0 %v5209
        %5821 = vmatprep.subr.mxu0 %v5208
        %5822 = vmatpush1.msra.mxu0 %v5207
        %5823 = vmatprep.subr.mxu0 %v5206
        %5824 = vmatpush1.msra.mxu0 %v5205
        %5825 = vmatprep.subr.mxu0 %v5204
        %5826 = vmatpush1.msra.mxu0 %v5203
        %5827 = vmatprep.subr.mxu0 %v5202
        %5828 = vmatpush1.msra.mxu0 %v5201
        %5829 = vmatprep.subr.mxu0 %v5200
        %5830 = vmatpush1.msra.mxu0 %v5199
        %5831 = vmatprep.subr.mxu0 %v5198
        %5832 = vmatpush1.msra.mxu0 %v5197
        %5833 = vmatprep.subr.mxu0 %v5196
        %5834 = vmatpush1.msra.mxu0 %v5195
        %5835 = vmatprep.subr.mxu0 %v5194
        %5836 = vmatpush1.msra.mxu0 %v5193
        %5837 = vmatprep.subr.mxu0 %v5192
        %5838 = vmatpush1.msra.mxu0 %v5191
        %5839 = vmatprep.subr.mxu0 %v5190
        %5840 = vmatpush1.msra.mxu0 %v5189
        %5841 = vmatprep.subr.mxu0 %v5188
        %5842 = vmatpush1.msra.mxu0 %v5187
        %5843 = vmatprep.subr.mxu0 %v5186
        %5844 = vmatpush1.msra.mxu0 %v5185
        %5845 = vmatprep.subr.mxu0 %v5248
        %5846 = vmatpush2.msra.mxu0 %v5247
        %5847 = vmatprep.subr.mxu0 %v5246
        %5848 = vmatpush2.msra.mxu0 %v5245
        %5849 = vmatprep.subr.mxu0 %v5244
        %5850 = vmatpush2.msra.mxu0 %v5243
        %5851 = vmatprep.subr.mxu0 %v5242
        %5852 = vmatpush2.msra.mxu0 %v5241
        %5853 = vmatprep.subr.mxu0 %v5240
        %5854 = vmatpush2.msra.mxu0 %v5239
        %5855 = vmatprep.subr.mxu0 %v5238
        %5856 = vmatpush2.msra.mxu0 %v5237
        %5857 = vmatprep.subr.mxu0 %v5236
        %5858 = vmatpush2.msra.mxu0 %v5235
        %5859 = vmatprep.subr.mxu0 %v5234
        %5860 = vmatpush2.msra.mxu0 %v5233
        %5861 = vmatprep.subr.mxu0 %v5232
        %5862 = vmatpush2.msra.mxu0 %v5231
        %5863 = vmatprep.subr.mxu0 %v5230
        %5864 = vmatpush2.msra.mxu0 %v5229
        %5865 = vmatprep.subr.mxu0 %v5228
        %5866 = vmatpush2.msra.mxu0 %v5227
        %5867 = vmatprep.subr.mxu0 %v5226
        %5868 = vmatpush2.msra.mxu0 %v5225
        %5869 = vmatprep.subr.mxu0 %v5224
        %5870 = vmatpush2.msra.mxu0 %v5223
        %5871 = vmatprep.subr.mxu0 %v5222
        %5872 = vmatpush2.msra.mxu0 %v5221
        %5873 = vmatprep.subr.mxu0 %v5220
        %5874 = vmatpush2.msra.mxu0 %v5219
        %5875 = vmatprep.subr.mxu0 %v5218
        %5876 = vmatpush2.msra.mxu0 %v5217
        %5877 = vmatprep.mubr.f32.mxu0 %v5183
        %5878 = vmatmul.mubr.f32.gmra.mxu0 %v5182
        %v5879 = vpop.f32.mrf.mxu0
        %v5880 = vadd.f32 %v5667, %v5879
        %v5881 = vpop.f32.mrf.mxu0
        %v5882 = vadd.f32 %v5669, %v5881
        %5883 = vdwg.mxu0
        %5884 = vmatprep.subr.mxu0 %v5280
        %5885 = vmatpush1.msra.mxu0 %v5279
        %5886 = vmatprep.subr.mxu0 %v5278
        %5887 = vmatpush1.msra.mxu0 %v5277
        %5888 = vmatprep.subr.mxu0 %v5276
        %5889 = vmatpush1.msra.mxu0 %v5275
        %5890 = vmatprep.subr.mxu0 %v5274
        %5891 = vmatpush1.msra.mxu0 %v5273
        %5892 = vmatprep.subr.mxu0 %v5272
        %5893 = vmatpush1.msra.mxu0 %v5271
        %5894 = vmatprep.subr.mxu0 %v5270
        %5895 = vmatpush1.msra.mxu0 %v5269
        %5896 = vmatprep.subr.mxu0 %v5268
        %5897 = vmatpush1.msra.mxu0 %v5267
        %5898 = vmatprep.subr.mxu0 %v5266
        %5899 = vmatpush1.msra.mxu0 %v5265
        %5900 = vmatprep.subr.mxu0 %v5264
        %5901 = vmatpush1.msra.mxu0 %v5263
        %5902 = vmatprep.subr.mxu0 %v5262
        %5903 = vmatpush1.msra.mxu0 %v5261
        %5904 = vmatprep.subr.mxu0 %v5260
        %5905 = vmatpush1.msra.mxu0 %v5259
        %5906 = vmatprep.subr.mxu0 %v5258
        %5907 = vmatpush1.msra.mxu0 %v5257
        %5908 = vmatprep.subr.mxu0 %v5256
        %5909 = vmatpush1.msra.mxu0 %v5255
        %5910 = vmatprep.subr.mxu0 %v5254
        %5911 = vmatpush1.msra.mxu0 %v5253
        %5912 = vmatprep.subr.mxu0 %v5252
        %5913 = vmatpush1.msra.mxu0 %v5251
        %5914 = vmatprep.subr.mxu0 %v5250
        %5915 = vmatpush1.msra.mxu0 %v5249
        %5916 = vmatprep.subr.mxu0 0.0
        %5917 = vmatpush2.msra.mxu0 0.0
        %5918 = vmatprep.subr.mxu0 0.0
        %5919 = vmatpush2.msra.mxu0 0.0
        %5920 = vmatprep.subr.mxu0 0.0
        %5921 = vmatpush2.msra.mxu0 0.0
        %5922 = vmatprep.subr.mxu0 0.0
        %5923 = vmatpush2.msra.mxu0 0.0
        %5924 = vmatprep.subr.mxu0 0.0
        %5925 = vmatpush2.msra.mxu0 0.0
        %5926 = vmatprep.subr.mxu0 0.0
        %5927 = vmatpush2.msra.mxu0 0.0
        %5928 = vmatprep.subr.mxu0 0.0
        %5929 = vmatpush2.msra.mxu0 0.0
        %5930 = vmatprep.subr.mxu0 0.0
        %5931 = vmatpush2.msra.mxu0 0.0
        %5932 = vmatprep.subr.mxu0 0.0
        %5933 = vmatpush2.msra.mxu0 0.0
        %5934 = vmatprep.subr.mxu0 0.0
        %5935 = vmatpush2.msra.mxu0 0.0
        %5936 = vmatprep.subr.mxu0 0.0
        %5937 = vmatpush2.msra.mxu0 0.0
        %5938 = vmatprep.subr.mxu0 0.0
        %5939 = vmatpush2.msra.mxu0 0.0
        %5940 = vmatprep.subr.mxu0 0.0
        %5941 = vmatpush2.msra.mxu0 0.0
        %5942 = vmatprep.subr.mxu0 0.0
        %5943 = vmatpush2.msra.mxu0 0.0
        %5944 = vmatprep.subr.mxu0 0.0
        %5945 = vmatpush2.msra.mxu0 0.0
        %5946 = vmatprep.subr.mxu0 0.0
        %5947 = vmatpush2.msra.mxu0 0.0
        %5948 = vmatprep.mubr.f32.mxu0 0.0
        %5949 = vmatmul.mubr.f32.gmra.mxu0 %v5184
        %v5950 = vpop.f32.mrf.mxu0
        %v5951 = vadd.f32 %v5880, %v5950
        %v5952 = vpop.f32.mrf.mxu0
        %v5953 = vadd.f32 %v5882, %v5952
        %5954 = vdwg.mxu0
        %s5955 = scalar_lea.vmem %s3, 1536
        %v5956 = vld [vmem:[%s5955] sm:$0xff]
        %v5957 = vld [vmem:[%s5955 + $0x8] sm:$0xff]
        %v5958 = vld [vmem:[%s5955 + $0x10] sm:$0xff]
        %v5959 = vld [vmem:[%s5955 + $0x18] sm:$0xff]
        %v5960 = vld [vmem:[%s5955 + $0x20] sm:$0xff]
        %v5961 = vld [vmem:[%s5955 + $0x28] sm:$0xff]
        %v5962 = vld [vmem:[%s5955 + $0x30] sm:$0xff]
        %v5963 = vld [vmem:[%s5955 + $0x38] sm:$0xff]
        %v5964 = vld [vmem:[%s5955 + $0x40] sm:$0xff]
        %v5965 = vld [vmem:[%s5955 + $0x48] sm:$0xff]
        %v5966 = vld [vmem:[%s5955 + $0x50] sm:$0xff]
        %v5967 = vld [vmem:[%s5955 + $0x58] sm:$0xff]
        %v5968 = vld [vmem:[%s5955 + $0x60] sm:$0xff]
        %v5969 = vld [vmem:[%s5955 + $0x68] sm:$0xff]
        %v5970 = vld [vmem:[%s5955 + $0x70] sm:$0xff]
        %v5971 = vld [vmem:[%s5955 + $0x78] sm:$0xff]
        %v5972 = vld [vmem:[%s5955 + $0x80] sm:$0xff]
        %v5973 = vld [vmem:[%s5955 + $0x88] sm:$0xff]
        %v5974 = vld [vmem:[%s5955 + $0x90] sm:$0xff]
        %v5975 = vld [vmem:[%s5955 + $0x98] sm:$0xff]
        %v5976 = vld [vmem:[%s5955 + $0xa0] sm:$0xff]
        %v5977 = vld [vmem:[%s5955 + $0xa8] sm:$0xff]
        %v5978 = vld [vmem:[%s5955 + $0xb0] sm:$0xff]
        %v5979 = vld [vmem:[%s5955 + $0xb8] sm:$0xff]
        %v5980 = vld [vmem:[%s5955 + $0xc0] sm:$0xff]
        %v5981 = vld [vmem:[%s5955 + $0xc8] sm:$0xff]
        %v5982 = vld [vmem:[%s5955 + $0xd0] sm:$0xff]
        %v5983 = vld [vmem:[%s5955 + $0xd8] sm:$0xff]
        %v5984 = vld [vmem:[%s5955 + $0xe0] sm:$0xff]
        %v5985 = vld [vmem:[%s5955 + $0xe8] sm:$0xff]
        %v5986 = vld [vmem:[%s5955 + $0xf0] sm:$0xff]
        %v5987 = vld [vmem:[%s5955 + $0xf8] sm:$0xff]
        %v5988 = vld [vmem:[%s5955 + $0x100] sm:$0xff]
        %v5989 = vld [vmem:[%s5955 + $0x108] sm:$0xff]
        %v5990 = vld [vmem:[%s5955 + $0x110] sm:$0xff]
        %v5991 = vld [vmem:[%s5955 + $0x118] sm:$0xff]
        %v5992 = vld [vmem:[%s5955 + $0x120] sm:$0xff]
        %v5993 = vld [vmem:[%s5955 + $0x128] sm:$0xff]
        %v5994 = vld [vmem:[%s5955 + $0x130] sm:$0xff]
        %v5995 = vld [vmem:[%s5955 + $0x138] sm:$0xff]
        %v5996 = vld [vmem:[%s5955 + $0x140] sm:$0xff]
        %v5997 = vld [vmem:[%s5955 + $0x148] sm:$0xff]
        %v5998 = vld [vmem:[%s5955 + $0x150] sm:$0xff]
        %v5999 = vld [vmem:[%s5955 + $0x158] sm:$0xff]
        %v6000 = vld [vmem:[%s5955 + $0x160] sm:$0xff]
        %v6001 = vld [vmem:[%s5955 + $0x168] sm:$0xff]
        %v6002 = vld [vmem:[%s5955 + $0x170] sm:$0xff]
        %v6003 = vld [vmem:[%s5955 + $0x178] sm:$0xff]
        %v6004 = vld [vmem:[%s5955 + $0x180] sm:$0xff]
        %v6005 = vld [vmem:[%s5955 + $0x188] sm:$0xff]
        %v6006 = vld [vmem:[%s5955 + $0x190] sm:$0xff]
        %v6007 = vld [vmem:[%s5955 + $0x198] sm:$0xff]
        %v6008 = vld [vmem:[%s5955 + $0x1a0] sm:$0xff]
        %v6009 = vld [vmem:[%s5955 + $0x1a8] sm:$0xff]
        %v6010 = vld [vmem:[%s5955 + $0x1b0] sm:$0xff]
        %v6011 = vld [vmem:[%s5955 + $0x1b8] sm:$0xff]
        %v6012 = vld [vmem:[%s5955 + $0x1c0] sm:$0xff]
        %v6013 = vld [vmem:[%s5955 + $0x1c8] sm:$0xff]
        %v6014 = vld [vmem:[%s5955 + $0x1d0] sm:$0xff]
        %v6015 = vld [vmem:[%s5955 + $0x1d8] sm:$0xff]
        %v6016 = vld [vmem:[%s5955 + $0x1e0] sm:$0xff]
        %v6017 = vld [vmem:[%s5955 + $0x1e8] sm:$0xff]
        %v6018 = vld [vmem:[%s5955 + $0x1f0] sm:$0xff]
        %v6019 = vld [vmem:[%s5955 + $0x1f8] sm:$0xff]
        %v6020 = vld [vmem:[%s5955 + $0x200] sm:$0xff]
        %v6021 = vld [vmem:[%s5955 + $0x208] sm:$0xff]
        %v6022 = vld [vmem:[%s5955 + $0x210] sm:$0xff]
        %v6023 = vld [vmem:[%s5955 + $0x218] sm:$0xff]
        %v6024 = vld [vmem:[%s5955 + $0x220] sm:$0xff]
        %v6025 = vld [vmem:[%s5955 + $0x228] sm:$0xff]
        %v6026 = vld [vmem:[%s5955 + $0x230] sm:$0xff]
        %v6027 = vld [vmem:[%s5955 + $0x238] sm:$0xff]
        %v6028 = vld [vmem:[%s5955 + $0x240] sm:$0xff]
        %v6029 = vld [vmem:[%s5955 + $0x248] sm:$0xff]
        %v6030 = vld [vmem:[%s5955 + $0x250] sm:$0xff]
        %v6031 = vld [vmem:[%s5955 + $0x258] sm:$0xff]
        %v6032 = vld [vmem:[%s5955 + $0x260] sm:$0xff]
        %v6033 = vld [vmem:[%s5955 + $0x268] sm:$0xff]
        %v6034 = vld [vmem:[%s5955 + $0x270] sm:$0xff]
        %v6035 = vld [vmem:[%s5955 + $0x278] sm:$0xff]
        %v6036 = vld [vmem:[%s5955 + $0x280] sm:$0xff]
        %v6037 = vld [vmem:[%s5955 + $0x288] sm:$0xff]
        %v6038 = vld [vmem:[%s5955 + $0x290] sm:$0xff]
        %v6039 = vld [vmem:[%s5955 + $0x298] sm:$0xff]
        %v6040 = vld [vmem:[%s5955 + $0x2a0] sm:$0xff]
        %v6041 = vld [vmem:[%s5955 + $0x2a8] sm:$0xff]
        %v6042 = vld [vmem:[%s5955 + $0x2b0] sm:$0xff]
        %v6043 = vld [vmem:[%s5955 + $0x2b8] sm:$0xff]
        %v6044 = vld [vmem:[%s5955 + $0x2c0] sm:$0xff]
        %v6045 = vld [vmem:[%s5955 + $0x2c8] sm:$0xff]
        %v6046 = vld [vmem:[%s5955 + $0x2d0] sm:$0xff]
        %v6047 = vld [vmem:[%s5955 + $0x2d8] sm:$0xff]
        %v6048 = vld [vmem:[%s5955 + $0x2e0] sm:$0xff]
        %v6049 = vld [vmem:[%s5955 + $0x2e8] sm:$0xff]
        %v6050 = vld [vmem:[%s5955 + $0x2f0] sm:$0xff]
        %v6051 = vld [vmem:[%s5955 + $0x2f8] sm:$0xff]
        %6052 = vmatprep.subr.mxu0 %v5987
        %6053 = vmatpush1.msra.mxu0 %v5986
        %6054 = vmatprep.subr.mxu0 %v5985
        %6055 = vmatpush1.msra.mxu0 %v5984
        %6056 = vmatprep.subr.mxu0 %v5983
        %6057 = vmatpush1.msra.mxu0 %v5982
        %6058 = vmatprep.subr.mxu0 %v5981
        %6059 = vmatpush1.msra.mxu0 %v5980
        %6060 = vmatprep.subr.mxu0 %v5979
        %6061 = vmatpush1.msra.mxu0 %v5978
        %6062 = vmatprep.subr.mxu0 %v5977
        %6063 = vmatpush1.msra.mxu0 %v5976
        %6064 = vmatprep.subr.mxu0 %v5975
        %6065 = vmatpush1.msra.mxu0 %v5974
        %6066 = vmatprep.subr.mxu0 %v5973
        %6067 = vmatpush1.msra.mxu0 %v5972
        %6068 = vmatprep.subr.mxu0 %v5971
        %6069 = vmatpush1.msra.mxu0 %v5970
        %6070 = vmatprep.subr.mxu0 %v5969
        %6071 = vmatpush1.msra.mxu0 %v5968
        %6072 = vmatprep.subr.mxu0 %v5967
        %6073 = vmatpush1.msra.mxu0 %v5966
        %6074 = vmatprep.subr.mxu0 %v5965
        %6075 = vmatpush1.msra.mxu0 %v5964
        %6076 = vmatprep.subr.mxu0 %v5963
        %6077 = vmatpush1.msra.mxu0 %v5962
        %6078 = vmatprep.subr.mxu0 %v5961
        %6079 = vmatpush1.msra.mxu0 %v5960
        %6080 = vmatprep.subr.mxu0 %v5959
        %6081 = vmatpush1.msra.mxu0 %v5958
        %6082 = vmatprep.subr.mxu0 %v5957
        %6083 = vmatpush1.msra.mxu0 %v5956
        %6084 = vmatprep.subr.mxu0 %v6019
        %6085 = vmatpush2.msra.mxu0 %v6018
        %6086 = vmatprep.subr.mxu0 %v6017
        %6087 = vmatpush2.msra.mxu0 %v6016
        %6088 = vmatprep.subr.mxu0 %v6015
        %6089 = vmatpush2.msra.mxu0 %v6014
        %6090 = vmatprep.subr.mxu0 %v6013
        %6091 = vmatpush2.msra.mxu0 %v6012
        %6092 = vmatprep.subr.mxu0 %v6011
        %6093 = vmatpush2.msra.mxu0 %v6010
        %6094 = vmatprep.subr.mxu0 %v6009
        %6095 = vmatpush2.msra.mxu0 %v6008
        %6096 = vmatprep.subr.mxu0 %v6007
        %6097 = vmatpush2.msra.mxu0 %v6006
        %6098 = vmatprep.subr.mxu0 %v6005
        %6099 = vmatpush2.msra.mxu0 %v6004
        %6100 = vmatprep.subr.mxu0 %v6003
        %6101 = vmatpush2.msra.mxu0 %v6002
        %6102 = vmatprep.subr.mxu0 %v6001
        %6103 = vmatpush2.msra.mxu0 %v6000
        %6104 = vmatprep.subr.mxu0 %v5999
        %6105 = vmatpush2.msra.mxu0 %v5998
        %6106 = vmatprep.subr.mxu0 %v5997
        %6107 = vmatpush2.msra.mxu0 %v5996
        %6108 = vmatprep.subr.mxu0 %v5995
        %6109 = vmatpush2.msra.mxu0 %v5994
        %6110 = vmatprep.subr.mxu0 %v5993
        %6111 = vmatpush2.msra.mxu0 %v5992
        %6112 = vmatprep.subr.mxu0 %v5991
        %6113 = vmatpush2.msra.mxu0 %v5990
        %6114 = vmatprep.subr.mxu0 %v5989
        %6115 = vmatpush2.msra.mxu0 %v5988
        %6116 = vmatprep.mubr.f32.mxu0 %v5524
        %6117 = vmatmul.mubr.f32.gmra.mxu0 %v5523
        %v6118 = vpop.f32.mrf.mxu0
        %v6119 = vadd.f32 0.0, %v6118
        %v6120 = vpop.f32.mrf.mxu0
        %v6121 = vadd.f32 0.0, %v6120
        %6122 = vdwg.mxu0
        %6123 = vmatprep.subr.mxu0 %v6051
        %6124 = vmatpush1.msra.mxu0 %v6050
        %6125 = vmatprep.subr.mxu0 %v6049
        %6126 = vmatpush1.msra.mxu0 %v6048
        %6127 = vmatprep.subr.mxu0 %v6047
        %6128 = vmatpush1.msra.mxu0 %v6046
        %6129 = vmatprep.subr.mxu0 %v6045
        %6130 = vmatpush1.msra.mxu0 %v6044
        %6131 = vmatprep.subr.mxu0 %v6043
        %6132 = vmatpush1.msra.mxu0 %v6042
        %6133 = vmatprep.subr.mxu0 %v6041
        %6134 = vmatpush1.msra.mxu0 %v6040
        %6135 = vmatprep.subr.mxu0 %v6039
        %6136 = vmatpush1.msra.mxu0 %v6038
        %6137 = vmatprep.subr.mxu0 %v6037
        %6138 = vmatpush1.msra.mxu0 %v6036
        %6139 = vmatprep.subr.mxu0 %v6035
        %6140 = vmatpush1.msra.mxu0 %v6034
        %6141 = vmatprep.subr.mxu0 %v6033
        %6142 = vmatpush1.msra.mxu0 %v6032
        %6143 = vmatprep.subr.mxu0 %v6031
        %6144 = vmatpush1.msra.mxu0 %v6030
        %6145 = vmatprep.subr.mxu0 %v6029
        %6146 = vmatpush1.msra.mxu0 %v6028
        %6147 = vmatprep.subr.mxu0 %v6027
        %6148 = vmatpush1.msra.mxu0 %v6026
        %6149 = vmatprep.subr.mxu0 %v6025
        %6150 = vmatpush1.msra.mxu0 %v6024
        %6151 = vmatprep.subr.mxu0 %v6023
        %6152 = vmatpush1.msra.mxu0 %v6022
        %6153 = vmatprep.subr.mxu0 %v6021
        %6154 = vmatpush1.msra.mxu0 %v6020
        %6155 = vmatprep.subr.mxu0 0.0
        %6156 = vmatpush2.msra.mxu0 0.0
        %6157 = vmatprep.subr.mxu0 0.0
        %6158 = vmatpush2.msra.mxu0 0.0
        %6159 = vmatprep.subr.mxu0 0.0
        %6160 = vmatpush2.msra.mxu0 0.0
        %6161 = vmatprep.subr.mxu0 0.0
        %6162 = vmatpush2.msra.mxu0 0.0
        %6163 = vmatprep.subr.mxu0 0.0
        %6164 = vmatpush2.msra.mxu0 0.0
        %6165 = vmatprep.subr.mxu0 0.0
        %6166 = vmatpush2.msra.mxu0 0.0
        %6167 = vmatprep.subr.mxu0 0.0
        %6168 = vmatpush2.msra.mxu0 0.0
        %6169 = vmatprep.subr.mxu0 0.0
        %6170 = vmatpush2.msra.mxu0 0.0
        %6171 = vmatprep.subr.mxu0 0.0
        %6172 = vmatpush2.msra.mxu0 0.0
        %6173 = vmatprep.subr.mxu0 0.0
        %6174 = vmatpush2.msra.mxu0 0.0
        %6175 = vmatprep.subr.mxu0 0.0
        %6176 = vmatpush2.msra.mxu0 0.0
        %6177 = vmatprep.subr.mxu0 0.0
        %6178 = vmatpush2.msra.mxu0 0.0
        %6179 = vmatprep.subr.mxu0 0.0
        %6180 = vmatpush2.msra.mxu0 0.0
        %6181 = vmatprep.subr.mxu0 0.0
        %6182 = vmatpush2.msra.mxu0 0.0
        %6183 = vmatprep.subr.mxu0 0.0
        %6184 = vmatpush2.msra.mxu0 0.0
        %6185 = vmatprep.subr.mxu0 0.0
        %6186 = vmatpush2.msra.mxu0 0.0
        %6187 = vmatprep.mubr.f32.mxu0 0.0
        %6188 = vmatmul.mubr.f32.gmra.mxu0 %v5525
        %v6189 = vpop.f32.mrf.mxu0
        %v6190 = vadd.f32 %v6119, %v6189
        %v6191 = vpop.f32.mrf.mxu0
        %v6192 = vadd.f32 %v6121, %v6191
        %6193 = vdwg.mxu0
        %v6197 = vrot.slane %v5182, 1
        %v6198 = vrot.slane %v5183, 1
        %v6199 = vrot.slane %v5184, 1
        %6203 = vmatprep.subr.mxu0 %v5987
        %6204 = vmatpush1.msra.mxu0 %v5986
        %6205 = vmatprep.subr.mxu0 %v5985
        %6206 = vmatpush1.msra.mxu0 %v5984
        %6207 = vmatprep.subr.mxu0 %v5983
        %6208 = vmatpush1.msra.mxu0 %v5982
        %6209 = vmatprep.subr.mxu0 %v5981
        %6210 = vmatpush1.msra.mxu0 %v5980
        %6211 = vmatprep.subr.mxu0 %v5979
        %6212 = vmatpush1.msra.mxu0 %v5978
        %6213 = vmatprep.subr.mxu0 %v5977
        %6214 = vmatpush1.msra.mxu0 %v5976
        %6215 = vmatprep.subr.mxu0 %v5975
        %6216 = vmatpush1.msra.mxu0 %v5974
        %6217 = vmatprep.subr.mxu0 %v5973
        %6218 = vmatpush1.msra.mxu0 %v5972
        %6219 = vmatprep.subr.mxu0 %v5971
        %6220 = vmatpush1.msra.mxu0 %v5970
        %6221 = vmatprep.subr.mxu0 %v5969
        %6222 = vmatpush1.msra.mxu0 %v5968
        %6223 = vmatprep.subr.mxu0 %v5967
        %6224 = vmatpush1.msra.mxu0 %v5966
        %6225 = vmatprep.subr.mxu0 %v5965
        %6226 = vmatpush1.msra.mxu0 %v5964
        %6227 = vmatprep.subr.mxu0 %v5963
        %6228 = vmatpush1.msra.mxu0 %v5962
        %6229 = vmatprep.subr.mxu0 %v5961
        %6230 = vmatpush1.msra.mxu0 %v5960
        %6231 = vmatprep.subr.mxu0 %v5959
        %6232 = vmatpush1.msra.mxu0 %v5958
        %6233 = vmatprep.subr.mxu0 %v5957
        %6234 = vmatpush1.msra.mxu0 %v5956
        %6235 = vmatprep.subr.mxu0 %v6019
        %6236 = vmatpush2.msra.mxu0 %v6018
        %6237 = vmatprep.subr.mxu0 %v6017
        %6238 = vmatpush2.msra.mxu0 %v6016
        %6239 = vmatprep.subr.mxu0 %v6015
        %6240 = vmatpush2.msra.mxu0 %v6014
        %6241 = vmatprep.subr.mxu0 %v6013
        %6242 = vmatpush2.msra.mxu0 %v6012
        %6243 = vmatprep.subr.mxu0 %v6011
        %6244 = vmatpush2.msra.mxu0 %v6010
        %6245 = vmatprep.subr.mxu0 %v6009
        %6246 = vmatpush2.msra.mxu0 %v6008
        %6247 = vmatprep.subr.mxu0 %v6007
        %6248 = vmatpush2.msra.mxu0 %v6006
        %6249 = vmatprep.subr.mxu0 %v6005
        %6250 = vmatpush2.msra.mxu0 %v6004
        %6251 = vmatprep.subr.mxu0 %v6003
        %6252 = vmatpush2.msra.mxu0 %v6002
        %6253 = vmatprep.subr.mxu0 %v6001
        %6254 = vmatpush2.msra.mxu0 %v6000
        %6255 = vmatprep.subr.mxu0 %v5999
        %6256 = vmatpush2.msra.mxu0 %v5998
        %6257 = vmatprep.subr.mxu0 %v5997
        %6258 = vmatpush2.msra.mxu0 %v5996
        %6259 = vmatprep.subr.mxu0 %v5995
        %6260 = vmatpush2.msra.mxu0 %v5994
        %6261 = vmatprep.subr.mxu0 %v5993
        %6262 = vmatpush2.msra.mxu0 %v5992
        %6263 = vmatprep.subr.mxu0 %v5991
        %6264 = vmatpush2.msra.mxu0 %v5990
        %6265 = vmatprep.subr.mxu0 %v5989
        %6266 = vmatpush2.msra.mxu0 %v5988
        %6267 = vmatprep.mubr.f32.mxu0 %v6198
        %6268 = vmatmul.mubr.f32.gmra.mxu0 %v6197
        %v6269 = vpop.f32.mrf.mxu0
        %v6270 = vadd.f32 0.0, %v6269
        %v6271 = vpop.f32.mrf.mxu0
        %v6272 = vadd.f32 0.0, %v6271
        %6273 = vdwg.mxu0
        %6274 = vmatprep.subr.mxu0 %v6051
        %6275 = vmatpush1.msra.mxu0 %v6050
        %6276 = vmatprep.subr.mxu0 %v6049
        %6277 = vmatpush1.msra.mxu0 %v6048
        %6278 = vmatprep.subr.mxu0 %v6047
        %6279 = vmatpush1.msra.mxu0 %v6046
        %6280 = vmatprep.subr.mxu0 %v6045
        %6281 = vmatpush1.msra.mxu0 %v6044
        %6282 = vmatprep.subr.mxu0 %v6043
        %6283 = vmatpush1.msra.mxu0 %v6042
        %6284 = vmatprep.subr.mxu0 %v6041
        %6285 = vmatpush1.msra.mxu0 %v6040
        %6286 = vmatprep.subr.mxu0 %v6039
        %6287 = vmatpush1.msra.mxu0 %v6038
        %6288 = vmatprep.subr.mxu0 %v6037
        %6289 = vmatpush1.msra.mxu0 %v6036
        %6290 = vmatprep.subr.mxu0 %v6035
        %6291 = vmatpush1.msra.mxu0 %v6034
        %6292 = vmatprep.subr.mxu0 %v6033
        %6293 = vmatpush1.msra.mxu0 %v6032
        %6294 = vmatprep.subr.mxu0 %v6031
        %6295 = vmatpush1.msra.mxu0 %v6030
        %6296 = vmatprep.subr.mxu0 %v6029
        %6297 = vmatpush1.msra.mxu0 %v6028
        %6298 = vmatprep.subr.mxu0 %v6027
        %6299 = vmatpush1.msra.mxu0 %v6026
        %6300 = vmatprep.subr.mxu0 %v6025
        %6301 = vmatpush1.msra.mxu0 %v6024
        %6302 = vmatprep.subr.mxu0 %v6023
        %6303 = vmatpush1.msra.mxu0 %v6022
        %6304 = vmatprep.subr.mxu0 %v6021
        %6305 = vmatpush1.msra.mxu0 %v6020
        %6306 = vmatprep.subr.mxu0 0.0
        %6307 = vmatpush2.msra.mxu0 0.0
        %6308 = vmatprep.subr.mxu0 0.0
        %6309 = vmatpush2.msra.mxu0 0.0
        %6310 = vmatprep.subr.mxu0 0.0
        %6311 = vmatpush2.msra.mxu0 0.0
        %6312 = vmatprep.subr.mxu0 0.0
        %6313 = vmatpush2.msra.mxu0 0.0
        %6314 = vmatprep.subr.mxu0 0.0
        %6315 = vmatpush2.msra.mxu0 0.0
        %6316 = vmatprep.subr.mxu0 0.0
        %6317 = vmatpush2.msra.mxu0 0.0
        %6318 = vmatprep.subr.mxu0 0.0
        %6319 = vmatpush2.msra.mxu0 0.0
        %6320 = vmatprep.subr.mxu0 0.0
        %6321 = vmatpush2.msra.mxu0 0.0
        %6322 = vmatprep.subr.mxu0 0.0
        %6323 = vmatpush2.msra.mxu0 0.0
        %6324 = vmatprep.subr.mxu0 0.0
        %6325 = vmatpush2.msra.mxu0 0.0
        %6326 = vmatprep.subr.mxu0 0.0
        %6327 = vmatpush2.msra.mxu0 0.0
        %6328 = vmatprep.subr.mxu0 0.0
        %6329 = vmatpush2.msra.mxu0 0.0
        %6330 = vmatprep.subr.mxu0 0.0
        %6331 = vmatpush2.msra.mxu0 0.0
        %6332 = vmatprep.subr.mxu0 0.0
        %6333 = vmatpush2.msra.mxu0 0.0
        %6334 = vmatprep.subr.mxu0 0.0
        %6335 = vmatpush2.msra.mxu0 0.0
        %6336 = vmatprep.subr.mxu0 0.0
        %6337 = vmatpush2.msra.mxu0 0.0
        %6338 = vmatprep.mubr.f32.mxu0 0.0
        %6339 = vmatmul.mubr.f32.gmra.mxu0 %v6199
        %v6340 = vpop.f32.mrf.mxu0
        %v6341 = vadd.f32 %v6270, %v6340
        %v6342 = vpop.f32.mrf.mxu0
        %v6343 = vadd.f32 %v6272, %v6342
        %6344 = vdwg.mxu0
        %v6345 = vadd.f32 %v5809, %v6190
        %v6346 = vadd.f32 %v5811, %v6192
        %v6347 = vadd.f32 %v5951, %v6341
        %v6348 = vadd.f32 %v5953, %v6343
        %s6349 = scalar_lea.vmem %s3, 2304
        %v6350 = vld [vmem:[%s6349] sm:$0xff]
        %v6351 = vld [vmem:[%s6349 + $0x8] sm:$0xff]
        %v6352 = vld [vmem:[%s6349 + $0x10] sm:$0xff]
        %v6353 = vld [vmem:[%s6349 + $0x18] sm:$0xff]
        %v6354 = vld [vmem:[%s6349 + $0x20] sm:$0xff]
        %v6355 = vld [vmem:[%s6349 + $0x28] sm:$0xff]
        %v6356 = vld [vmem:[%s6349 + $0x30] sm:$0xff]
        %v6357 = vld [vmem:[%s6349 + $0x38] sm:$0xff]
        %v6358 = vld [vmem:[%s6349 + $0x40] sm:$0xff]
        %v6359 = vld [vmem:[%s6349 + $0x48] sm:$0xff]
        %v6360 = vld [vmem:[%s6349 + $0x50] sm:$0xff]
        %v6361 = vld [vmem:[%s6349 + $0x58] sm:$0xff]
        %v6362 = vld [vmem:[%s6349 + $0x60] sm:$0xff]
        %v6363 = vld [vmem:[%s6349 + $0x68] sm:$0xff]
        %v6364 = vld [vmem:[%s6349 + $0x70] sm:$0xff]
        %v6365 = vld [vmem:[%s6349 + $0x78] sm:$0xff]
        %v6366 = vld [vmem:[%s6349 + $0x80] sm:$0xff]
        %v6367 = vld [vmem:[%s6349 + $0x88] sm:$0xff]
        %v6368 = vld [vmem:[%s6349 + $0x90] sm:$0xff]
        %v6369 = vld [vmem:[%s6349 + $0x98] sm:$0xff]
        %v6370 = vld [vmem:[%s6349 + $0xa0] sm:$0xff]
        %v6371 = vld [vmem:[%s6349 + $0xa8] sm:$0xff]
        %v6372 = vld [vmem:[%s6349 + $0xb0] sm:$0xff]
        %v6373 = vld [vmem:[%s6349 + $0xb8] sm:$0xff]
        %v6374 = vld [vmem:[%s6349 + $0xc0] sm:$0xff]
        %v6375 = vld [vmem:[%s6349 + $0xc8] sm:$0xff]
        %v6376 = vld [vmem:[%s6349 + $0xd0] sm:$0xff]
        %v6377 = vld [vmem:[%s6349 + $0xd8] sm:$0xff]
        %v6378 = vld [vmem:[%s6349 + $0xe0] sm:$0xff]
        %v6379 = vld [vmem:[%s6349 + $0xe8] sm:$0xff]
        %v6380 = vld [vmem:[%s6349 + $0xf0] sm:$0xff]
        %v6381 = vld [vmem:[%s6349 + $0xf8] sm:$0xff]
        %v6382 = vld [vmem:[%s6349 + $0x100] sm:$0xff]
        %v6383 = vld [vmem:[%s6349 + $0x108] sm:$0xff]
        %v6384 = vld [vmem:[%s6349 + $0x110] sm:$0xff]
        %v6385 = vld [vmem:[%s6349 + $0x118] sm:$0xff]
        %v6386 = vld [vmem:[%s6349 + $0x120] sm:$0xff]
        %v6387 = vld [vmem:[%s6349 + $0x128] sm:$0xff]
        %v6388 = vld [vmem:[%s6349 + $0x130] sm:$0xff]
        %v6389 = vld [vmem:[%s6349 + $0x138] sm:$0xff]
        %v6390 = vld [vmem:[%s6349 + $0x140] sm:$0xff]
        %v6391 = vld [vmem:[%s6349 + $0x148] sm:$0xff]
        %v6392 = vld [vmem:[%s6349 + $0x150] sm:$0xff]
        %v6393 = vld [vmem:[%s6349 + $0x158] sm:$0xff]
        %v6394 = vld [vmem:[%s6349 + $0x160] sm:$0xff]
        %v6395 = vld [vmem:[%s6349 + $0x168] sm:$0xff]
        %v6396 = vld [vmem:[%s6349 + $0x170] sm:$0xff]
        %v6397 = vld [vmem:[%s6349 + $0x178] sm:$0xff]
        %v6398 = vld [vmem:[%s6349 + $0x180] sm:$0xff]
        %v6399 = vld [vmem:[%s6349 + $0x188] sm:$0xff]
        %v6400 = vld [vmem:[%s6349 + $0x190] sm:$0xff]
        %v6401 = vld [vmem:[%s6349 + $0x198] sm:$0xff]
        %v6402 = vld [vmem:[%s6349 + $0x1a0] sm:$0xff]
        %v6403 = vld [vmem:[%s6349 + $0x1a8] sm:$0xff]
        %v6404 = vld [vmem:[%s6349 + $0x1b0] sm:$0xff]
        %v6405 = vld [vmem:[%s6349 + $0x1b8] sm:$0xff]
        %v6406 = vld [vmem:[%s6349 + $0x1c0] sm:$0xff]
        %v6407 = vld [vmem:[%s6349 + $0x1c8] sm:$0xff]
        %v6408 = vld [vmem:[%s6349 + $0x1d0] sm:$0xff]
        %v6409 = vld [vmem:[%s6349 + $0x1d8] sm:$0xff]
        %v6410 = vld [vmem:[%s6349 + $0x1e0] sm:$0xff]
        %v6411 = vld [vmem:[%s6349 + $0x1e8] sm:$0xff]
        %v6412 = vld [vmem:[%s6349 + $0x1f0] sm:$0xff]
        %v6413 = vld [vmem:[%s6349 + $0x1f8] sm:$0xff]
        %v6414 = vld [vmem:[%s6349 + $0x200] sm:$0xff]
        %v6415 = vld [vmem:[%s6349 + $0x208] sm:$0xff]
        %v6416 = vld [vmem:[%s6349 + $0x210] sm:$0xff]
        %v6417 = vld [vmem:[%s6349 + $0x218] sm:$0xff]
        %v6418 = vld [vmem:[%s6349 + $0x220] sm:$0xff]
        %v6419 = vld [vmem:[%s6349 + $0x228] sm:$0xff]
        %v6420 = vld [vmem:[%s6349 + $0x230] sm:$0xff]
        %v6421 = vld [vmem:[%s6349 + $0x238] sm:$0xff]
        %v6422 = vld [vmem:[%s6349 + $0x240] sm:$0xff]
        %v6423 = vld [vmem:[%s6349 + $0x248] sm:$0xff]
        %v6424 = vld [vmem:[%s6349 + $0x250] sm:$0xff]
        %v6425 = vld [vmem:[%s6349 + $0x258] sm:$0xff]
        %v6426 = vld [vmem:[%s6349 + $0x260] sm:$0xff]
        %v6427 = vld [vmem:[%s6349 + $0x268] sm:$0xff]
        %v6428 = vld [vmem:[%s6349 + $0x270] sm:$0xff]
        %v6429 = vld [vmem:[%s6349 + $0x278] sm:$0xff]
        %v6430 = vld [vmem:[%s6349 + $0x280] sm:$0xff]
        %v6431 = vld [vmem:[%s6349 + $0x288] sm:$0xff]
        %v6432 = vld [vmem:[%s6349 + $0x290] sm:$0xff]
        %v6433 = vld [vmem:[%s6349 + $0x298] sm:$0xff]
        %v6434 = vld [vmem:[%s6349 + $0x2a0] sm:$0xff]
        %v6435 = vld [vmem:[%s6349 + $0x2a8] sm:$0xff]
        %v6436 = vld [vmem:[%s6349 + $0x2b0] sm:$0xff]
        %v6437 = vld [vmem:[%s6349 + $0x2b8] sm:$0xff]
        %v6438 = vld [vmem:[%s6349 + $0x2c0] sm:$0xff]
        %v6439 = vld [vmem:[%s6349 + $0x2c8] sm:$0xff]
        %v6440 = vld [vmem:[%s6349 + $0x2d0] sm:$0xff]
        %v6441 = vld [vmem:[%s6349 + $0x2d8] sm:$0xff]
        %v6442 = vld [vmem:[%s6349 + $0x2e0] sm:$0xff]
        %v6443 = vld [vmem:[%s6349 + $0x2e8] sm:$0xff]
        %v6444 = vld [vmem:[%s6349 + $0x2f0] sm:$0xff]
        %v6445 = vld [vmem:[%s6349 + $0x2f8] sm:$0xff]
        %6446 = vmatprep.subr.mxu0 %v6381
        %6447 = vmatpush1.msra.mxu0 %v6380
        %6448 = vmatprep.subr.mxu0 %v6379
        %6449 = vmatpush1.msra.mxu0 %v6378
        %6450 = vmatprep.subr.mxu0 %v6377
        %6451 = vmatpush1.msra.mxu0 %v6376
        %6452 = vmatprep.subr.mxu0 %v6375
        %6453 = vmatpush1.msra.mxu0 %v6374
        %6454 = vmatprep.subr.mxu0 %v6373
        %6455 = vmatpush1.msra.mxu0 %v6372
        %6456 = vmatprep.subr.mxu0 %v6371
        %6457 = vmatpush1.msra.mxu0 %v6370
        %6458 = vmatprep.subr.mxu0 %v6369
        %6459 = vmatpush1.msra.mxu0 %v6368
        %6460 = vmatprep.subr.mxu0 %v6367
        %6461 = vmatpush1.msra.mxu0 %v6366
        %6462 = vmatprep.subr.mxu0 %v6365
        %6463 = vmatpush1.msra.mxu0 %v6364
        %6464 = vmatprep.subr.mxu0 %v6363
        %6465 = vmatpush1.msra.mxu0 %v6362
        %6466 = vmatprep.subr.mxu0 %v6361
        %6467 = vmatpush1.msra.mxu0 %v6360
        %6468 = vmatprep.subr.mxu0 %v6359
        %6469 = vmatpush1.msra.mxu0 %v6358
        %6470 = vmatprep.subr.mxu0 %v6357
        %6471 = vmatpush1.msra.mxu0 %v6356
        %6472 = vmatprep.subr.mxu0 %v6355
        %6473 = vmatpush1.msra.mxu0 %v6354
        %6474 = vmatprep.subr.mxu0 %v6353
        %6475 = vmatpush1.msra.mxu0 %v6352
        %6476 = vmatprep.subr.mxu0 %v6351
        %6477 = vmatpush1.msra.mxu0 %v6350
        %6478 = vmatprep.subr.mxu0 %v6413
        %6479 = vmatpush2.msra.mxu0 %v6412
        %6480 = vmatprep.subr.mxu0 %v6411
        %6481 = vmatpush2.msra.mxu0 %v6410
        %6482 = vmatprep.subr.mxu0 %v6409
        %6483 = vmatpush2.msra.mxu0 %v6408
        %6484 = vmatprep.subr.mxu0 %v6407
        %6485 = vmatpush2.msra.mxu0 %v6406
        %6486 = vmatprep.subr.mxu0 %v6405
        %6487 = vmatpush2.msra.mxu0 %v6404
        %6488 = vmatprep.subr.mxu0 %v6403
        %6489 = vmatpush2.msra.mxu0 %v6402
        %6490 = vmatprep.subr.mxu0 %v6401
        %6491 = vmatpush2.msra.mxu0 %v6400
        %6492 = vmatprep.subr.mxu0 %v6399
        %6493 = vmatpush2.msra.mxu0 %v6398
        %6494 = vmatprep.subr.mxu0 %v6397
        %6495 = vmatpush2.msra.mxu0 %v6396
        %6496 = vmatprep.subr.mxu0 %v6395
        %6497 = vmatpush2.msra.mxu0 %v6394
        %6498 = vmatprep.subr.mxu0 %v6393
        %6499 = vmatpush2.msra.mxu0 %v6392
        %6500 = vmatprep.subr.mxu0 %v6391
        %6501 = vmatpush2.msra.mxu0 %v6390
        %6502 = vmatprep.subr.mxu0 %v6389
        %6503 = vmatpush2.msra.mxu0 %v6388
        %6504 = vmatprep.subr.mxu0 %v6387
        %6505 = vmatpush2.msra.mxu0 %v6386
        %6506 = vmatprep.subr.mxu0 %v6385
        %6507 = vmatpush2.msra.mxu0 %v6384
        %6508 = vmatprep.subr.mxu0 %v6383
        %6509 = vmatpush2.msra.mxu0 %v6382
        %6510 = vmatprep.mubr.f32.mxu0 %v6198
        %6511 = vmatmul.mubr.f32.gmra.mxu0 %v6197
        %v6512 = vpop.f32.mrf.mxu0
        %v6513 = vadd.f32 0.0, %v6512
        %v6514 = vpop.f32.mrf.mxu0
        %v6515 = vadd.f32 0.0, %v6514
        %6516 = vdwg.mxu0
        %6517 = vmatprep.subr.mxu0 %v6445
        %6518 = vmatpush1.msra.mxu0 %v6444
        %6519 = vmatprep.subr.mxu0 %v6443
        %6520 = vmatpush1.msra.mxu0 %v6442
        %6521 = vmatprep.subr.mxu0 %v6441
        %6522 = vmatpush1.msra.mxu0 %v6440
        %6523 = vmatprep.subr.mxu0 %v6439
        %6524 = vmatpush1.msra.mxu0 %v6438
        %6525 = vmatprep.subr.mxu0 %v6437
        %6526 = vmatpush1.msra.mxu0 %v6436
        %6527 = vmatprep.subr.mxu0 %v6435
        %6528 = vmatpush1.msra.mxu0 %v6434
        %6529 = vmatprep.subr.mxu0 %v6433
        %6530 = vmatpush1.msra.mxu0 %v6432
        %6531 = vmatprep.subr.mxu0 %v6431
        %6532 = vmatpush1.msra.mxu0 %v6430
        %6533 = vmatprep.subr.mxu0 %v6429
        %6534 = vmatpush1.msra.mxu0 %v6428
        %6535 = vmatprep.subr.mxu0 %v6427
        %6536 = vmatpush1.msra.mxu0 %v6426
        %6537 = vmatprep.subr.mxu0 %v6425
        %6538 = vmatpush1.msra.mxu0 %v6424
        %6539 = vmatprep.subr.mxu0 %v6423
        %6540 = vmatpush1.msra.mxu0 %v6422
        %6541 = vmatprep.subr.mxu0 %v6421
        %6542 = vmatpush1.msra.mxu0 %v6420
        %6543 = vmatprep.subr.mxu0 %v6419
        %6544 = vmatpush1.msra.mxu0 %v6418
        %6545 = vmatprep.subr.mxu0 %v6417
        %6546 = vmatpush1.msra.mxu0 %v6416
        %6547 = vmatprep.subr.mxu0 %v6415
        %6548 = vmatpush1.msra.mxu0 %v6414
        %6549 = vmatprep.subr.mxu0 0.0
        %6550 = vmatpush2.msra.mxu0 0.0
        %6551 = vmatprep.subr.mxu0 0.0
        %6552 = vmatpush2.msra.mxu0 0.0
        %6553 = vmatprep.subr.mxu0 0.0
        %6554 = vmatpush2.msra.mxu0 0.0
        %6555 = vmatprep.subr.mxu0 0.0
        %6556 = vmatpush2.msra.mxu0 0.0
        %6557 = vmatprep.subr.mxu0 0.0
        %6558 = vmatpush2.msra.mxu0 0.0
        %6559 = vmatprep.subr.mxu0 0.0
        %6560 = vmatpush2.msra.mxu0 0.0
        %6561 = vmatprep.subr.mxu0 0.0
        %6562 = vmatpush2.msra.mxu0 0.0
        %6563 = vmatprep.subr.mxu0 0.0
        %6564 = vmatpush2.msra.mxu0 0.0
        %6565 = vmatprep.subr.mxu0 0.0
        %6566 = vmatpush2.msra.mxu0 0.0
        %6567 = vmatprep.subr.mxu0 0.0
        %6568 = vmatpush2.msra.mxu0 0.0
        %6569 = vmatprep.subr.mxu0 0.0
        %6570 = vmatpush2.msra.mxu0 0.0
        %6571 = vmatprep.subr.mxu0 0.0
        %6572 = vmatpush2.msra.mxu0 0.0
        %6573 = vmatprep.subr.mxu0 0.0
        %6574 = vmatpush2.msra.mxu0 0.0
        %6575 = vmatprep.subr.mxu0 0.0
        %6576 = vmatpush2.msra.mxu0 0.0
        %6577 = vmatprep.subr.mxu0 0.0
        %6578 = vmatpush2.msra.mxu0 0.0
        %6579 = vmatprep.subr.mxu0 0.0
        %6580 = vmatpush2.msra.mxu0 0.0
        %6581 = vmatprep.mubr.f32.mxu0 0.0
        %6582 = vmatmul.mubr.f32.gmra.mxu0 %v6199
        %v6583 = vpop.f32.mrf.mxu0
        %v6584 = vadd.f32 %v6513, %v6583
        %v6585 = vpop.f32.mrf.mxu0
        %v6586 = vadd.f32 %v6515, %v6585
        %6587 = vdwg.mxu0
        %v6588 = vrot.slane %v5173, 2
        %v6589 = vrot.slane %v5174, 2
        %v6590 = vrot.slane %v5175, 2
        %6594 = vmatprep.subr.mxu0 %v6381
        %6595 = vmatpush1.msra.mxu0 %v6380
        %6596 = vmatprep.subr.mxu0 %v6379
        %6597 = vmatpush1.msra.mxu0 %v6378
        %6598 = vmatprep.subr.mxu0 %v6377
        %6599 = vmatpush1.msra.mxu0 %v6376
        %6600 = vmatprep.subr.mxu0 %v6375
        %6601 = vmatpush1.msra.mxu0 %v6374
        %6602 = vmatprep.subr.mxu0 %v6373
        %6603 = vmatpush1.msra.mxu0 %v6372
        %6604 = vmatprep.subr.mxu0 %v6371
        %6605 = vmatpush1.msra.mxu0 %v6370
        %6606 = vmatprep.subr.mxu0 %v6369
        %6607 = vmatpush1.msra.mxu0 %v6368
        %6608 = vmatprep.subr.mxu0 %v6367
        %6609 = vmatpush1.msra.mxu0 %v6366
        %6610 = vmatprep.subr.mxu0 %v6365
        %6611 = vmatpush1.msra.mxu0 %v6364
        %6612 = vmatprep.subr.mxu0 %v6363
        %6613 = vmatpush1.msra.mxu0 %v6362
        %6614 = vmatprep.subr.mxu0 %v6361
        %6615 = vmatpush1.msra.mxu0 %v6360
        %6616 = vmatprep.subr.mxu0 %v6359
        %6617 = vmatpush1.msra.mxu0 %v6358
        %6618 = vmatprep.subr.mxu0 %v6357
        %6619 = vmatpush1.msra.mxu0 %v6356
        %6620 = vmatprep.subr.mxu0 %v6355
        %6621 = vmatpush1.msra.mxu0 %v6354
        %6622 = vmatprep.subr.mxu0 %v6353
        %6623 = vmatpush1.msra.mxu0 %v6352
        %6624 = vmatprep.subr.mxu0 %v6351
        %6625 = vmatpush1.msra.mxu0 %v6350
        %6626 = vmatprep.subr.mxu0 %v6413
        %6627 = vmatpush2.msra.mxu0 %v6412
        %6628 = vmatprep.subr.mxu0 %v6411
        %6629 = vmatpush2.msra.mxu0 %v6410
        %6630 = vmatprep.subr.mxu0 %v6409
        %6631 = vmatpush2.msra.mxu0 %v6408
        %6632 = vmatprep.subr.mxu0 %v6407
        %6633 = vmatpush2.msra.mxu0 %v6406
        %6634 = vmatprep.subr.mxu0 %v6405
        %6635 = vmatpush2.msra.mxu0 %v6404
        %6636 = vmatprep.subr.mxu0 %v6403
        %6637 = vmatpush2.msra.mxu0 %v6402
        %6638 = vmatprep.subr.mxu0 %v6401
        %6639 = vmatpush2.msra.mxu0 %v6400
        %6640 = vmatprep.subr.mxu0 %v6399
        %6641 = vmatpush2.msra.mxu0 %v6398
        %6642 = vmatprep.subr.mxu0 %v6397
        %6643 = vmatpush2.msra.mxu0 %v6396
        %6644 = vmatprep.subr.mxu0 %v6395
        %6645 = vmatpush2.msra.mxu0 %v6394
        %6646 = vmatprep.subr.mxu0 %v6393
        %6647 = vmatpush2.msra.mxu0 %v6392
        %6648 = vmatprep.subr.mxu0 %v6391
        %6649 = vmatpush2.msra.mxu0 %v6390
        %6650 = vmatprep.subr.mxu0 %v6389
        %6651 = vmatpush2.msra.mxu0 %v6388
        %6652 = vmatprep.subr.mxu0 %v6387
        %6653 = vmatpush2.msra.mxu0 %v6386
        %6654 = vmatprep.subr.mxu0 %v6385
        %6655 = vmatpush2.msra.mxu0 %v6384
        %6656 = vmatprep.subr.mxu0 %v6383
        %6657 = vmatpush2.msra.mxu0 %v6382
        %6658 = vmatprep.mubr.f32.mxu0 %v6589
        %6659 = vmatmul.mubr.f32.gmra.mxu0 %v6588
        %v6660 = vpop.f32.mrf.mxu0
        %v6661 = vadd.f32 0.0, %v6660
        %v6662 = vpop.f32.mrf.mxu0
        %v6663 = vadd.f32 0.0, %v6662
        %6664 = vdwg.mxu0
        %6665 = vmatprep.subr.mxu0 %v6445
        %6666 = vmatpush1.msra.mxu0 %v6444
        %6667 = vmatprep.subr.mxu0 %v6443
        %6668 = vmatpush1.msra.mxu0 %v6442
        %6669 = vmatprep.subr.mxu0 %v6441
        %6670 = vmatpush1.msra.mxu0 %v6440
        %6671 = vmatprep.subr.mxu0 %v6439
        %6672 = vmatpush1.msra.mxu0 %v6438
        %6673 = vmatprep.subr.mxu0 %v6437
        %6674 = vmatpush1.msra.mxu0 %v6436
        %6675 = vmatprep.subr.mxu0 %v6435
        %6676 = vmatpush1.msra.mxu0 %v6434
        %6677 = vmatprep.subr.mxu0 %v6433
        %6678 = vmatpush1.msra.mxu0 %v6432
        %6679 = vmatprep.subr.mxu0 %v6431
        %6680 = vmatpush1.msra.mxu0 %v6430
        %6681 = vmatprep.subr.mxu0 %v6429
        %6682 = vmatpush1.msra.mxu0 %v6428
        %6683 = vmatprep.subr.mxu0 %v6427
        %6684 = vmatpush1.msra.mxu0 %v6426
        %6685 = vmatprep.subr.mxu0 %v6425
        %6686 = vmatpush1.msra.mxu0 %v6424
        %6687 = vmatprep.subr.mxu0 %v6423
        %6688 = vmatpush1.msra.mxu0 %v6422
        %6689 = vmatprep.subr.mxu0 %v6421
        %6690 = vmatpush1.msra.mxu0 %v6420
        %6691 = vmatprep.subr.mxu0 %v6419
        %6692 = vmatpush1.msra.mxu0 %v6418
        %6693 = vmatprep.subr.mxu0 %v6417
        %6694 = vmatpush1.msra.mxu0 %v6416
        %6695 = vmatprep.subr.mxu0 %v6415
        %6696 = vmatpush1.msra.mxu0 %v6414
        %6697 = vmatprep.subr.mxu0 0.0
        %6698 = vmatpush2.msra.mxu0 0.0
        %6699 = vmatprep.subr.mxu0 0.0
        %6700 = vmatpush2.msra.mxu0 0.0
        %6701 = vmatprep.subr.mxu0 0.0
        %6702 = vmatpush2.msra.mxu0 0.0
        %6703 = vmatprep.subr.mxu0 0.0
        %6704 = vmatpush2.msra.mxu0 0.0
        %6705 = vmatprep.subr.mxu0 0.0
        %6706 = vmatpush2.msra.mxu0 0.0
        %6707 = vmatprep.subr.mxu0 0.0
        %6708 = vmatpush2.msra.mxu0 0.0
        %6709 = vmatprep.subr.mxu0 0.0
        %6710 = vmatpush2.msra.mxu0 0.0
        %6711 = vmatprep.subr.mxu0 0.0
        %6712 = vmatpush2.msra.mxu0 0.0
        %6713 = vmatprep.subr.mxu0 0.0
        %6714 = vmatpush2.msra.mxu0 0.0
        %6715 = vmatprep.subr.mxu0 0.0
        %6716 = vmatpush2.msra.mxu0 0.0
        %6717 = vmatprep.subr.mxu0 0.0
        %6718 = vmatpush2.msra.mxu0 0.0
        %6719 = vmatprep.subr.mxu0 0.0
        %6720 = vmatpush2.msra.mxu0 0.0
        %6721 = vmatprep.subr.mxu0 0.0
        %6722 = vmatpush2.msra.mxu0 0.0
        %6723 = vmatprep.subr.mxu0 0.0
        %6724 = vmatpush2.msra.mxu0 0.0
        %6725 = vmatprep.subr.mxu0 0.0
        %6726 = vmatpush2.msra.mxu0 0.0
        %6727 = vmatprep.subr.mxu0 0.0
        %6728 = vmatpush2.msra.mxu0 0.0
        %6729 = vmatprep.mubr.f32.mxu0 0.0
        %6730 = vmatmul.mubr.f32.gmra.mxu0 %v6590
        %v6731 = vpop.f32.mrf.mxu0
        %v6732 = vadd.f32 %v6661, %v6731
        %v6733 = vpop.f32.mrf.mxu0
        %v6734 = vadd.f32 %v6663, %v6733
        %6735 = vdwg.mxu0
        %v6736 = vadd.f32 %v6345, %v6584
        %v6737 = vadd.f32 %v6346, %v6586
        %v6738 = vadd.f32 %v6347, %v6732
        %v6739 = vadd.f32 %v6348, %v6734
        %s6740 = scalar_lea.vmem %s3, 3072
        %v6741 = vld [vmem:[%s6740] sm:$0xff]
        %v6742 = vld [vmem:[%s6740 + $0x8] sm:$0xff]
        %v6743 = vld [vmem:[%s6740 + $0x10] sm:$0xff]
        %v6744 = vld [vmem:[%s6740 + $0x18] sm:$0xff]
        %v6745 = vld [vmem:[%s6740 + $0x20] sm:$0xff]
        %v6746 = vld [vmem:[%s6740 + $0x28] sm:$0xff]
        %v6747 = vld [vmem:[%s6740 + $0x30] sm:$0xff]
        %v6748 = vld [vmem:[%s6740 + $0x38] sm:$0xff]
        %v6749 = vld [vmem:[%s6740 + $0x40] sm:$0xff]
        %v6750 = vld [vmem:[%s6740 + $0x48] sm:$0xff]
        %v6751 = vld [vmem:[%s6740 + $0x50] sm:$0xff]
        %v6752 = vld [vmem:[%s6740 + $0x58] sm:$0xff]
        %v6753 = vld [vmem:[%s6740 + $0x60] sm:$0xff]
        %v6754 = vld [vmem:[%s6740 + $0x68] sm:$0xff]
        %v6755 = vld [vmem:[%s6740 + $0x70] sm:$0xff]
        %v6756 = vld [vmem:[%s6740 + $0x78] sm:$0xff]
        %v6757 = vld [vmem:[%s6740 + $0x80] sm:$0xff]
        %v6758 = vld [vmem:[%s6740 + $0x88] sm:$0xff]
        %v6759 = vld [vmem:[%s6740 + $0x90] sm:$0xff]
        %v6760 = vld [vmem:[%s6740 + $0x98] sm:$0xff]
        %v6761 = vld [vmem:[%s6740 + $0xa0] sm:$0xff]
        %v6762 = vld [vmem:[%s6740 + $0xa8] sm:$0xff]
        %v6763 = vld [vmem:[%s6740 + $0xb0] sm:$0xff]
        %v6764 = vld [vmem:[%s6740 + $0xb8] sm:$0xff]
        %v6765 = vld [vmem:[%s6740 + $0xc0] sm:$0xff]
        %v6766 = vld [vmem:[%s6740 + $0xc8] sm:$0xff]
        %v6767 = vld [vmem:[%s6740 + $0xd0] sm:$0xff]
        %v6768 = vld [vmem:[%s6740 + $0xd8] sm:$0xff]
        %v6769 = vld [vmem:[%s6740 + $0xe0] sm:$0xff]
        %v6770 = vld [vmem:[%s6740 + $0xe8] sm:$0xff]
        %v6771 = vld [vmem:[%s6740 + $0xf0] sm:$0xff]
        %v6772 = vld [vmem:[%s6740 + $0xf8] sm:$0xff]
        %v6773 = vld [vmem:[%s6740 + $0x100] sm:$0xff]
        %v6774 = vld [vmem:[%s6740 + $0x108] sm:$0xff]
        %v6775 = vld [vmem:[%s6740 + $0x110] sm:$0xff]
        %v6776 = vld [vmem:[%s6740 + $0x118] sm:$0xff]
        %v6777 = vld [vmem:[%s6740 + $0x120] sm:$0xff]
        %v6778 = vld [vmem:[%s6740 + $0x128] sm:$0xff]
        %v6779 = vld [vmem:[%s6740 + $0x130] sm:$0xff]
        %v6780 = vld [vmem:[%s6740 + $0x138] sm:$0xff]
        %v6781 = vld [vmem:[%s6740 + $0x140] sm:$0xff]
        %v6782 = vld [vmem:[%s6740 + $0x148] sm:$0xff]
        %v6783 = vld [vmem:[%s6740 + $0x150] sm:$0xff]
        %v6784 = vld [vmem:[%s6740 + $0x158] sm:$0xff]
        %v6785 = vld [vmem:[%s6740 + $0x160] sm:$0xff]
        %v6786 = vld [vmem:[%s6740 + $0x168] sm:$0xff]
        %v6787 = vld [vmem:[%s6740 + $0x170] sm:$0xff]
        %v6788 = vld [vmem:[%s6740 + $0x178] sm:$0xff]
        %v6789 = vld [vmem:[%s6740 + $0x180] sm:$0xff]
        %v6790 = vld [vmem:[%s6740 + $0x188] sm:$0xff]
        %v6791 = vld [vmem:[%s6740 + $0x190] sm:$0xff]
        %v6792 = vld [vmem:[%s6740 + $0x198] sm:$0xff]
        %v6793 = vld [vmem:[%s6740 + $0x1a0] sm:$0xff]
        %v6794 = vld [vmem:[%s6740 + $0x1a8] sm:$0xff]
        %v6795 = vld [vmem:[%s6740 + $0x1b0] sm:$0xff]
        %v6796 = vld [vmem:[%s6740 + $0x1b8] sm:$0xff]
        %v6797 = vld [vmem:[%s6740 + $0x1c0] sm:$0xff]
        %v6798 = vld [vmem:[%s6740 + $0x1c8] sm:$0xff]
        %v6799 = vld [vmem:[%s6740 + $0x1d0] sm:$0xff]
        %v6800 = vld [vmem:[%s6740 + $0x1d8] sm:$0xff]
        %v6801 = vld [vmem:[%s6740 + $0x1e0] sm:$0xff]
        %v6802 = vld [vmem:[%s6740 + $0x1e8] sm:$0xff]
        %v6803 = vld [vmem:[%s6740 + $0x1f0] sm:$0xff]
        %v6804 = vld [vmem:[%s6740 + $0x1f8] sm:$0xff]
        %v6805 = vld [vmem:[%s6740 + $0x200] sm:$0xff]
        %v6806 = vld [vmem:[%s6740 + $0x208] sm:$0xff]
        %v6807 = vld [vmem:[%s6740 + $0x210] sm:$0xff]
        %v6808 = vld [vmem:[%s6740 + $0x218] sm:$0xff]
        %v6809 = vld [vmem:[%s6740 + $0x220] sm:$0xff]
        %v6810 = vld [vmem:[%s6740 + $0x228] sm:$0xff]
        %v6811 = vld [vmem:[%s6740 + $0x230] sm:$0xff]
        %v6812 = vld [vmem:[%s6740 + $0x238] sm:$0xff]
        %v6813 = vld [vmem:[%s6740 + $0x240] sm:$0xff]
        %v6814 = vld [vmem:[%s6740 + $0x248] sm:$0xff]
        %v6815 = vld [vmem:[%s6740 + $0x250] sm:$0xff]
        %v6816 = vld [vmem:[%s6740 + $0x258] sm:$0xff]
        %v6817 = vld [vmem:[%s6740 + $0x260] sm:$0xff]
        %v6818 = vld [vmem:[%s6740 + $0x268] sm:$0xff]
        %v6819 = vld [vmem:[%s6740 + $0x270] sm:$0xff]
        %v6820 = vld [vmem:[%s6740 + $0x278] sm:$0xff]
        %v6821 = vld [vmem:[%s6740 + $0x280] sm:$0xff]
        %v6822 = vld [vmem:[%s6740 + $0x288] sm:$0xff]
        %v6823 = vld [vmem:[%s6740 + $0x290] sm:$0xff]
        %v6824 = vld [vmem:[%s6740 + $0x298] sm:$0xff]
        %v6825 = vld [vmem:[%s6740 + $0x2a0] sm:$0xff]
        %v6826 = vld [vmem:[%s6740 + $0x2a8] sm:$0xff]
        %v6827 = vld [vmem:[%s6740 + $0x2b0] sm:$0xff]
        %v6828 = vld [vmem:[%s6740 + $0x2b8] sm:$0xff]
        %v6829 = vld [vmem:[%s6740 + $0x2c0] sm:$0xff]
        %v6830 = vld [vmem:[%s6740 + $0x2c8] sm:$0xff]
        %v6831 = vld [vmem:[%s6740 + $0x2d0] sm:$0xff]
        %v6832 = vld [vmem:[%s6740 + $0x2d8] sm:$0xff]
        %v6833 = vld [vmem:[%s6740 + $0x2e0] sm:$0xff]
        %v6834 = vld [vmem:[%s6740 + $0x2e8] sm:$0xff]
        %v6835 = vld [vmem:[%s6740 + $0x2f0] sm:$0xff]
        %v6836 = vld [vmem:[%s6740 + $0x2f8] sm:$0xff]
        %6837 = vmatprep.subr.mxu0 %v6772
        %6838 = vmatpush1.msra.mxu0 %v6771
        %6839 = vmatprep.subr.mxu0 %v6770
        %6840 = vmatpush1.msra.mxu0 %v6769
        %6841 = vmatprep.subr.mxu0 %v6768
        %6842 = vmatpush1.msra.mxu0 %v6767
        %6843 = vmatprep.subr.mxu0 %v6766
        %6844 = vmatpush1.msra.mxu0 %v6765
        %6845 = vmatprep.subr.mxu0 %v6764
        %6846 = vmatpush1.msra.mxu0 %v6763
        %6847 = vmatprep.subr.mxu0 %v6762
        %6848 = vmatpush1.msra.mxu0 %v6761
        %6849 = vmatprep.subr.mxu0 %v6760
        %6850 = vmatpush1.msra.mxu0 %v6759
        %6851 = vmatprep.subr.mxu0 %v6758
        %6852 = vmatpush1.msra.mxu0 %v6757
        %6853 = vmatprep.subr.mxu0 %v6756
        %6854 = vmatpush1.msra.mxu0 %v6755
        %6855 = vmatprep.subr.mxu0 %v6754
        %6856 = vmatpush1.msra.mxu0 %v6753
        %6857 = vmatprep.subr.mxu0 %v6752
        %6858 = vmatpush1.msra.mxu0 %v6751
        %6859 = vmatprep.subr.mxu0 %v6750
        %6860 = vmatpush1.msra.mxu0 %v6749
        %6861 = vmatprep.subr.mxu0 %v6748
        %6862 = vmatpush1.msra.mxu0 %v6747
        %6863 = vmatprep.subr.mxu0 %v6746
        %6864 = vmatpush1.msra.mxu0 %v6745
        %6865 = vmatprep.subr.mxu0 %v6744
        %6866 = vmatpush1.msra.mxu0 %v6743
        %6867 = vmatprep.subr.mxu0 %v6742
        %6868 = vmatpush1.msra.mxu0 %v6741
        %6869 = vmatprep.subr.mxu0 %v6804
        %6870 = vmatpush2.msra.mxu0 %v6803
        %6871 = vmatprep.subr.mxu0 %v6802
        %6872 = vmatpush2.msra.mxu0 %v6801
        %6873 = vmatprep.subr.mxu0 %v6800
        %6874 = vmatpush2.msra.mxu0 %v6799
        %6875 = vmatprep.subr.mxu0 %v6798
        %6876 = vmatpush2.msra.mxu0 %v6797
        %6877 = vmatprep.subr.mxu0 %v6796
        %6878 = vmatpush2.msra.mxu0 %v6795
        %6879 = vmatprep.subr.mxu0 %v6794
        %6880 = vmatpush2.msra.mxu0 %v6793
        %6881 = vmatprep.subr.mxu0 %v6792
        %6882 = vmatpush2.msra.mxu0 %v6791
        %6883 = vmatprep.subr.mxu0 %v6790
        %6884 = vmatpush2.msra.mxu0 %v6789
        %6885 = vmatprep.subr.mxu0 %v6788
        %6886 = vmatpush2.msra.mxu0 %v6787
        %6887 = vmatprep.subr.mxu0 %v6786
        %6888 = vmatpush2.msra.mxu0 %v6785
        %6889 = vmatprep.subr.mxu0 %v6784
        %6890 = vmatpush2.msra.mxu0 %v6783
        %6891 = vmatprep.subr.mxu0 %v6782
        %6892 = vmatpush2.msra.mxu0 %v6781
        %6893 = vmatprep.subr.mxu0 %v6780
        %6894 = vmatpush2.msra.mxu0 %v6779
        %6895 = vmatprep.subr.mxu0 %v6778
        %6896 = vmatpush2.msra.mxu0 %v6777
        %6897 = vmatprep.subr.mxu0 %v6776
        %6898 = vmatpush2.msra.mxu0 %v6775
        %6899 = vmatprep.subr.mxu0 %v6774
        %6900 = vmatpush2.msra.mxu0 %v6773
        %6901 = vmatprep.mubr.f32.mxu0 %v6589
        %6902 = vmatmul.mubr.f32.gmra.mxu0 %v6588
        %v6903 = vpop.f32.mrf.mxu0
        %v6904 = vadd.f32 0.0, %v6903
        %v6905 = vpop.f32.mrf.mxu0
        %v6906 = vadd.f32 0.0, %v6905
        %6907 = vdwg.mxu0
        %6908 = vmatprep.subr.mxu0 %v6836
        %6909 = vmatpush1.msra.mxu0 %v6835
        %6910 = vmatprep.subr.mxu0 %v6834
        %6911 = vmatpush1.msra.mxu0 %v6833
        %6912 = vmatprep.subr.mxu0 %v6832
        %6913 = vmatpush1.msra.mxu0 %v6831
        %6914 = vmatprep.subr.mxu0 %v6830
        %6915 = vmatpush1.msra.mxu0 %v6829
        %6916 = vmatprep.subr.mxu0 %v6828
        %6917 = vmatpush1.msra.mxu0 %v6827
        %6918 = vmatprep.subr.mxu0 %v6826
        %6919 = vmatpush1.msra.mxu0 %v6825
        %6920 = vmatprep.subr.mxu0 %v6824
        %6921 = vmatpush1.msra.mxu0 %v6823
        %6922 = vmatprep.subr.mxu0 %v6822
        %6923 = vmatpush1.msra.mxu0 %v6821
        %6924 = vmatprep.subr.mxu0 %v6820
        %6925 = vmatpush1.msra.mxu0 %v6819
        %6926 = vmatprep.subr.mxu0 %v6818
        %6927 = vmatpush1.msra.mxu0 %v6817
        %6928 = vmatprep.subr.mxu0 %v6816
        %6929 = vmatpush1.msra.mxu0 %v6815
        %6930 = vmatprep.subr.mxu0 %v6814
        %6931 = vmatpush1.msra.mxu0 %v6813
        %6932 = vmatprep.subr.mxu0 %v6812
        %6933 = vmatpush1.msra.mxu0 %v6811
        %6934 = vmatprep.subr.mxu0 %v6810
        %6935 = vmatpush1.msra.mxu0 %v6809
        %6936 = vmatprep.subr.mxu0 %v6808
        %6937 = vmatpush1.msra.mxu0 %v6807
        %6938 = vmatprep.subr.mxu0 %v6806
        %6939 = vmatpush1.msra.mxu0 %v6805
        %6940 = vmatprep.subr.mxu0 0.0
        %6941 = vmatpush2.msra.mxu0 0.0
        %6942 = vmatprep.subr.mxu0 0.0
        %6943 = vmatpush2.msra.mxu0 0.0
        %6944 = vmatprep.subr.mxu0 0.0
        %6945 = vmatpush2.msra.mxu0 0.0
        %6946 = vmatprep.subr.mxu0 0.0
        %6947 = vmatpush2.msra.mxu0 0.0
        %6948 = vmatprep.subr.mxu0 0.0
        %6949 = vmatpush2.msra.mxu0 0.0
        %6950 = vmatprep.subr.mxu0 0.0
        %6951 = vmatpush2.msra.mxu0 0.0
        %6952 = vmatprep.subr.mxu0 0.0
        %6953 = vmatpush2.msra.mxu0 0.0
        %6954 = vmatprep.subr.mxu0 0.0
        %6955 = vmatpush2.msra.mxu0 0.0
        %6956 = vmatprep.subr.mxu0 0.0
        %6957 = vmatpush2.msra.mxu0 0.0
        %6958 = vmatprep.subr.mxu0 0.0
        %6959 = vmatpush2.msra.mxu0 0.0
        %6960 = vmatprep.subr.mxu0 0.0
        %6961 = vmatpush2.msra.mxu0 0.0
        %6962 = vmatprep.subr.mxu0 0.0
        %6963 = vmatpush2.msra.mxu0 0.0
        %6964 = vmatprep.subr.mxu0 0.0
        %6965 = vmatpush2.msra.mxu0 0.0
        %6966 = vmatprep.subr.mxu0 0.0
        %6967 = vmatpush2.msra.mxu0 0.0
        %6968 = vmatprep.subr.mxu0 0.0
        %6969 = vmatpush2.msra.mxu0 0.0
        %6970 = vmatprep.subr.mxu0 0.0
        %6971 = vmatpush2.msra.mxu0 0.0
        %6972 = vmatprep.mubr.f32.mxu0 0.0
        %6973 = vmatmul.mubr.f32.gmra.mxu0 %v6590
        %v6974 = vpop.f32.mrf.mxu0
        %v6975 = vadd.f32 %v6904, %v6974
        %v6976 = vpop.f32.mrf.mxu0
        %v6977 = vadd.f32 %v6906, %v6976
        %6978 = vdwg.mxu0
        %v6979 = vrot.slane %v5182, 2
        %v6980 = vrot.slane %v5183, 2
        %v6981 = vrot.slane %v5184, 2
        %6985 = vmatprep.subr.mxu0 %v6772
        %6986 = vmatpush1.msra.mxu0 %v6771
        %6987 = vmatprep.subr.mxu0 %v6770
        %6988 = vmatpush1.msra.mxu0 %v6769
        %6989 = vmatprep.subr.mxu0 %v6768
        %6990 = vmatpush1.msra.mxu0 %v6767
        %6991 = vmatprep.subr.mxu0 %v6766
        %6992 = vmatpush1.msra.mxu0 %v6765
        %6993 = vmatprep.subr.mxu0 %v6764
        %6994 = vmatpush1.msra.mxu0 %v6763
        %6995 = vmatprep.subr.mxu0 %v6762
        %6996 = vmatpush1.msra.mxu0 %v6761
        %6997 = vmatprep.subr.mxu0 %v6760
        %6998 = vmatpush1.msra.mxu0 %v6759
        %6999 = vmatprep.subr.mxu0 %v6758
        %7000 = vmatpush1.msra.mxu0 %v6757
        %7001 = vmatprep.subr.mxu0 %v6756
        %7002 = vmatpush1.msra.mxu0 %v6755
        %7003 = vmatprep.subr.mxu0 %v6754
        %7004 = vmatpush1.msra.mxu0 %v6753
        %7005 = vmatprep.subr.mxu0 %v6752
        %7006 = vmatpush1.msra.mxu0 %v6751
        %7007 = vmatprep.subr.mxu0 %v6750
        %7008 = vmatpush1.msra.mxu0 %v6749
        %7009 = vmatprep.subr.mxu0 %v6748
        %7010 = vmatpush1.msra.mxu0 %v6747
        %7011 = vmatprep.subr.mxu0 %v6746
        %7012 = vmatpush1.msra.mxu0 %v6745
        %7013 = vmatprep.subr.mxu0 %v6744
        %7014 = vmatpush1.msra.mxu0 %v6743
        %7015 = vmatprep.subr.mxu0 %v6742
        %7016 = vmatpush1.msra.mxu0 %v6741
        %7017 = vmatprep.subr.mxu0 %v6804
        %7018 = vmatpush2.msra.mxu0 %v6803
        %7019 = vmatprep.subr.mxu0 %v6802
        %7020 = vmatpush2.msra.mxu0 %v6801
        %7021 = vmatprep.subr.mxu0 %v6800
        %7022 = vmatpush2.msra.mxu0 %v6799
        %7023 = vmatprep.subr.mxu0 %v6798
        %7024 = vmatpush2.msra.mxu0 %v6797
        %7025 = vmatprep.subr.mxu0 %v6796
        %7026 = vmatpush2.msra.mxu0 %v6795
        %7027 = vmatprep.subr.mxu0 %v6794
        %7028 = vmatpush2.msra.mxu0 %v6793
        %7029 = vmatprep.subr.mxu0 %v6792
        %7030 = vmatpush2.msra.mxu0 %v6791
        %7031 = vmatprep.subr.mxu0 %v6790
        %7032 = vmatpush2.msra.mxu0 %v6789
        %7033 = vmatprep.subr.mxu0 %v6788
        %7034 = vmatpush2.msra.mxu0 %v6787
        %7035 = vmatprep.subr.mxu0 %v6786
        %7036 = vmatpush2.msra.mxu0 %v6785
        %7037 = vmatprep.subr.mxu0 %v6784
        %7038 = vmatpush2.msra.mxu0 %v6783
        %7039 = vmatprep.subr.mxu0 %v6782
        %7040 = vmatpush2.msra.mxu0 %v6781
        %7041 = vmatprep.subr.mxu0 %v6780
        %7042 = vmatpush2.msra.mxu0 %v6779
        %7043 = vmatprep.subr.mxu0 %v6778
        %7044 = vmatpush2.msra.mxu0 %v6777
        %7045 = vmatprep.subr.mxu0 %v6776
        %7046 = vmatpush2.msra.mxu0 %v6775
        %7047 = vmatprep.subr.mxu0 %v6774
        %7048 = vmatpush2.msra.mxu0 %v6773
        %7049 = vmatprep.mubr.f32.mxu0 %v6980
        %7050 = vmatmul.mubr.f32.gmra.mxu0 %v6979
        %v7051 = vpop.f32.mrf.mxu0
        %v7052 = vadd.f32 0.0, %v7051
        %v7053 = vpop.f32.mrf.mxu0
        %v7054 = vadd.f32 0.0, %v7053
        %7055 = vdwg.mxu0
        %7056 = vmatprep.subr.mxu0 %v6836
        %7057 = vmatpush1.msra.mxu0 %v6835
        %7058 = vmatprep.subr.mxu0 %v6834
        %7059 = vmatpush1.msra.mxu0 %v6833
        %7060 = vmatprep.subr.mxu0 %v6832
        %7061 = vmatpush1.msra.mxu0 %v6831
        %7062 = vmatprep.subr.mxu0 %v6830
        %7063 = vmatpush1.msra.mxu0 %v6829
        %7064 = vmatprep.subr.mxu0 %v6828
        %7065 = vmatpush1.msra.mxu0 %v6827
        %7066 = vmatprep.subr.mxu0 %v6826
        %7067 = vmatpush1.msra.mxu0 %v6825
        %7068 = vmatprep.subr.mxu0 %v6824
        %7069 = vmatpush1.msra.mxu0 %v6823
        %7070 = vmatprep.subr.mxu0 %v6822
        %7071 = vmatpush1.msra.mxu0 %v6821
        %7072 = vmatprep.subr.mxu0 %v6820
        %7073 = vmatpush1.msra.mxu0 %v6819
        %7074 = vmatprep.subr.mxu0 %v6818
        %7075 = vmatpush1.msra.mxu0 %v6817
        %7076 = vmatprep.subr.mxu0 %v6816
        %7077 = vmatpush1.msra.mxu0 %v6815
        %7078 = vmatprep.subr.mxu0 %v6814
        %7079 = vmatpush1.msra.mxu0 %v6813
        %7080 = vmatprep.subr.mxu0 %v6812
        %7081 = vmatpush1.msra.mxu0 %v6811
        %7082 = vmatprep.subr.mxu0 %v6810
        %7083 = vmatpush1.msra.mxu0 %v6809
        %7084 = vmatprep.subr.mxu0 %v6808
        %7085 = vmatpush1.msra.mxu0 %v6807
        %7086 = vmatprep.subr.mxu0 %v6806
        %7087 = vmatpush1.msra.mxu0 %v6805
        %7088 = vmatprep.subr.mxu0 0.0
        %7089 = vmatpush2.msra.mxu0 0.0
        %7090 = vmatprep.subr.mxu0 0.0
        %7091 = vmatpush2.msra.mxu0 0.0
        %7092 = vmatprep.subr.mxu0 0.0
        %7093 = vmatpush2.msra.mxu0 0.0
        %7094 = vmatprep.subr.mxu0 0.0
        %7095 = vmatpush2.msra.mxu0 0.0
        %7096 = vmatprep.subr.mxu0 0.0
        %7097 = vmatpush2.msra.mxu0 0.0
        %7098 = vmatprep.subr.mxu0 0.0
        %7099 = vmatpush2.msra.mxu0 0.0
        %7100 = vmatprep.subr.mxu0 0.0
        %7101 = vmatpush2.msra.mxu0 0.0
        %7102 = vmatprep.subr.mxu0 0.0
        %7103 = vmatpush2.msra.mxu0 0.0
        %7104 = vmatprep.subr.mxu0 0.0
        %7105 = vmatpush2.msra.mxu0 0.0
        %7106 = vmatprep.subr.mxu0 0.0
        %7107 = vmatpush2.msra.mxu0 0.0
        %7108 = vmatprep.subr.mxu0 0.0
        %7109 = vmatpush2.msra.mxu0 0.0
        %7110 = vmatprep.subr.mxu0 0.0
        %7111 = vmatpush2.msra.mxu0 0.0
        %7112 = vmatprep.subr.mxu0 0.0
        %7113 = vmatpush2.msra.mxu0 0.0
        %7114 = vmatprep.subr.mxu0 0.0
        %7115 = vmatpush2.msra.mxu0 0.0
        %7116 = vmatprep.subr.mxu0 0.0
        %7117 = vmatpush2.msra.mxu0 0.0
        %7118 = vmatprep.subr.mxu0 0.0
        %7119 = vmatpush2.msra.mxu0 0.0
        %7120 = vmatprep.mubr.f32.mxu0 0.0
        %7121 = vmatmul.mubr.f32.gmra.mxu0 %v6981
        %v7122 = vpop.f32.mrf.mxu0
        %v7123 = vadd.f32 %v7052, %v7122
        %v7124 = vpop.f32.mrf.mxu0
        %v7125 = vadd.f32 %v7054, %v7124
        %7126 = vdwg.mxu0
        %v7127 = vadd.f32 %v6736, %v6975
        %v7128 = vadd.f32 %v6737, %v6977
        %v7129 = vadd.f32 %v6738, %v7123
        %v7130 = vadd.f32 %v6739, %v7125
        %v7131 = vmax.f32 %v7127, %v7129
        %v7132 = vmax.f32 %v7128, %v7130
        %v7133 = vmax.f32 %v7131, %v7132
        %v7134 = vld [vmem:[%s4] sm:$0x1]
        %v7136 = vlaneseq
        %v7137 = vshrl.u32 %v7136, 7
        %v7138 = vsub.s32 0, %v7137
        %v7139 = vrot.slane %v7134, %v7138
        %v7141 = vadd.f32 %v7133, %v7139
        %v7142 = vld [vmem:[%s5] sm:$0xff]
        %v7143 = vld [vmem:[%s5 + $0x8] sm:$0xff]
        %v7144 = vld [vmem:[%s5 + $0x10] sm:$0xff]
        %v7145 = vld [vmem:[%s5 + $0x18] sm:$0xff]
        %v7146 = vld [vmem:[%s5 + $0x20] sm:$0xff]
        %v7147 = vld [vmem:[%s5 + $0x28] sm:$0xff]
        %v7148 = vld [vmem:[%s5 + $0x30] sm:$0xff]
        %v7149 = vld [vmem:[%s5 + $0x38] sm:$0xff]
        %v7150 = vld [vmem:[%s5 + $0x40] sm:$0xff]
        %v7151 = vld [vmem:[%s5 + $0x48] sm:$0xff]
        %v7152 = vld [vmem:[%s5 + $0x50] sm:$0xff]
        %v7153 = vld [vmem:[%s5 + $0x58] sm:$0xff]
        %v7154 = vld [vmem:[%s5 + $0x60] sm:$0xff]
        %v7155 = vld [vmem:[%s5 + $0x68] sm:$0xff]
        %v7156 = vld [vmem:[%s5 + $0x70] sm:$0xff]
        %v7157 = vld [vmem:[%s5 + $0x78] sm:$0xff]
        %s7158 = scalar_lea.vmem %s5, 128
        %v7159 = vld [vmem:[%s7158] sm:$0xff]
        %v7160 = vld [vmem:[%s7158 + $0x8] sm:$0xff]
        %v7161 = vld [vmem:[%s7158 + $0x10] sm:$0xff]
        %v7162 = vld [vmem:[%s7158 + $0x18] sm:$0xff]
        %v7163 = vld [vmem:[%s7158 + $0x20] sm:$0xff]
        %v7164 = vld [vmem:[%s7158 + $0x28] sm:$0xff]
        %v7165 = vld [vmem:[%s7158 + $0x30] sm:$0xff]
        %v7166 = vld [vmem:[%s7158 + $0x38] sm:$0xff]
        %v7167 = vld [vmem:[%s7158 + $0x40] sm:$0xff]
        %v7168 = vld [vmem:[%s7158 + $0x48] sm:$0xff]
        %v7169 = vld [vmem:[%s7158 + $0x50] sm:$0xff]
        %v7170 = vld [vmem:[%s7158 + $0x58] sm:$0xff]
        %v7171 = vld [vmem:[%s7158 + $0x60] sm:$0xff]
        %v7172 = vld [vmem:[%s7158 + $0x68] sm:$0xff]
        %v7173 = vld [vmem:[%s7158 + $0x70] sm:$0xff]
        %v7174 = vld [vmem:[%s7158 + $0x78] sm:$0xff]
        %v7176 = vrot.slane %v7141, 1
        %7178 = vmatprep.subr.mxu0 0.0
        %7179 = vmatpush1.msra.mxu0 %v7174
        %7180 = vmatprep.subr.mxu0 0.0
        %7181 = vmatpush1.msra.mxu0 %v7173
        %7182 = vmatprep.subr.mxu0 0.0
        %7183 = vmatpush1.msra.mxu0 %v7172
        %7184 = vmatprep.subr.mxu0 0.0
        %7185 = vmatpush1.msra.mxu0 %v7171
        %7186 = vmatprep.subr.mxu0 0.0
        %7187 = vmatpush1.msra.mxu0 %v7170
        %7188 = vmatprep.subr.mxu0 0.0
        %7189 = vmatpush1.msra.mxu0 %v7169
        %7190 = vmatprep.subr.mxu0 0.0
        %7191 = vmatpush1.msra.mxu0 %v7168
        %7192 = vmatprep.subr.mxu0 0.0
        %7193 = vmatpush1.msra.mxu0 %v7167
        %7194 = vmatprep.subr.mxu0 0.0
        %7195 = vmatpush1.msra.mxu0 %v7166
        %7196 = vmatprep.subr.mxu0 0.0
        %7197 = vmatpush1.msra.mxu0 %v7165
        %7198 = vmatprep.subr.mxu0 0.0
        %7199 = vmatpush1.msra.mxu0 %v7164
        %7200 = vmatprep.subr.mxu0 0.0
        %7201 = vmatpush1.msra.mxu0 %v7163
        %7202 = vmatprep.subr.mxu0 0.0
        %7203 = vmatpush1.msra.mxu0 %v7162
        %7204 = vmatprep.subr.mxu0 0.0
        %7205 = vmatpush1.msra.mxu0 %v7161
        %7206 = vmatprep.subr.mxu0 0.0
        %7207 = vmatpush1.msra.mxu0 %v7160
        %7208 = vmatprep.subr.mxu0 0.0
        %7209 = vmatpush1.msra.mxu0 %v7159
        %7210 = vmatprep.subr.mxu0 0.0
        %7211 = vmatpush2.msra.mxu0 0.0
        %7212 = vmatprep.subr.mxu0 0.0
        %7213 = vmatpush2.msra.mxu0 0.0
        %7214 = vmatprep.subr.mxu0 0.0
        %7215 = vmatpush2.msra.mxu0 0.0
        %7216 = vmatprep.subr.mxu0 0.0
        %7217 = vmatpush2.msra.mxu0 0.0
        %7218 = vmatprep.subr.mxu0 0.0
        %7219 = vmatpush2.msra.mxu0 0.0
        %7220 = vmatprep.subr.mxu0 0.0
        %7221 = vmatpush2.msra.mxu0 0.0
        %7222 = vmatprep.subr.mxu0 0.0
        %7223 = vmatpush2.msra.mxu0 0.0
        %7224 = vmatprep.subr.mxu0 0.0
        %7225 = vmatpush2.msra.mxu0 0.0
        %7226 = vmatprep.subr.mxu0 0.0
        %7227 = vmatpush2.msra.mxu0 0.0
        %7228 = vmatprep.subr.mxu0 0.0
        %7229 = vmatpush2.msra.mxu0 0.0
        %7230 = vmatprep.subr.mxu0 0.0
        %7231 = vmatpush2.msra.mxu0 0.0
        %7232 = vmatprep.subr.mxu0 0.0
        %7233 = vmatpush2.msra.mxu0 0.0
        %7234 = vmatprep.subr.mxu0 0.0
        %7235 = vmatpush2.msra.mxu0 0.0
        %7236 = vmatprep.subr.mxu0 0.0
        %7237 = vmatpush2.msra.mxu0 0.0
        %7238 = vmatprep.subr.mxu0 0.0
        %7239 = vmatpush2.msra.mxu0 0.0
        %7240 = vmatprep.subr.mxu0 0.0
        %7241 = vmatpush2.msra.mxu0 0.0
        %7242 = vmatprep.mubr.f32.mxu0 0.0
        %7243 = vmatmul.mubr.f32.gmra.mxu0 %v7176
        %v7244 = vpop.f32.mrf.mxu0
        %v7245 = vadd.f32 0.0, %v7244
        %v7246 = vpop.f32.mrf.mxu0
        %7247 = vdwg.mxu0
        %7248 = vmatprep.subr.mxu0 0.0
        %7249 = vmatpush1.msra.mxu0 %v7157
        %7250 = vmatprep.subr.mxu0 0.0
        %7251 = vmatpush1.msra.mxu0 %v7156
        %7252 = vmatprep.subr.mxu0 0.0
        %7253 = vmatpush1.msra.mxu0 %v7155
        %7254 = vmatprep.subr.mxu0 0.0
        %7255 = vmatpush1.msra.mxu0 %v7154
        %7256 = vmatprep.subr.mxu0 0.0
        %7257 = vmatpush1.msra.mxu0 %v7153
        %7258 = vmatprep.subr.mxu0 0.0
        %7259 = vmatpush1.msra.mxu0 %v7152
        %7260 = vmatprep.subr.mxu0 0.0
        %7261 = vmatpush1.msra.mxu0 %v7151
        %7262 = vmatprep.subr.mxu0 0.0
        %7263 = vmatpush1.msra.mxu0 %v7150
        %7264 = vmatprep.subr.mxu0 0.0
        %7265 = vmatpush1.msra.mxu0 %v7149
        %7266 = vmatprep.subr.mxu0 0.0
        %7267 = vmatpush1.msra.mxu0 %v7148
        %7268 = vmatprep.subr.mxu0 0.0
        %7269 = vmatpush1.msra.mxu0 %v7147
        %7270 = vmatprep.subr.mxu0 0.0
        %7271 = vmatpush1.msra.mxu0 %v7146
        %7272 = vmatprep.subr.mxu0 0.0
        %7273 = vmatpush1.msra.mxu0 %v7145
        %7274 = vmatprep.subr.mxu0 0.0
        %7275 = vmatpush1.msra.mxu0 %v7144
        %7276 = vmatprep.subr.mxu0 0.0
        %7277 = vmatpush1.msra.mxu0 %v7143
        %7278 = vmatprep.subr.mxu0 0.0
        %7279 = vmatpush1.msra.mxu0 %v7142
        %7280 = vmatprep.subr.mxu0 0.0
        %7281 = vmatpush2.msra.mxu0 0.0
        %7282 = vmatprep.subr.mxu0 0.0
        %7283 = vmatpush2.msra.mxu0 0.0
        %7284 = vmatprep.subr.mxu0 0.0
        %7285 = vmatpush2.msra.mxu0 0.0
        %7286 = vmatprep.subr.mxu0 0.0
        %7287 = vmatpush2.msra.mxu0 0.0
        %7288 = vmatprep.subr.mxu0 0.0
        %7289 = vmatpush2.msra.mxu0 0.0
        %7290 = vmatprep.subr.mxu0 0.0
        %7291 = vmatpush2.msra.mxu0 0.0
        %7292 = vmatprep.subr.mxu0 0.0
        %7293 = vmatpush2.msra.mxu0 0.0
        %7294 = vmatprep.subr.mxu0 0.0
        %7295 = vmatpush2.msra.mxu0 0.0
        %7296 = vmatprep.subr.mxu0 0.0
        %7297 = vmatpush2.msra.mxu0 0.0
        %7298 = vmatprep.subr.mxu0 0.0
        %7299 = vmatpush2.msra.mxu0 0.0
        %7300 = vmatprep.subr.mxu0 0.0
        %7301 = vmatpush2.msra.mxu0 0.0
        %7302 = vmatprep.subr.mxu0 0.0
        %7303 = vmatpush2.msra.mxu0 0.0
        %7304 = vmatprep.subr.mxu0 0.0
        %7305 = vmatpush2.msra.mxu0 0.0
        %7306 = vmatprep.subr.mxu0 0.0
        %7307 = vmatpush2.msra.mxu0 0.0
        %7308 = vmatprep.subr.mxu0 0.0
        %7309 = vmatpush2.msra.mxu0 0.0
        %7310 = vmatprep.subr.mxu0 0.0
        %7311 = vmatpush2.msra.mxu0 0.0
        %7312 = vmatprep.mubr.f32.mxu0 0.0
        %7313 = vmatmul.mubr.f32.gmra.mxu0 %v7141
        %v7314 = vpop.f32.mrf.mxu0
        %v7315 = vadd.f32 %v7245, %v7314
        %v7316 = vpop.f32.mrf.mxu0
        %7317 = vdwg.mxu0
        %s7318 = scalar_lea.vmem %s5, 256
        %v7319 = vld [vmem:[%s7318] sm:$0xff]
        %v7320 = vld [vmem:[%s7318 + $0x8] sm:$0xff]
        %v7321 = vld [vmem:[%s7318 + $0x10] sm:$0xff]
        %v7322 = vld [vmem:[%s7318 + $0x18] sm:$0xff]
        %v7323 = vld [vmem:[%s7318 + $0x20] sm:$0xff]
        %v7324 = vld [vmem:[%s7318 + $0x28] sm:$0xff]
        %v7325 = vld [vmem:[%s7318 + $0x30] sm:$0xff]
        %v7326 = vld [vmem:[%s7318 + $0x38] sm:$0xff]
        %v7327 = vld [vmem:[%s7318 + $0x40] sm:$0xff]
        %v7328 = vld [vmem:[%s7318 + $0x48] sm:$0xff]
        %v7329 = vld [vmem:[%s7318 + $0x50] sm:$0xff]
        %v7330 = vld [vmem:[%s7318 + $0x58] sm:$0xff]
        %v7331 = vld [vmem:[%s7318 + $0x60] sm:$0xff]
        %v7332 = vld [vmem:[%s7318 + $0x68] sm:$0xff]
        %v7333 = vld [vmem:[%s7318 + $0x70] sm:$0xff]
        %v7334 = vld [vmem:[%s7318 + $0x78] sm:$0xff]
        %v7335 = vrot.slane %v7141, 2
        %7337 = vmatprep.subr.mxu0 0.0
        %7338 = vmatpush1.msra.mxu0 %v7334
        %7339 = vmatprep.subr.mxu0 0.0
        %7340 = vmatpush1.msra.mxu0 %v7333
        %7341 = vmatprep.subr.mxu0 0.0
        %7342 = vmatpush1.msra.mxu0 %v7332
        %7343 = vmatprep.subr.mxu0 0.0
        %7344 = vmatpush1.msra.mxu0 %v7331
        %7345 = vmatprep.subr.mxu0 0.0
        %7346 = vmatpush1.msra.mxu0 %v7330
        %7347 = vmatprep.subr.mxu0 0.0
        %7348 = vmatpush1.msra.mxu0 %v7329
        %7349 = vmatprep.subr.mxu0 0.0
        %7350 = vmatpush1.msra.mxu0 %v7328
        %7351 = vmatprep.subr.mxu0 0.0
        %7352 = vmatpush1.msra.mxu0 %v7327
        %7353 = vmatprep.subr.mxu0 0.0
        %7354 = vmatpush1.msra.mxu0 %v7326
        %7355 = vmatprep.subr.mxu0 0.0
        %7356 = vmatpush1.msra.mxu0 %v7325
        %7357 = vmatprep.subr.mxu0 0.0
        %7358 = vmatpush1.msra.mxu0 %v7324
        %7359 = vmatprep.subr.mxu0 0.0
        %7360 = vmatpush1.msra.mxu0 %v7323
        %7361 = vmatprep.subr.mxu0 0.0
        %7362 = vmatpush1.msra.mxu0 %v7322
        %7363 = vmatprep.subr.mxu0 0.0
        %7364 = vmatpush1.msra.mxu0 %v7321
        %7365 = vmatprep.subr.mxu0 0.0
        %7366 = vmatpush1.msra.mxu0 %v7320
        %7367 = vmatprep.subr.mxu0 0.0
        %7368 = vmatpush1.msra.mxu0 %v7319
        %7369 = vmatprep.subr.mxu0 0.0
        %7370 = vmatpush2.msra.mxu0 0.0
        %7371 = vmatprep.subr.mxu0 0.0
        %7372 = vmatpush2.msra.mxu0 0.0
        %7373 = vmatprep.subr.mxu0 0.0
        %7374 = vmatpush2.msra.mxu0 0.0
        %7375 = vmatprep.subr.mxu0 0.0
        %7376 = vmatpush2.msra.mxu0 0.0
        %7377 = vmatprep.subr.mxu0 0.0
        %7378 = vmatpush2.msra.mxu0 0.0
        %7379 = vmatprep.subr.mxu0 0.0
        %7380 = vmatpush2.msra.mxu0 0.0
        %7381 = vmatprep.subr.mxu0 0.0
        %7382 = vmatpush2.msra.mxu0 0.0
        %7383 = vmatprep.subr.mxu0 0.0
        %7384 = vmatpush2.msra.mxu0 0.0
        %7385 = vmatprep.subr.mxu0 0.0
        %7386 = vmatpush2.msra.mxu0 0.0
        %7387 = vmatprep.subr.mxu0 0.0
        %7388 = vmatpush2.msra.mxu0 0.0
        %7389 = vmatprep.subr.mxu0 0.0
        %7390 = vmatpush2.msra.mxu0 0.0
        %7391 = vmatprep.subr.mxu0 0.0
        %7392 = vmatpush2.msra.mxu0 0.0
        %7393 = vmatprep.subr.mxu0 0.0
        %7394 = vmatpush2.msra.mxu0 0.0
        %7395 = vmatprep.subr.mxu0 0.0
        %7396 = vmatpush2.msra.mxu0 0.0
        %7397 = vmatprep.subr.mxu0 0.0
        %7398 = vmatpush2.msra.mxu0 0.0
        %7399 = vmatprep.subr.mxu0 0.0
        %7400 = vmatpush2.msra.mxu0 0.0
        %7401 = vmatprep.mubr.f32.mxu0 0.0
        %7402 = vmatmul.mubr.f32.gmra.mxu0 %v7335
        %v7403 = vpop.f32.mrf.mxu0
        %v7404 = vadd.f32 0.0, %v7403
        %v7405 = vpop.f32.mrf.mxu0
        %7406 = vdwg.mxu0
        %v7407 = vadd.f32 %v7315, %v7404
        %s7408 = scalar_lea.vmem %s5, 384
        %v7409 = vld [vmem:[%s7408] sm:$0xff]
        %v7410 = vld [vmem:[%s7408 + $0x8] sm:$0xff]
        %v7411 = vld [vmem:[%s7408 + $0x10] sm:$0xff]
        %v7412 = vld [vmem:[%s7408 + $0x18] sm:$0xff]
        %v7413 = vld [vmem:[%s7408 + $0x20] sm:$0xff]
        %v7414 = vld [vmem:[%s7408 + $0x28] sm:$0xff]
        %v7415 = vld [vmem:[%s7408 + $0x30] sm:$0xff]
        %v7416 = vld [vmem:[%s7408 + $0x38] sm:$0xff]
        %v7417 = vld [vmem:[%s7408 + $0x40] sm:$0xff]
        %v7418 = vld [vmem:[%s7408 + $0x48] sm:$0xff]
        %v7419 = vld [vmem:[%s7408 + $0x50] sm:$0xff]
        %v7420 = vld [vmem:[%s7408 + $0x58] sm:$0xff]
        %v7421 = vld [vmem:[%s7408 + $0x60] sm:$0xff]
        %v7422 = vld [vmem:[%s7408 + $0x68] sm:$0xff]
        %v7423 = vld [vmem:[%s7408 + $0x70] sm:$0xff]
        %v7424 = vld [vmem:[%s7408 + $0x78] sm:$0xff]
        %v7425 = vrot.slane %v7141, 3
        %7427 = vmatprep.subr.mxu0 0.0
        %7428 = vmatpush1.msra.mxu0 %v7424
        %7429 = vmatprep.subr.mxu0 0.0
        %7430 = vmatpush1.msra.mxu0 %v7423
        %7431 = vmatprep.subr.mxu0 0.0
        %7432 = vmatpush1.msra.mxu0 %v7422
        %7433 = vmatprep.subr.mxu0 0.0
        %7434 = vmatpush1.msra.mxu0 %v7421
        %7435 = vmatprep.subr.mxu0 0.0
        %7436 = vmatpush1.msra.mxu0 %v7420
        %7437 = vmatprep.subr.mxu0 0.0
        %7438 = vmatpush1.msra.mxu0 %v7419
        %7439 = vmatprep.subr.mxu0 0.0
        %7440 = vmatpush1.msra.mxu0 %v7418
        %7441 = vmatprep.subr.mxu0 0.0
        %7442 = vmatpush1.msra.mxu0 %v7417
        %7443 = vmatprep.subr.mxu0 0.0
        %7444 = vmatpush1.msra.mxu0 %v7416
        %7445 = vmatprep.subr.mxu0 0.0
        %7446 = vmatpush1.msra.mxu0 %v7415
        %7447 = vmatprep.subr.mxu0 0.0
        %7448 = vmatpush1.msra.mxu0 %v7414
        %7449 = vmatprep.subr.mxu0 0.0
        %7450 = vmatpush1.msra.mxu0 %v7413
        %7451 = vmatprep.subr.mxu0 0.0
        %7452 = vmatpush1.msra.mxu0 %v7412
        %7453 = vmatprep.subr.mxu0 0.0
        %7454 = vmatpush1.msra.mxu0 %v7411
        %7455 = vmatprep.subr.mxu0 0.0
        %7456 = vmatpush1.msra.mxu0 %v7410
        %7457 = vmatprep.subr.mxu0 0.0
        %7458 = vmatpush1.msra.mxu0 %v7409
        %7459 = vmatprep.subr.mxu0 0.0
        %7460 = vmatpush2.msra.mxu0 0.0
        %7461 = vmatprep.subr.mxu0 0.0
        %7462 = vmatpush2.msra.mxu0 0.0
        %7463 = vmatprep.subr.mxu0 0.0
        %7464 = vmatpush2.msra.mxu0 0.0
        %7465 = vmatprep.subr.mxu0 0.0
        %7466 = vmatpush2.msra.mxu0 0.0
        %7467 = vmatprep.subr.mxu0 0.0
        %7468 = vmatpush2.msra.mxu0 0.0
        %7469 = vmatprep.subr.mxu0 0.0
        %7470 = vmatpush2.msra.mxu0 0.0
        %7471 = vmatprep.subr.mxu0 0.0
        %7472 = vmatpush2.msra.mxu0 0.0
        %7473 = vmatprep.subr.mxu0 0.0
        %7474 = vmatpush2.msra.mxu0 0.0
        %7475 = vmatprep.subr.mxu0 0.0
        %7476 = vmatpush2.msra.mxu0 0.0
        %7477 = vmatprep.subr.mxu0 0.0
        %7478 = vmatpush2.msra.mxu0 0.0
        %7479 = vmatprep.subr.mxu0 0.0
        %7480 = vmatpush2.msra.mxu0 0.0
        %7481 = vmatprep.subr.mxu0 0.0
        %7482 = vmatpush2.msra.mxu0 0.0
        %7483 = vmatprep.subr.mxu0 0.0
        %7484 = vmatpush2.msra.mxu0 0.0
        %7485 = vmatprep.subr.mxu0 0.0
        %7486 = vmatpush2.msra.mxu0 0.0
        %7487 = vmatprep.subr.mxu0 0.0
        %7488 = vmatpush2.msra.mxu0 0.0
        %7489 = vmatprep.subr.mxu0 0.0
        %7490 = vmatpush2.msra.mxu0 0.0
        %7491 = vmatprep.mubr.f32.mxu0 0.0
        %7492 = vmatmul.mubr.f32.gmra.mxu0 %v7425
        %v7493 = vpop.f32.mrf.mxu0
        %v7494 = vadd.f32 0.0, %v7493
        %v7495 = vpop.f32.mrf.mxu0
        %7496 = vdwg.mxu0
        %v7497 = vadd.f32 %v7407, %v7494
        %v7498 = vld [vmem:[%s6] sm:$0x1]
        %v7499 = vadd.f32 %v7497, %v7498
        %v7500 = vmax.f32 %v7499, 0.0
        %v7501 = vld [vmem:[%s7] sm:$0xff]
        %v7502 = vld [vmem:[%s7 + $0x8] sm:$0xff]
        %v7503 = vld [vmem:[%s7 + $0x10] sm:$0xff]
        %v7504 = vld [vmem:[%s7 + $0x18] sm:$0xff]
        %v7505 = vld [vmem:[%s7 + $0x20] sm:$0xff]
        %v7506 = vld [vmem:[%s7 + $0x28] sm:$0xff]
        %v7507 = vld [vmem:[%s7 + $0x30] sm:$0xff]
        %v7508 = vld [vmem:[%s7 + $0x38] sm:$0xff]
        %v7509 = vld [vmem:[%s8] sm:$0x1]
        %vm7510 = vcmask 523264
        %v7512 = vsel %vm7510, %v7500, 0
        %7514 = vmatprep.subr.mxu0 0.0
        %7515 = vmatpush1.msra.mxu0 0.0
        %7516 = vmatprep.subr.mxu0 0.0
        %7517 = vmatpush1.msra.mxu0 0.0
        %7518 = vmatprep.subr.mxu0 0.0
        %7519 = vmatpush1.msra.mxu0 0.0
        %7520 = vmatprep.subr.mxu0 0.0
        %7521 = vmatpush1.msra.mxu0 0.0
        %7522 = vmatprep.subr.mxu0 0.0
        %7523 = vmatpush1.msra.mxu0 0.0
        %7524 = vmatprep.subr.mxu0 0.0
        %7525 = vmatpush1.msra.mxu0 0.0
        %7526 = vmatprep.subr.mxu0 0.0
        %7527 = vmatpush1.msra.mxu0 0.0
        %7528 = vmatprep.subr.mxu0 0.0
        %7529 = vmatpush1.msra.mxu0 0.0
        %7530 = vmatprep.subr.mxu0 0.0
        %7531 = vmatpush1.msra.mxu0 %v7508
        %7532 = vmatprep.subr.mxu0 0.0
        %7533 = vmatpush1.msra.mxu0 %v7507
        %7534 = vmatprep.subr.mxu0 0.0
        %7535 = vmatpush1.msra.mxu0 %v7506
        %7536 = vmatprep.subr.mxu0 0.0
        %7537 = vmatpush1.msra.mxu0 %v7505
        %7538 = vmatprep.subr.mxu0 0.0
        %7539 = vmatpush1.msra.mxu0 %v7504
        %7540 = vmatprep.subr.mxu0 0.0
        %7541 = vmatpush1.msra.mxu0 %v7503
        %7542 = vmatprep.subr.mxu0 0.0
        %7543 = vmatpush1.msra.mxu0 %v7502
        %7544 = vmatprep.subr.mxu0 0.0
        %7545 = vmatpush1.msra.mxu0 %v7501
        %7546 = vmatprep.subr.mxu0 0.0
        %7547 = vmatpush2.msra.mxu0 0.0
        %7548 = vmatprep.subr.mxu0 0.0
        %7549 = vmatpush2.msra.mxu0 0.0
        %7550 = vmatprep.subr.mxu0 0.0
        %7551 = vmatpush2.msra.mxu0 0.0
        %7552 = vmatprep.subr.mxu0 0.0
        %7553 = vmatpush2.msra.mxu0 0.0
        %7554 = vmatprep.subr.mxu0 0.0
        %7555 = vmatpush2.msra.mxu0 0.0
        %7556 = vmatprep.subr.mxu0 0.0
        %7557 = vmatpush2.msra.mxu0 0.0
        %7558 = vmatprep.subr.mxu0 0.0
        %7559 = vmatpush2.msra.mxu0 0.0
        %7560 = vmatprep.subr.mxu0 0.0
        %7561 = vmatpush2.msra.mxu0 0.0
        %7562 = vmatprep.subr.mxu0 0.0
        %7563 = vmatpush2.msra.mxu0 0.0
        %7564 = vmatprep.subr.mxu0 0.0
        %7565 = vmatpush2.msra.mxu0 0.0
        %7566 = vmatprep.subr.mxu0 0.0
        %7567 = vmatpush2.msra.mxu0 0.0
        %7568 = vmatprep.subr.mxu0 0.0
        %7569 = vmatpush2.msra.mxu0 0.0
        %7570 = vmatprep.subr.mxu0 0.0
        %7571 = vmatpush2.msra.mxu0 0.0
        %7572 = vmatprep.subr.mxu0 0.0
        %7573 = vmatpush2.msra.mxu0 0.0
        %7574 = vmatprep.subr.mxu0 0.0
        %7575 = vmatpush2.msra.mxu0 0.0
        %7576 = vmatprep.subr.mxu0 0.0
        %7577 = vmatpush2.msra.mxu0 0.0
        %7578 = vmatprep.mubr.f32.mxu0 0.0
        %7579 = vmatmul.mubr.f32.gmra.mxu0 %v7512
        %v7580 = vpop.f32.mrf.mxu0
        %v7581 = vadd.f32 %v7509, %v7580
        %v7582 = vpop.f32.mrf.mxu0
        %7583 = vdwg.mxu0
        %vm7584 = vcmask 73728
        %v7585 = vsel %vm7584, %v7581, -inf
        %7586 = vmax.xlane.f32.xlu0 %v7585
        %v7587 = vpop.xlane.xlu0 %7586
        %v7588 = vsub.f32 %v7581, %v7587
        %v7589 = vmul.f32 %v7588, 1.442695
        %v7590 = vpow.pop %v7589
        %v7591 = vsel %vm7584, %v7590, 0.0
        %7592 = vadd.xlane.f32.xlu0 %v7591
        %v7593 = vpop.xlane.xlu0 %7592
        %v7594 = vlog2.pop %v7593
        %v7595 = vmul.f32 %v7594, 0.6931472
        %v7596 = vadd.f32 %v7587, %v7595
        %v7597 = vsub.f32 %v7581, %v7596
        %7598 = vst.msk [vmem:[%s339] sm:$0x1] %vm7584, %v7597
        %s7599 = sand.u32 %s226, 1
        %s7600 = scalar_lea.sflag [#allocation4], %s7599
        %s7601 = sand.u32 %s226, 1
        %s7602 = scalar_lea.vmem [#allocation5], %s7601
        // Predicated region
        $region61: #{net_forward.1} parent=55 // pred_check
          %p7603 = pneg %p236
        $region62: #{net_forward.1} parent=55 // pred_check_branch
          %7605 = sbr.rel (%p7603) target = $region64
        $region63: #{net_forward.1} parent=55 // pred_region
          %s7607 = ssub.s32 16, 16
          %7608 = vsyncadd %s7600, %s7607
          %s7609 = smul.addr %s24, 16
          %s7610 = scalar_lea.hbm %s9, %s7609
          %s7612 = sshll.u32 %s7602, 4
          %s7613 = int_to_ptr.vmem [resolvable:$true] %s7612
          %7615 = dma.vmem_to_hbm [thread:$0]  %s7613, 16, %s7610, %s7600
        $region64: #{net_forward.1} parent=55 // pred_fallthru
          _
      $region56: #{net_forward.1} parent=5 // pred_fallthru
        _
      %p7616 = scmp.le.s32.totalorder 2, %s19
      // Predicated region
      $region65: #{net_forward.1} parent=5 // pred_check
        %p7617 = pneg %p7616
      $region66: #{net_forward.1} parent=5 // pred_check_branch
        %7619 = sbr.rel (%p7617) target = $region68
      $region67: #{net_forward.1} parent=5 // pred_region
        %s7620 = ssub.s32 %s19, 2
        // Predicated region
        $region69: #{net_forward.1} parent=67 // pred_check
          %p7621 = pneg %p242
        $region70: #{net_forward.1} parent=67 // pred_check_branch
          %7623 = sbr.rel (%p7621) target = $region72
        $region71: #{net_forward.1} parent=67 // pred_region
          %s7624 = sand.u32 %s227, 1
          %s7625 = scalar_lea.sflag [#allocation4], %s7624
          %s7626 = sand.u32 %s227, 1
          %s7627 = scalar_lea.vmem [#allocation5], %s7626
          %7628 = dma.done %s7625, 16
        $region72: #{net_forward.1} parent=67 // pred_fallthru
          _
      $region68: #{net_forward.1} parent=5 // pred_fallthru
        _
    $region6: #{net_forward.1} parent=1 // loop_footer
      %s23 = sadd.s32 1, %s19
    $region7: #{net_forward.1} parent=1 // loop_footer_branch
      %18 = sbr.rel target = $region3
    $region8: #{net_forward.1} parent=1 // loop_exit
      _
    %7629 = vsyncpa [#allocation3], 1
    %s7630 = scalar_lea.sflag [#allocation3], 1
    %7631 = vsyncpa %s7630, 1
    %7632 = vsyncpa [#allocation4], 1
    %s7633 = scalar_lea.sflag [#allocation4], 1
    %7634 = vsyncpa %s7633, 1

</llo_original>
